<compile_context>
chip_gen: v7x
topology: tpu7x:2x2x1
jax: 0.10.0
libtpu: 0.0.40
codegen_flags: <defaults>
</compile_context>

<pallas_src>
import functools

import jax
import jax.numpy as jnp
from jax import lax
from jax.experimental import pallas as pl
from jax.experimental.pallas import tpu as pltpu

_HAS_BUFFERED = hasattr(pl, "Buffered")


# --------------------------------------------------------------------------------
# Hardware queries & small helpers (all failures fall back to safe defaults).
# --------------------------------------------------------------------------------
def _tpu_params():
    """(physical VMEM bytes, MXU M width, tensorcores per chip)."""
    vmem_phys, mxu_m, n_cores = 128 * 1024 * 1024, 256, 1
    kind = ""
    try:
        kind = jax.devices()[0].device_kind.lower()
    except Exception:
        pass
    if "v5" in kind and ("lite" in kind or "v5e" in kind):
        mxu_m = 128                      # v5e MXU is 128 wide
    if "v7" in kind:
        n_cores = 2                      # v7x: 2 TensorCores share the chip
        vmem_phys = 64 * 1024 * 1024     # and only 64 MiB VMEM per TC
    try:
        vmem_phys = int(pltpu.get_tpu_info().vmem_capacity_bytes)
    except Exception:
        pass
    return vmem_phys, mxu_m, n_cores


def _round_up(n, m):
    return -(-n // m) * m


def _vmem_tile_bytes(shape, itemsize):
    """Upper bound on the VMEM footprint of one block ((8,128) tile padding)."""
    shape = (1,) * max(0, 2 - len(shape)) + tuple(int(d) for d in shape)
    lead = 1
    for d in shape[:-2]:
        lead *= d
    return lead * _round_up(shape[-2], 8) * _round_up(shape[-1], 128) * itemsize


def _pick_batch_tile(batch, per_row_bytes, budget_bytes, *, mxu_m, n_cores, sublane=8):
    """Largest legal batch tile whose pipelined VMEM stays within `budget_bytes`.

    per_row_bytes already includes double-buffering of the x and out tiles. Large
    tiles are rounded to the MXU M width, small partial tiles to the 8-sublane rule,
    and on multi-core chips the tile is capped so the parallel grid has >= 2 steps.
    """
    max_rows = max(1, budget_bytes // max(per_row_bytes, 1))
    bt = min(batch, max_rows)
    if n_cores > 1 and batch >= 2 * sublane:
        bt = min(bt, _round_up(batch, 2) // 2)   # keep both v7x TensorCores busy
    if bt >= batch:
        return batch                              # one full block: no sublane rule
    if bt >= mxu_m:
        bt = (bt // mxu_m) * mxu_m                # fill the MXU M dimension
    elif bt >= sublane:
        bt = (bt // sublane) * sublane
    else:
        bt = sublane                              # minimum legal partial block
    return bt


def _invariant_spec(shape, single_buffer):
    """BlockSpec for a grid-invariant operand (same block every step)."""
    ndim = len(shape)
    index_map = lambda i, _n=ndim: (0,) * _n
    if single_buffer and _HAS_BUFFERED:
        # Single-buffer: the block never changes, so double-buffering only wastes VMEM.
        return pl.BlockSpec(shape, index_map, pipeline_mode=pl.Buffered(1))
    return pl.BlockSpec(shape, index_map)


def _try_configs(run_fn):
    """Try (single-buffered invariants, HIGHEST matmul precision) first and degrade
    gracefully if this jax / Mosaic stack rejects pl.Buffered(1) or HIGHEST."""
    singles = (True, False) if _HAS_BUFFERED else (False,)
    last_err = None
    for single in singles:
        for prec in (lax.Precision.HIGHEST, lax.Precision.DEFAULT):
            try:
                return run_fn(single, prec)
            except Exception as err:  # unsupported feature on this stack -> next config
                last_err = err
    raise last_err


# --------------------------------------------------------------------------------
# Kernels
# --------------------------------------------------------------------------------
def _fused_kernel(scal_ref, x_ref, wexp_ref, bexp_ref, useg_ref, expand_ref,
                  codeid_ref, out_ref, *, matmul_precision):
    """One grid step = bt batch rows; everything fused (small T*C regime)."""
    xf = x_ref[...]                                                    # (bt, T*C)

    # Linear(C->A) for all T positions in ONE MXU matmul via the block-diagonal
    # weight, then tanh (EUP).  All math stays f32 (v5e has no bf16 VPU/EUP path);
    # at this size the kernel is overhead/HBM-bound, so bf16 MXU inputs would not pay.
    v = jnp.tanh(
        jnp.dot(xf, wexp_ref[...], preferred_element_type=jnp.float32,
                precision=matmul_precision) + bexp_ref[...])           # (bt, T*A)

    # Linear(A->1) per time step as one segmented matmul.  u_bias omitted: softmax
    # is invariant to an additive constant, so it cannot change the output.
    logits = jnp.dot(v, useg_ref[...], preferred_element_type=jnp.float32,
                     precision=matmul_precision)                       # (bt, T)

    lens = scal_ref[:, 0:1]                                            # (bt, 1) int32
    tcode = scal_ref[:, 1:2]                                           # (bt, 1) int32

    T = logits.shape[-1]
    t_idx = lax.broadcasted_iota(jnp.int32, (1, T), 1)
    logits = jnp.where(t_idx < lens, logits, jnp.float32(-1e30))       # mask t >= lens[b]
    m = jnp.max(logits, axis=-1, keepdims=True)
    e = jnp.exp(logits - m)
    score = e / jnp.sum(e, axis=-1, keepdims=True)                     # (bt, T)

    # Broadcast each score over the C codes of its time step (exact 0/1 matmul),
    # then one-hot select of the target code in flat layout: (j mod C) == target[b].
    score_flat = jnp.dot(score, expand_ref[...], preferred_element_type=jnp.float32,
                         precision=matmul_precision)                   # (bt, T*C)
    onehot = (codeid_ref[...] == tcode).astype(jnp.float32)            # (bt, T*C)

    out_ref[...] = jnp.minimum(xf.astype(jnp.float32) + score_flat * onehot,
                               jnp.float32(1.0)).astype(out_ref.dtype)


def _attn_logits_kernel(x_ref, w_ref, b_ref, u_ref, out_ref, *, matmul_precision):
    """Fallback stage 1: attention logit for every (b, t) row of x viewed as (B*T, C)."""
    v = jnp.tanh(
        jnp.dot(x_ref[...], w_ref[...], preferred_element_type=jnp.float32,
                precision=matmul_precision) + b_ref[...])              # (rt, A)
    out_ref[...] = jnp.dot(v, u_ref[...], preferred_element_type=jnp.float32,
                           precision=matmul_precision)                 # (rt, 1)


def _softmax_scatter_kernel(scal_ref, logits_ref, x_ref, out_ref):
    """Fallback stage 2: masked softmax over T + scatter onto target code + clip."""
    x = x_ref[...]                                                     # (bt, T, C)
    logits = logits_ref[...]                                           # (bt, T)
    lens = scal_ref[:, 0:1]
    tcode = scal_ref[:, 1:2]

    T = logits.shape[-1]
    C = x.shape[-1]
    t_idx = lax.broadcasted_iota(jnp.int32, (1, T), 1)
    logits = jnp.where(t_idx < lens, logits, jnp.float32(-1e30))
    m = jnp.max(logits, axis=-1, keepdims=True)
    e = jnp.exp(logits - m)
    score = e / jnp.sum(e, axis=-1, keepdims=True)                     # (bt, T)

    c_idx = lax.broadcasted_iota(jnp.int32, (1, 1, C), 2)
    onehot = (c_idx == tcode[:, :, None]).astype(jnp.float32)          # (bt, 1, C)
    out_ref[...] = jnp.minimum(x.astype(jnp.float32) + score[:, :, None] * onehot,
                               jnp.float32(1.0)).astype(out_ref.dtype)


# --------------------------------------------------------------------------------
# Drivers
# --------------------------------------------------------------------------------
def _smooth_condition_fused(x, scal, w, b, u, vmem_phys, vmem_target, mxu_m, n_cores):
    """Small-T*C path: lane-dense (B, T*C) blocks + block-diagonal fused matmuls."""
    B, T, C = x.shape
    A = w.shape[1]
    TC, TA = T * C, T * A
    dtype = x.dtype
    itemsize = jnp.dtype(dtype).itemsize

    x_flat = x.reshape(B, TC)                                    # lane-dense I/O layout

    # Expanded (block-diagonal) attention parameters so the kernel needs no reshapes.
    eye_t = jnp.eye(T, dtype=dtype)
    w_exp = jnp.kron(eye_t, w.astype(dtype))                     # (T*C, T*A)
    b_exp = jnp.tile(jnp.reshape(b, (1, A)).astype(dtype), (1, T))   # (1, T*A)
    u_seg = jnp.kron(eye_t, jnp.reshape(u, (A, 1)).astype(dtype))    # (T*A, T)
    expand = jnp.kron(eye_t, jnp.ones((1, C), dtype))            # (T, T*C)
    code_ids = jnp.tile(jnp.arange(C, dtype=jnp.int32), T)[None, :]  # (1, T*C): j -> j % C

    invariants = (w_exp, b_exp, u_seg, expand, code_ids)
    inv_bytes = sum(_vmem_tile_bytes(a.shape, jnp.dtype(a.dtype).itemsize)
                    for a in invariants)

    # Per-batch-row pipelined VMEM: x tile + out tile (double-buffered) + scalar row.
    per_row = 2 * 2 * _round_up(TC, 128) * itemsize + 2 * 128 * 4

    def run(single, prec):
        inv_mult = 1 if (single and _HAS_BUFFERED) else 2
        budget = vmem_target - inv_mult * inv_bytes - (2 << 20)   # slack for scratch
        bt = _pick_batch_tile(B, per_row, budget, mxu_m=mxu_m, n_cores=n_cores)

        steps = -(-B // bt)
        b_pad = steps * bt
        if b_pad != B:
            x_in = jnp.pad(x_flat, ((0, b_pad - B), (0, 0)))
            scal_in = jnp.pad(scal, ((0, b_pad - B), (0, 0)))
        else:
            x_in, scal_in = x_flat, scal

        est = inv_mult * inv_bytes + bt * per_row + (4 << 20)
        vmem_limit = int(min(max(vmem_target, est), vmem_phys - (8 << 20)))

        out_flat = pl.pallas_call(
            functools.partial(_fused_kernel, matmul_precision=prec),
            out_shape=jax.ShapeDtypeStruct((b_pad, TC), dtype),
            grid_spec=pltpu.PrefetchScalarGridSpec(
                num_scalar_prefetch=0,
                grid=(steps,),
                in_specs=[
                    pl.BlockSpec((bt, 2), lambda i: (i, 0)),        # lens + target_code
                    pl.BlockSpec((bt, TC), lambda i: (i, 0)),       # x (flat, lane-dense)
                    _invariant_spec((TC, TA), single),              # block-diag W
                    _invariant_spec((1, TA), single),               # bias tiled over T
                    _invariant_spec((TA, T), single),               # segmented u
                    _invariant_spec((T, TC), single),               # time -> code expand
                    _invariant_spec((1, TC), single),               # code-id (j mod C)
                ],
                out_specs=pl.BlockSpec((bt, TC), lambda i: (i, 0)),
            ),
            compiler_params=pltpu.CompilerParams(
                dimension_semantics=("parallel",),
                vmem_limit_bytes=vmem_limit,
            ),
        )(scal_in, x_in, *invariants)
        return out_flat[:B].reshape(B, T, C)

    return _try_configs(run)


def _smooth_condition_tiled(x, scal, w, b, u, vmem_phys, vmem_target, mxu_m, n_cores):
    """Large-T*C fallback: keep W as (C, A).  Stage 1 computes the attention logit for
    every (b, t) row of x viewed as (B*T, C); stage 2 does the masked softmax over T,
    the scatter onto the target code and the clip on (bt, T, C) blocks.  x is read
    twice from HBM (once per stage) instead of carrying an O(T^2) block-diag weight."""
    B, T, C = x.shape
    A = w.shape[1]
    dtype = x.dtype
    itemsize = jnp.dtype(dtype).itemsize

    w2 = w.astype(dtype)
    b2 = jnp.reshape(b, (1, A)).astype(dtype)
    u2 = jnp.reshape(u, (A, 1)).astype(dtype)

    def run(single, prec):
        inv_mult = 1 if (single and _HAS_BUFFERED) else 2

        # ---- stage 1: logits over rows of x viewed as (B*T, C) ----
        rows = B * T
        x2 = x.reshape(rows, C)
        inv1 = (_vmem_tile_bytes((C, A), itemsize) + _vmem_tile_bytes((1, A), itemsize)
                + _vmem_tile_bytes((A, 1), itemsize))
        per_row1 = 2 * (_round_up(C, 128) * itemsize + 128 * 4)
        rt = _pick_batch_tile(rows, per_row1,
                              vmem_target - inv_mult * inv1 - (2 << 20),
                              mxu_m=mxu_m, n_cores=n_cores)
        steps1 = -(-rows // rt)
        rows_pad = steps1 * rt
        x2p = jnp.pad(x2, ((0, rows_pad - rows), (0, 0))) if rows_pad != rows else x2

        logits = pl.pallas_call(
            functools.partial(_attn_logits_kernel, matmul_precision=prec),
            out_shape=jax.ShapeDtypeStruct((rows_pad, 1), jnp.float32),
            grid_spec=pltpu.PrefetchScalarGridSpec(
                num_scalar_prefetch=0,
                grid=(steps1,),
                in_specs=[
                    pl.BlockSpec((rt, C), lambda i: (i, 0)),
                    _invariant_spec((C, A), single),
                    _invariant_spec((1, A), single),
                    _invariant_spec((A, 1), single),
                ],
                out_specs=pl.BlockSpec((rt, 1), lambda i: (i, 0)),
            ),
            compiler_params=pltpu.CompilerParams(
                dimension_semantics=("parallel",),
                vmem_limit_bytes=int(vmem_target),
            ),
        )(x2p, w2, b2, u2)
        logits = logits[:rows].reshape(B, T)

        # ---- stage 2: masked softmax over T, scatter at target code, clip ----
        per_row2 = (2 * 2 * _round_up(T, 8) * _round_up(C, 128) * itemsize
                    + 2 * _round_up(T, 128) * 4 + 2 * 128 * 4)
        bt = _pick_batch_tile(B, per_row2, vmem_target - (2 << 20),
                              mxu_m=mxu_m, n_cores=n_cores)
        steps2 = -(-B // bt)
        b_pad = steps2 * bt
        if b_pad != B:
            x_in = jnp.pad(x, ((0, b_pad - B), (0, 0), (0, 0)))
            scal_in = jnp.pad(scal, ((0, b_pad - B), (0, 0)))
            logits_in = jnp.pad(logits, ((0, b_pad - B), (0, 0)))
        else:
            x_in, scal_in, logits_in = x, scal, logits

        out = pl.pallas_call(
            _softmax_scatter_kernel,
            out_shape=jax.ShapeDtypeStruct((b_pad, T, C), dtype),
            grid_spec=pltpu.PrefetchScalarGridSpec(
                num_scalar_prefetch=0,
                grid=(steps2,),
                in_specs=[
                    pl.BlockSpec((bt, 2), lambda i: (i, 0)),
                    pl.BlockSpec((bt, T), lambda i: (i, 0)),
                    pl.BlockSpec((bt, T, C), lambda i: (i, 0, 0)),
                ],
                out_specs=pl.BlockSpec((bt, T, C), lambda i: (i, 0, 0)),
            ),
            compiler_params=pltpu.CompilerParams(
                dimension_semantics=("parallel",),
                vmem_limit_bytes=int(vmem_target),
            ),
        )(scal_in, logits_in, x_in)
        return out[:B]

    return _try_configs(run)


def smooth_condition(x, lens, target_codes, w, b, u, u_bias=None):
    """x: (B, T, C) f32; lens/target_codes: (B,) int; w: (C, A); b: (1, A); u: (A, 1).

    u_bias is accepted for API parity with the PyTorch module but unused (softmax is
    invariant to an additive constant, so it cannot change the output).
    """
    del u_bias
    B, T, C = x.shape
    A = w.shape[1]
    TC, TA = T * C, T * A
    itemsize = jnp.dtype(x.dtype).itemsize

    vmem_phys, mxu_m, n_cores = _tpu_params()
    # Generation-aware target: ~96 MiB on v5e/v6e (128 MiB physical), ~48 MiB on v7x.
    vmem_target = (vmem_phys // 4) * 3

    scal = jnp.stack([lens.astype(jnp.int32), target_codes.astype(jnp.int32)], axis=1)

    # Size guard for the block-diagonal ("kron") expansion: it carries O(T^2) bytes of
    # mostly-zero weights, so only use it while that stays a small slice of VMEM
    # (threshold scales with the chip, hence ~2x lower on v7x).
    kron_bytes = (_vmem_tile_bytes((TC, TA), itemsize)
                  + _vmem_tile_bytes((TA, T), itemsize)
                  + _vmem_tile_bytes((T, TC), itemsize))
    if kron_bytes <= vmem_target // 16:
        return _smooth_condition_fused(x, scal, w, b, u,
                                       vmem_phys, vmem_target, mxu_m, n_cores)
    return _smooth_condition_tiled(x, scal, w, b, u,
                                   vmem_phys, vmem_target, mxu_m, n_cores)


# --------------------------------------------------------------------------------
# Pure-JAX reference (mirrors the PyTorch forward, faithful f32 matmuls)
# --------------------------------------------------------------------------------
def reference(x, lens, target_codes, w, b, u, u_bias):
    hp = lax.Precision.HIGHEST
    v = jnp.tanh(jnp.einsum("btc,ca->bta", x, w, precision=hp) + b[0])
    weight = jnp.einsum("bta,ao->bto", v, u, precision=hp)[..., 0] + u_bias[0, 0]
    t_idx = jnp.arange(x.shape[1])
    mask = t_idx[None, :] < lens[:, None]
    weight = jnp.where(mask, weight, -jnp.inf)
    score = jax.nn.softmax(weight, axis=-1)
    onehot = jax.nn.one_hot(target_codes, x.shape[2], dtype=x.dtype)
    score_tensor = score[:, :, None] * onehot[:, None, :]
    return jnp.minimum(x + score_tensor, 1.0)


if __name__ == "__main__":
    B, T, C, A = 2, 8, 16, 32  # batch, seq_len, code_num, attention_dim

    key = jax.random.PRNGKey(0)
    kx, kw, kb, ku, kub, kl, kt = jax.random.split(key, 7)

    # Deterministic parameter init (PyTorch Linear-style uniform bounds).
    lim1 = 1.0 / (C ** 0.5)
    lim2 = 1.0 / (A ** 0.5)
    w = jax.random.uniform(kw, (C, A), jnp.float32, -lim1, lim1)
    b = jax.random.uniform(kb, (1, A), jnp.float32, -lim1, lim1)
    u = jax.random.uniform(ku, (A, 1), jnp.float32, -lim2, lim2)
    ub = jax.random.uniform(kub, (1, 1), jnp.float32, -lim2, lim2)

    x = jax.random.uniform(kx, (B, T, C), jnp.float32, 0.0, 1.0)
    lens = jax.random.randint(kl, (B,), 1, T + 1).astype(jnp.int32)
    target_codes = jax.random.randint(kt, (B,), 0, C).astype(jnp.int32)

    out = smooth_condition(x, lens, target_codes, w, b, u, ub)
    out = jax.block_until_ready(out)

    ref = reference(x, lens, target_codes, w, b, u, ub)
    assert out.shape == x.shape and out.dtype == x.dtype
    assert jnp.allclose(out, ref, atol=1e-5, rtol=1e-5), "mismatch vs reference"

    print("KERNEL_OK")
</pallas_src>

<mosaic_0001>
module attributes {stable_mosaic.version = 11 : i64} {
  func.func @_fused_kernel(%arg0: i32, %arg1: memref<2x2xi32, #tpu.memory_space<vmem>>, %arg2: memref<2x128xf32, #tpu.memory_space<vmem>>, %arg3: memref<128x256xf32, #tpu.memory_space<vmem>>, %arg4: memref<1x256xf32, #tpu.memory_space<vmem>>, %arg5: memref<256x8xf32, #tpu.memory_space<vmem>>, %arg6: memref<8x128xf32, #tpu.memory_space<vmem>>, %arg7: memref<1x128xi32, #tpu.memory_space<vmem>>, %arg8: memref<2x128xf32, #tpu.memory_space<vmem>>) attributes {dimension_semantics = [#tpu.dimension_semantics<parallel>], iteration_bounds = array<i64: 1>, scalar_prefetch = 0 : i64, scratch_operands = 0 : i64, tpu.core_type = #tpu.core_type<tc>, window_params = [{transform_indices = @transform_0, window_bounds = array<i64: 2, 2>}, {transform_indices = @transform_1, window_bounds = array<i64: 2, 128>}, {pipeline_mode = #tpu.pipeline_mode<synchronous>, transform_indices = @transform_2, window_bounds = array<i64: 128, 256>}, {pipeline_mode = #tpu.pipeline_mode<synchronous>, transform_indices = @transform_3, window_bounds = array<i64: 1, 256>}, {pipeline_mode = #tpu.pipeline_mode<synchronous>, transform_indices = @transform_4, window_bounds = array<i64: 256, 8>}, {pipeline_mode = #tpu.pipeline_mode<synchronous>, transform_indices = @transform_5, window_bounds = array<i64: 8, 128>}, {pipeline_mode = #tpu.pipeline_mode<synchronous>, transform_indices = @transform_6, window_bounds = array<i64: 1, 128>}, {transform_indices = @transform_7, window_bounds = array<i64: 2, 128>}]} {
    %c0 = arith.constant 0 : index
    %c0_0 = arith.constant 0 : index
    %0 = vector.load %arg2[%c0, %c0_0] : memref<2x128xf32, #tpu.memory_space<vmem>>, vector<2x128xf32>
    %c0_1 = arith.constant 0 : index
    %c0_2 = arith.constant 0 : index
    %1 = vector.load %arg3[%c0_1, %c0_2] : memref<128x256xf32, #tpu.memory_space<vmem>>, vector<128x256xf32>
    %cst = arith.constant dense<0.000000e+00> : vector<2x256xf32>
    %2 = tpu.matmul %0, %1, %cst {dimension_numbers = #tpu.dot_dimension_numbers<[1], [0], [0], [1], [0, 0, 1, 1], [], []>, precision = #tpu.contract_precision<fp32>} : vector<2x128xf32>, vector<128x256xf32>, vector<2x256xf32> -> vector<2x256xf32>
    %c0_3 = arith.constant 0 : index
    %c0_4 = arith.constant 0 : index
    %3 = vector.load %arg4[%c0_3, %c0_4] : memref<1x256xf32, #tpu.memory_space<vmem>>, vector<1x256xf32>
    %4 = vector.broadcast %3 : vector<1x256xf32> to vector<2x256xf32>
    %5 = arith.addf %2, %4 : vector<2x256xf32>
    %6 = math.tanh %5 : vector<2x256xf32>
    %c0_5 = arith.constant 0 : index
    %c0_6 = arith.constant 0 : index
    %7 = vector.load %arg5[%c0_5, %c0_6] : memref<256x8xf32, #tpu.memory_space<vmem>>, vector<256x8xf32>
    %cst_7 = arith.constant dense<0.000000e+00> : vector<2x8xf32>
    %8 = tpu.matmul %6, %7, %cst_7 {dimension_numbers = #tpu.dot_dimension_numbers<[1], [0], [0], [1], [0, 0, 1, 1], [], []>, precision = #tpu.contract_precision<fp32>} : vector<2x256xf32>, vector<256x8xf32>, vector<2x8xf32> -> vector<2x8xf32>
    %c0_8 = arith.constant 0 : index
    %c0_9 = arith.constant 0 : index
    %9 = vector.load %arg1[%c0_8, %c0_9] : memref<2x2xi32, #tpu.memory_space<vmem>>, vector<2x1xi32>
    %c0_10 = arith.constant 0 : index
    %c1 = arith.constant 1 : index
    %10 = vector.load %arg1[%c0_10, %c1] : memref<2x2xi32, #tpu.memory_space<vmem>>, vector<2x1xi32>
    %11 = tpu.iota {dimensions = array<i32: 1>} : vector<1x8xi32>
    %12 = vector.broadcast %11 : vector<1x8xi32> to vector<2x8xi32>
    %13 = vector.broadcast %9 : vector<2x1xi32> to vector<2x8xi32>
    %14 = arith.cmpi slt, %12, %13 : vector<2x8xi32>
    %cst_11 = arith.constant -1.000000e+30 : f32
    %15 = vector.broadcast %cst_11 : f32 to vector<2x8xf32>
    %16 = arith.select %14, %8, %15 : vector<2x8xi1>, vector<2x8xf32>
    %cst_12 = arith.constant dense<0xFF800000> : vector<2xf32>
    %17 = vector.multi_reduction <maximumf>, %16, %cst_12 [1] : vector<2x8xf32> to vector<2xf32>
    %18 = vector.shape_cast %17 : vector<2xf32> to vector<2x1xf32>
    %19 = vector.broadcast %18 : vector<2x1xf32> to vector<2x8xf32>
    %20 = arith.subf %16, %19 : vector<2x8xf32>
    %21 = math.exp %20 : vector<2x8xf32>
    %cst_13 = arith.constant dense<0.000000e+00> : vector<2xf32>
    %22 = vector.multi_reduction <add>, %21, %cst_13 [1] : vector<2x8xf32> to vector<2xf32>
    %23 = vector.shape_cast %22 : vector<2xf32> to vector<2x1xf32>
    %24 = vector.broadcast %23 : vector<2x1xf32> to vector<2x8xf32>
    %25 = arith.divf %21, %24 : vector<2x8xf32>
    %c0_14 = arith.constant 0 : index
    %c0_15 = arith.constant 0 : index
    %26 = vector.load %arg6[%c0_14, %c0_15] : memref<8x128xf32, #tpu.memory_space<vmem>>, vector<8x128xf32>
    %cst_16 = arith.constant dense<0.000000e+00> : vector<2x128xf32>
    %27 = tpu.matmul %25, %26, %cst_16 {dimension_numbers = #tpu.dot_dimension_numbers<[1], [0], [0], [1], [0, 0, 1, 1], [], []>, precision = #tpu.contract_precision<fp32>} : vector<2x8xf32>, vector<8x128xf32>, vector<2x128xf32> -> vector<2x128xf32>
    %c0_17 = arith.constant 0 : index
    %c0_18 = arith.constant 0 : index
    %28 = vector.load %arg7[%c0_17, %c0_18] : memref<1x128xi32, #tpu.memory_space<vmem>>, vector<1x128xi32>
    %29 = vector.broadcast %28 : vector<1x128xi32> to vector<2x128xi32>
    %30 = vector.broadcast %10 : vector<2x1xi32> to vector<2x128xi32>
    %31 = arith.cmpi eq, %29, %30 : vector<2x128xi32>
    %32 = arith.extui %31 : vector<2x128xi1> to vector<2x128xi32>
    %33 = arith.sitofp %32 : vector<2x128xi32> to vector<2x128xf32>
    %34 = arith.mulf %27, %33 : vector<2x128xf32>
    %35 = arith.addf %0, %34 : vector<2x128xf32>
    %cst_19 = arith.constant 1.000000e+00 : f32
    %36 = vector.broadcast %cst_19 : f32 to vector<2x128xf32>
    %37 = arith.minimumf %35, %36 : vector<2x128xf32>
    %c0_20 = arith.constant 0 : index
    %c0_21 = arith.constant 0 : index
    %38 = vector.load %arg8[%c0_20, %c0_21] : memref<2x128xf32, #tpu.memory_space<vmem>>, vector<2x128xf32>
    tpu.vector_store %arg8[%c0_20, %c0_21], %37 {strides = array<i32>} : memref<2x128xf32, #tpu.memory_space<vmem>>, vector<2x128xf32>,
    return
  }
  func.func @transform_0(%arg0: i32) -> (i32, i32) {
    %c0_i32 = arith.constant 0 : i32
    %c0_i32_0 = arith.constant 0 : i32
    return %arg0, %c0_i32 : i32, i32
  }
  func.func @transform_1(%arg0: i32) -> (i32, i32) {
    %c0_i32 = arith.constant 0 : i32
    %c0_i32_0 = arith.constant 0 : i32
    return %arg0, %c0_i32 : i32, i32
  }
  func.func @transform_2(%arg0: i32) -> (i32, i32) {
    %c0_i32 = arith.constant 0 : i32
    %c0_i32_0 = arith.constant 0 : i32
    %c0_i32_1 = arith.constant 0 : i32
    return %c0_i32, %c0_i32_0 : i32, i32
  }
  func.func @transform_3(%arg0: i32) -> (i32, i32) {
    %c0_i32 = arith.constant 0 : i32
    %c0_i32_0 = arith.constant 0 : i32
    %c0_i32_1 = arith.constant 0 : i32
    return %c0_i32, %c0_i32_0 : i32, i32
  }
  func.func @transform_4(%arg0: i32) -> (i32, i32) {
    %c0_i32 = arith.constant 0 : i32
    %c0_i32_0 = arith.constant 0 : i32
    %c0_i32_1 = arith.constant 0 : i32
    return %c0_i32, %c0_i32_0 : i32, i32
  }
  func.func @transform_5(%arg0: i32) -> (i32, i32) {
    %c0_i32 = arith.constant 0 : i32
    %c0_i32_0 = arith.constant 0 : i32
    %c0_i32_1 = arith.constant 0 : i32
    return %c0_i32, %c0_i32_0 : i32, i32
  }
  func.func @transform_6(%arg0: i32) -> (i32, i32) {
    %c0_i32 = arith.constant 0 : i32
    %c0_i32_0 = arith.constant 0 : i32
    %c0_i32_1 = arith.constant 0 : i32
    return %c0_i32, %c0_i32_0 : i32, i32
  }
  func.func @transform_7(%arg0: i32) -> (i32, i32) {
    %c0_i32 = arith.constant 0 : i32
    %c0_i32_0 = arith.constant 0 : i32
    return %arg0, %c0_i32 : i32, i32
  }
}

module attributes {stable_mosaic.version = 11 : i64} {
  func.func @_fused_kernel(%arg0: i32, %arg1: memref<2x2xi32, #tpu.memory_space<vmem>>, %arg2: memref<2x128xf32, #tpu.memory_space<vmem>>, %arg3: memref<128x256xf32, #tpu.memory_space<vmem>>, %arg4: memref<1x256xf32, #tpu.memory_space<vmem>>, %arg5: memref<256x8xf32, #tpu.memory_space<vmem>>, %arg6: memref<8x128xf32, #tpu.memory_space<vmem>>, %arg7: memref<1x128xi32, #tpu.memory_space<vmem>>, %arg8: memref<2x128xf32, #tpu.memory_space<vmem>>) attributes {dimension_semantics = [#tpu.dimension_semantics<parallel>], iteration_bounds = array<i64: 1>, scalar_prefetch = 0 : i64, scratch_operands = 0 : i64, tpu.core_type = #tpu.core_type<tc>, window_params = [{transform_indices = @transform_0, window_bounds = array<i64: 2, 2>}, {transform_indices = @transform_1, window_bounds = array<i64: 2, 128>}, {pipeline_mode = #tpu.pipeline_mode<synchronous>, transform_indices = @transform_2, window_bounds = array<i64: 128, 256>}, {pipeline_mode = #tpu.pipeline_mode<synchronous>, transform_indices = @transform_3, window_bounds = array<i64: 1, 256>}, {pipeline_mode = #tpu.pipeline_mode<synchronous>, transform_indices = @transform_4, window_bounds = array<i64: 256, 8>}, {pipeline_mode = #tpu.pipeline_mode<synchronous>, transform_indices = @transform_5, window_bounds = array<i64: 8, 128>}, {pipeline_mode = #tpu.pipeline_mode<synchronous>, transform_indices = @transform_6, window_bounds = array<i64: 1, 128>}, {transform_indices = @transform_7, window_bounds = array<i64: 2, 128>}]} {
    %c0 = arith.constant 0 : index
    %c0_0 = arith.constant 0 : index
    %0 = vector.load %arg2[%c0, %c0_0] : memref<2x128xf32, #tpu.memory_space<vmem>>, vector<2x128xf32>
    %c0_1 = arith.constant 0 : index
    %c0_2 = arith.constant 0 : index
    %1 = vector.load %arg3[%c0_1, %c0_2] : memref<128x256xf32, #tpu.memory_space<vmem>>, vector<128x256xf32>
    %cst = arith.constant dense<0.000000e+00> : vector<2x256xf32>
    %2 = tpu.matmul %0, %1, %cst {dimension_numbers = #tpu.dot_dimension_numbers<[1], [0], [0], [1], [0, 0, 1, 1], [], []>} : vector<2x128xf32>, vector<128x256xf32>, vector<2x256xf32> -> vector<2x256xf32>
    %c0_3 = arith.constant 0 : index
    %c0_4 = arith.constant 0 : index
    %3 = vector.load %arg4[%c0_3, %c0_4] : memref<1x256xf32, #tpu.memory_space<vmem>>, vector<1x256xf32>
    %4 = vector.broadcast %3 : vector<1x256xf32> to vector<2x256xf32>
    %5 = arith.addf %2, %4 : vector<2x256xf32>
    %6 = math.tanh %5 : vector<2x256xf32>
    %c0_5 = arith.constant 0 : index
    %c0_6 = arith.constant 0 : index
    %7 = vector.load %arg5[%c0_5, %c0_6] : memref<256x8xf32, #tpu.memory_space<vmem>>, vector<256x8xf32>
    %cst_7 = arith.constant dense<0.000000e+00> : vector<2x8xf32>
    %8 = tpu.matmul %6, %7, %cst_7 {dimension_numbers = #tpu.dot_dimension_numbers<[1], [0], [0], [1], [0, 0, 1, 1], [], []>} : vector<2x256xf32>, vector<256x8xf32>, vector<2x8xf32> -> vector<2x8xf32>
    %c0_8 = arith.constant 0 : index
    %c0_9 = arith.constant 0 : index
    %9 = vector.load %arg1[%c0_8, %c0_9] : memref<2x2xi32, #tpu.memory_space<vmem>>, vector<2x1xi32>
    %c0_10 = arith.constant 0 : index
    %c1 = arith.constant 1 : index
    %10 = vector.load %arg1[%c0_10, %c1] : memref<2x2xi32, #tpu.memory_space<vmem>>, vector<2x1xi32>
    %11 = tpu.iota {dimensions = array<i32: 1>} : vector<1x8xi32>
    %12 = vector.broadcast %11 : vector<1x8xi32> to vector<2x8xi32>
    %13 = vector.broadcast %9 : vector<2x1xi32> to vector<2x8xi32>
    %14 = arith.cmpi slt, %12, %13 : vector<2x8xi32>
    %cst_11 = arith.constant -1.000000e+30 : f32
    %15 = vector.broadcast %cst_11 : f32 to vector<2x8xf32>
    %16 = arith.select %14, %8, %15 : vector<2x8xi1>, vector<2x8xf32>
    %cst_12 = arith.constant dense<0xFF800000> : vector<2xf32>
    %17 = vector.multi_reduction <maximumf>, %16, %cst_12 [1] : vector<2x8xf32> to vector<2xf32>
    %18 = vector.shape_cast %17 : vector<2xf32> to vector<2x1xf32>
    %19 = vector.broadcast %18 : vector<2x1xf32> to vector<2x8xf32>
    %20 = arith.subf %16, %19 : vector<2x8xf32>
    %21 = math.exp %20 : vector<2x8xf32>
    %cst_13 = arith.constant dense<0.000000e+00> : vector<2xf32>
    %22 = vector.multi_reduction <add>, %21, %cst_13 [1] : vector<2x8xf32> to vector<2xf32>
    %23 = vector.shape_cast %22 : vector<2xf32> to vector<2x1xf32>
    %24 = vector.broadcast %23 : vector<2x1xf32> to vector<2x8xf32>
    %25 = arith.divf %21, %24 : vector<2x8xf32>
    %c0_14 = arith.constant 0 : index
    %c0_15 = arith.constant 0 : index
    %26 = vector.load %arg6[%c0_14, %c0_15] : memref<8x128xf32, #tpu.memory_space<vmem>>, vector<8x128xf32>
    %cst_16 = arith.constant dense<0.000000e+00> : vector<2x128xf32>
    %27 = tpu.matmul %25, %26, %cst_16 {dimension_numbers = #tpu.dot_dimension_numbers<[1], [0], [0], [1], [0, 0, 1, 1], [], []>} : vector<2x8xf32>, vector<8x128xf32>, vector<2x128xf32> -> vector<2x128xf32>
    %c0_17 = arith.constant 0 : index
    %c0_18 = arith.constant 0 : index
    %28 = vector.load %arg7[%c0_17, %c0_18] : memref<1x128xi32, #tpu.memory_space<vmem>>, vector<1x128xi32>
    %29 = vector.broadcast %28 : vector<1x128xi32> to vector<2x128xi32>
    %30 = vector.broadcast %10 : vector<2x1xi32> to vector<2x128xi32>
    %31 = arith.cmpi eq, %29, %30 : vector<2x128xi32>
    %32 = arith.extui %31 : vector<2x128xi1> to vector<2x128xi32>
    %33 = arith.sitofp %32 : vector<2x128xi32> to vector<2x128xf32>
    %34 = arith.mulf %27, %33 : vector<2x128xf32>
    %35 = arith.addf %0, %34 : vector<2x128xf32>
    %cst_19 = arith.constant 1.000000e+00 : f32
    %36 = vector.broadcast %cst_19 : f32 to vector<2x128xf32>
    %37 = arith.minimumf %35, %36 : vector<2x128xf32>
    %c0_20 = arith.constant 0 : index
    %c0_21 = arith.constant 0 : index
    %38 = vector.load %arg8[%c0_20, %c0_21] : memref<2x128xf32, #tpu.memory_space<vmem>>, vector<2x128xf32>
    tpu.vector_store %arg8[%c0_20, %c0_21], %37 {strides = array<i32>} : memref<2x128xf32, #tpu.memory_space<vmem>>, vector<2x128xf32>,
    return
  }
  func.func @transform_0(%arg0: i32) -> (i32, i32) {
    %c0_i32 = arith.constant 0 : i32
    %c0_i32_0 = arith.constant 0 : i32
    return %arg0, %c0_i32 : i32, i32
  }
  func.func @transform_1(%arg0: i32) -> (i32, i32) {
    %c0_i32 = arith.constant 0 : i32
    %c0_i32_0 = arith.constant 0 : i32
    return %arg0, %c0_i32 : i32, i32
  }
  func.func @transform_2(%arg0: i32) -> (i32, i32) {
    %c0_i32 = arith.constant 0 : i32
    %c0_i32_0 = arith.constant 0 : i32
    %c0_i32_1 = arith.constant 0 : i32
    return %c0_i32, %c0_i32_0 : i32, i32
  }
  func.func @transform_3(%arg0: i32) -> (i32, i32) {
    %c0_i32 = arith.constant 0 : i32
    %c0_i32_0 = arith.constant 0 : i32
    %c0_i32_1 = arith.constant 0 : i32
    return %c0_i32, %c0_i32_0 : i32, i32
  }
  func.func @transform_4(%arg0: i32) -> (i32, i32) {
    %c0_i32 = arith.constant 0 : i32
    %c0_i32_0 = arith.constant 0 : i32
    %c0_i32_1 = arith.constant 0 : i32
    return %c0_i32, %c0_i32_0 : i32, i32
  }
  func.func @transform_5(%arg0: i32) -> (i32, i32) {
    %c0_i32 = arith.constant 0 : i32
    %c0_i32_0 = arith.constant 0 : i32
    %c0_i32_1 = arith.constant 0 : i32
    return %c0_i32, %c0_i32_0 : i32, i32
  }
  func.func @transform_6(%arg0: i32) -> (i32, i32) {
    %c0_i32 = arith.constant 0 : i32
    %c0_i32_0 = arith.constant 0 : i32
    %c0_i32_1 = arith.constant 0 : i32
    return %c0_i32, %c0_i32_0 : i32, i32
  }
  func.func @transform_7(%arg0: i32) -> (i32, i32) {
    %c0_i32 = arith.constant 0 : i32
    %c0_i32_0 = arith.constant 0 : i32
    return %arg0, %c0_i32 : i32, i32
  }
}

module attributes {stable_mosaic.version = 11 : i64} {
  func.func @_fused_kernel(%arg0: i32, %arg1: memref<2x2xi32, #tpu.memory_space<vmem>>, %arg2: memref<2x128xf32, #tpu.memory_space<vmem>>, %arg3: memref<128x256xf32, #tpu.memory_space<vmem>>, %arg4: memref<1x256xf32, #tpu.memory_space<vmem>>, %arg5: memref<256x8xf32, #tpu.memory_space<vmem>>, %arg6: memref<8x128xf32, #tpu.memory_space<vmem>>, %arg7: memref<1x128xi32, #tpu.memory_space<vmem>>, %arg8: memref<2x128xf32, #tpu.memory_space<vmem>>) attributes {dimension_semantics = [#tpu.dimension_semantics<parallel>], iteration_bounds = array<i64: 1>, scalar_prefetch = 0 : i64, scratch_operands = 0 : i64, tpu.core_type = #tpu.core_type<tc>, window_params = [{transform_indices = @transform_0, window_bounds = array<i64: 2, 2>}, {transform_indices = @transform_1, window_bounds = array<i64: 2, 128>}, {pipeline_mode = #tpu.pipeline_mode<synchronous>, transform_indices = @transform_2, window_bounds = array<i64: 128, 256>}, {pipeline_mode = #tpu.pipeline_mode<synchronous>, transform_indices = @transform_3, window_bounds = array<i64: 1, 256>}, {pipeline_mode = #tpu.pipeline_mode<synchronous>, transform_indices = @transform_4, window_bounds = array<i64: 256, 8>}, {pipeline_mode = #tpu.pipeline_mode<synchronous>, transform_indices = @transform_5, window_bounds = array<i64: 8, 128>}, {pipeline_mode = #tpu.pipeline_mode<synchronous>, transform_indices = @transform_6, window_bounds = array<i64: 1, 128>}, {transform_indices = @transform_7, window_bounds = array<i64: 2, 128>}]} {
    %c0 = arith.constant 0 : index
    %c0_0 = arith.constant 0 : index
    %0 = vector.load %arg2[%c0, %c0_0] : memref<2x128xf32, #tpu.memory_space<vmem>>, vector<2x128xf32>
    %c0_1 = arith.constant 0 : index
    %c0_2 = arith.constant 0 : index
    %1 = vector.load %arg3[%c0_1, %c0_2] : memref<128x256xf32, #tpu.memory_space<vmem>>, vector<128x256xf32>
    %cst = arith.constant dense<0.000000e+00> : vector<2x256xf32>
    %2 = tpu.matmul %0, %1, %cst {dimension_numbers = #tpu.dot_dimension_numbers<[1], [0], [0], [1], [0, 0, 1, 1], [], []>, precision = #tpu.contract_precision<fp32>} : vector<2x128xf32>, vector<128x256xf32>, vector<2x256xf32> -> vector<2x256xf32>
    %c0_3 = arith.constant 0 : index
    %c0_4 = arith.constant 0 : index
    %3 = vector.load %arg4[%c0_3, %c0_4] : memref<1x256xf32, #tpu.memory_space<vmem>>, vector<1x256xf32>
    %4 = vector.broadcast %3 : vector<1x256xf32> to vector<2x256xf32>
    %5 = arith.addf %2, %4 : vector<2x256xf32>
    %6 = math.tanh %5 : vector<2x256xf32>
    %c0_5 = arith.constant 0 : index
    %c0_6 = arith.constant 0 : index
    %7 = vector.load %arg5[%c0_5, %c0_6] : memref<256x8xf32, #tpu.memory_space<vmem>>, vector<256x8xf32>
    %cst_7 = arith.constant dense<0.000000e+00> : vector<2x8xf32>
    %8 = tpu.matmul %6, %7, %cst_7 {dimension_numbers = #tpu.dot_dimension_numbers<[1], [0], [0], [1], [0, 0, 1, 1], [], []>, precision = #tpu.contract_precision<fp32>} : vector<2x256xf32>, vector<256x8xf32>, vector<2x8xf32> -> vector<2x8xf32>
    %c0_8 = arith.constant 0 : index
    %c0_9 = arith.constant 0 : index
    %9 = vector.load %arg1[%c0_8, %c0_9] : memref<2x2xi32, #tpu.memory_space<vmem>>, vector<2x1xi32>
    %c0_10 = arith.constant 0 : index
    %c1 = arith.constant 1 : index
    %10 = vector.load %arg1[%c0_10, %c1] : memref<2x2xi32, #tpu.memory_space<vmem>>, vector<2x1xi32>
    %11 = tpu.iota {dimensions = array<i32: 1>} : vector<1x8xi32>
    %12 = vector.broadcast %11 : vector<1x8xi32> to vector<2x8xi32>
    %13 = vector.broadcast %9 : vector<2x1xi32> to vector<2x8xi32>
    %14 = arith.cmpi slt, %12, %13 : vector<2x8xi32>
    %cst_11 = arith.constant -1.000000e+30 : f32
    %15 = vector.broadcast %cst_11 : f32 to vector<2x8xf32>
    %16 = arith.select %14, %8, %15 : vector<2x8xi1>, vector<2x8xf32>
    %cst_12 = arith.constant dense<0xFF800000> : vector<2xf32>
    %17 = vector.multi_reduction <maximumf>, %16, %cst_12 [1] : vector<2x8xf32> to vector<2xf32>
    %18 = vector.shape_cast %17 : vector<2xf32> to vector<2x1xf32>
    %19 = vector.broadcast %18 : vector<2x1xf32> to vector<2x8xf32>
    %20 = arith.subf %16, %19 : vector<2x8xf32>
    %21 = math.exp %20 : vector<2x8xf32>
    %cst_13 = arith.constant dense<0.000000e+00> : vector<2xf32>
    %22 = vector.multi_reduction <add>, %21, %cst_13 [1] : vector<2x8xf32> to vector<2xf32>
    %23 = vector.shape_cast %22 : vector<2xf32> to vector<2x1xf32>
    %24 = vector.broadcast %23 : vector<2x1xf32> to vector<2x8xf32>
    %25 = arith.divf %21, %24 : vector<2x8xf32>
    %c0_14 = arith.constant 0 : index
    %c0_15 = arith.constant 0 : index
    %26 = vector.load %arg6[%c0_14, %c0_15] : memref<8x128xf32, #tpu.memory_space<vmem>>, vector<8x128xf32>
    %cst_16 = arith.constant dense<0.000000e+00> : vector<2x128xf32>
    %27 = tpu.matmul %25, %26, %cst_16 {dimension_numbers = #tpu.dot_dimension_numbers<[1], [0], [0], [1], [0, 0, 1, 1], [], []>, precision = #tpu.contract_precision<fp32>} : vector<2x8xf32>, vector<8x128xf32>, vector<2x128xf32> -> vector<2x128xf32>
    %c0_17 = arith.constant 0 : index
    %c0_18 = arith.constant 0 : index
    %28 = vector.load %arg7[%c0_17, %c0_18] : memref<1x128xi32, #tpu.memory_space<vmem>>, vector<1x128xi32>
    %29 = vector.broadcast %28 : vector<1x128xi32> to vector<2x128xi32>
    %30 = vector.broadcast %10 : vector<2x1xi32> to vector<2x128xi32>
    %31 = arith.cmpi eq, %29, %30 : vector<2x128xi32>
    %32 = arith.extui %31 : vector<2x128xi1> to vector<2x128xi32>
    %33 = arith.sitofp %32 : vector<2x128xi32> to vector<2x128xf32>
    %34 = arith.mulf %27, %33 : vector<2x128xf32>
    %35 = arith.addf %0, %34 : vector<2x128xf32>
    %cst_19 = arith.constant 1.000000e+00 : f32
    %36 = vector.broadcast %cst_19 : f32 to vector<2x128xf32>
    %37 = arith.minimumf %35, %36 : vector<2x128xf32>
    %c0_20 = arith.constant 0 : index
    %c0_21 = arith.constant 0 : index
    %38 = vector.load %arg8[%c0_20, %c0_21] : memref<2x128xf32, #tpu.memory_space<vmem>>, vector<2x128xf32>
    tpu.vector_store %arg8[%c0_20, %c0_21], %37 {strides = array<i32>} : memref<2x128xf32, #tpu.memory_space<vmem>>, vector<2x128xf32>,
    return
  }
  func.func @transform_0(%arg0: i32) -> (i32, i32) {
    %c0_i32 = arith.constant 0 : i32
    %c0_i32_0 = arith.constant 0 : i32
    return %arg0, %c0_i32 : i32, i32
  }
  func.func @transform_1(%arg0: i32) -> (i32, i32) {
    %c0_i32 = arith.constant 0 : i32
    %c0_i32_0 = arith.constant 0 : i32
    return %arg0, %c0_i32 : i32, i32
  }
  func.func @transform_2(%arg0: i32) -> (i32, i32) {
    %c0_i32 = arith.constant 0 : i32
    %c0_i32_0 = arith.constant 0 : i32
    %c0_i32_1 = arith.constant 0 : i32
    return %c0_i32, %c0_i32_0 : i32, i32
  }
  func.func @transform_3(%arg0: i32) -> (i32, i32) {
    %c0_i32 = arith.constant 0 : i32
    %c0_i32_0 = arith.constant 0 : i32
    %c0_i32_1 = arith.constant 0 : i32
    return %c0_i32, %c0_i32_0 : i32, i32
  }
  func.func @transform_4(%arg0: i32) -> (i32, i32) {
    %c0_i32 = arith.constant 0 : i32
    %c0_i32_0 = arith.constant 0 : i32
    %c0_i32_1 = arith.constant 0 : i32
    return %c0_i32, %c0_i32_0 : i32, i32
  }
  func.func @transform_5(%arg0: i32) -> (i32, i32) {
    %c0_i32 = arith.constant 0 : i32
    %c0_i32_0 = arith.constant 0 : i32
    %c0_i32_1 = arith.constant 0 : i32
    return %c0_i32, %c0_i32_0 : i32, i32
  }
  func.func @transform_6(%arg0: i32) -> (i32, i32) {
    %c0_i32 = arith.constant 0 : i32
    %c0_i32_0 = arith.constant 0 : i32
    %c0_i32_1 = arith.constant 0 : i32
    return %c0_i32, %c0_i32_0 : i32, i32
  }
  func.func @transform_7(%arg0: i32) -> (i32, i32) {
    %c0_i32 = arith.constant 0 : i32
    %c0_i32_0 = arith.constant 0 : i32
    return %arg0, %c0_i32 : i32, i32
  }
}

module attributes {stable_mosaic.version = 11 : i64} {
  func.func @_fused_kernel(%arg0: i32, %arg1: memref<2x2xi32, #tpu.memory_space<vmem>>, %arg2: memref<2x128xf32, #tpu.memory_space<vmem>>, %arg3: memref<128x256xf32, #tpu.memory_space<vmem>>, %arg4: memref<1x256xf32, #tpu.memory_space<vmem>>, %arg5: memref<256x8xf32, #tpu.memory_space<vmem>>, %arg6: memref<8x128xf32, #tpu.memory_space<vmem>>, %arg7: memref<1x128xi32, #tpu.memory_space<vmem>>, %arg8: memref<2x128xf32, #tpu.memory_space<vmem>>) attributes {dimension_semantics = [#tpu.dimension_semantics<parallel>], iteration_bounds = array<i64: 1>, scalar_prefetch = 0 : i64, scratch_operands = 0 : i64, tpu.core_type = #tpu.core_type<tc>, window_params = [{transform_indices = @transform_0, window_bounds = array<i64: 2, 2>}, {transform_indices = @transform_1, window_bounds = array<i64: 2, 128>}, {pipeline_mode = #tpu.pipeline_mode<synchronous>, transform_indices = @transform_2, window_bounds = array<i64: 128, 256>}, {pipeline_mode = #tpu.pipeline_mode<synchronous>, transform_indices = @transform_3, window_bounds = array<i64: 1, 256>}, {pipeline_mode = #tpu.pipeline_mode<synchronous>, transform_indices = @transform_4, window_bounds = array<i64: 256, 8>}, {pipeline_mode = #tpu.pipeline_mode<synchronous>, transform_indices = @transform_5, window_bounds = array<i64: 8, 128>}, {pipeline_mode = #tpu.pipeline_mode<synchronous>, transform_indices = @transform_6, window_bounds = array<i64: 1, 128>}, {transform_indices = @transform_7, window_bounds = array<i64: 2, 128>}]} {
    %c0 = arith.constant 0 : index
    %c0_0 = arith.constant 0 : index
    %0 = vector.load %arg2[%c0, %c0_0] : memref<2x128xf32, #tpu.memory_space<vmem>>, vector<2x128xf32>
    %c0_1 = arith.constant 0 : index
    %c0_2 = arith.constant 0 : index
    %1 = vector.load %arg3[%c0_1, %c0_2] : memref<128x256xf32, #tpu.memory_space<vmem>>, vector<128x256xf32>
    %cst = arith.constant dense<0.000000e+00> : vector<2x256xf32>
    %2 = tpu.matmul %0, %1, %cst {dimension_numbers = #tpu.dot_dimension_numbers<[1], [0], [0], [1], [0, 0, 1, 1], [], []>} : vector<2x128xf32>, vector<128x256xf32>, vector<2x256xf32> -> vector<2x256xf32>
    %c0_3 = arith.constant 0 : index
    %c0_4 = arith.constant 0 : index
    %3 = vector.load %arg4[%c0_3, %c0_4] : memref<1x256xf32, #tpu.memory_space<vmem>>, vector<1x256xf32>
    %4 = vector.broadcast %3 : vector<1x256xf32> to vector<2x256xf32>
    %5 = arith.addf %2, %4 : vector<2x256xf32>
    %6 = math.tanh %5 : vector<2x256xf32>
    %c0_5 = arith.constant 0 : index
    %c0_6 = arith.constant 0 : index
    %7 = vector.load %arg5[%c0_5, %c0_6] : memref<256x8xf32, #tpu.memory_space<vmem>>, vector<256x8xf32>
    %cst_7 = arith.constant dense<0.000000e+00> : vector<2x8xf32>
    %8 = tpu.matmul %6, %7, %cst_7 {dimension_numbers = #tpu.dot_dimension_numbers<[1], [0], [0], [1], [0, 0, 1, 1], [], []>} : vector<2x256xf32>, vector<256x8xf32>, vector<2x8xf32> -> vector<2x8xf32>
    %c0_8 = arith.constant 0 : index
    %c0_9 = arith.constant 0 : index
    %9 = vector.load %arg1[%c0_8, %c0_9] : memref<2x2xi32, #tpu.memory_space<vmem>>, vector<2x1xi32>
    %c0_10 = arith.constant 0 : index
    %c1 = arith.constant 1 : index
    %10 = vector.load %arg1[%c0_10, %c1] : memref<2x2xi32, #tpu.memory_space<vmem>>, vector<2x1xi32>
    %11 = tpu.iota {dimensions = array<i32: 1>} : vector<1x8xi32>
    %12 = vector.broadcast %11 : vector<1x8xi32> to vector<2x8xi32>
    %13 = vector.broadcast %9 : vector<2x1xi32> to vector<2x8xi32>
    %14 = arith.cmpi slt, %12, %13 : vector<2x8xi32>
    %cst_11 = arith.constant -1.000000e+30 : f32
    %15 = vector.broadcast %cst_11 : f32 to vector<2x8xf32>
    %16 = arith.select %14, %8, %15 : vector<2x8xi1>, vector<2x8xf32>
    %cst_12 = arith.constant dense<0xFF800000> : vector<2xf32>
    %17 = vector.multi_reduction <maximumf>, %16, %cst_12 [1] : vector<2x8xf32> to vector<2xf32>
    %18 = vector.shape_cast %17 : vector<2xf32> to vector<2x1xf32>
    %19 = vector.broadcast %18 : vector<2x1xf32> to vector<2x8xf32>
    %20 = arith.subf %16, %19 : vector<2x8xf32>
    %21 = math.exp %20 : vector<2x8xf32>
    %cst_13 = arith.constant dense<0.000000e+00> : vector<2xf32>
    %22 = vector.multi_reduction <add>, %21, %cst_13 [1] : vector<2x8xf32> to vector<2xf32>
    %23 = vector.shape_cast %22 : vector<2xf32> to vector<2x1xf32>
    %24 = vector.broadcast %23 : vector<2x1xf32> to vector<2x8xf32>
    %25 = arith.divf %21, %24 : vector<2x8xf32>
    %c0_14 = arith.constant 0 : index
    %c0_15 = arith.constant 0 : index
    %26 = vector.load %arg6[%c0_14, %c0_15] : memref<8x128xf32, #tpu.memory_space<vmem>>, vector<8x128xf32>
    %cst_16 = arith.constant dense<0.000000e+00> : vector<2x128xf32>
    %27 = tpu.matmul %25, %26, %cst_16 {dimension_numbers = #tpu.dot_dimension_numbers<[1], [0], [0], [1], [0, 0, 1, 1], [], []>} : vector<2x8xf32>, vector<8x128xf32>, vector<2x128xf32> -> vector<2x128xf32>
    %c0_17 = arith.constant 0 : index
    %c0_18 = arith.constant 0 : index
    %28 = vector.load %arg7[%c0_17, %c0_18] : memref<1x128xi32, #tpu.memory_space<vmem>>, vector<1x128xi32>
    %29 = vector.broadcast %28 : vector<1x128xi32> to vector<2x128xi32>
    %30 = vector.broadcast %10 : vector<2x1xi32> to vector<2x128xi32>
    %31 = arith.cmpi eq, %29, %30 : vector<2x128xi32>
    %32 = arith.extui %31 : vector<2x128xi1> to vector<2x128xi32>
    %33 = arith.sitofp %32 : vector<2x128xi32> to vector<2x128xf32>
    %34 = arith.mulf %27, %33 : vector<2x128xf32>
    %35 = arith.addf %0, %34 : vector<2x128xf32>
    %cst_19 = arith.constant 1.000000e+00 : f32
    %36 = vector.broadcast %cst_19 : f32 to vector<2x128xf32>
    %37 = arith.minimumf %35, %36 : vector<2x128xf32>
    %c0_20 = arith.constant 0 : index
    %c0_21 = arith.constant 0 : index
    %38 = vector.load %arg8[%c0_20, %c0_21] : memref<2x128xf32, #tpu.memory_space<vmem>>, vector<2x128xf32>
    tpu.vector_store %arg8[%c0_20, %c0_21], %37 {strides = array<i32>} : memref<2x128xf32, #tpu.memory_space<vmem>>, vector<2x128xf32>,
    return
  }
  func.func @transform_0(%arg0: i32) -> (i32, i32) {
    %c0_i32 = arith.constant 0 : i32
    %c0_i32_0 = arith.constant 0 : i32
    return %arg0, %c0_i32 : i32, i32
  }
  func.func @transform_1(%arg0: i32) -> (i32, i32) {
    %c0_i32 = arith.constant 0 : i32
    %c0_i32_0 = arith.constant 0 : i32
    return %arg0, %c0_i32 : i32, i32
  }
  func.func @transform_2(%arg0: i32) -> (i32, i32) {
    %c0_i32 = arith.constant 0 : i32
    %c0_i32_0 = arith.constant 0 : i32
    %c0_i32_1 = arith.constant 0 : i32
    return %c0_i32, %c0_i32_0 : i32, i32
  }
  func.func @transform_3(%arg0: i32) -> (i32, i32) {
    %c0_i32 = arith.constant 0 : i32
    %c0_i32_0 = arith.constant 0 : i32
    %c0_i32_1 = arith.constant 0 : i32
    return %c0_i32, %c0_i32_0 : i32, i32
  }
  func.func @transform_4(%arg0: i32) -> (i32, i32) {
    %c0_i32 = arith.constant 0 : i32
    %c0_i32_0 = arith.constant 0 : i32
    %c0_i32_1 = arith.constant 0 : i32
    return %c0_i32, %c0_i32_0 : i32, i32
  }
  func.func @transform_5(%arg0: i32) -> (i32, i32) {
    %c0_i32 = arith.constant 0 : i32
    %c0_i32_0 = arith.constant 0 : i32
    %c0_i32_1 = arith.constant 0 : i32
    return %c0_i32, %c0_i32_0 : i32, i32
  }
  func.func @transform_6(%arg0: i32) -> (i32, i32) {
    %c0_i32 = arith.constant 0 : i32
    %c0_i32_0 = arith.constant 0 : i32
    %c0_i32_1 = arith.constant 0 : i32
    return %c0_i32, %c0_i32_0 : i32, i32
  }
  func.func @transform_7(%arg0: i32) -> (i32, i32) {
    %c0_i32 = arith.constant 0 : i32
    %c0_i32_0 = arith.constant 0 : i32
    return %arg0, %c0_i32 : i32, i32
  }
}

</mosaic_0001>

<llo_original>
// kernel: tpu_custom_call.1
$region0: #{tpu_custom_call.1}
  #allocation0 [shape = 'u32[]', space=smem, size = 0x4, offset = 0x4, fixed_abs, tag = 'smem constant byte address 0x4 - core index']
  #allocation1 [shape = 'u32[144,128]{1,0:T(1,128)}', space=vmem, size = 0x12000, scoped, tag = 'internal scratch']
  %s0 = inlined_call_operand.hbm [shape: s32[2,2], index: 0, kind: input, shape index: {}]
  %s1 = inlined_call_operand.hbm [shape: f32[2,128], index: 1, kind: input, shape index: {}]
  %s2 = inlined_call_operand.hbm [shape: f32[128,256], index: 2, kind: input, shape index: {}]
  %s3 = inlined_call_operand.hbm [shape: f32[1,256], index: 3, kind: input, shape index: {}]
  %s4 = inlined_call_operand.hbm [shape: f32[256,8], index: 4, kind: input, shape index: {}]
  %s5 = inlined_call_operand.hbm [shape: f32[8,128], index: 5, kind: input, shape index: {}]
  %s6 = inlined_call_operand.hbm [shape: s32[1,128], index: 6, kind: input, shape index: {}]
  %s7 = inlined_call_operand.hbm [shape: f32[2,128], index: 7, kind: output, shape index: {}]
  %s8 = sld [smem:[#allocation0]]
  $region66: #{tpu_custom_call.1} parent=0
    _
  %s10 = ssub.s32 1, %s8
  %s11 = scalar_select 0, %s10, %s8
  $region1: #{tpu_custom_call.1} parent=0
    #allocation2 [shape = 'u8[1024]{0}', space=vmem, size = 0x400, scoped, tag = 'input window, operand 0, single buffered']
    #allocation3 [shape = 's32[1]{0}', space=sflag, size = 0x4, scoped, tag = 'scoped memory for tpu_custom_call.1']
    #allocation4 [shape = 's32[1]{0}', space=sflag, size = 0x4, scoped, tag = 'scoped memory for tpu_custom_call.1']
    #allocation5 [shape = 'u8[1024]{0}', space=vmem, size = 0x400, scoped, tag = 'input window, operand 1, single buffered']
    #allocation6 [shape = 's32[1]{0}', space=sflag, size = 0x4, scoped, tag = 'scoped memory for tpu_custom_call.1']
    #allocation7 [shape = 'u8[131072]{0}', space=vmem, size = 0x20000, scoped, tag = 'input window, operand 2, single buffered']
    #allocation8 [shape = 'u8[1024]{0}', space=vmem, size = 0x400, scoped, tag = 'input window, operand 3, single buffered']
    #allocation9 [shape = 's32[1]{0}', space=sflag, size = 0x4, scoped, tag = 'scoped memory for tpu_custom_call.1']
    #allocation10 [shape = 'u8[131072]{0}', space=vmem, size = 0x20000, scoped, tag = 'input window, operand 4, single buffered']
    #allocation11 [shape = 'u8[4096]{0}', space=vmem, size = 0x1000, scoped, tag = 'input window, operand 5, single buffered']
    #allocation12 [shape = 's32[1]{0}', space=sflag, size = 0x4, scoped, tag = 'scoped memory for tpu_custom_call.1']
    #allocation13 [shape = 'u8[512]{0}', space=vmem, size = 0x400, scoped, tag = 'input window, operand 6, single buffered']
    #allocation14 [shape = 'u8[1024]{0}', space=vmem, size = 0x400, scoped, tag = 'output window, operand 0, single buffered']
    %12 = vsyncpa [#allocation3], 0
    %13 = vsyncpa [#allocation6], 0
    %14 = vsyncpa [#allocation9], 0
    %15 = vsyncpa [#allocation12], 0
    %16 = vsyncpa [#allocation4], 0
    // Predicated region
    $region2: #{tpu_custom_call.1} parent=1 // pred_check
      _
    $region3: #{tpu_custom_call.1} parent=1 // pred_check_branch
      %18 = sbr.rel (0) target = $region5
    $region4: #{tpu_custom_call.1} parent=1 // pred_region
      %s20 = ssub.s32 32, 32
      %21 = vsyncadd [#allocation3], %s20
      %s23 = sshll.u32 [#allocation2], 4
      %s24 = int_to_ptr.vmem [resolvable:$true] %s23
      %26 = dma.hbm_to_vmem [thread:$0]  %s0, 32, %s24, [#allocation3]
    $region5: #{tpu_custom_call.1} parent=1 // pred_fallthru
      _
    // Predicated region
    $region6: #{tpu_custom_call.1} parent=1 // pred_check
      _
    $region7: #{tpu_custom_call.1} parent=1 // pred_check_branch
      %28 = sbr.rel (0) target = $region9
    $region8: #{tpu_custom_call.1} parent=1 // pred_region
      %s30 = ssub.s32 32, 32
      %31 = vsyncadd [#allocation6], %s30
      %s33 = sshll.u32 [#allocation5], 4
      %s34 = int_to_ptr.vmem [resolvable:$true] %s33
      %36 = dma.hbm_to_vmem [thread:$0]  %s1, 32, %s34, [#allocation6]
    $region9: #{tpu_custom_call.1} parent=1 // pred_fallthru
      _
    // Predicated region
    $region10: #{tpu_custom_call.1} parent=1 // pred_check
      _
    $region11: #{tpu_custom_call.1} parent=1 // pred_check_branch
      %38 = sbr.rel (0) target = $region13
    $region12: #{tpu_custom_call.1} parent=1 // pred_region
      %s40 = ssub.s32 4096, 4096
      %41 = vsyncadd [#allocation6], %s40
      %s42 = sshll.u32 [#allocation7], 4
      %s43 = int_to_ptr.vmem [resolvable:$true] %s42
      %48 = dma.hbm_to_vmem [thread:$0]  %s2, 4096, %s43, [#allocation6], 256, 256, 16
    $region13: #{tpu_custom_call.1} parent=1 // pred_fallthru
      _
    // Predicated region
    $region14: #{tpu_custom_call.1} parent=1 // pred_check
      _
    $region15: #{tpu_custom_call.1} parent=1 // pred_check_branch
      %50 = sbr.rel (0) target = $region17
    $region16: #{tpu_custom_call.1} parent=1 // pred_region
      %s52 = ssub.s32 32, 32
      %53 = vsyncadd [#allocation9], %s52
      %s55 = sshll.u32 [#allocation8], 4
      %s56 = int_to_ptr.vmem [resolvable:$true] %s55
      %58 = dma.hbm_to_vmem [thread:$0]  %s3, 32, %s56, [#allocation9]
    $region17: #{tpu_custom_call.1} parent=1 // pred_fallthru
      _
    // Predicated region
    $region18: #{tpu_custom_call.1} parent=1 // pred_check
      _
    $region19: #{tpu_custom_call.1} parent=1 // pred_check_branch
      %60 = sbr.rel (0) target = $region21
    $region20: #{tpu_custom_call.1} parent=1 // pred_region
      %s62 = ssub.s32 4096, 4096
      %63 = vsyncadd [#allocation9], %s62
      %s64 = sshll.u32 [#allocation10], 4
      %s65 = int_to_ptr.vmem [resolvable:$true] %s64
      %70 = dma.hbm_to_vmem [thread:$0]  %s4, 4096, %s65, [#allocation9], 128, 128, 8
    $region21: #{tpu_custom_call.1} parent=1 // pred_fallthru
      _
    // Predicated region
    $region22: #{tpu_custom_call.1} parent=1 // pred_check
      _
    $region23: #{tpu_custom_call.1} parent=1 // pred_check_branch
      %72 = sbr.rel (0) target = $region25
    $region24: #{tpu_custom_call.1} parent=1 // pred_region
      %s74 = ssub.s32 128, 128
      %75 = vsyncadd [#allocation12], %s74
      %s77 = sshll.u32 [#allocation11], 4
      %s78 = int_to_ptr.vmem [resolvable:$true] %s77
      %80 = dma.hbm_to_vmem [thread:$0]  %s5, 128, %s78, [#allocation12]
    $region25: #{tpu_custom_call.1} parent=1 // pred_fallthru
      _
    // Predicated region
    $region26: #{tpu_custom_call.1} parent=1 // pred_check
      _
    $region27: #{tpu_custom_call.1} parent=1 // pred_check_branch
      %82 = sbr.rel (0) target = $region29
    $region28: #{tpu_custom_call.1} parent=1 // pred_region
      %s84 = ssub.s32 16, 16
      %85 = vsyncadd [#allocation12], %s84
      %s87 = sshll.u32 [#allocation13], 4
      %s88 = int_to_ptr.vmem [resolvable:$true] %s87
      %90 = dma.hbm_to_vmem [thread:$0]  %s6, 16, %s88, [#allocation12]
    $region29: #{tpu_custom_call.1} parent=1 // pred_fallthru
      _
    // Predicated region
    $region30: #{tpu_custom_call.1} parent=1 // pred_check
      _
    $region31: #{tpu_custom_call.1} parent=1 // pred_check_branch
      %92 = sbr.rel (0) target = $region33
    $region32: #{tpu_custom_call.1} parent=1 // pred_region
      %93 = dma.done [#allocation3], 32
    $region33: #{tpu_custom_call.1} parent=1 // pred_fallthru
      _
    // Predicated region
    $region34: #{tpu_custom_call.1} parent=1 // pred_check
      _
    $region35: #{tpu_custom_call.1} parent=1 // pred_check_branch
      %95 = sbr.rel (0) target = $region37
    $region36: #{tpu_custom_call.1} parent=1 // pred_region
      %96 = dma.done [#allocation6], 32
    $region37: #{tpu_custom_call.1} parent=1 // pred_fallthru
      _
    // Predicated region
    $region38: #{tpu_custom_call.1} parent=1 // pred_check
      _
    $region39: #{tpu_custom_call.1} parent=1 // pred_check_branch
      %98 = sbr.rel (0) target = $region41
    $region40: #{tpu_custom_call.1} parent=1 // pred_region
      %99 = dma.done [#allocation6], 4096
    $region41: #{tpu_custom_call.1} parent=1 // pred_fallthru
      _
    // Predicated region
    $region42: #{tpu_custom_call.1} parent=1 // pred_check
      _
    $region43: #{tpu_custom_call.1} parent=1 // pred_check_branch
      %101 = sbr.rel (0) target = $region45
    $region44: #{tpu_custom_call.1} parent=1 // pred_region
      %102 = dma.done [#allocation9], 32
    $region45: #{tpu_custom_call.1} parent=1 // pred_fallthru
      _
    // Predicated region
    $region46: #{tpu_custom_call.1} parent=1 // pred_check
      _
    $region47: #{tpu_custom_call.1} parent=1 // pred_check_branch
      %104 = sbr.rel (0) target = $region49
    $region48: #{tpu_custom_call.1} parent=1 // pred_region
      %105 = dma.done [#allocation9], 4096
    $region49: #{tpu_custom_call.1} parent=1 // pred_fallthru
      _
    // Predicated region
    $region50: #{tpu_custom_call.1} parent=1 // pred_check
      _
    $region51: #{tpu_custom_call.1} parent=1 // pred_check_branch
      %107 = sbr.rel (0) target = $region53
    $region52: #{tpu_custom_call.1} parent=1 // pred_region
      %108 = dma.done [#allocation12], 128
    $region53: #{tpu_custom_call.1} parent=1 // pred_fallthru
      _
    // Predicated region
    $region54: #{tpu_custom_call.1} parent=1 // pred_check
      _
    $region55: #{tpu_custom_call.1} parent=1 // pred_check_branch
      %110 = sbr.rel (0) target = $region57
    $region56: #{tpu_custom_call.1} parent=1 // pred_region
      %111 = dma.done [#allocation12], 16
    $region57: #{tpu_custom_call.1} parent=1 // pred_fallthru
      _
    %v112 = vld [vmem:[#allocation5] sm:$0x3]
    %v113 = vld [vmem:[#allocation7] sm:$0xff]
    %v114 = vld [vmem:[#allocation7 + $0x8] sm:$0xff]
    %v115 = vld [vmem:[#allocation7 + $0x10] sm:$0xff]
    %v116 = vld [vmem:[#allocation7 + $0x18] sm:$0xff]
    %v117 = vld [vmem:[#allocation7 + $0x20] sm:$0xff]
    %v118 = vld [vmem:[#allocation7 + $0x28] sm:$0xff]
    %v119 = vld [vmem:[#allocation7 + $0x30] sm:$0xff]
    %v120 = vld [vmem:[#allocation7 + $0x38] sm:$0xff]
    %v121 = vld [vmem:[#allocation7 + $0x40] sm:$0xff]
    %v122 = vld [vmem:[#allocation7 + $0x48] sm:$0xff]
    %v123 = vld [vmem:[#allocation7 + $0x50] sm:$0xff]
    %v124 = vld [vmem:[#allocation7 + $0x58] sm:$0xff]
    %v125 = vld [vmem:[#allocation7 + $0x60] sm:$0xff]
    %v126 = vld [vmem:[#allocation7 + $0x68] sm:$0xff]
    %v127 = vld [vmem:[#allocation7 + $0x70] sm:$0xff]
    %v128 = vld [vmem:[#allocation7 + $0x78] sm:$0xff]
    %v129 = vld [vmem:[#allocation7 + $0x80] sm:$0xff]
    %v130 = vld [vmem:[#allocation7 + $0x88] sm:$0xff]
    %v131 = vld [vmem:[#allocation7 + $0x90] sm:$0xff]
    %v132 = vld [vmem:[#allocation7 + $0x98] sm:$0xff]
    %v133 = vld [vmem:[#allocation7 + $0xa0] sm:$0xff]
    %v134 = vld [vmem:[#allocation7 + $0xa8] sm:$0xff]
    %v135 = vld [vmem:[#allocation7 + $0xb0] sm:$0xff]
    %v136 = vld [vmem:[#allocation7 + $0xb8] sm:$0xff]
    %v137 = vld [vmem:[#allocation7 + $0xc0] sm:$0xff]
    %v138 = vld [vmem:[#allocation7 + $0xc8] sm:$0xff]
    %v139 = vld [vmem:[#allocation7 + $0xd0] sm:$0xff]
    %v140 = vld [vmem:[#allocation7 + $0xd8] sm:$0xff]
    %v141 = vld [vmem:[#allocation7 + $0xe0] sm:$0xff]
    %v142 = vld [vmem:[#allocation7 + $0xe8] sm:$0xff]
    %v143 = vld [vmem:[#allocation7 + $0xf0] sm:$0xff]
    %v144 = vld [vmem:[#allocation7 + $0xf8] sm:$0xff]
    %v145 = vld [vmem:[#allocation8] sm:$0x3]
    %v147 = vlaneseq
    %v148 = vshrl.u32 %v147, 7
    %v149 = vsub.s32 0, %v148
    %v150 = vrot.slane %v145, %v149
    %v151 = vlaneseq
    %v152 = vshrl.u32 %v151, 7
    %v153 = vsub.s32 1, %v152
    %v154 = vrot.slane %v145, %v153
    %v157 = vand.u32 %v114, 4294901760
    %158 = vmatprep.subr.mxu0 %v157
    %v159 = vand.u32 %v113, 4294901760
    %160 = vmatpush1.msra.mxu0 %v159
    %v161 = vand.u32 %v116, 4294901760
    %162 = vmatprep.subr.mxu0 %v161
    %v163 = vand.u32 %v115, 4294901760
    %164 = vmatpush1.msra.mxu0 %v163
    %v165 = vand.u32 %v118, 4294901760
    %166 = vmatprep.subr.mxu0 %v165
    %v167 = vand.u32 %v117, 4294901760
    %168 = vmatpush1.msra.mxu0 %v167
    %v169 = vand.u32 %v120, 4294901760
    %170 = vmatprep.subr.mxu0 %v169
    %v171 = vand.u32 %v119, 4294901760
    %172 = vmatpush1.msra.mxu0 %v171
    %v173 = vand.u32 %v122, 4294901760
    %174 = vmatprep.subr.mxu0 %v173
    %v175 = vand.u32 %v121, 4294901760
    %176 = vmatpush1.msra.mxu0 %v175
    %v177 = vand.u32 %v124, 4294901760
    %178 = vmatprep.subr.mxu0 %v177
    %v179 = vand.u32 %v123, 4294901760
    %180 = vmatpush1.msra.mxu0 %v179
    %v181 = vand.u32 %v126, 4294901760
    %182 = vmatprep.subr.mxu0 %v181
    %v183 = vand.u32 %v125, 4294901760
    %184 = vmatpush1.msra.mxu0 %v183
    %v185 = vand.u32 %v128, 4294901760
    %186 = vmatprep.subr.mxu0 %v185
    %v187 = vand.u32 %v127, 4294901760
    %188 = vmatpush1.msra.mxu0 %v187
    %v189 = vand.u32 %v130, 4294901760
    %190 = vmatprep.subr.mxu0 %v189
    %v191 = vand.u32 %v129, 4294901760
    %192 = vmatpush1.msra.mxu0 %v191
    %v193 = vand.u32 %v132, 4294901760
    %194 = vmatprep.subr.mxu0 %v193
    %v195 = vand.u32 %v131, 4294901760
    %196 = vmatpush1.msra.mxu0 %v195
    %v197 = vand.u32 %v134, 4294901760
    %198 = vmatprep.subr.mxu0 %v197
    %v199 = vand.u32 %v133, 4294901760
    %200 = vmatpush1.msra.mxu0 %v199
    %v201 = vand.u32 %v136, 4294901760
    %202 = vmatprep.subr.mxu0 %v201
    %v203 = vand.u32 %v135, 4294901760
    %204 = vmatpush1.msra.mxu0 %v203
    %v205 = vand.u32 %v138, 4294901760
    %206 = vmatprep.subr.mxu0 %v205
    %v207 = vand.u32 %v137, 4294901760
    %208 = vmatpush1.msra.mxu0 %v207
    %v209 = vand.u32 %v140, 4294901760
    %210 = vmatprep.subr.mxu0 %v209
    %v211 = vand.u32 %v139, 4294901760
    %212 = vmatpush1.msra.mxu0 %v211
    %v213 = vand.u32 %v142, 4294901760
    %214 = vmatprep.subr.mxu0 %v213
    %v215 = vand.u32 %v141, 4294901760
    %216 = vmatpush1.msra.mxu0 %v215
    %v217 = vand.u32 %v144, 4294901760
    %218 = vmatprep.subr.mxu0 %v217
    %v219 = vand.u32 %v143, 4294901760
    %220 = vmatpush1.msra.mxu0 %v219
    %221 = vmatprep.subr.mxu0 0.0
    %222 = vmatpush1.msra.mxu0 0.0
    %223 = vmatprep.subr.mxu0 0.0
    %224 = vmatpush1.msra.mxu0 0.0
    %225 = vmatprep.subr.mxu0 0.0
    %226 = vmatpush1.msra.mxu0 0.0
    %227 = vmatprep.subr.mxu0 0.0
    %228 = vmatpush1.msra.mxu0 0.0
    %229 = vmatprep.subr.mxu0 0.0
    %230 = vmatpush1.msra.mxu0 0.0
    %231 = vmatprep.subr.mxu0 0.0
    %232 = vmatpush1.msra.mxu0 0.0
    %233 = vmatprep.subr.mxu0 0.0
    %234 = vmatpush1.msra.mxu0 0.0
    %235 = vmatprep.subr.mxu0 0.0
    %236 = vmatpush1.msra.mxu0 0.0
    %237 = vmatprep.subr.mxu0 0.0
    %238 = vmatpush1.msra.mxu0 0.0
    %239 = vmatprep.subr.mxu0 0.0
    %240 = vmatpush1.msra.mxu0 0.0
    %241 = vmatprep.subr.mxu0 0.0
    %242 = vmatpush1.msra.mxu0 0.0
    %243 = vmatprep.subr.mxu0 0.0
    %244 = vmatpush1.msra.mxu0 0.0
    %245 = vmatprep.subr.mxu0 0.0
    %246 = vmatpush1.msra.mxu0 0.0
    %247 = vmatprep.subr.mxu0 0.0
    %248 = vmatpush1.msra.mxu0 0.0
    %249 = vmatprep.subr.mxu0 0.0
    %250 = vmatpush1.msra.mxu0 0.0
    %251 = vmatprep.subr.mxu0 0.0
    %252 = vmatpush1.msra.mxu0 0.0
    %253 = vmatprep.mubr.f32.mxu0 0.0
    %v254 = vand.u32 %v112, 4294901760
    %v255 = vsub.f32 %v112, %v254
    %v256 = vand.u32 %v255, 4294901760
    %v257 = vsub.f32 %v255, %v256
    %v258 = vand.u32 %v257, 4294901760
    %259 = vmatmul.mubr.f32.gmra.mrb[0].mxu0 %v258
    %v260 = vpop.f32.mrb[0].mxu0
    %v261 = vadd.f32 %v150, %v260
    %v262 = vpop.f32.mrb[0].mxu0
    %v263 = vadd.f32 %v154, %v262
    %264 = vdwg.mxu0
    %v265 = vand.u32 %v114, 4294901760
    %v266 = vsub.f32 %v114, %v265
    %v267 = vand.u32 %v266, 4294901760
    %v268 = vsub.f32 %v266, %v267
    %v269 = vand.u32 %v268, 4294901760
    %270 = vmatprep.subr.mxu0 %v269
    %v271 = vand.u32 %v113, 4294901760
    %v272 = vsub.f32 %v113, %v271
    %v273 = vand.u32 %v272, 4294901760
    %v274 = vsub.f32 %v272, %v273
    %v275 = vand.u32 %v274, 4294901760
    %276 = vmatpush1.msra.mxu0 %v275
    %v277 = vand.u32 %v116, 4294901760
    %v278 = vsub.f32 %v116, %v277
    %v279 = vand.u32 %v278, 4294901760
    %v280 = vsub.f32 %v278, %v279
    %v281 = vand.u32 %v280, 4294901760
    %282 = vmatprep.subr.mxu0 %v281
    %v283 = vand.u32 %v115, 4294901760
    %v284 = vsub.f32 %v115, %v283
    %v285 = vand.u32 %v284, 4294901760
    %v286 = vsub.f32 %v284, %v285
    %v287 = vand.u32 %v286, 4294901760
    %288 = vmatpush1.msra.mxu0 %v287
    %v289 = vand.u32 %v118, 4294901760
    %v290 = vsub.f32 %v118, %v289
    %v291 = vand.u32 %v290, 4294901760
    %v292 = vsub.f32 %v290, %v291
    %v293 = vand.u32 %v292, 4294901760
    %294 = vmatprep.subr.mxu0 %v293
    %v295 = vand.u32 %v117, 4294901760
    %v296 = vsub.f32 %v117, %v295
    %v297 = vand.u32 %v296, 4294901760
    %v298 = vsub.f32 %v296, %v297
    %v299 = vand.u32 %v298, 4294901760
    %300 = vmatpush1.msra.mxu0 %v299
    %v301 = vand.u32 %v120, 4294901760
    %v302 = vsub.f32 %v120, %v301
    %v303 = vand.u32 %v302, 4294901760
    %v304 = vsub.f32 %v302, %v303
    %v305 = vand.u32 %v304, 4294901760
    %306 = vmatprep.subr.mxu0 %v305
    %v307 = vand.u32 %v119, 4294901760
    %v308 = vsub.f32 %v119, %v307
    %v309 = vand.u32 %v308, 4294901760
    %v310 = vsub.f32 %v308, %v309
    %v311 = vand.u32 %v310, 4294901760
    %312 = vmatpush1.msra.mxu0 %v311
    %v313 = vand.u32 %v122, 4294901760
    %v314 = vsub.f32 %v122, %v313
    %v315 = vand.u32 %v314, 4294901760
    %v316 = vsub.f32 %v314, %v315
    %v317 = vand.u32 %v316, 4294901760
    %318 = vmatprep.subr.mxu0 %v317
    %v319 = vand.u32 %v121, 4294901760
    %v320 = vsub.f32 %v121, %v319
    %v321 = vand.u32 %v320, 4294901760
    %v322 = vsub.f32 %v320, %v321
    %v323 = vand.u32 %v322, 4294901760
    %324 = vmatpush1.msra.mxu0 %v323
    %v325 = vand.u32 %v124, 4294901760
    %v326 = vsub.f32 %v124, %v325
    %v327 = vand.u32 %v326, 4294901760
    %v328 = vsub.f32 %v326, %v327
    %v329 = vand.u32 %v328, 4294901760
    %330 = vmatprep.subr.mxu0 %v329
    %v331 = vand.u32 %v123, 4294901760
    %v332 = vsub.f32 %v123, %v331
    %v333 = vand.u32 %v332, 4294901760
    %v334 = vsub.f32 %v332, %v333
    %v335 = vand.u32 %v334, 4294901760
    %336 = vmatpush1.msra.mxu0 %v335
    %v337 = vand.u32 %v126, 4294901760
    %v338 = vsub.f32 %v126, %v337
    %v339 = vand.u32 %v338, 4294901760
    %v340 = vsub.f32 %v338, %v339
    %v341 = vand.u32 %v340, 4294901760
    %342 = vmatprep.subr.mxu0 %v341
    %v343 = vand.u32 %v125, 4294901760
    %v344 = vsub.f32 %v125, %v343
    %v345 = vand.u32 %v344, 4294901760
    %v346 = vsub.f32 %v344, %v345
    %v347 = vand.u32 %v346, 4294901760
    %348 = vmatpush1.msra.mxu0 %v347
    %v349 = vand.u32 %v128, 4294901760
    %v350 = vsub.f32 %v128, %v349
    %v351 = vand.u32 %v350, 4294901760
    %v352 = vsub.f32 %v350, %v351
    %v353 = vand.u32 %v352, 4294901760
    %354 = vmatprep.subr.mxu0 %v353
    %v355 = vand.u32 %v127, 4294901760
    %v356 = vsub.f32 %v127, %v355
    %v357 = vand.u32 %v356, 4294901760
    %v358 = vsub.f32 %v356, %v357
    %v359 = vand.u32 %v358, 4294901760
    %360 = vmatpush1.msra.mxu0 %v359
    %v361 = vand.u32 %v130, 4294901760
    %v362 = vsub.f32 %v130, %v361
    %v363 = vand.u32 %v362, 4294901760
    %v364 = vsub.f32 %v362, %v363
    %v365 = vand.u32 %v364, 4294901760
    %366 = vmatprep.subr.mxu0 %v365
    %v367 = vand.u32 %v129, 4294901760
    %v368 = vsub.f32 %v129, %v367
    %v369 = vand.u32 %v368, 4294901760
    %v370 = vsub.f32 %v368, %v369
    %v371 = vand.u32 %v370, 4294901760
    %372 = vmatpush1.msra.mxu0 %v371
    %v373 = vand.u32 %v132, 4294901760
    %v374 = vsub.f32 %v132, %v373
    %v375 = vand.u32 %v374, 4294901760
    %v376 = vsub.f32 %v374, %v375
    %v377 = vand.u32 %v376, 4294901760
    %378 = vmatprep.subr.mxu0 %v377
    %v379 = vand.u32 %v131, 4294901760
    %v380 = vsub.f32 %v131, %v379
    %v381 = vand.u32 %v380, 4294901760
    %v382 = vsub.f32 %v380, %v381
    %v383 = vand.u32 %v382, 4294901760
    %384 = vmatpush1.msra.mxu0 %v383
    %v385 = vand.u32 %v134, 4294901760
    %v386 = vsub.f32 %v134, %v385
    %v387 = vand.u32 %v386, 4294901760
    %v388 = vsub.f32 %v386, %v387
    %v389 = vand.u32 %v388, 4294901760
    %390 = vmatprep.subr.mxu0 %v389
    %v391 = vand.u32 %v133, 4294901760
    %v392 = vsub.f32 %v133, %v391
    %v393 = vand.u32 %v392, 4294901760
    %v394 = vsub.f32 %v392, %v393
    %v395 = vand.u32 %v394, 4294901760
    %396 = vmatpush1.msra.mxu0 %v395
    %v397 = vand.u32 %v136, 4294901760
    %v398 = vsub.f32 %v136, %v397
    %v399 = vand.u32 %v398, 4294901760
    %v400 = vsub.f32 %v398, %v399
    %v401 = vand.u32 %v400, 4294901760
    %402 = vmatprep.subr.mxu0 %v401
    %v403 = vand.u32 %v135, 4294901760
    %v404 = vsub.f32 %v135, %v403
    %v405 = vand.u32 %v404, 4294901760
    %v406 = vsub.f32 %v404, %v405
    %v407 = vand.u32 %v406, 4294901760
    %408 = vmatpush1.msra.mxu0 %v407
    %v409 = vand.u32 %v138, 4294901760
    %v410 = vsub.f32 %v138, %v409
    %v411 = vand.u32 %v410, 4294901760
    %v412 = vsub.f32 %v410, %v411
    %v413 = vand.u32 %v412, 4294901760
    %414 = vmatprep.subr.mxu0 %v413
    %v415 = vand.u32 %v137, 4294901760
    %v416 = vsub.f32 %v137, %v415
    %v417 = vand.u32 %v416, 4294901760
    %v418 = vsub.f32 %v416, %v417
    %v419 = vand.u32 %v418, 4294901760
    %420 = vmatpush1.msra.mxu0 %v419
    %v421 = vand.u32 %v140, 4294901760
    %v422 = vsub.f32 %v140, %v421
    %v423 = vand.u32 %v422, 4294901760
    %v424 = vsub.f32 %v422, %v423
    %v425 = vand.u32 %v424, 4294901760
    %426 = vmatprep.subr.mxu0 %v425
    %v427 = vand.u32 %v139, 4294901760
    %v428 = vsub.f32 %v139, %v427
    %v429 = vand.u32 %v428, 4294901760
    %v430 = vsub.f32 %v428, %v429
    %v431 = vand.u32 %v430, 4294901760
    %432 = vmatpush1.msra.mxu0 %v431
    %v433 = vand.u32 %v142, 4294901760
    %v434 = vsub.f32 %v142, %v433
    %v435 = vand.u32 %v434, 4294901760
    %v436 = vsub.f32 %v434, %v435
    %v437 = vand.u32 %v436, 4294901760
    %438 = vmatprep.subr.mxu0 %v437
    %v439 = vand.u32 %v141, 4294901760
    %v440 = vsub.f32 %v141, %v439
    %v441 = vand.u32 %v440, 4294901760
    %v442 = vsub.f32 %v440, %v441
    %v443 = vand.u32 %v442, 4294901760
    %444 = vmatpush1.msra.mxu0 %v443
    %v445 = vand.u32 %v144, 4294901760
    %v446 = vsub.f32 %v144, %v445
    %v447 = vand.u32 %v446, 4294901760
    %v448 = vsub.f32 %v446, %v447
    %v449 = vand.u32 %v448, 4294901760
    %450 = vmatprep.subr.mxu0 %v449
    %v451 = vand.u32 %v143, 4294901760
    %v452 = vsub.f32 %v143, %v451
    %v453 = vand.u32 %v452, 4294901760
    %v454 = vsub.f32 %v452, %v453
    %v455 = vand.u32 %v454, 4294901760
    %456 = vmatpush1.msra.mxu0 %v455
    %457 = vmatprep.subr.mxu0 0.0
    %458 = vmatpush1.msra.mxu0 0.0
    %459 = vmatprep.subr.mxu0 0.0
    %460 = vmatpush1.msra.mxu0 0.0
    %461 = vmatprep.subr.mxu0 0.0
    %462 = vmatpush1.msra.mxu0 0.0
    %463 = vmatprep.subr.mxu0 0.0
    %464 = vmatpush1.msra.mxu0 0.0
    %465 = vmatprep.subr.mxu0 0.0
    %466 = vmatpush1.msra.mxu0 0.0
    %467 = vmatprep.subr.mxu0 0.0
    %468 = vmatpush1.msra.mxu0 0.0
    %469 = vmatprep.subr.mxu0 0.0
    %470 = vmatpush1.msra.mxu0 0.0
    %471 = vmatprep.subr.mxu0 0.0
    %472 = vmatpush1.msra.mxu0 0.0
    %473 = vmatprep.subr.mxu0 0.0
    %474 = vmatpush1.msra.mxu0 0.0
    %475 = vmatprep.subr.mxu0 0.0
    %476 = vmatpush1.msra.mxu0 0.0
    %477 = vmatprep.subr.mxu0 0.0
    %478 = vmatpush1.msra.mxu0 0.0
    %479 = vmatprep.subr.mxu0 0.0
    %480 = vmatpush1.msra.mxu0 0.0
    %481 = vmatprep.subr.mxu0 0.0
    %482 = vmatpush1.msra.mxu0 0.0
    %483 = vmatprep.subr.mxu0 0.0
    %484 = vmatpush1.msra.mxu0 0.0
    %485 = vmatprep.subr.mxu0 0.0
    %486 = vmatpush1.msra.mxu0 0.0
    %487 = vmatprep.subr.mxu0 0.0
    %488 = vmatpush1.msra.mxu0 0.0
    %489 = vmatprep.mubr.f32.mxu0 0.0
    %v490 = vand.u32 %v112, 4294901760
    %491 = vmatmul.mubr.f32.gmra.mrb[0].mxu0 %v490
    %v492 = vpop.f32.mrb[0].mxu0
    %v493 = vadd.f32 %v261, %v492
    %v494 = vpop.f32.mrb[0].mxu0
    %v495 = vadd.f32 %v263, %v494
    %496 = vdwg.mxu0
    %v497 = vand.u32 %v114, 4294901760
    %v498 = vsub.f32 %v114, %v497
    %499 = vmatprep.subr.mxu0 %v498
    %v500 = vand.u32 %v113, 4294901760
    %v501 = vsub.f32 %v113, %v500
    %502 = vmatpush1.msra.mxu0 %v501
    %v503 = vand.u32 %v116, 4294901760
    %v504 = vsub.f32 %v116, %v503
    %505 = vmatprep.subr.mxu0 %v504
    %v506 = vand.u32 %v115, 4294901760
    %v507 = vsub.f32 %v115, %v506
    %508 = vmatpush1.msra.mxu0 %v507
    %v509 = vand.u32 %v118, 4294901760
    %v510 = vsub.f32 %v118, %v509
    %511 = vmatprep.subr.mxu0 %v510
    %v512 = vand.u32 %v117, 4294901760
    %v513 = vsub.f32 %v117, %v512
    %514 = vmatpush1.msra.mxu0 %v513
    %v515 = vand.u32 %v120, 4294901760
    %v516 = vsub.f32 %v120, %v515
    %517 = vmatprep.subr.mxu0 %v516
    %v518 = vand.u32 %v119, 4294901760
    %v519 = vsub.f32 %v119, %v518
    %520 = vmatpush1.msra.mxu0 %v519
    %v521 = vand.u32 %v122, 4294901760
    %v522 = vsub.f32 %v122, %v521
    %523 = vmatprep.subr.mxu0 %v522
    %v524 = vand.u32 %v121, 4294901760
    %v525 = vsub.f32 %v121, %v524
    %526 = vmatpush1.msra.mxu0 %v525
    %v527 = vand.u32 %v124, 4294901760
    %v528 = vsub.f32 %v124, %v527
    %529 = vmatprep.subr.mxu0 %v528
    %v530 = vand.u32 %v123, 4294901760
    %v531 = vsub.f32 %v123, %v530
    %532 = vmatpush1.msra.mxu0 %v531
    %v533 = vand.u32 %v126, 4294901760
    %v534 = vsub.f32 %v126, %v533
    %535 = vmatprep.subr.mxu0 %v534
    %v536 = vand.u32 %v125, 4294901760
    %v537 = vsub.f32 %v125, %v536
    %538 = vmatpush1.msra.mxu0 %v537
    %v539 = vand.u32 %v128, 4294901760
    %v540 = vsub.f32 %v128, %v539
    %541 = vmatprep.subr.mxu0 %v540
    %v542 = vand.u32 %v127, 4294901760
    %v543 = vsub.f32 %v127, %v542
    %544 = vmatpush1.msra.mxu0 %v543
    %v545 = vand.u32 %v130, 4294901760
    %v546 = vsub.f32 %v130, %v545
    %547 = vmatprep.subr.mxu0 %v546
    %v548 = vand.u32 %v129, 4294901760
    %v549 = vsub.f32 %v129, %v548
    %550 = vmatpush1.msra.mxu0 %v549
    %v551 = vand.u32 %v132, 4294901760
    %v552 = vsub.f32 %v132, %v551
    %553 = vmatprep.subr.mxu0 %v552
    %v554 = vand.u32 %v131, 4294901760
    %v555 = vsub.f32 %v131, %v554
    %556 = vmatpush1.msra.mxu0 %v555
    %v557 = vand.u32 %v134, 4294901760
    %v558 = vsub.f32 %v134, %v557
    %559 = vmatprep.subr.mxu0 %v558
    %v560 = vand.u32 %v133, 4294901760
    %v561 = vsub.f32 %v133, %v560
    %562 = vmatpush1.msra.mxu0 %v561
    %v563 = vand.u32 %v136, 4294901760
    %v564 = vsub.f32 %v136, %v563
    %565 = vmatprep.subr.mxu0 %v564
    %v566 = vand.u32 %v135, 4294901760
    %v567 = vsub.f32 %v135, %v566
    %568 = vmatpush1.msra.mxu0 %v567
    %v569 = vand.u32 %v138, 4294901760
    %v570 = vsub.f32 %v138, %v569
    %571 = vmatprep.subr.mxu0 %v570
    %v572 = vand.u32 %v137, 4294901760
    %v573 = vsub.f32 %v137, %v572
    %574 = vmatpush1.msra.mxu0 %v573
    %v575 = vand.u32 %v140, 4294901760
    %v576 = vsub.f32 %v140, %v575
    %577 = vmatprep.subr.mxu0 %v576
    %v578 = vand.u32 %v139, 4294901760
    %v579 = vsub.f32 %v139, %v578
    %580 = vmatpush1.msra.mxu0 %v579
    %v581 = vand.u32 %v142, 4294901760
    %v582 = vsub.f32 %v142, %v581
    %583 = vmatprep.subr.mxu0 %v582
    %v584 = vand.u32 %v141, 4294901760
    %v585 = vsub.f32 %v141, %v584
    %586 = vmatpush1.msra.mxu0 %v585
    %v587 = vand.u32 %v144, 4294901760
    %v588 = vsub.f32 %v144, %v587
    %589 = vmatprep.subr.mxu0 %v588
    %v590 = vand.u32 %v143, 4294901760
    %v591 = vsub.f32 %v143, %v590
    %592 = vmatpush1.msra.mxu0 %v591
    %593 = vmatprep.subr.mxu0 0.0
    %594 = vmatpush1.msra.mxu0 0.0
    %595 = vmatprep.subr.mxu0 0.0
    %596 = vmatpush1.msra.mxu0 0.0
    %597 = vmatprep.subr.mxu0 0.0
    %598 = vmatpush1.msra.mxu0 0.0
    %599 = vmatprep.subr.mxu0 0.0
    %600 = vmatpush1.msra.mxu0 0.0
    %601 = vmatprep.subr.mxu0 0.0
    %602 = vmatpush1.msra.mxu0 0.0
    %603 = vmatprep.subr.mxu0 0.0
    %604 = vmatpush1.msra.mxu0 0.0
    %605 = vmatprep.subr.mxu0 0.0
    %606 = vmatpush1.msra.mxu0 0.0
    %607 = vmatprep.subr.mxu0 0.0
    %608 = vmatpush1.msra.mxu0 0.0
    %609 = vmatprep.subr.mxu0 0.0
    %610 = vmatpush1.msra.mxu0 0.0
    %611 = vmatprep.subr.mxu0 0.0
    %612 = vmatpush1.msra.mxu0 0.0
    %613 = vmatprep.subr.mxu0 0.0
    %614 = vmatpush1.msra.mxu0 0.0
    %615 = vmatprep.subr.mxu0 0.0
    %616 = vmatpush1.msra.mxu0 0.0
    %617 = vmatprep.subr.mxu0 0.0
    %618 = vmatpush1.msra.mxu0 0.0
    %619 = vmatprep.subr.mxu0 0.0
    %620 = vmatpush1.msra.mxu0 0.0
    %621 = vmatprep.subr.mxu0 0.0
    %622 = vmatpush1.msra.mxu0 0.0
    %623 = vmatprep.subr.mxu0 0.0
    %624 = vmatpush1.msra.mxu0 0.0
    %625 = vmatprep.mubr.f32.mxu0 0.0
    %v626 = vand.u32 %v112, 4294901760
    %v627 = vsub.f32 %v112, %v626
    %628 = vmatmul.mubr.f32.gmra.mrb[0].mxu0 %v627
    %v629 = vpop.f32.mrb[0].mxu0
    %v630 = vadd.f32 %v493, %v629
    %v631 = vpop.f32.mrb[0].mxu0
    %v632 = vadd.f32 %v495, %v631
    %633 = vdwg.mxu0
    %v634 = vand.u32 %v114, 4294901760
    %635 = vmatprep.subr.mxu0 %v634
    %v636 = vand.u32 %v113, 4294901760
    %637 = vmatpush1.msra.mxu0 %v636
    %v638 = vand.u32 %v116, 4294901760
    %639 = vmatprep.subr.mxu0 %v638
    %v640 = vand.u32 %v115, 4294901760
    %641 = vmatpush1.msra.mxu0 %v640
    %v642 = vand.u32 %v118, 4294901760
    %643 = vmatprep.subr.mxu0 %v642
    %v644 = vand.u32 %v117, 4294901760
    %645 = vmatpush1.msra.mxu0 %v644
    %v646 = vand.u32 %v120, 4294901760
    %647 = vmatprep.subr.mxu0 %v646
    %v648 = vand.u32 %v119, 4294901760
    %649 = vmatpush1.msra.mxu0 %v648
    %v650 = vand.u32 %v122, 4294901760
    %651 = vmatprep.subr.mxu0 %v650
    %v652 = vand.u32 %v121, 4294901760
    %653 = vmatpush1.msra.mxu0 %v652
    %v654 = vand.u32 %v124, 4294901760
    %655 = vmatprep.subr.mxu0 %v654
    %v656 = vand.u32 %v123, 4294901760
    %657 = vmatpush1.msra.mxu0 %v656
    %v658 = vand.u32 %v126, 4294901760
    %659 = vmatprep.subr.mxu0 %v658
    %v660 = vand.u32 %v125, 4294901760
    %661 = vmatpush1.msra.mxu0 %v660
    %v662 = vand.u32 %v128, 4294901760
    %663 = vmatprep.subr.mxu0 %v662
    %v664 = vand.u32 %v127, 4294901760
    %665 = vmatpush1.msra.mxu0 %v664
    %v666 = vand.u32 %v130, 4294901760
    %667 = vmatprep.subr.mxu0 %v666
    %v668 = vand.u32 %v129, 4294901760
    %669 = vmatpush1.msra.mxu0 %v668
    %v670 = vand.u32 %v132, 4294901760
    %671 = vmatprep.subr.mxu0 %v670
    %v672 = vand.u32 %v131, 4294901760
    %673 = vmatpush1.msra.mxu0 %v672
    %v674 = vand.u32 %v134, 4294901760
    %675 = vmatprep.subr.mxu0 %v674
    %v676 = vand.u32 %v133, 4294901760
    %677 = vmatpush1.msra.mxu0 %v676
    %v678 = vand.u32 %v136, 4294901760
    %679 = vmatprep.subr.mxu0 %v678
    %v680 = vand.u32 %v135, 4294901760
    %681 = vmatpush1.msra.mxu0 %v680
    %v682 = vand.u32 %v138, 4294901760
    %683 = vmatprep.subr.mxu0 %v682
    %v684 = vand.u32 %v137, 4294901760
    %685 = vmatpush1.msra.mxu0 %v684
    %v686 = vand.u32 %v140, 4294901760
    %687 = vmatprep.subr.mxu0 %v686
    %v688 = vand.u32 %v139, 4294901760
    %689 = vmatpush1.msra.mxu0 %v688
    %v690 = vand.u32 %v142, 4294901760
    %691 = vmatprep.subr.mxu0 %v690
    %v692 = vand.u32 %v141, 4294901760
    %693 = vmatpush1.msra.mxu0 %v692
    %v694 = vand.u32 %v144, 4294901760
    %695 = vmatprep.subr.mxu0 %v694
    %v696 = vand.u32 %v143, 4294901760
    %697 = vmatpush1.msra.mxu0 %v696
    %698 = vmatprep.subr.mxu0 0.0
    %699 = vmatpush1.msra.mxu0 0.0
    %700 = vmatprep.subr.mxu0 0.0
    %701 = vmatpush1.msra.mxu0 0.0
    %702 = vmatprep.subr.mxu0 0.0
    %703 = vmatpush1.msra.mxu0 0.0
    %704 = vmatprep.subr.mxu0 0.0
    %705 = vmatpush1.msra.mxu0 0.0
    %706 = vmatprep.subr.mxu0 0.0
    %707 = vmatpush1.msra.mxu0 0.0
    %708 = vmatprep.subr.mxu0 0.0
    %709 = vmatpush1.msra.mxu0 0.0
    %710 = vmatprep.subr.mxu0 0.0
    %711 = vmatpush1.msra.mxu0 0.0
    %712 = vmatprep.subr.mxu0 0.0
    %713 = vmatpush1.msra.mxu0 0.0
    %714 = vmatprep.subr.mxu0 0.0
    %715 = vmatpush1.msra.mxu0 0.0
    %716 = vmatprep.subr.mxu0 0.0
    %717 = vmatpush1.msra.mxu0 0.0
    %718 = vmatprep.subr.mxu0 0.0
    %719 = vmatpush1.msra.mxu0 0.0
    %720 = vmatprep.subr.mxu0 0.0
    %721 = vmatpush1.msra.mxu0 0.0
    %722 = vmatprep.subr.mxu0 0.0
    %723 = vmatpush1.msra.mxu0 0.0
    %724 = vmatprep.subr.mxu0 0.0
    %725 = vmatpush1.msra.mxu0 0.0
    %726 = vmatprep.subr.mxu0 0.0
    %727 = vmatpush1.msra.mxu0 0.0
    %728 = vmatprep.subr.mxu0 0.0
    %729 = vmatpush1.msra.mxu0 0.0
    %730 = vmatprep.mubr.f32.mxu0 0.0
    %v731 = vand.u32 %v112, 4294901760
    %v732 = vsub.f32 %v112, %v731
    %v733 = vand.u32 %v732, 4294901760
    %734 = vmatmul.mubr.f32.gmra.mrb[0].mxu0 %v733
    %v735 = vpop.f32.mrb[0].mxu0
    %v736 = vadd.f32 %v630, %v735
    %v737 = vpop.f32.mrb[0].mxu0
    %v738 = vadd.f32 %v632, %v737
    %739 = vdwg.mxu0
    %v740 = vand.u32 %v114, 4294901760
    %v741 = vsub.f32 %v114, %v740
    %v742 = vand.u32 %v741, 4294901760
    %743 = vmatprep.subr.mxu0 %v742
    %v744 = vand.u32 %v113, 4294901760
    %v745 = vsub.f32 %v113, %v744
    %v746 = vand.u32 %v745, 4294901760
    %747 = vmatpush1.msra.mxu0 %v746
    %v748 = vand.u32 %v116, 4294901760
    %v749 = vsub.f32 %v116, %v748
    %v750 = vand.u32 %v749, 4294901760
    %751 = vmatprep.subr.mxu0 %v750
    %v752 = vand.u32 %v115, 4294901760
    %v753 = vsub.f32 %v115, %v752
    %v754 = vand.u32 %v753, 4294901760
    %755 = vmatpush1.msra.mxu0 %v754
    %v756 = vand.u32 %v118, 4294901760
    %v757 = vsub.f32 %v118, %v756
    %v758 = vand.u32 %v757, 4294901760
    %759 = vmatprep.subr.mxu0 %v758
    %v760 = vand.u32 %v117, 4294901760
    %v761 = vsub.f32 %v117, %v760
    %v762 = vand.u32 %v761, 4294901760
    %763 = vmatpush1.msra.mxu0 %v762
    %v764 = vand.u32 %v120, 4294901760
    %v765 = vsub.f32 %v120, %v764
    %v766 = vand.u32 %v765, 4294901760
    %767 = vmatprep.subr.mxu0 %v766
    %v768 = vand.u32 %v119, 4294901760
    %v769 = vsub.f32 %v119, %v768
    %v770 = vand.u32 %v769, 4294901760
    %771 = vmatpush1.msra.mxu0 %v770
    %v772 = vand.u32 %v122, 4294901760
    %v773 = vsub.f32 %v122, %v772
    %v774 = vand.u32 %v773, 4294901760
    %775 = vmatprep.subr.mxu0 %v774
    %v776 = vand.u32 %v121, 4294901760
    %v777 = vsub.f32 %v121, %v776
    %v778 = vand.u32 %v777, 4294901760
    %779 = vmatpush1.msra.mxu0 %v778
    %v780 = vand.u32 %v124, 4294901760
    %v781 = vsub.f32 %v124, %v780
    %v782 = vand.u32 %v781, 4294901760
    %783 = vmatprep.subr.mxu0 %v782
    %v784 = vand.u32 %v123, 4294901760
    %v785 = vsub.f32 %v123, %v784
    %v786 = vand.u32 %v785, 4294901760
    %787 = vmatpush1.msra.mxu0 %v786
    %v788 = vand.u32 %v126, 4294901760
    %v789 = vsub.f32 %v126, %v788
    %v790 = vand.u32 %v789, 4294901760
    %791 = vmatprep.subr.mxu0 %v790
    %v792 = vand.u32 %v125, 4294901760
    %v793 = vsub.f32 %v125, %v792
    %v794 = vand.u32 %v793, 4294901760
    %795 = vmatpush1.msra.mxu0 %v794
    %v796 = vand.u32 %v128, 4294901760
    %v797 = vsub.f32 %v128, %v796
    %v798 = vand.u32 %v797, 4294901760
    %799 = vmatprep.subr.mxu0 %v798
    %v800 = vand.u32 %v127, 4294901760
    %v801 = vsub.f32 %v127, %v800
    %v802 = vand.u32 %v801, 4294901760
    %803 = vmatpush1.msra.mxu0 %v802
    %v804 = vand.u32 %v130, 4294901760
    %v805 = vsub.f32 %v130, %v804
    %v806 = vand.u32 %v805, 4294901760
    %807 = vmatprep.subr.mxu0 %v806
    %v808 = vand.u32 %v129, 4294901760
    %v809 = vsub.f32 %v129, %v808
    %v810 = vand.u32 %v809, 4294901760
    %811 = vmatpush1.msra.mxu0 %v810
    %v812 = vand.u32 %v132, 4294901760
    %v813 = vsub.f32 %v132, %v812
    %v814 = vand.u32 %v813, 4294901760
    %815 = vmatprep.subr.mxu0 %v814
    %v816 = vand.u32 %v131, 4294901760
    %v817 = vsub.f32 %v131, %v816
    %v818 = vand.u32 %v817, 4294901760
    %819 = vmatpush1.msra.mxu0 %v818
    %v820 = vand.u32 %v134, 4294901760
    %v821 = vsub.f32 %v134, %v820
    %v822 = vand.u32 %v821, 4294901760
    %823 = vmatprep.subr.mxu0 %v822
    %v824 = vand.u32 %v133, 4294901760
    %v825 = vsub.f32 %v133, %v824
    %v826 = vand.u32 %v825, 4294901760
    %827 = vmatpush1.msra.mxu0 %v826
    %v828 = vand.u32 %v136, 4294901760
    %v829 = vsub.f32 %v136, %v828
    %v830 = vand.u32 %v829, 4294901760
    %831 = vmatprep.subr.mxu0 %v830
    %v832 = vand.u32 %v135, 4294901760
    %v833 = vsub.f32 %v135, %v832
    %v834 = vand.u32 %v833, 4294901760
    %835 = vmatpush1.msra.mxu0 %v834
    %v836 = vand.u32 %v138, 4294901760
    %v837 = vsub.f32 %v138, %v836
    %v838 = vand.u32 %v837, 4294901760
    %839 = vmatprep.subr.mxu0 %v838
    %v840 = vand.u32 %v137, 4294901760
    %v841 = vsub.f32 %v137, %v840
    %v842 = vand.u32 %v841, 4294901760
    %843 = vmatpush1.msra.mxu0 %v842
    %v844 = vand.u32 %v140, 4294901760
    %v845 = vsub.f32 %v140, %v844
    %v846 = vand.u32 %v845, 4294901760
    %847 = vmatprep.subr.mxu0 %v846
    %v848 = vand.u32 %v139, 4294901760
    %v849 = vsub.f32 %v139, %v848
    %v850 = vand.u32 %v849, 4294901760
    %851 = vmatpush1.msra.mxu0 %v850
    %v852 = vand.u32 %v142, 4294901760
    %v853 = vsub.f32 %v142, %v852
    %v854 = vand.u32 %v853, 4294901760
    %855 = vmatprep.subr.mxu0 %v854
    %v856 = vand.u32 %v141, 4294901760
    %v857 = vsub.f32 %v141, %v856
    %v858 = vand.u32 %v857, 4294901760
    %859 = vmatpush1.msra.mxu0 %v858
    %v860 = vand.u32 %v144, 4294901760
    %v861 = vsub.f32 %v144, %v860
    %v862 = vand.u32 %v861, 4294901760
    %863 = vmatprep.subr.mxu0 %v862
    %v864 = vand.u32 %v143, 4294901760
    %v865 = vsub.f32 %v143, %v864
    %v866 = vand.u32 %v865, 4294901760
    %867 = vmatpush1.msra.mxu0 %v866
    %868 = vmatprep.subr.mxu0 0.0
    %869 = vmatpush1.msra.mxu0 0.0
    %870 = vmatprep.subr.mxu0 0.0
    %871 = vmatpush1.msra.mxu0 0.0
    %872 = vmatprep.subr.mxu0 0.0
    %873 = vmatpush1.msra.mxu0 0.0
    %874 = vmatprep.subr.mxu0 0.0
    %875 = vmatpush1.msra.mxu0 0.0
    %876 = vmatprep.subr.mxu0 0.0
    %877 = vmatpush1.msra.mxu0 0.0
    %878 = vmatprep.subr.mxu0 0.0
    %879 = vmatpush1.msra.mxu0 0.0
    %880 = vmatprep.subr.mxu0 0.0
    %881 = vmatpush1.msra.mxu0 0.0
    %882 = vmatprep.subr.mxu0 0.0
    %883 = vmatpush1.msra.mxu0 0.0
    %884 = vmatprep.subr.mxu0 0.0
    %885 = vmatpush1.msra.mxu0 0.0
    %886 = vmatprep.subr.mxu0 0.0
    %887 = vmatpush1.msra.mxu0 0.0
    %888 = vmatprep.subr.mxu0 0.0
    %889 = vmatpush1.msra.mxu0 0.0
    %890 = vmatprep.subr.mxu0 0.0
    %891 = vmatpush1.msra.mxu0 0.0
    %892 = vmatprep.subr.mxu0 0.0
    %893 = vmatpush1.msra.mxu0 0.0
    %894 = vmatprep.subr.mxu0 0.0
    %895 = vmatpush1.msra.mxu0 0.0
    %896 = vmatprep.subr.mxu0 0.0
    %897 = vmatpush1.msra.mxu0 0.0
    %898 = vmatprep.subr.mxu0 0.0
    %899 = vmatpush1.msra.mxu0 0.0
    %900 = vmatprep.mubr.f32.mxu0 0.0
    %v901 = vand.u32 %v112, 4294901760
    %902 = vmatmul.mubr.f32.gmra.mrb[0].mxu0 %v901
    %v903 = vpop.f32.mrb[0].mxu0
    %v904 = vadd.f32 %v736, %v903
    %v905 = vpop.f32.mrb[0].mxu0
    %v906 = vadd.f32 %v738, %v905
    %907 = vdwg.mxu0
    %v908 = vand.u32 %v114, 4294901760
    %909 = vmatprep.subr.mxu0 %v908
    %v910 = vand.u32 %v113, 4294901760
    %911 = vmatpush1.msra.mxu0 %v910
    %v912 = vand.u32 %v116, 4294901760
    %913 = vmatprep.subr.mxu0 %v912
    %v914 = vand.u32 %v115, 4294901760
    %915 = vmatpush1.msra.mxu0 %v914
    %v916 = vand.u32 %v118, 4294901760
    %917 = vmatprep.subr.mxu0 %v916
    %v918 = vand.u32 %v117, 4294901760
    %919 = vmatpush1.msra.mxu0 %v918
    %v920 = vand.u32 %v120, 4294901760
    %921 = vmatprep.subr.mxu0 %v920
    %v922 = vand.u32 %v119, 4294901760
    %923 = vmatpush1.msra.mxu0 %v922
    %v924 = vand.u32 %v122, 4294901760
    %925 = vmatprep.subr.mxu0 %v924
    %v926 = vand.u32 %v121, 4294901760
    %927 = vmatpush1.msra.mxu0 %v926
    %v928 = vand.u32 %v124, 4294901760
    %929 = vmatprep.subr.mxu0 %v928
    %v930 = vand.u32 %v123, 4294901760
    %931 = vmatpush1.msra.mxu0 %v930
    %v932 = vand.u32 %v126, 4294901760
    %933 = vmatprep.subr.mxu0 %v932
    %v934 = vand.u32 %v125, 4294901760
    %935 = vmatpush1.msra.mxu0 %v934
    %v936 = vand.u32 %v128, 4294901760
    %937 = vmatprep.subr.mxu0 %v936
    %v938 = vand.u32 %v127, 4294901760
    %939 = vmatpush1.msra.mxu0 %v938
    %v940 = vand.u32 %v130, 4294901760
    %941 = vmatprep.subr.mxu0 %v940
    %v942 = vand.u32 %v129, 4294901760
    %943 = vmatpush1.msra.mxu0 %v942
    %v944 = vand.u32 %v132, 4294901760
    %945 = vmatprep.subr.mxu0 %v944
    %v946 = vand.u32 %v131, 4294901760
    %947 = vmatpush1.msra.mxu0 %v946
    %v948 = vand.u32 %v134, 4294901760
    %949 = vmatprep.subr.mxu0 %v948
    %v950 = vand.u32 %v133, 4294901760
    %951 = vmatpush1.msra.mxu0 %v950
    %v952 = vand.u32 %v136, 4294901760
    %953 = vmatprep.subr.mxu0 %v952
    %v954 = vand.u32 %v135, 4294901760
    %955 = vmatpush1.msra.mxu0 %v954
    %v956 = vand.u32 %v138, 4294901760
    %957 = vmatprep.subr.mxu0 %v956
    %v958 = vand.u32 %v137, 4294901760
    %959 = vmatpush1.msra.mxu0 %v958
    %v960 = vand.u32 %v140, 4294901760
    %961 = vmatprep.subr.mxu0 %v960
    %v962 = vand.u32 %v139, 4294901760
    %963 = vmatpush1.msra.mxu0 %v962
    %v964 = vand.u32 %v142, 4294901760
    %965 = vmatprep.subr.mxu0 %v964
    %v966 = vand.u32 %v141, 4294901760
    %967 = vmatpush1.msra.mxu0 %v966
    %v968 = vand.u32 %v144, 4294901760
    %969 = vmatprep.subr.mxu0 %v968
    %v970 = vand.u32 %v143, 4294901760
    %971 = vmatpush1.msra.mxu0 %v970
    %972 = vmatprep.subr.mxu0 0.0
    %973 = vmatpush1.msra.mxu0 0.0
    %974 = vmatprep.subr.mxu0 0.0
    %975 = vmatpush1.msra.mxu0 0.0
    %976 = vmatprep.subr.mxu0 0.0
    %977 = vmatpush1.msra.mxu0 0.0
    %978 = vmatprep.subr.mxu0 0.0
    %979 = vmatpush1.msra.mxu0 0.0
    %980 = vmatprep.subr.mxu0 0.0
    %981 = vmatpush1.msra.mxu0 0.0
    %982 = vmatprep.subr.mxu0 0.0
    %983 = vmatpush1.msra.mxu0 0.0
    %984 = vmatprep.subr.mxu0 0.0
    %985 = vmatpush1.msra.mxu0 0.0
    %986 = vmatprep.subr.mxu0 0.0
    %987 = vmatpush1.msra.mxu0 0.0
    %988 = vmatprep.subr.mxu0 0.0
    %989 = vmatpush1.msra.mxu0 0.0
    %990 = vmatprep.subr.mxu0 0.0
    %991 = vmatpush1.msra.mxu0 0.0
    %992 = vmatprep.subr.mxu0 0.0
    %993 = vmatpush1.msra.mxu0 0.0
    %994 = vmatprep.subr.mxu0 0.0
    %995 = vmatpush1.msra.mxu0 0.0
    %996 = vmatprep.subr.mxu0 0.0
    %997 = vmatpush1.msra.mxu0 0.0
    %998 = vmatprep.subr.mxu0 0.0
    %999 = vmatpush1.msra.mxu0 0.0
    %1000 = vmatprep.subr.mxu0 0.0
    %1001 = vmatpush1.msra.mxu0 0.0
    %1002 = vmatprep.subr.mxu0 0.0
    %1003 = vmatpush1.msra.mxu0 0.0
    %1004 = vmatprep.mubr.f32.mxu0 0.0
    %v1005 = vand.u32 %v112, 4294901760
    %1006 = vmatmul.mubr.f32.gmra.mrb[0].mxu0 %v1005
    %v1007 = vpop.f32.mrb[0].mxu0
    %v1008 = vadd.f32 %v904, %v1007
    %v1009 = vpop.f32.mrb[0].mxu0
    %v1010 = vadd.f32 %v906, %v1009
    %1011 = vdwg.mxu0
    %v1012 = vtanh.pop %v1008
    %v1013 = vtanh.pop %v1010
    %v1014 = vld [vmem:[#allocation10] sm:$0xff]
    %v1015 = vld [vmem:[#allocation10 + $0x8] sm:$0xff]
    %v1016 = vld [vmem:[#allocation10 + $0x10] sm:$0xff]
    %v1017 = vld [vmem:[#allocation10 + $0x18] sm:$0xff]
    %v1018 = vld [vmem:[#allocation10 + $0x20] sm:$0xff]
    %v1019 = vld [vmem:[#allocation10 + $0x28] sm:$0xff]
    %v1020 = vld [vmem:[#allocation10 + $0x30] sm:$0xff]
    %v1021 = vld [vmem:[#allocation10 + $0x38] sm:$0xff]
    %v1022 = vld [vmem:[#allocation10 + $0x40] sm:$0xff]
    %v1023 = vld [vmem:[#allocation10 + $0x48] sm:$0xff]
    %v1024 = vld [vmem:[#allocation10 + $0x50] sm:$0xff]
    %v1025 = vld [vmem:[#allocation10 + $0x58] sm:$0xff]
    %v1026 = vld [vmem:[#allocation10 + $0x60] sm:$0xff]
    %v1027 = vld [vmem:[#allocation10 + $0x68] sm:$0xff]
    %v1028 = vld [vmem:[#allocation10 + $0x70] sm:$0xff]
    %v1029 = vld [vmem:[#allocation10 + $0x78] sm:$0xff]
    %v1030 = vld [vmem:[#allocation10 + $0x80] sm:$0xff]
    %v1031 = vld [vmem:[#allocation10 + $0x88] sm:$0xff]
    %v1032 = vld [vmem:[#allocation10 + $0x90] sm:$0xff]
    %v1033 = vld [vmem:[#allocation10 + $0x98] sm:$0xff]
    %v1034 = vld [vmem:[#allocation10 + $0xa0] sm:$0xff]
    %v1035 = vld [vmem:[#allocation10 + $0xa8] sm:$0xff]
    %v1036 = vld [vmem:[#allocation10 + $0xb0] sm:$0xff]
    %v1037 = vld [vmem:[#allocation10 + $0xb8] sm:$0xff]
    %v1038 = vld [vmem:[#allocation10 + $0xc0] sm:$0xff]
    %v1039 = vld [vmem:[#allocation10 + $0xc8] sm:$0xff]
    %v1040 = vld [vmem:[#allocation10 + $0xd0] sm:$0xff]
    %v1041 = vld [vmem:[#allocation10 + $0xd8] sm:$0xff]
    %v1042 = vld [vmem:[#allocation10 + $0xe0] sm:$0xff]
    %v1043 = vld [vmem:[#allocation10 + $0xe8] sm:$0xff]
    %v1044 = vld [vmem:[#allocation10 + $0xf0] sm:$0xff]
    %v1045 = vld [vmem:[#allocation10 + $0xf8] sm:$0xff]
    %1046 = vmatprep.subr.mxu0 0.0
    %v1047 = vand.u32 %v1014, 4294901760
    %1048 = vmatpush1.msra.mxu0 %v1047
    %1049 = vmatprep.subr.mxu0 0.0
    %v1050 = vand.u32 %v1015, 4294901760
    %1051 = vmatpush1.msra.mxu0 %v1050
    %1052 = vmatprep.subr.mxu0 0.0
    %v1053 = vand.u32 %v1016, 4294901760
    %1054 = vmatpush1.msra.mxu0 %v1053
    %1055 = vmatprep.subr.mxu0 0.0
    %v1056 = vand.u32 %v1017, 4294901760
    %1057 = vmatpush1.msra.mxu0 %v1056
    %1058 = vmatprep.subr.mxu0 0.0
    %v1059 = vand.u32 %v1018, 4294901760
    %1060 = vmatpush1.msra.mxu0 %v1059
    %1061 = vmatprep.subr.mxu0 0.0
    %v1062 = vand.u32 %v1019, 4294901760
    %1063 = vmatpush1.msra.mxu0 %v1062
    %1064 = vmatprep.subr.mxu0 0.0
    %v1065 = vand.u32 %v1020, 4294901760
    %1066 = vmatpush1.msra.mxu0 %v1065
    %1067 = vmatprep.subr.mxu0 0.0
    %v1068 = vand.u32 %v1021, 4294901760
    %1069 = vmatpush1.msra.mxu0 %v1068
    %1070 = vmatprep.subr.mxu0 0.0
    %v1071 = vand.u32 %v1022, 4294901760
    %1072 = vmatpush1.msra.mxu0 %v1071
    %1073 = vmatprep.subr.mxu0 0.0
    %v1074 = vand.u32 %v1023, 4294901760
    %1075 = vmatpush1.msra.mxu0 %v1074
    %1076 = vmatprep.subr.mxu0 0.0
    %v1077 = vand.u32 %v1024, 4294901760
    %1078 = vmatpush1.msra.mxu0 %v1077
    %1079 = vmatprep.subr.mxu0 0.0
    %v1080 = vand.u32 %v1025, 4294901760
    %1081 = vmatpush1.msra.mxu0 %v1080
    %1082 = vmatprep.subr.mxu0 0.0
    %v1083 = vand.u32 %v1026, 4294901760
    %1084 = vmatpush1.msra.mxu0 %v1083
    %1085 = vmatprep.subr.mxu0 0.0
    %v1086 = vand.u32 %v1027, 4294901760
    %1087 = vmatpush1.msra.mxu0 %v1086
    %1088 = vmatprep.subr.mxu0 0.0
    %v1089 = vand.u32 %v1028, 4294901760
    %1090 = vmatpush1.msra.mxu0 %v1089
    %1091 = vmatprep.subr.mxu0 0.0
    %v1092 = vand.u32 %v1029, 4294901760
    %1093 = vmatpush1.msra.mxu0 %v1092
    %1094 = vmatprep.subr.mxu0 0.0
    %v1095 = vand.u32 %v1030, 4294901760
    %1096 = vmatpush1.msra.mxu0 %v1095
    %1097 = vmatprep.subr.mxu0 0.0
    %v1098 = vand.u32 %v1031, 4294901760
    %1099 = vmatpush1.msra.mxu0 %v1098
    %1100 = vmatprep.subr.mxu0 0.0
    %v1101 = vand.u32 %v1032, 4294901760
    %1102 = vmatpush1.msra.mxu0 %v1101
    %1103 = vmatprep.subr.mxu0 0.0
    %v1104 = vand.u32 %v1033, 4294901760
    %1105 = vmatpush1.msra.mxu0 %v1104
    %1106 = vmatprep.subr.mxu0 0.0
    %v1107 = vand.u32 %v1034, 4294901760
    %1108 = vmatpush1.msra.mxu0 %v1107
    %1109 = vmatprep.subr.mxu0 0.0
    %v1110 = vand.u32 %v1035, 4294901760
    %1111 = vmatpush1.msra.mxu0 %v1110
    %1112 = vmatprep.subr.mxu0 0.0
    %v1113 = vand.u32 %v1036, 4294901760
    %1114 = vmatpush1.msra.mxu0 %v1113
    %1115 = vmatprep.subr.mxu0 0.0
    %v1116 = vand.u32 %v1037, 4294901760
    %1117 = vmatpush1.msra.mxu0 %v1116
    %1118 = vmatprep.subr.mxu0 0.0
    %v1119 = vand.u32 %v1038, 4294901760
    %1120 = vmatpush1.msra.mxu0 %v1119
    %1121 = vmatprep.subr.mxu0 0.0
    %v1122 = vand.u32 %v1039, 4294901760
    %1123 = vmatpush1.msra.mxu0 %v1122
    %1124 = vmatprep.subr.mxu0 0.0
    %v1125 = vand.u32 %v1040, 4294901760
    %1126 = vmatpush1.msra.mxu0 %v1125
    %1127 = vmatprep.subr.mxu0 0.0
    %v1128 = vand.u32 %v1041, 4294901760
    %1129 = vmatpush1.msra.mxu0 %v1128
    %1130 = vmatprep.subr.mxu0 0.0
    %v1131 = vand.u32 %v1042, 4294901760
    %1132 = vmatpush1.msra.mxu0 %v1131
    %1133 = vmatprep.subr.mxu0 0.0
    %v1134 = vand.u32 %v1043, 4294901760
    %1135 = vmatpush1.msra.mxu0 %v1134
    %1136 = vmatprep.subr.mxu0 0.0
    %v1137 = vand.u32 %v1044, 4294901760
    %1138 = vmatpush1.msra.mxu0 %v1137
    %1139 = vmatprep.subr.mxu0 0.0
    %v1140 = vand.u32 %v1045, 4294901760
    %1141 = vmatpush1.msra.mxu0 %v1140
    %v1142 = vand.u32 %v1013, 4294901760
    %v1143 = vsub.f32 %v1013, %v1142
    %v1144 = vand.u32 %v1143, 4294901760
    %v1145 = vsub.f32 %v1143, %v1144
    %v1146 = vand.u32 %v1145, 4294901760
    %1147 = vmatprep.mubr.f32.mxu0 %v1146
    %v1148 = vand.u32 %v1012, 4294901760
    %v1149 = vsub.f32 %v1012, %v1148
    %v1150 = vand.u32 %v1149, 4294901760
    %v1151 = vsub.f32 %v1149, %v1150
    %v1152 = vand.u32 %v1151, 4294901760
    %1153 = vmatmul.mubr.f32.gmra.mrb[0].mxu0 %v1152
    %v1154 = vpop.f32.mrb[0].mxu0
    %v1155 = vadd.f32 0.0, %v1154
    %v1156 = vpop.f32.mrb[0].mxu0
    %1157 = vdwg.mxu0
    %1158 = vmatprep.subr.mxu0 0.0
    %v1159 = vand.u32 %v1014, 4294901760
    %v1160 = vsub.f32 %v1014, %v1159
    %v1161 = vand.u32 %v1160, 4294901760
    %v1162 = vsub.f32 %v1160, %v1161
    %v1163 = vand.u32 %v1162, 4294901760
    %1164 = vmatpush1.msra.mxu0 %v1163
    %1165 = vmatprep.subr.mxu0 0.0
    %v1166 = vand.u32 %v1015, 4294901760
    %v1167 = vsub.f32 %v1015, %v1166
    %v1168 = vand.u32 %v1167, 4294901760
    %v1169 = vsub.f32 %v1167, %v1168
    %v1170 = vand.u32 %v1169, 4294901760
    %1171 = vmatpush1.msra.mxu0 %v1170
    %1172 = vmatprep.subr.mxu0 0.0
    %v1173 = vand.u32 %v1016, 4294901760
    %v1174 = vsub.f32 %v1016, %v1173
    %v1175 = vand.u32 %v1174, 4294901760
    %v1176 = vsub.f32 %v1174, %v1175
    %v1177 = vand.u32 %v1176, 4294901760
    %1178 = vmatpush1.msra.mxu0 %v1177
    %1179 = vmatprep.subr.mxu0 0.0
    %v1180 = vand.u32 %v1017, 4294901760
    %v1181 = vsub.f32 %v1017, %v1180
    %v1182 = vand.u32 %v1181, 4294901760
    %v1183 = vsub.f32 %v1181, %v1182
    %v1184 = vand.u32 %v1183, 4294901760
    %1185 = vmatpush1.msra.mxu0 %v1184
    %1186 = vmatprep.subr.mxu0 0.0
    %v1187 = vand.u32 %v1018, 4294901760
    %v1188 = vsub.f32 %v1018, %v1187
    %v1189 = vand.u32 %v1188, 4294901760
    %v1190 = vsub.f32 %v1188, %v1189
    %v1191 = vand.u32 %v1190, 4294901760
    %1192 = vmatpush1.msra.mxu0 %v1191
    %1193 = vmatprep.subr.mxu0 0.0
    %v1194 = vand.u32 %v1019, 4294901760
    %v1195 = vsub.f32 %v1019, %v1194
    %v1196 = vand.u32 %v1195, 4294901760
    %v1197 = vsub.f32 %v1195, %v1196
    %v1198 = vand.u32 %v1197, 4294901760
    %1199 = vmatpush1.msra.mxu0 %v1198
    %1200 = vmatprep.subr.mxu0 0.0
    %v1201 = vand.u32 %v1020, 4294901760
    %v1202 = vsub.f32 %v1020, %v1201
    %v1203 = vand.u32 %v1202, 4294901760
    %v1204 = vsub.f32 %v1202, %v1203
    %v1205 = vand.u32 %v1204, 4294901760
    %1206 = vmatpush1.msra.mxu0 %v1205
    %1207 = vmatprep.subr.mxu0 0.0
    %v1208 = vand.u32 %v1021, 4294901760
    %v1209 = vsub.f32 %v1021, %v1208
    %v1210 = vand.u32 %v1209, 4294901760
    %v1211 = vsub.f32 %v1209, %v1210
    %v1212 = vand.u32 %v1211, 4294901760
    %1213 = vmatpush1.msra.mxu0 %v1212
    %1214 = vmatprep.subr.mxu0 0.0
    %v1215 = vand.u32 %v1022, 4294901760
    %v1216 = vsub.f32 %v1022, %v1215
    %v1217 = vand.u32 %v1216, 4294901760
    %v1218 = vsub.f32 %v1216, %v1217
    %v1219 = vand.u32 %v1218, 4294901760
    %1220 = vmatpush1.msra.mxu0 %v1219
    %1221 = vmatprep.subr.mxu0 0.0
    %v1222 = vand.u32 %v1023, 4294901760
    %v1223 = vsub.f32 %v1023, %v1222
    %v1224 = vand.u32 %v1223, 4294901760
    %v1225 = vsub.f32 %v1223, %v1224
    %v1226 = vand.u32 %v1225, 4294901760
    %1227 = vmatpush1.msra.mxu0 %v1226
    %1228 = vmatprep.subr.mxu0 0.0
    %v1229 = vand.u32 %v1024, 4294901760
    %v1230 = vsub.f32 %v1024, %v1229
    %v1231 = vand.u32 %v1230, 4294901760
    %v1232 = vsub.f32 %v1230, %v1231
    %v1233 = vand.u32 %v1232, 4294901760
    %1234 = vmatpush1.msra.mxu0 %v1233
    %1235 = vmatprep.subr.mxu0 0.0
    %v1236 = vand.u32 %v1025, 4294901760
    %v1237 = vsub.f32 %v1025, %v1236
    %v1238 = vand.u32 %v1237, 4294901760
    %v1239 = vsub.f32 %v1237, %v1238
    %v1240 = vand.u32 %v1239, 4294901760
    %1241 = vmatpush1.msra.mxu0 %v1240
    %1242 = vmatprep.subr.mxu0 0.0
    %v1243 = vand.u32 %v1026, 4294901760
    %v1244 = vsub.f32 %v1026, %v1243
    %v1245 = vand.u32 %v1244, 4294901760
    %v1246 = vsub.f32 %v1244, %v1245
    %v1247 = vand.u32 %v1246, 4294901760
    %1248 = vmatpush1.msra.mxu0 %v1247
    %1249 = vmatprep.subr.mxu0 0.0
    %v1250 = vand.u32 %v1027, 4294901760
    %v1251 = vsub.f32 %v1027, %v1250
    %v1252 = vand.u32 %v1251, 4294901760
    %v1253 = vsub.f32 %v1251, %v1252
    %v1254 = vand.u32 %v1253, 4294901760
    %1255 = vmatpush1.msra.mxu0 %v1254
    %1256 = vmatprep.subr.mxu0 0.0
    %v1257 = vand.u32 %v1028, 4294901760
    %v1258 = vsub.f32 %v1028, %v1257
    %v1259 = vand.u32 %v1258, 4294901760
    %v1260 = vsub.f32 %v1258, %v1259
    %v1261 = vand.u32 %v1260, 4294901760
    %1262 = vmatpush1.msra.mxu0 %v1261
    %1263 = vmatprep.subr.mxu0 0.0
    %v1264 = vand.u32 %v1029, 4294901760
    %v1265 = vsub.f32 %v1029, %v1264
    %v1266 = vand.u32 %v1265, 4294901760
    %v1267 = vsub.f32 %v1265, %v1266
    %v1268 = vand.u32 %v1267, 4294901760
    %1269 = vmatpush1.msra.mxu0 %v1268
    %1270 = vmatprep.subr.mxu0 0.0
    %v1271 = vand.u32 %v1030, 4294901760
    %v1272 = vsub.f32 %v1030, %v1271
    %v1273 = vand.u32 %v1272, 4294901760
    %v1274 = vsub.f32 %v1272, %v1273
    %v1275 = vand.u32 %v1274, 4294901760
    %1276 = vmatpush1.msra.mxu0 %v1275
    %1277 = vmatprep.subr.mxu0 0.0
    %v1278 = vand.u32 %v1031, 4294901760
    %v1279 = vsub.f32 %v1031, %v1278
    %v1280 = vand.u32 %v1279, 4294901760
    %v1281 = vsub.f32 %v1279, %v1280
    %v1282 = vand.u32 %v1281, 4294901760
    %1283 = vmatpush1.msra.mxu0 %v1282
    %1284 = vmatprep.subr.mxu0 0.0
    %v1285 = vand.u32 %v1032, 4294901760
    %v1286 = vsub.f32 %v1032, %v1285
    %v1287 = vand.u32 %v1286, 4294901760
    %v1288 = vsub.f32 %v1286, %v1287
    %v1289 = vand.u32 %v1288, 4294901760
    %1290 = vmatpush1.msra.mxu0 %v1289
    %1291 = vmatprep.subr.mxu0 0.0
    %v1292 = vand.u32 %v1033, 4294901760
    %v1293 = vsub.f32 %v1033, %v1292
    %v1294 = vand.u32 %v1293, 4294901760
    %v1295 = vsub.f32 %v1293, %v1294
    %v1296 = vand.u32 %v1295, 4294901760
    %1297 = vmatpush1.msra.mxu0 %v1296
    %1298 = vmatprep.subr.mxu0 0.0
    %v1299 = vand.u32 %v1034, 4294901760
    %v1300 = vsub.f32 %v1034, %v1299
    %v1301 = vand.u32 %v1300, 4294901760
    %v1302 = vsub.f32 %v1300, %v1301
    %v1303 = vand.u32 %v1302, 4294901760
    %1304 = vmatpush1.msra.mxu0 %v1303
    %1305 = vmatprep.subr.mxu0 0.0
    %v1306 = vand.u32 %v1035, 4294901760
    %v1307 = vsub.f32 %v1035, %v1306
    %v1308 = vand.u32 %v1307, 4294901760
    %v1309 = vsub.f32 %v1307, %v1308
    %v1310 = vand.u32 %v1309, 4294901760
    %1311 = vmatpush1.msra.mxu0 %v1310
    %1312 = vmatprep.subr.mxu0 0.0
    %v1313 = vand.u32 %v1036, 4294901760
    %v1314 = vsub.f32 %v1036, %v1313
    %v1315 = vand.u32 %v1314, 4294901760
    %v1316 = vsub.f32 %v1314, %v1315
    %v1317 = vand.u32 %v1316, 4294901760
    %1318 = vmatpush1.msra.mxu0 %v1317
    %1319 = vmatprep.subr.mxu0 0.0
    %v1320 = vand.u32 %v1037, 4294901760
    %v1321 = vsub.f32 %v1037, %v1320
    %v1322 = vand.u32 %v1321, 4294901760
    %v1323 = vsub.f32 %v1321, %v1322
    %v1324 = vand.u32 %v1323, 4294901760
    %1325 = vmatpush1.msra.mxu0 %v1324
    %1326 = vmatprep.subr.mxu0 0.0
    %v1327 = vand.u32 %v1038, 4294901760
    %v1328 = vsub.f32 %v1038, %v1327
    %v1329 = vand.u32 %v1328, 4294901760
    %v1330 = vsub.f32 %v1328, %v1329
    %v1331 = vand.u32 %v1330, 4294901760
    %1332 = vmatpush1.msra.mxu0 %v1331
    %1333 = vmatprep.subr.mxu0 0.0
    %v1334 = vand.u32 %v1039, 4294901760
    %v1335 = vsub.f32 %v1039, %v1334
    %v1336 = vand.u32 %v1335, 4294901760
    %v1337 = vsub.f32 %v1335, %v1336
    %v1338 = vand.u32 %v1337, 4294901760
    %1339 = vmatpush1.msra.mxu0 %v1338
    %1340 = vmatprep.subr.mxu0 0.0
    %v1341 = vand.u32 %v1040, 4294901760
    %v1342 = vsub.f32 %v1040, %v1341
    %v1343 = vand.u32 %v1342, 4294901760
    %v1344 = vsub.f32 %v1342, %v1343
    %v1345 = vand.u32 %v1344, 4294901760
    %1346 = vmatpush1.msra.mxu0 %v1345
    %1347 = vmatprep.subr.mxu0 0.0
    %v1348 = vand.u32 %v1041, 4294901760
    %v1349 = vsub.f32 %v1041, %v1348
    %v1350 = vand.u32 %v1349, 4294901760
    %v1351 = vsub.f32 %v1349, %v1350
    %v1352 = vand.u32 %v1351, 4294901760
    %1353 = vmatpush1.msra.mxu0 %v1352
    %1354 = vmatprep.subr.mxu0 0.0
    %v1355 = vand.u32 %v1042, 4294901760
    %v1356 = vsub.f32 %v1042, %v1355
    %v1357 = vand.u32 %v1356, 4294901760
    %v1358 = vsub.f32 %v1356, %v1357
    %v1359 = vand.u32 %v1358, 4294901760
    %1360 = vmatpush1.msra.mxu0 %v1359
    %1361 = vmatprep.subr.mxu0 0.0
    %v1362 = vand.u32 %v1043, 4294901760
    %v1363 = vsub.f32 %v1043, %v1362
    %v1364 = vand.u32 %v1363, 4294901760
    %v1365 = vsub.f32 %v1363, %v1364
    %v1366 = vand.u32 %v1365, 4294901760
    %1367 = vmatpush1.msra.mxu0 %v1366
    %1368 = vmatprep.subr.mxu0 0.0
    %v1369 = vand.u32 %v1044, 4294901760
    %v1370 = vsub.f32 %v1044, %v1369
    %v1371 = vand.u32 %v1370, 4294901760
    %v1372 = vsub.f32 %v1370, %v1371
    %v1373 = vand.u32 %v1372, 4294901760
    %1374 = vmatpush1.msra.mxu0 %v1373
    %1375 = vmatprep.subr.mxu0 0.0
    %v1376 = vand.u32 %v1045, 4294901760
    %v1377 = vsub.f32 %v1045, %v1376
    %v1378 = vand.u32 %v1377, 4294901760
    %v1379 = vsub.f32 %v1377, %v1378
    %v1380 = vand.u32 %v1379, 4294901760
    %1381 = vmatpush1.msra.mxu0 %v1380
    %v1382 = vand.u32 %v1013, 4294901760
    %1383 = vmatprep.mubr.f32.mxu0 %v1382
    %v1384 = vand.u32 %v1012, 4294901760
    %1385 = vmatmul.mubr.f32.gmra.mrb[0].mxu0 %v1384
    %v1386 = vpop.f32.mrb[0].mxu0
    %v1387 = vadd.f32 %v1155, %v1386
    %v1388 = vpop.f32.mrb[0].mxu0
    %1389 = vdwg.mxu0
    %1390 = vmatprep.subr.mxu0 0.0
    %v1391 = vand.u32 %v1014, 4294901760
    %v1392 = vsub.f32 %v1014, %v1391
    %1393 = vmatpush1.msra.mxu0 %v1392
    %1394 = vmatprep.subr.mxu0 0.0
    %v1395 = vand.u32 %v1015, 4294901760
    %v1396 = vsub.f32 %v1015, %v1395
    %1397 = vmatpush1.msra.mxu0 %v1396
    %1398 = vmatprep.subr.mxu0 0.0
    %v1399 = vand.u32 %v1016, 4294901760
    %v1400 = vsub.f32 %v1016, %v1399
    %1401 = vmatpush1.msra.mxu0 %v1400
    %1402 = vmatprep.subr.mxu0 0.0
    %v1403 = vand.u32 %v1017, 4294901760
    %v1404 = vsub.f32 %v1017, %v1403
    %1405 = vmatpush1.msra.mxu0 %v1404
    %1406 = vmatprep.subr.mxu0 0.0
    %v1407 = vand.u32 %v1018, 4294901760
    %v1408 = vsub.f32 %v1018, %v1407
    %1409 = vmatpush1.msra.mxu0 %v1408
    %1410 = vmatprep.subr.mxu0 0.0
    %v1411 = vand.u32 %v1019, 4294901760
    %v1412 = vsub.f32 %v1019, %v1411
    %1413 = vmatpush1.msra.mxu0 %v1412
    %1414 = vmatprep.subr.mxu0 0.0
    %v1415 = vand.u32 %v1020, 4294901760
    %v1416 = vsub.f32 %v1020, %v1415
    %1417 = vmatpush1.msra.mxu0 %v1416
    %1418 = vmatprep.subr.mxu0 0.0
    %v1419 = vand.u32 %v1021, 4294901760
    %v1420 = vsub.f32 %v1021, %v1419
    %1421 = vmatpush1.msra.mxu0 %v1420
    %1422 = vmatprep.subr.mxu0 0.0
    %v1423 = vand.u32 %v1022, 4294901760
    %v1424 = vsub.f32 %v1022, %v1423
    %1425 = vmatpush1.msra.mxu0 %v1424
    %1426 = vmatprep.subr.mxu0 0.0
    %v1427 = vand.u32 %v1023, 4294901760
    %v1428 = vsub.f32 %v1023, %v1427
    %1429 = vmatpush1.msra.mxu0 %v1428
    %1430 = vmatprep.subr.mxu0 0.0
    %v1431 = vand.u32 %v1024, 4294901760
    %v1432 = vsub.f32 %v1024, %v1431
    %1433 = vmatpush1.msra.mxu0 %v1432
    %1434 = vmatprep.subr.mxu0 0.0
    %v1435 = vand.u32 %v1025, 4294901760
    %v1436 = vsub.f32 %v1025, %v1435
    %1437 = vmatpush1.msra.mxu0 %v1436
    %1438 = vmatprep.subr.mxu0 0.0
    %v1439 = vand.u32 %v1026, 4294901760
    %v1440 = vsub.f32 %v1026, %v1439
    %1441 = vmatpush1.msra.mxu0 %v1440
    %1442 = vmatprep.subr.mxu0 0.0
    %v1443 = vand.u32 %v1027, 4294901760
    %v1444 = vsub.f32 %v1027, %v1443
    %1445 = vmatpush1.msra.mxu0 %v1444
    %1446 = vmatprep.subr.mxu0 0.0
    %v1447 = vand.u32 %v1028, 4294901760
    %v1448 = vsub.f32 %v1028, %v1447
    %1449 = vmatpush1.msra.mxu0 %v1448
    %1450 = vmatprep.subr.mxu0 0.0
    %v1451 = vand.u32 %v1029, 4294901760
    %v1452 = vsub.f32 %v1029, %v1451
    %1453 = vmatpush1.msra.mxu0 %v1452
    %1454 = vmatprep.subr.mxu0 0.0
    %v1455 = vand.u32 %v1030, 4294901760
    %v1456 = vsub.f32 %v1030, %v1455
    %1457 = vmatpush1.msra.mxu0 %v1456
    %1458 = vmatprep.subr.mxu0 0.0
    %v1459 = vand.u32 %v1031, 4294901760
    %v1460 = vsub.f32 %v1031, %v1459
    %1461 = vmatpush1.msra.mxu0 %v1460
    %1462 = vmatprep.subr.mxu0 0.0
    %v1463 = vand.u32 %v1032, 4294901760
    %v1464 = vsub.f32 %v1032, %v1463
    %1465 = vmatpush1.msra.mxu0 %v1464
    %1466 = vmatprep.subr.mxu0 0.0
    %v1467 = vand.u32 %v1033, 4294901760
    %v1468 = vsub.f32 %v1033, %v1467
    %1469 = vmatpush1.msra.mxu0 %v1468
    %1470 = vmatprep.subr.mxu0 0.0
    %v1471 = vand.u32 %v1034, 4294901760
    %v1472 = vsub.f32 %v1034, %v1471
    %1473 = vmatpush1.msra.mxu0 %v1472
    %1474 = vmatprep.subr.mxu0 0.0
    %v1475 = vand.u32 %v1035, 4294901760
    %v1476 = vsub.f32 %v1035, %v1475
    %1477 = vmatpush1.msra.mxu0 %v1476
    %1478 = vmatprep.subr.mxu0 0.0
    %v1479 = vand.u32 %v1036, 4294901760
    %v1480 = vsub.f32 %v1036, %v1479
    %1481 = vmatpush1.msra.mxu0 %v1480
    %1482 = vmatprep.subr.mxu0 0.0
    %v1483 = vand.u32 %v1037, 4294901760
    %v1484 = vsub.f32 %v1037, %v1483
    %1485 = vmatpush1.msra.mxu0 %v1484
    %1486 = vmatprep.subr.mxu0 0.0
    %v1487 = vand.u32 %v1038, 4294901760
    %v1488 = vsub.f32 %v1038, %v1487
    %1489 = vmatpush1.msra.mxu0 %v1488
    %1490 = vmatprep.subr.mxu0 0.0
    %v1491 = vand.u32 %v1039, 4294901760
    %v1492 = vsub.f32 %v1039, %v1491
    %1493 = vmatpush1.msra.mxu0 %v1492
    %1494 = vmatprep.subr.mxu0 0.0
    %v1495 = vand.u32 %v1040, 4294901760
    %v1496 = vsub.f32 %v1040, %v1495
    %1497 = vmatpush1.msra.mxu0 %v1496
    %1498 = vmatprep.subr.mxu0 0.0
    %v1499 = vand.u32 %v1041, 4294901760
    %v1500 = vsub.f32 %v1041, %v1499
    %1501 = vmatpush1.msra.mxu0 %v1500
    %1502 = vmatprep.subr.mxu0 0.0
    %v1503 = vand.u32 %v1042, 4294901760
    %v1504 = vsub.f32 %v1042, %v1503
    %1505 = vmatpush1.msra.mxu0 %v1504
    %1506 = vmatprep.subr.mxu0 0.0
    %v1507 = vand.u32 %v1043, 4294901760
    %v1508 = vsub.f32 %v1043, %v1507
    %1509 = vmatpush1.msra.mxu0 %v1508
    %1510 = vmatprep.subr.mxu0 0.0
    %v1511 = vand.u32 %v1044, 4294901760
    %v1512 = vsub.f32 %v1044, %v1511
    %1513 = vmatpush1.msra.mxu0 %v1512
    %1514 = vmatprep.subr.mxu0 0.0
    %v1515 = vand.u32 %v1045, 4294901760
    %v1516 = vsub.f32 %v1045, %v1515
    %1517 = vmatpush1.msra.mxu0 %v1516
    %v1518 = vand.u32 %v1013, 4294901760
    %v1519 = vsub.f32 %v1013, %v1518
    %1520 = vmatprep.mubr.f32.mxu0 %v1519
    %v1521 = vand.u32 %v1012, 4294901760
    %v1522 = vsub.f32 %v1012, %v1521
    %1523 = vmatmul.mubr.f32.gmra.mrb[0].mxu0 %v1522
    %v1524 = vpop.f32.mrb[0].mxu0
    %v1525 = vadd.f32 %v1387, %v1524
    %v1526 = vpop.f32.mrb[0].mxu0
    %1527 = vdwg.mxu0
    %1528 = vmatprep.subr.mxu0 0.0
    %v1529 = vand.u32 %v1014, 4294901760
    %1530 = vmatpush1.msra.mxu0 %v1529
    %1531 = vmatprep.subr.mxu0 0.0
    %v1532 = vand.u32 %v1015, 4294901760
    %1533 = vmatpush1.msra.mxu0 %v1532
    %1534 = vmatprep.subr.mxu0 0.0
    %v1535 = vand.u32 %v1016, 4294901760
    %1536 = vmatpush1.msra.mxu0 %v1535
    %1537 = vmatprep.subr.mxu0 0.0
    %v1538 = vand.u32 %v1017, 4294901760
    %1539 = vmatpush1.msra.mxu0 %v1538
    %1540 = vmatprep.subr.mxu0 0.0
    %v1541 = vand.u32 %v1018, 4294901760
    %1542 = vmatpush1.msra.mxu0 %v1541
    %1543 = vmatprep.subr.mxu0 0.0
    %v1544 = vand.u32 %v1019, 4294901760
    %1545 = vmatpush1.msra.mxu0 %v1544
    %1546 = vmatprep.subr.mxu0 0.0
    %v1547 = vand.u32 %v1020, 4294901760
    %1548 = vmatpush1.msra.mxu0 %v1547
    %1549 = vmatprep.subr.mxu0 0.0
    %v1550 = vand.u32 %v1021, 4294901760
    %1551 = vmatpush1.msra.mxu0 %v1550
    %1552 = vmatprep.subr.mxu0 0.0
    %v1553 = vand.u32 %v1022, 4294901760
    %1554 = vmatpush1.msra.mxu0 %v1553
    %1555 = vmatprep.subr.mxu0 0.0
    %v1556 = vand.u32 %v1023, 4294901760
    %1557 = vmatpush1.msra.mxu0 %v1556
    %1558 = vmatprep.subr.mxu0 0.0
    %v1559 = vand.u32 %v1024, 4294901760
    %1560 = vmatpush1.msra.mxu0 %v1559
    %1561 = vmatprep.subr.mxu0 0.0
    %v1562 = vand.u32 %v1025, 4294901760
    %1563 = vmatpush1.msra.mxu0 %v1562
    %1564 = vmatprep.subr.mxu0 0.0
    %v1565 = vand.u32 %v1026, 4294901760
    %1566 = vmatpush1.msra.mxu0 %v1565
    %1567 = vmatprep.subr.mxu0 0.0
    %v1568 = vand.u32 %v1027, 4294901760
    %1569 = vmatpush1.msra.mxu0 %v1568
    %1570 = vmatprep.subr.mxu0 0.0
    %v1571 = vand.u32 %v1028, 4294901760
    %1572 = vmatpush1.msra.mxu0 %v1571
    %1573 = vmatprep.subr.mxu0 0.0
    %v1574 = vand.u32 %v1029, 4294901760
    %1575 = vmatpush1.msra.mxu0 %v1574
    %1576 = vmatprep.subr.mxu0 0.0
    %v1577 = vand.u32 %v1030, 4294901760
    %1578 = vmatpush1.msra.mxu0 %v1577
    %1579 = vmatprep.subr.mxu0 0.0
    %v1580 = vand.u32 %v1031, 4294901760
    %1581 = vmatpush1.msra.mxu0 %v1580
    %1582 = vmatprep.subr.mxu0 0.0
    %v1583 = vand.u32 %v1032, 4294901760
    %1584 = vmatpush1.msra.mxu0 %v1583
    %1585 = vmatprep.subr.mxu0 0.0
    %v1586 = vand.u32 %v1033, 4294901760
    %1587 = vmatpush1.msra.mxu0 %v1586
    %1588 = vmatprep.subr.mxu0 0.0
    %v1589 = vand.u32 %v1034, 4294901760
    %1590 = vmatpush1.msra.mxu0 %v1589
    %1591 = vmatprep.subr.mxu0 0.0
    %v1592 = vand.u32 %v1035, 4294901760
    %1593 = vmatpush1.msra.mxu0 %v1592
    %1594 = vmatprep.subr.mxu0 0.0
    %v1595 = vand.u32 %v1036, 4294901760
    %1596 = vmatpush1.msra.mxu0 %v1595
    %1597 = vmatprep.subr.mxu0 0.0
    %v1598 = vand.u32 %v1037, 4294901760
    %1599 = vmatpush1.msra.mxu0 %v1598
    %1600 = vmatprep.subr.mxu0 0.0
    %v1601 = vand.u32 %v1038, 4294901760
    %1602 = vmatpush1.msra.mxu0 %v1601
    %1603 = vmatprep.subr.mxu0 0.0
    %v1604 = vand.u32 %v1039, 4294901760
    %1605 = vmatpush1.msra.mxu0 %v1604
    %1606 = vmatprep.subr.mxu0 0.0
    %v1607 = vand.u32 %v1040, 4294901760
    %1608 = vmatpush1.msra.mxu0 %v1607
    %1609 = vmatprep.subr.mxu0 0.0
    %v1610 = vand.u32 %v1041, 4294901760
    %1611 = vmatpush1.msra.mxu0 %v1610
    %1612 = vmatprep.subr.mxu0 0.0
    %v1613 = vand.u32 %v1042, 4294901760
    %1614 = vmatpush1.msra.mxu0 %v1613
    %1615 = vmatprep.subr.mxu0 0.0
    %v1616 = vand.u32 %v1043, 4294901760
    %1617 = vmatpush1.msra.mxu0 %v1616
    %1618 = vmatprep.subr.mxu0 0.0
    %v1619 = vand.u32 %v1044, 4294901760
    %1620 = vmatpush1.msra.mxu0 %v1619
    %1621 = vmatprep.subr.mxu0 0.0
    %v1622 = vand.u32 %v1045, 4294901760
    %1623 = vmatpush1.msra.mxu0 %v1622
    %v1624 = vand.u32 %v1013, 4294901760
    %v1625 = vsub.f32 %v1013, %v1624
    %v1626 = vand.u32 %v1625, 4294901760
    %1627 = vmatprep.mubr.f32.mxu0 %v1626
    %v1628 = vand.u32 %v1012, 4294901760
    %v1629 = vsub.f32 %v1012, %v1628
    %v1630 = vand.u32 %v1629, 4294901760
    %1631 = vmatmul.mubr.f32.gmra.mrb[0].mxu0 %v1630
    %v1632 = vpop.f32.mrb[0].mxu0
    %v1633 = vadd.f32 %v1525, %v1632
    %v1634 = vpop.f32.mrb[0].mxu0
    %1635 = vdwg.mxu0
    %1636 = vmatprep.subr.mxu0 0.0
    %v1637 = vand.u32 %v1014, 4294901760
    %v1638 = vsub.f32 %v1014, %v1637
    %v1639 = vand.u32 %v1638, 4294901760
    %1640 = vmatpush1.msra.mxu0 %v1639
    %1641 = vmatprep.subr.mxu0 0.0
    %v1642 = vand.u32 %v1015, 4294901760
    %v1643 = vsub.f32 %v1015, %v1642
    %v1644 = vand.u32 %v1643, 4294901760
    %1645 = vmatpush1.msra.mxu0 %v1644
    %1646 = vmatprep.subr.mxu0 0.0
    %v1647 = vand.u32 %v1016, 4294901760
    %v1648 = vsub.f32 %v1016, %v1647
    %v1649 = vand.u32 %v1648, 4294901760
    %1650 = vmatpush1.msra.mxu0 %v1649
    %1651 = vmatprep.subr.mxu0 0.0
    %v1652 = vand.u32 %v1017, 4294901760
    %v1653 = vsub.f32 %v1017, %v1652
    %v1654 = vand.u32 %v1653, 4294901760
    %1655 = vmatpush1.msra.mxu0 %v1654
    %1656 = vmatprep.subr.mxu0 0.0
    %v1657 = vand.u32 %v1018, 4294901760
    %v1658 = vsub.f32 %v1018, %v1657
    %v1659 = vand.u32 %v1658, 4294901760
    %1660 = vmatpush1.msra.mxu0 %v1659
    %1661 = vmatprep.subr.mxu0 0.0
    %v1662 = vand.u32 %v1019, 4294901760
    %v1663 = vsub.f32 %v1019, %v1662
    %v1664 = vand.u32 %v1663, 4294901760
    %1665 = vmatpush1.msra.mxu0 %v1664
    %1666 = vmatprep.subr.mxu0 0.0
    %v1667 = vand.u32 %v1020, 4294901760
    %v1668 = vsub.f32 %v1020, %v1667
    %v1669 = vand.u32 %v1668, 4294901760
    %1670 = vmatpush1.msra.mxu0 %v1669
    %1671 = vmatprep.subr.mxu0 0.0
    %v1672 = vand.u32 %v1021, 4294901760
    %v1673 = vsub.f32 %v1021, %v1672
    %v1674 = vand.u32 %v1673, 4294901760
    %1675 = vmatpush1.msra.mxu0 %v1674
    %1676 = vmatprep.subr.mxu0 0.0
    %v1677 = vand.u32 %v1022, 4294901760
    %v1678 = vsub.f32 %v1022, %v1677
    %v1679 = vand.u32 %v1678, 4294901760
    %1680 = vmatpush1.msra.mxu0 %v1679
    %1681 = vmatprep.subr.mxu0 0.0
    %v1682 = vand.u32 %v1023, 4294901760
    %v1683 = vsub.f32 %v1023, %v1682
    %v1684 = vand.u32 %v1683, 4294901760
    %1685 = vmatpush1.msra.mxu0 %v1684
    %1686 = vmatprep.subr.mxu0 0.0
    %v1687 = vand.u32 %v1024, 4294901760
    %v1688 = vsub.f32 %v1024, %v1687
    %v1689 = vand.u32 %v1688, 4294901760
    %1690 = vmatpush1.msra.mxu0 %v1689
    %1691 = vmatprep.subr.mxu0 0.0
    %v1692 = vand.u32 %v1025, 4294901760
    %v1693 = vsub.f32 %v1025, %v1692
    %v1694 = vand.u32 %v1693, 4294901760
    %1695 = vmatpush1.msra.mxu0 %v1694
    %1696 = vmatprep.subr.mxu0 0.0
    %v1697 = vand.u32 %v1026, 4294901760
    %v1698 = vsub.f32 %v1026, %v1697
    %v1699 = vand.u32 %v1698, 4294901760
    %1700 = vmatpush1.msra.mxu0 %v1699
    %1701 = vmatprep.subr.mxu0 0.0
    %v1702 = vand.u32 %v1027, 4294901760
    %v1703 = vsub.f32 %v1027, %v1702
    %v1704 = vand.u32 %v1703, 4294901760
    %1705 = vmatpush1.msra.mxu0 %v1704
    %1706 = vmatprep.subr.mxu0 0.0
    %v1707 = vand.u32 %v1028, 4294901760
    %v1708 = vsub.f32 %v1028, %v1707
    %v1709 = vand.u32 %v1708, 4294901760
    %1710 = vmatpush1.msra.mxu0 %v1709
    %1711 = vmatprep.subr.mxu0 0.0
    %v1712 = vand.u32 %v1029, 4294901760
    %v1713 = vsub.f32 %v1029, %v1712
    %v1714 = vand.u32 %v1713, 4294901760
    %1715 = vmatpush1.msra.mxu0 %v1714
    %1716 = vmatprep.subr.mxu0 0.0
    %v1717 = vand.u32 %v1030, 4294901760
    %v1718 = vsub.f32 %v1030, %v1717
    %v1719 = vand.u32 %v1718, 4294901760
    %1720 = vmatpush1.msra.mxu0 %v1719
    %1721 = vmatprep.subr.mxu0 0.0
    %v1722 = vand.u32 %v1031, 4294901760
    %v1723 = vsub.f32 %v1031, %v1722
    %v1724 = vand.u32 %v1723, 4294901760
    %1725 = vmatpush1.msra.mxu0 %v1724
    %1726 = vmatprep.subr.mxu0 0.0
    %v1727 = vand.u32 %v1032, 4294901760
    %v1728 = vsub.f32 %v1032, %v1727
    %v1729 = vand.u32 %v1728, 4294901760
    %1730 = vmatpush1.msra.mxu0 %v1729
    %1731 = vmatprep.subr.mxu0 0.0
    %v1732 = vand.u32 %v1033, 4294901760
    %v1733 = vsub.f32 %v1033, %v1732
    %v1734 = vand.u32 %v1733, 4294901760
    %1735 = vmatpush1.msra.mxu0 %v1734
    %1736 = vmatprep.subr.mxu0 0.0
    %v1737 = vand.u32 %v1034, 4294901760
    %v1738 = vsub.f32 %v1034, %v1737
    %v1739 = vand.u32 %v1738, 4294901760
    %1740 = vmatpush1.msra.mxu0 %v1739
    %1741 = vmatprep.subr.mxu0 0.0
    %v1742 = vand.u32 %v1035, 4294901760
    %v1743 = vsub.f32 %v1035, %v1742
    %v1744 = vand.u32 %v1743, 4294901760
    %1745 = vmatpush1.msra.mxu0 %v1744
    %1746 = vmatprep.subr.mxu0 0.0
    %v1747 = vand.u32 %v1036, 4294901760
    %v1748 = vsub.f32 %v1036, %v1747
    %v1749 = vand.u32 %v1748, 4294901760
    %1750 = vmatpush1.msra.mxu0 %v1749
    %1751 = vmatprep.subr.mxu0 0.0
    %v1752 = vand.u32 %v1037, 4294901760
    %v1753 = vsub.f32 %v1037, %v1752
    %v1754 = vand.u32 %v1753, 4294901760
    %1755 = vmatpush1.msra.mxu0 %v1754
    %1756 = vmatprep.subr.mxu0 0.0
    %v1757 = vand.u32 %v1038, 4294901760
    %v1758 = vsub.f32 %v1038, %v1757
    %v1759 = vand.u32 %v1758, 4294901760
    %1760 = vmatpush1.msra.mxu0 %v1759
    %1761 = vmatprep.subr.mxu0 0.0
    %v1762 = vand.u32 %v1039, 4294901760
    %v1763 = vsub.f32 %v1039, %v1762
    %v1764 = vand.u32 %v1763, 4294901760
    %1765 = vmatpush1.msra.mxu0 %v1764
    %1766 = vmatprep.subr.mxu0 0.0
    %v1767 = vand.u32 %v1040, 4294901760
    %v1768 = vsub.f32 %v1040, %v1767
    %v1769 = vand.u32 %v1768, 4294901760
    %1770 = vmatpush1.msra.mxu0 %v1769
    %1771 = vmatprep.subr.mxu0 0.0
    %v1772 = vand.u32 %v1041, 4294901760
    %v1773 = vsub.f32 %v1041, %v1772
    %v1774 = vand.u32 %v1773, 4294901760
    %1775 = vmatpush1.msra.mxu0 %v1774
    %1776 = vmatprep.subr.mxu0 0.0
    %v1777 = vand.u32 %v1042, 4294901760
    %v1778 = vsub.f32 %v1042, %v1777
    %v1779 = vand.u32 %v1778, 4294901760
    %1780 = vmatpush1.msra.mxu0 %v1779
    %1781 = vmatprep.subr.mxu0 0.0
    %v1782 = vand.u32 %v1043, 4294901760
    %v1783 = vsub.f32 %v1043, %v1782
    %v1784 = vand.u32 %v1783, 4294901760
    %1785 = vmatpush1.msra.mxu0 %v1784
    %1786 = vmatprep.subr.mxu0 0.0
    %v1787 = vand.u32 %v1044, 4294901760
    %v1788 = vsub.f32 %v1044, %v1787
    %v1789 = vand.u32 %v1788, 4294901760
    %1790 = vmatpush1.msra.mxu0 %v1789
    %1791 = vmatprep.subr.mxu0 0.0
    %v1792 = vand.u32 %v1045, 4294901760
    %v1793 = vsub.f32 %v1045, %v1792
    %v1794 = vand.u32 %v1793, 4294901760
    %1795 = vmatpush1.msra.mxu0 %v1794
    %v1796 = vand.u32 %v1013, 4294901760
    %1797 = vmatprep.mubr.f32.mxu0 %v1796
    %v1798 = vand.u32 %v1012, 4294901760
    %1799 = vmatmul.mubr.f32.gmra.mrb[0].mxu0 %v1798
    %v1800 = vpop.f32.mrb[0].mxu0
    %v1801 = vadd.f32 %v1633, %v1800
    %v1802 = vpop.f32.mrb[0].mxu0
    %1803 = vdwg.mxu0
    %1804 = vmatprep.subr.mxu0 0.0
    %v1805 = vand.u32 %v1014, 4294901760
    %1806 = vmatpush1.msra.mxu0 %v1805
    %1807 = vmatprep.subr.mxu0 0.0
    %v1808 = vand.u32 %v1015, 4294901760
    %1809 = vmatpush1.msra.mxu0 %v1808
    %1810 = vmatprep.subr.mxu0 0.0
    %v1811 = vand.u32 %v1016, 4294901760
    %1812 = vmatpush1.msra.mxu0 %v1811
    %1813 = vmatprep.subr.mxu0 0.0
    %v1814 = vand.u32 %v1017, 4294901760
    %1815 = vmatpush1.msra.mxu0 %v1814
    %1816 = vmatprep.subr.mxu0 0.0
    %v1817 = vand.u32 %v1018, 4294901760
    %1818 = vmatpush1.msra.mxu0 %v1817
    %1819 = vmatprep.subr.mxu0 0.0
    %v1820 = vand.u32 %v1019, 4294901760
    %1821 = vmatpush1.msra.mxu0 %v1820
    %1822 = vmatprep.subr.mxu0 0.0
    %v1823 = vand.u32 %v1020, 4294901760
    %1824 = vmatpush1.msra.mxu0 %v1823
    %1825 = vmatprep.subr.mxu0 0.0
    %v1826 = vand.u32 %v1021, 4294901760
    %1827 = vmatpush1.msra.mxu0 %v1826
    %1828 = vmatprep.subr.mxu0 0.0
    %v1829 = vand.u32 %v1022, 4294901760
    %1830 = vmatpush1.msra.mxu0 %v1829
    %1831 = vmatprep.subr.mxu0 0.0
    %v1832 = vand.u32 %v1023, 4294901760
    %1833 = vmatpush1.msra.mxu0 %v1832
    %1834 = vmatprep.subr.mxu0 0.0
    %v1835 = vand.u32 %v1024, 4294901760
    %1836 = vmatpush1.msra.mxu0 %v1835
    %1837 = vmatprep.subr.mxu0 0.0
    %v1838 = vand.u32 %v1025, 4294901760
    %1839 = vmatpush1.msra.mxu0 %v1838
    %1840 = vmatprep.subr.mxu0 0.0
    %v1841 = vand.u32 %v1026, 4294901760
    %1842 = vmatpush1.msra.mxu0 %v1841
    %1843 = vmatprep.subr.mxu0 0.0
    %v1844 = vand.u32 %v1027, 4294901760
    %1845 = vmatpush1.msra.mxu0 %v1844
    %1846 = vmatprep.subr.mxu0 0.0
    %v1847 = vand.u32 %v1028, 4294901760
    %1848 = vmatpush1.msra.mxu0 %v1847
    %1849 = vmatprep.subr.mxu0 0.0
    %v1850 = vand.u32 %v1029, 4294901760
    %1851 = vmatpush1.msra.mxu0 %v1850
    %1852 = vmatprep.subr.mxu0 0.0
    %v1853 = vand.u32 %v1030, 4294901760
    %1854 = vmatpush1.msra.mxu0 %v1853
    %1855 = vmatprep.subr.mxu0 0.0
    %v1856 = vand.u32 %v1031, 4294901760
    %1857 = vmatpush1.msra.mxu0 %v1856
    %1858 = vmatprep.subr.mxu0 0.0
    %v1859 = vand.u32 %v1032, 4294901760
    %1860 = vmatpush1.msra.mxu0 %v1859
    %1861 = vmatprep.subr.mxu0 0.0
    %v1862 = vand.u32 %v1033, 4294901760
    %1863 = vmatpush1.msra.mxu0 %v1862
    %1864 = vmatprep.subr.mxu0 0.0
    %v1865 = vand.u32 %v1034, 4294901760
    %1866 = vmatpush1.msra.mxu0 %v1865
    %1867 = vmatprep.subr.mxu0 0.0
    %v1868 = vand.u32 %v1035, 4294901760
    %1869 = vmatpush1.msra.mxu0 %v1868
    %1870 = vmatprep.subr.mxu0 0.0
    %v1871 = vand.u32 %v1036, 4294901760
    %1872 = vmatpush1.msra.mxu0 %v1871
    %1873 = vmatprep.subr.mxu0 0.0
    %v1874 = vand.u32 %v1037, 4294901760
    %1875 = vmatpush1.msra.mxu0 %v1874
    %1876 = vmatprep.subr.mxu0 0.0
    %v1877 = vand.u32 %v1038, 4294901760
    %1878 = vmatpush1.msra.mxu0 %v1877
    %1879 = vmatprep.subr.mxu0 0.0
    %v1880 = vand.u32 %v1039, 4294901760
    %1881 = vmatpush1.msra.mxu0 %v1880
    %1882 = vmatprep.subr.mxu0 0.0
    %v1883 = vand.u32 %v1040, 4294901760
    %1884 = vmatpush1.msra.mxu0 %v1883
    %1885 = vmatprep.subr.mxu0 0.0
    %v1886 = vand.u32 %v1041, 4294901760
    %1887 = vmatpush1.msra.mxu0 %v1886
    %1888 = vmatprep.subr.mxu0 0.0
    %v1889 = vand.u32 %v1042, 4294901760
    %1890 = vmatpush1.msra.mxu0 %v1889
    %1891 = vmatprep.subr.mxu0 0.0
    %v1892 = vand.u32 %v1043, 4294901760
    %1893 = vmatpush1.msra.mxu0 %v1892
    %1894 = vmatprep.subr.mxu0 0.0
    %v1895 = vand.u32 %v1044, 4294901760
    %1896 = vmatpush1.msra.mxu0 %v1895
    %1897 = vmatprep.subr.mxu0 0.0
    %v1898 = vand.u32 %v1045, 4294901760
    %1899 = vmatpush1.msra.mxu0 %v1898
    %v1900 = vand.u32 %v1013, 4294901760
    %1901 = vmatprep.mubr.f32.mxu0 %v1900
    %v1902 = vand.u32 %v1012, 4294901760
    %1903 = vmatmul.mubr.f32.gmra.mrb[0].mxu0 %v1902
    %v1904 = vpop.f32.mrb[0].mxu0
    %v1905 = vadd.f32 %v1801, %v1904
    %v1906 = vpop.f32.mrb[0].mxu0
    %1907 = vdwg.mxu0
    %v1908 = vld [vmem:[#allocation2] sm:$0x3]
    %v1909 = vlaneseq
    %v1910 = vand.u32 %v1909, 127
    %1911 = vset.pattern.permute.xlu0 0
    %1912 = vperm.xlu0 %1911, %v1908
    %v1913 = vpop.permute.xlu0 %1912
    %vm1914 = vcmp.lt.s32.totalorder %v1910, %v1913
    %v1915 = vsel %vm1914, %v1905, -1e+30
    %vm1916 = vcmask 58368
    %v1917 = vsel %vm1916, %v1915, -inf
    %1918 = vmax.xlane.f32.xlu0 %v1917
    %v1919 = vpop.xlane.xlu0 %1918
    %v1920 = vsub.f32 %v1915, %v1919
    %v1921 = vmul.f32 %v1920, 1.442695
    %v1922 = vpow.pop %v1921
    %v1923 = vsel %vm1916, %v1922, 0.0
    %1924 = vadd.xlane.f32.xlu0 %v1923
    %v1925 = vpop.xlane.xlu0 %1924
    %v1926 = vrcp.pop %v1925
    %v1927 = vmul.f32 %v1922, %v1926
    %v1928 = vld [vmem:[#allocation11] sm:$0xff]
    %vm1929 = vcmask 64512
    %v1931 = vsel %vm1929, %v1927, 0
    %1933 = vmatprep.subr.mxu0 0.0
    %v1934 = vand.u32 %v1928, 4294901760
    %1935 = vmatpush1.msra.mxu0 %v1934
    %1936 = vmatprep.subr.mxu0 0.0
    %1937 = vmatpush1.msra.mxu0 0.0
    %1938 = vmatprep.subr.mxu0 0.0
    %1939 = vmatpush1.msra.mxu0 0.0
    %1940 = vmatprep.subr.mxu0 0.0
    %1941 = vmatpush1.msra.mxu0 0.0
    %1942 = vmatprep.subr.mxu0 0.0
    %1943 = vmatpush1.msra.mxu0 0.0
    %1944 = vmatprep.subr.mxu0 0.0
    %1945 = vmatpush1.msra.mxu0 0.0
    %1946 = vmatprep.subr.mxu0 0.0
    %1947 = vmatpush1.msra.mxu0 0.0
    %1948 = vmatprep.subr.mxu0 0.0
    %1949 = vmatpush1.msra.mxu0 0.0
    %1950 = vmatprep.subr.mxu0 0.0
    %1951 = vmatpush1.msra.mxu0 0.0
    %1952 = vmatprep.subr.mxu0 0.0
    %1953 = vmatpush1.msra.mxu0 0.0
    %1954 = vmatprep.subr.mxu0 0.0
    %1955 = vmatpush1.msra.mxu0 0.0
    %1956 = vmatprep.subr.mxu0 0.0
    %1957 = vmatpush1.msra.mxu0 0.0
    %1958 = vmatprep.subr.mxu0 0.0
    %1959 = vmatpush1.msra.mxu0 0.0
    %1960 = vmatprep.subr.mxu0 0.0
    %1961 = vmatpush1.msra.mxu0 0.0
    %1962 = vmatprep.subr.mxu0 0.0
    %1963 = vmatpush1.msra.mxu0 0.0
    %1964 = vmatprep.subr.mxu0 0.0
    %1965 = vmatpush1.msra.mxu0 0.0
    %1966 = vmatprep.subr.mxu0 0.0
    %1967 = vmatpush1.msra.mxu0 0.0
    %1968 = vmatprep.subr.mxu0 0.0
    %1969 = vmatpush1.msra.mxu0 0.0
    %1970 = vmatprep.subr.mxu0 0.0
    %1971 = vmatpush1.msra.mxu0 0.0
    %1972 = vmatprep.subr.mxu0 0.0
    %1973 = vmatpush1.msra.mxu0 0.0
    %1974 = vmatprep.subr.mxu0 0.0
    %1975 = vmatpush1.msra.mxu0 0.0
    %1976 = vmatprep.subr.mxu0 0.0
    %1977 = vmatpush1.msra.mxu0 0.0
    %1978 = vmatprep.subr.mxu0 0.0
    %1979 = vmatpush1.msra.mxu0 0.0
    %1980 = vmatprep.subr.mxu0 0.0
    %1981 = vmatpush1.msra.mxu0 0.0
    %1982 = vmatprep.subr.mxu0 0.0
    %1983 = vmatpush1.msra.mxu0 0.0
    %1984 = vmatprep.subr.mxu0 0.0
    %1985 = vmatpush1.msra.mxu0 0.0
    %1986 = vmatprep.subr.mxu0 0.0
    %1987 = vmatpush1.msra.mxu0 0.0
    %1988 = vmatprep.subr.mxu0 0.0
    %1989 = vmatpush1.msra.mxu0 0.0
    %1990 = vmatprep.subr.mxu0 0.0
    %1991 = vmatpush1.msra.mxu0 0.0
    %1992 = vmatprep.subr.mxu0 0.0
    %1993 = vmatpush1.msra.mxu0 0.0
    %1994 = vmatprep.subr.mxu0 0.0
    %1995 = vmatpush1.msra.mxu0 0.0
    %1996 = vmatprep.subr.mxu0 0.0
    %1997 = vmatpush1.msra.mxu0 0.0
    %1998 = vmatprep.mubr.f32.mxu0 0.0
    %v1999 = vand.u32 %v1931, 4294901760
    %v2000 = vsub.f32 %v1931, %v1999
    %v2001 = vand.u32 %v2000, 4294901760
    %v2002 = vsub.f32 %v2000, %v2001
    %v2003 = vand.u32 %v2002, 4294901760
    %2004 = vmatmul.mubr.f32.gmra.mrb[0].mxu0 %v2003
    %v2005 = vpop.f32.mrb[0].mxu0
    %v2006 = vadd.f32 0.0, %v2005
    %v2007 = vpop.f32.mrb[0].mxu0
    %2008 = vdwg.mxu0
    %2009 = vmatprep.subr.mxu0 0.0
    %v2010 = vand.u32 %v1928, 4294901760
    %v2011 = vsub.f32 %v1928, %v2010
    %v2012 = vand.u32 %v2011, 4294901760
    %v2013 = vsub.f32 %v2011, %v2012
    %v2014 = vand.u32 %v2013, 4294901760
    %2015 = vmatpush1.msra.mxu0 %v2014
    %2016 = vmatprep.subr.mxu0 0.0
    %2017 = vmatpush1.msra.mxu0 0.0
    %2018 = vmatprep.subr.mxu0 0.0
    %2019 = vmatpush1.msra.mxu0 0.0
    %2020 = vmatprep.subr.mxu0 0.0
    %2021 = vmatpush1.msra.mxu0 0.0
    %2022 = vmatprep.subr.mxu0 0.0
    %2023 = vmatpush1.msra.mxu0 0.0
    %2024 = vmatprep.subr.mxu0 0.0
    %2025 = vmatpush1.msra.mxu0 0.0
    %2026 = vmatprep.subr.mxu0 0.0
    %2027 = vmatpush1.msra.mxu0 0.0
    %2028 = vmatprep.subr.mxu0 0.0
    %2029 = vmatpush1.msra.mxu0 0.0
    %2030 = vmatprep.subr.mxu0 0.0
    %2031 = vmatpush1.msra.mxu0 0.0
    %2032 = vmatprep.subr.mxu0 0.0
    %2033 = vmatpush1.msra.mxu0 0.0
    %2034 = vmatprep.subr.mxu0 0.0
    %2035 = vmatpush1.msra.mxu0 0.0
    %2036 = vmatprep.subr.mxu0 0.0
    %2037 = vmatpush1.msra.mxu0 0.0
    %2038 = vmatprep.subr.mxu0 0.0
    %2039 = vmatpush1.msra.mxu0 0.0
    %2040 = vmatprep.subr.mxu0 0.0
    %2041 = vmatpush1.msra.mxu0 0.0
    %2042 = vmatprep.subr.mxu0 0.0
    %2043 = vmatpush1.msra.mxu0 0.0
    %2044 = vmatprep.subr.mxu0 0.0
    %2045 = vmatpush1.msra.mxu0 0.0
    %2046 = vmatprep.subr.mxu0 0.0
    %2047 = vmatpush1.msra.mxu0 0.0
    %2048 = vmatprep.subr.mxu0 0.0
    %2049 = vmatpush1.msra.mxu0 0.0
    %2050 = vmatprep.subr.mxu0 0.0
    %2051 = vmatpush1.msra.mxu0 0.0
    %2052 = vmatprep.subr.mxu0 0.0
    %2053 = vmatpush1.msra.mxu0 0.0
    %2054 = vmatprep.subr.mxu0 0.0
    %2055 = vmatpush1.msra.mxu0 0.0
    %2056 = vmatprep.subr.mxu0 0.0
    %2057 = vmatpush1.msra.mxu0 0.0
    %2058 = vmatprep.subr.mxu0 0.0
    %2059 = vmatpush1.msra.mxu0 0.0
    %2060 = vmatprep.subr.mxu0 0.0
    %2061 = vmatpush1.msra.mxu0 0.0
    %2062 = vmatprep.subr.mxu0 0.0
    %2063 = vmatpush1.msra.mxu0 0.0
    %2064 = vmatprep.subr.mxu0 0.0
    %2065 = vmatpush1.msra.mxu0 0.0
    %2066 = vmatprep.subr.mxu0 0.0
    %2067 = vmatpush1.msra.mxu0 0.0
    %2068 = vmatprep.subr.mxu0 0.0
    %2069 = vmatpush1.msra.mxu0 0.0
    %2070 = vmatprep.subr.mxu0 0.0
    %2071 = vmatpush1.msra.mxu0 0.0
    %2072 = vmatprep.subr.mxu0 0.0
    %2073 = vmatpush1.msra.mxu0 0.0
    %2074 = vmatprep.subr.mxu0 0.0
    %2075 = vmatpush1.msra.mxu0 0.0
    %2076 = vmatprep.subr.mxu0 0.0
    %2077 = vmatpush1.msra.mxu0 0.0
    %2078 = vmatprep.mubr.f32.mxu0 0.0
    %v2079 = vand.u32 %v1931, 4294901760
    %2080 = vmatmul.mubr.f32.gmra.mrb[0].mxu0 %v2079
    %v2081 = vpop.f32.mrb[0].mxu0
    %v2082 = vadd.f32 %v2006, %v2081
    %v2083 = vpop.f32.mrb[0].mxu0
    %2084 = vdwg.mxu0
    %2085 = vmatprep.subr.mxu0 0.0
    %v2086 = vand.u32 %v1928, 4294901760
    %v2087 = vsub.f32 %v1928, %v2086
    %2088 = vmatpush1.msra.mxu0 %v2087
    %2089 = vmatprep.subr.mxu0 0.0
    %2090 = vmatpush1.msra.mxu0 0.0
    %2091 = vmatprep.subr.mxu0 0.0
    %2092 = vmatpush1.msra.mxu0 0.0
    %2093 = vmatprep.subr.mxu0 0.0
    %2094 = vmatpush1.msra.mxu0 0.0
    %2095 = vmatprep.subr.mxu0 0.0
    %2096 = vmatpush1.msra.mxu0 0.0
    %2097 = vmatprep.subr.mxu0 0.0
    %2098 = vmatpush1.msra.mxu0 0.0
    %2099 = vmatprep.subr.mxu0 0.0
    %2100 = vmatpush1.msra.mxu0 0.0
    %2101 = vmatprep.subr.mxu0 0.0
    %2102 = vmatpush1.msra.mxu0 0.0
    %2103 = vmatprep.subr.mxu0 0.0
    %2104 = vmatpush1.msra.mxu0 0.0
    %2105 = vmatprep.subr.mxu0 0.0
    %2106 = vmatpush1.msra.mxu0 0.0
    %2107 = vmatprep.subr.mxu0 0.0
    %2108 = vmatpush1.msra.mxu0 0.0
    %2109 = vmatprep.subr.mxu0 0.0
    %2110 = vmatpush1.msra.mxu0 0.0
    %2111 = vmatprep.subr.mxu0 0.0
    %2112 = vmatpush1.msra.mxu0 0.0
    %2113 = vmatprep.subr.mxu0 0.0
    %2114 = vmatpush1.msra.mxu0 0.0
    %2115 = vmatprep.subr.mxu0 0.0
    %2116 = vmatpush1.msra.mxu0 0.0
    %2117 = vmatprep.subr.mxu0 0.0
    %2118 = vmatpush1.msra.mxu0 0.0
    %2119 = vmatprep.subr.mxu0 0.0
    %2120 = vmatpush1.msra.mxu0 0.0
    %2121 = vmatprep.subr.mxu0 0.0
    %2122 = vmatpush1.msra.mxu0 0.0
    %2123 = vmatprep.subr.mxu0 0.0
    %2124 = vmatpush1.msra.mxu0 0.0
    %2125 = vmatprep.subr.mxu0 0.0
    %2126 = vmatpush1.msra.mxu0 0.0
    %2127 = vmatprep.subr.mxu0 0.0
    %2128 = vmatpush1.msra.mxu0 0.0
    %2129 = vmatprep.subr.mxu0 0.0
    %2130 = vmatpush1.msra.mxu0 0.0
    %2131 = vmatprep.subr.mxu0 0.0
    %2132 = vmatpush1.msra.mxu0 0.0
    %2133 = vmatprep.subr.mxu0 0.0
    %2134 = vmatpush1.msra.mxu0 0.0
    %2135 = vmatprep.subr.mxu0 0.0
    %2136 = vmatpush1.msra.mxu0 0.0
    %2137 = vmatprep.subr.mxu0 0.0
    %2138 = vmatpush1.msra.mxu0 0.0
    %2139 = vmatprep.subr.mxu0 0.0
    %2140 = vmatpush1.msra.mxu0 0.0
    %2141 = vmatprep.subr.mxu0 0.0
    %2142 = vmatpush1.msra.mxu0 0.0
    %2143 = vmatprep.subr.mxu0 0.0
    %2144 = vmatpush1.msra.mxu0 0.0
    %2145 = vmatprep.subr.mxu0 0.0
    %2146 = vmatpush1.msra.mxu0 0.0
    %2147 = vmatprep.subr.mxu0 0.0
    %2148 = vmatpush1.msra.mxu0 0.0
    %2149 = vmatprep.subr.mxu0 0.0
    %2150 = vmatpush1.msra.mxu0 0.0
    %2151 = vmatprep.mubr.f32.mxu0 0.0
    %v2152 = vand.u32 %v1931, 4294901760
    %v2153 = vsub.f32 %v1931, %v2152
    %2154 = vmatmul.mubr.f32.gmra.mrb[0].mxu0 %v2153
    %v2155 = vpop.f32.mrb[0].mxu0
    %v2156 = vadd.f32 %v2082, %v2155
    %v2157 = vpop.f32.mrb[0].mxu0
    %2158 = vdwg.mxu0
    %2159 = vmatprep.subr.mxu0 0.0
    %v2160 = vand.u32 %v1928, 4294901760
    %2161 = vmatpush1.msra.mxu0 %v2160
    %2162 = vmatprep.subr.mxu0 0.0
    %2163 = vmatpush1.msra.mxu0 0.0
    %2164 = vmatprep.subr.mxu0 0.0
    %2165 = vmatpush1.msra.mxu0 0.0
    %2166 = vmatprep.subr.mxu0 0.0
    %2167 = vmatpush1.msra.mxu0 0.0
    %2168 = vmatprep.subr.mxu0 0.0
    %2169 = vmatpush1.msra.mxu0 0.0
    %2170 = vmatprep.subr.mxu0 0.0
    %2171 = vmatpush1.msra.mxu0 0.0
    %2172 = vmatprep.subr.mxu0 0.0
    %2173 = vmatpush1.msra.mxu0 0.0
    %2174 = vmatprep.subr.mxu0 0.0
    %2175 = vmatpush1.msra.mxu0 0.0
    %2176 = vmatprep.subr.mxu0 0.0
    %2177 = vmatpush1.msra.mxu0 0.0
    %2178 = vmatprep.subr.mxu0 0.0
    %2179 = vmatpush1.msra.mxu0 0.0
    %2180 = vmatprep.subr.mxu0 0.0
    %2181 = vmatpush1.msra.mxu0 0.0
    %2182 = vmatprep.subr.mxu0 0.0
    %2183 = vmatpush1.msra.mxu0 0.0
    %2184 = vmatprep.subr.mxu0 0.0
    %2185 = vmatpush1.msra.mxu0 0.0
    %2186 = vmatprep.subr.mxu0 0.0
    %2187 = vmatpush1.msra.mxu0 0.0
    %2188 = vmatprep.subr.mxu0 0.0
    %2189 = vmatpush1.msra.mxu0 0.0
    %2190 = vmatprep.subr.mxu0 0.0
    %2191 = vmatpush1.msra.mxu0 0.0
    %2192 = vmatprep.subr.mxu0 0.0
    %2193 = vmatpush1.msra.mxu0 0.0
    %2194 = vmatprep.subr.mxu0 0.0
    %2195 = vmatpush1.msra.mxu0 0.0
    %2196 = vmatprep.subr.mxu0 0.0
    %2197 = vmatpush1.msra.mxu0 0.0
    %2198 = vmatprep.subr.mxu0 0.0
    %2199 = vmatpush1.msra.mxu0 0.0
    %2200 = vmatprep.subr.mxu0 0.0
    %2201 = vmatpush1.msra.mxu0 0.0
    %2202 = vmatprep.subr.mxu0 0.0
    %2203 = vmatpush1.msra.mxu0 0.0
    %2204 = vmatprep.subr.mxu0 0.0
    %2205 = vmatpush1.msra.mxu0 0.0
    %2206 = vmatprep.subr.mxu0 0.0
    %2207 = vmatpush1.msra.mxu0 0.0
    %2208 = vmatprep.subr.mxu0 0.0
    %2209 = vmatpush1.msra.mxu0 0.0
    %2210 = vmatprep.subr.mxu0 0.0
    %2211 = vmatpush1.msra.mxu0 0.0
    %2212 = vmatprep.subr.mxu0 0.0
    %2213 = vmatpush1.msra.mxu0 0.0
    %2214 = vmatprep.subr.mxu0 0.0
    %2215 = vmatpush1.msra.mxu0 0.0
    %2216 = vmatprep.subr.mxu0 0.0
    %2217 = vmatpush1.msra.mxu0 0.0
    %2218 = vmatprep.subr.mxu0 0.0
    %2219 = vmatpush1.msra.mxu0 0.0
    %2220 = vmatprep.subr.mxu0 0.0
    %2221 = vmatpush1.msra.mxu0 0.0
    %2222 = vmatprep.subr.mxu0 0.0
    %2223 = vmatpush1.msra.mxu0 0.0
    %2224 = vmatprep.mubr.f32.mxu0 0.0
    %v2225 = vand.u32 %v1931, 4294901760
    %v2226 = vsub.f32 %v1931, %v2225
    %v2227 = vand.u32 %v2226, 4294901760
    %2228 = vmatmul.mubr.f32.gmra.mrb[0].mxu0 %v2227
    %v2229 = vpop.f32.mrb[0].mxu0
    %v2230 = vadd.f32 %v2156, %v2229
    %v2231 = vpop.f32.mrb[0].mxu0
    %2232 = vdwg.mxu0
    %2233 = vmatprep.subr.mxu0 0.0
    %v2234 = vand.u32 %v1928, 4294901760
    %v2235 = vsub.f32 %v1928, %v2234
    %v2236 = vand.u32 %v2235, 4294901760
    %2237 = vmatpush1.msra.mxu0 %v2236
    %2238 = vmatprep.subr.mxu0 0.0
    %2239 = vmatpush1.msra.mxu0 0.0
    %2240 = vmatprep.subr.mxu0 0.0
    %2241 = vmatpush1.msra.mxu0 0.0
    %2242 = vmatprep.subr.mxu0 0.0
    %2243 = vmatpush1.msra.mxu0 0.0
    %2244 = vmatprep.subr.mxu0 0.0
    %2245 = vmatpush1.msra.mxu0 0.0
    %2246 = vmatprep.subr.mxu0 0.0
    %2247 = vmatpush1.msra.mxu0 0.0
    %2248 = vmatprep.subr.mxu0 0.0
    %2249 = vmatpush1.msra.mxu0 0.0
    %2250 = vmatprep.subr.mxu0 0.0
    %2251 = vmatpush1.msra.mxu0 0.0
    %2252 = vmatprep.subr.mxu0 0.0
    %2253 = vmatpush1.msra.mxu0 0.0
    %2254 = vmatprep.subr.mxu0 0.0
    %2255 = vmatpush1.msra.mxu0 0.0
    %2256 = vmatprep.subr.mxu0 0.0
    %2257 = vmatpush1.msra.mxu0 0.0
    %2258 = vmatprep.subr.mxu0 0.0
    %2259 = vmatpush1.msra.mxu0 0.0
    %2260 = vmatprep.subr.mxu0 0.0
    %2261 = vmatpush1.msra.mxu0 0.0
    %2262 = vmatprep.subr.mxu0 0.0
    %2263 = vmatpush1.msra.mxu0 0.0
    %2264 = vmatprep.subr.mxu0 0.0
    %2265 = vmatpush1.msra.mxu0 0.0
    %2266 = vmatprep.subr.mxu0 0.0
    %2267 = vmatpush1.msra.mxu0 0.0
    %2268 = vmatprep.subr.mxu0 0.0
    %2269 = vmatpush1.msra.mxu0 0.0
    %2270 = vmatprep.subr.mxu0 0.0
    %2271 = vmatpush1.msra.mxu0 0.0
    %2272 = vmatprep.subr.mxu0 0.0
    %2273 = vmatpush1.msra.mxu0 0.0
    %2274 = vmatprep.subr.mxu0 0.0
    %2275 = vmatpush1.msra.mxu0 0.0
    %2276 = vmatprep.subr.mxu0 0.0
    %2277 = vmatpush1.msra.mxu0 0.0
    %2278 = vmatprep.subr.mxu0 0.0
    %2279 = vmatpush1.msra.mxu0 0.0
    %2280 = vmatprep.subr.mxu0 0.0
    %2281 = vmatpush1.msra.mxu0 0.0
    %2282 = vmatprep.subr.mxu0 0.0
    %2283 = vmatpush1.msra.mxu0 0.0
    %2284 = vmatprep.subr.mxu0 0.0
    %2285 = vmatpush1.msra.mxu0 0.0
    %2286 = vmatprep.subr.mxu0 0.0
    %2287 = vmatpush1.msra.mxu0 0.0
    %2288 = vmatprep.subr.mxu0 0.0
    %2289 = vmatpush1.msra.mxu0 0.0
    %2290 = vmatprep.subr.mxu0 0.0
    %2291 = vmatpush1.msra.mxu0 0.0
    %2292 = vmatprep.subr.mxu0 0.0
    %2293 = vmatpush1.msra.mxu0 0.0
    %2294 = vmatprep.subr.mxu0 0.0
    %2295 = vmatpush1.msra.mxu0 0.0
    %2296 = vmatprep.subr.mxu0 0.0
    %2297 = vmatpush1.msra.mxu0 0.0
    %2298 = vmatprep.subr.mxu0 0.0
    %2299 = vmatpush1.msra.mxu0 0.0
    %2300 = vmatprep.mubr.f32.mxu0 0.0
    %v2301 = vand.u32 %v1931, 4294901760
    %2302 = vmatmul.mubr.f32.gmra.mrb[0].mxu0 %v2301
    %v2303 = vpop.f32.mrb[0].mxu0
    %v2304 = vadd.f32 %v2230, %v2303
    %v2305 = vpop.f32.mrb[0].mxu0
    %2306 = vdwg.mxu0
    %2307 = vmatprep.subr.mxu0 0.0
    %v2308 = vand.u32 %v1928, 4294901760
    %2309 = vmatpush1.msra.mxu0 %v2308
    %2310 = vmatprep.subr.mxu0 0.0
    %2311 = vmatpush1.msra.mxu0 0.0
    %2312 = vmatprep.subr.mxu0 0.0
    %2313 = vmatpush1.msra.mxu0 0.0
    %2314 = vmatprep.subr.mxu0 0.0
    %2315 = vmatpush1.msra.mxu0 0.0
    %2316 = vmatprep.subr.mxu0 0.0
    %2317 = vmatpush1.msra.mxu0 0.0
    %2318 = vmatprep.subr.mxu0 0.0
    %2319 = vmatpush1.msra.mxu0 0.0
    %2320 = vmatprep.subr.mxu0 0.0
    %2321 = vmatpush1.msra.mxu0 0.0
    %2322 = vmatprep.subr.mxu0 0.0
    %2323 = vmatpush1.msra.mxu0 0.0
    %2324 = vmatprep.subr.mxu0 0.0
    %2325 = vmatpush1.msra.mxu0 0.0
    %2326 = vmatprep.subr.mxu0 0.0
    %2327 = vmatpush1.msra.mxu0 0.0
    %2328 = vmatprep.subr.mxu0 0.0
    %2329 = vmatpush1.msra.mxu0 0.0
    %2330 = vmatprep.subr.mxu0 0.0
    %2331 = vmatpush1.msra.mxu0 0.0
    %2332 = vmatprep.subr.mxu0 0.0
    %2333 = vmatpush1.msra.mxu0 0.0
    %2334 = vmatprep.subr.mxu0 0.0
    %2335 = vmatpush1.msra.mxu0 0.0
    %2336 = vmatprep.subr.mxu0 0.0
    %2337 = vmatpush1.msra.mxu0 0.0
    %2338 = vmatprep.subr.mxu0 0.0
    %2339 = vmatpush1.msra.mxu0 0.0
    %2340 = vmatprep.subr.mxu0 0.0
    %2341 = vmatpush1.msra.mxu0 0.0
    %2342 = vmatprep.subr.mxu0 0.0
    %2343 = vmatpush1.msra.mxu0 0.0
    %2344 = vmatprep.subr.mxu0 0.0
    %2345 = vmatpush1.msra.mxu0 0.0
    %2346 = vmatprep.subr.mxu0 0.0
    %2347 = vmatpush1.msra.mxu0 0.0
    %2348 = vmatprep.subr.mxu0 0.0
    %2349 = vmatpush1.msra.mxu0 0.0
    %2350 = vmatprep.subr.mxu0 0.0
    %2351 = vmatpush1.msra.mxu0 0.0
    %2352 = vmatprep.subr.mxu0 0.0
    %2353 = vmatpush1.msra.mxu0 0.0
    %2354 = vmatprep.subr.mxu0 0.0
    %2355 = vmatpush1.msra.mxu0 0.0
    %2356 = vmatprep.subr.mxu0 0.0
    %2357 = vmatpush1.msra.mxu0 0.0
    %2358 = vmatprep.subr.mxu0 0.0
    %2359 = vmatpush1.msra.mxu0 0.0
    %2360 = vmatprep.subr.mxu0 0.0
    %2361 = vmatpush1.msra.mxu0 0.0
    %2362 = vmatprep.subr.mxu0 0.0
    %2363 = vmatpush1.msra.mxu0 0.0
    %2364 = vmatprep.subr.mxu0 0.0
    %2365 = vmatpush1.msra.mxu0 0.0
    %2366 = vmatprep.subr.mxu0 0.0
    %2367 = vmatpush1.msra.mxu0 0.0
    %2368 = vmatprep.subr.mxu0 0.0
    %2369 = vmatpush1.msra.mxu0 0.0
    %2370 = vmatprep.subr.mxu0 0.0
    %2371 = vmatpush1.msra.mxu0 0.0
    %2372 = vmatprep.mubr.f32.mxu0 0.0
    %v2373 = vand.u32 %v1931, 4294901760
    %2374 = vmatmul.mubr.f32.gmra.mrb[0].mxu0 %v2373
    %v2375 = vpop.f32.mrb[0].mxu0
    %v2376 = vadd.f32 %v2304, %v2375
    %v2377 = vpop.f32.mrb[0].mxu0
    %2378 = vdwg.mxu0
    %v2379 = vld [vmem:[#allocation13] sm:$0x1]
    %v2380 = vlaneseq
    %v2381 = vshrl.u32 %v2380, 7
    %v2382 = vsub.s32 0, %v2381
    %v2383 = vrot.slane %v2379, %v2382
    %2384 = vset.pattern.permute.xlu0 1
    %2385 = vperm.xlu0 %2384, %v1908
    %v2386 = vpop.permute.xlu0 %2385
    %vm2387 = vcmp.eq.s32.totalorder %v2383, %v2386
    %v2388 = vsel %vm2387, 1, 0
    %v2389 = vcvt.s32.f32 %v2388
    %v2390 = vmul.f32 %v2376, %v2389
    %v2391 = vadd.f32 %v112, %v2390
    %v2392 = vmin.f32 %v2391, 1.0
    %2393 = vst [vmem:[#allocation14] sm:$0x3] %v2392
    // Predicated region
    $region58: #{tpu_custom_call.1} parent=1 // pred_check
      _
    $region59: #{tpu_custom_call.1} parent=1 // pred_check_branch
      %2395 = sbr.rel (0) target = $region61
    $region60: #{tpu_custom_call.1} parent=1 // pred_region
      %s2397 = ssub.s32 32, 32
      %2398 = vsyncadd [#allocation4], %s2397
      %s2400 = sshll.u32 [#allocation14], 4
      %s2401 = int_to_ptr.vmem [resolvable:$true] %s2400
      %2403 = dma.vmem_to_hbm [thread:$0]  %s2401, 32, %s7, [#allocation4]
    $region61: #{tpu_custom_call.1} parent=1 // pred_fallthru
      _
    // Predicated region
    $region62: #{tpu_custom_call.1} parent=1 // pred_check
      _
    $region63: #{tpu_custom_call.1} parent=1 // pred_check_branch
      %2405 = sbr.rel (0) target = $region65
    $region64: #{tpu_custom_call.1} parent=1 // pred_region
      %2406 = dma.done [#allocation4], 32
    $region65: #{tpu_custom_call.1} parent=1 // pred_fallthru
      _
    %2407 = vsyncpa [#allocation3], 1
    %2408 = vsyncpa [#allocation6], 1
    %2409 = vsyncpa [#allocation9], 1
    %2410 = vsyncpa [#allocation12], 1
    %2411 = vsyncpa [#allocation4], 1

// kernel: tpu_custom_call.1
$region0: #{tpu_custom_call.1}
  #allocation0 [shape = 'u32[]', space=smem, size = 0x4, offset = 0x4, fixed_abs, tag = 'smem constant byte address 0x4 - core index']
  #allocation1 [shape = 'u32[144,128]{1,0:T(1,128)}', space=vmem, size = 0x12000, scoped, tag = 'internal scratch']
  %s0 = inlined_call_operand.hbm [shape: s32[2,2], index: 0, kind: input, shape index: {}]
  %s1 = inlined_call_operand.hbm [shape: f32[2,128], index: 1, kind: input, shape index: {}]
  %s2 = inlined_call_operand.hbm [shape: f32[128,256], index: 2, kind: input, shape index: {}]
  %s3 = inlined_call_operand.hbm [shape: f32[1,256], index: 3, kind: input, shape index: {}]
  %s4 = inlined_call_operand.hbm [shape: f32[256,8], index: 4, kind: input, shape index: {}]
  %s5 = inlined_call_operand.hbm [shape: f32[8,128], index: 5, kind: input, shape index: {}]
  %s6 = inlined_call_operand.hbm [shape: s32[1,128], index: 6, kind: input, shape index: {}]
  %s7 = inlined_call_operand.hbm [shape: f32[2,128], index: 7, kind: output, shape index: {}]
  %s8 = sld [smem:[#allocation0]]
  $region66: #{tpu_custom_call.1} parent=0
    _
  %s10 = ssub.s32 1, %s8
  %s11 = scalar_select 0, %s10, %s8
  $region1: #{tpu_custom_call.1} parent=0
    #allocation2 [shape = 'u8[1024]{0}', space=vmem, size = 0x400, scoped, tag = 'input window, operand 0, single buffered']
    #allocation3 [shape = 's32[1]{0}', space=sflag, size = 0x4, scoped, tag = 'scoped memory for tpu_custom_call.1']
    #allocation4 [shape = 's32[1]{0}', space=sflag, size = 0x4, scoped, tag = 'scoped memory for tpu_custom_call.1']
    #allocation5 [shape = 'u8[1024]{0}', space=vmem, size = 0x400, scoped, tag = 'input window, operand 1, single buffered']
    #allocation6 [shape = 's32[1]{0}', space=sflag, size = 0x4, scoped, tag = 'scoped memory for tpu_custom_call.1']
    #allocation7 [shape = 'u8[131072]{0}', space=vmem, size = 0x20000, scoped, tag = 'input window, operand 2, single buffered']
    #allocation8 [shape = 'u8[1024]{0}', space=vmem, size = 0x400, scoped, tag = 'input window, operand 3, single buffered']
    #allocation9 [shape = 's32[1]{0}', space=sflag, size = 0x4, scoped, tag = 'scoped memory for tpu_custom_call.1']
    #allocation10 [shape = 'u8[131072]{0}', space=vmem, size = 0x20000, scoped, tag = 'input window, operand 4, single buffered']
    #allocation11 [shape = 'u8[4096]{0}', space=vmem, size = 0x1000, scoped, tag = 'input window, operand 5, single buffered']
    #allocation12 [shape = 's32[1]{0}', space=sflag, size = 0x4, scoped, tag = 'scoped memory for tpu_custom_call.1']
    #allocation13 [shape = 'u8[512]{0}', space=vmem, size = 0x400, scoped, tag = 'input window, operand 6, single buffered']
    #allocation14 [shape = 'u8[1024]{0}', space=vmem, size = 0x400, scoped, tag = 'output window, operand 0, single buffered']
    %12 = vsyncpa [#allocation3], 0
    %13 = vsyncpa [#allocation6], 0
    %14 = vsyncpa [#allocation9], 0
    %15 = vsyncpa [#allocation12], 0
    %16 = vsyncpa [#allocation4], 0
    // Predicated region
    $region2: #{tpu_custom_call.1} parent=1 // pred_check
      _
    $region3: #{tpu_custom_call.1} parent=1 // pred_check_branch
      %18 = sbr.rel (0) target = $region5
    $region4: #{tpu_custom_call.1} parent=1 // pred_region
      %s20 = ssub.s32 32, 32
      %21 = vsyncadd [#allocation3], %s20
      %s23 = sshll.u32 [#allocation2], 4
      %s24 = int_to_ptr.vmem [resolvable:$true] %s23
      %26 = dma.hbm_to_vmem [thread:$0]  %s0, 32, %s24, [#allocation3]
    $region5: #{tpu_custom_call.1} parent=1 // pred_fallthru
      _
    // Predicated region
    $region6: #{tpu_custom_call.1} parent=1 // pred_check
      _
    $region7: #{tpu_custom_call.1} parent=1 // pred_check_branch
      %28 = sbr.rel (0) target = $region9
    $region8: #{tpu_custom_call.1} parent=1 // pred_region
      %s30 = ssub.s32 32, 32
      %31 = vsyncadd [#allocation6], %s30
      %s33 = sshll.u32 [#allocation5], 4
      %s34 = int_to_ptr.vmem [resolvable:$true] %s33
      %36 = dma.hbm_to_vmem [thread:$0]  %s1, 32, %s34, [#allocation6]
    $region9: #{tpu_custom_call.1} parent=1 // pred_fallthru
      _
    // Predicated region
    $region10: #{tpu_custom_call.1} parent=1 // pred_check
      _
    $region11: #{tpu_custom_call.1} parent=1 // pred_check_branch
      %38 = sbr.rel (0) target = $region13
    $region12: #{tpu_custom_call.1} parent=1 // pred_region
      %s40 = ssub.s32 4096, 4096
      %41 = vsyncadd [#allocation6], %s40
      %s42 = sshll.u32 [#allocation7], 4
      %s43 = int_to_ptr.vmem [resolvable:$true] %s42
      %48 = dma.hbm_to_vmem [thread:$0]  %s2, 4096, %s43, [#allocation6], 256, 256, 16
    $region13: #{tpu_custom_call.1} parent=1 // pred_fallthru
      _
    // Predicated region
    $region14: #{tpu_custom_call.1} parent=1 // pred_check
      _
    $region15: #{tpu_custom_call.1} parent=1 // pred_check_branch
      %50 = sbr.rel (0) target = $region17
    $region16: #{tpu_custom_call.1} parent=1 // pred_region
      %s52 = ssub.s32 32, 32
      %53 = vsyncadd [#allocation9], %s52
      %s55 = sshll.u32 [#allocation8], 4
      %s56 = int_to_ptr.vmem [resolvable:$true] %s55
      %58 = dma.hbm_to_vmem [thread:$0]  %s3, 32, %s56, [#allocation9]
    $region17: #{tpu_custom_call.1} parent=1 // pred_fallthru
      _
    // Predicated region
    $region18: #{tpu_custom_call.1} parent=1 // pred_check
      _
    $region19: #{tpu_custom_call.1} parent=1 // pred_check_branch
      %60 = sbr.rel (0) target = $region21
    $region20: #{tpu_custom_call.1} parent=1 // pred_region
      %s62 = ssub.s32 4096, 4096
      %63 = vsyncadd [#allocation9], %s62
      %s64 = sshll.u32 [#allocation10], 4
      %s65 = int_to_ptr.vmem [resolvable:$true] %s64
      %70 = dma.hbm_to_vmem [thread:$0]  %s4, 4096, %s65, [#allocation9], 128, 128, 8
    $region21: #{tpu_custom_call.1} parent=1 // pred_fallthru
      _
    // Predicated region
    $region22: #{tpu_custom_call.1} parent=1 // pred_check
      _
    $region23: #{tpu_custom_call.1} parent=1 // pred_check_branch
      %72 = sbr.rel (0) target = $region25
    $region24: #{tpu_custom_call.1} parent=1 // pred_region
      %s74 = ssub.s32 128, 128
      %75 = vsyncadd [#allocation12], %s74
      %s77 = sshll.u32 [#allocation11], 4
      %s78 = int_to_ptr.vmem [resolvable:$true] %s77
      %80 = dma.hbm_to_vmem [thread:$0]  %s5, 128, %s78, [#allocation12]
    $region25: #{tpu_custom_call.1} parent=1 // pred_fallthru
      _
    // Predicated region
    $region26: #{tpu_custom_call.1} parent=1 // pred_check
      _
    $region27: #{tpu_custom_call.1} parent=1 // pred_check_branch
      %82 = sbr.rel (0) target = $region29
    $region28: #{tpu_custom_call.1} parent=1 // pred_region
      %s84 = ssub.s32 16, 16
      %85 = vsyncadd [#allocation12], %s84
      %s87 = sshll.u32 [#allocation13], 4
      %s88 = int_to_ptr.vmem [resolvable:$true] %s87
      %90 = dma.hbm_to_vmem [thread:$0]  %s6, 16, %s88, [#allocation12]
    $region29: #{tpu_custom_call.1} parent=1 // pred_fallthru
      _
    // Predicated region
    $region30: #{tpu_custom_call.1} parent=1 // pred_check
      _
    $region31: #{tpu_custom_call.1} parent=1 // pred_check_branch
      %92 = sbr.rel (0) target = $region33
    $region32: #{tpu_custom_call.1} parent=1 // pred_region
      %93 = dma.done [#allocation3], 32
    $region33: #{tpu_custom_call.1} parent=1 // pred_fallthru
      _
    // Predicated region
    $region34: #{tpu_custom_call.1} parent=1 // pred_check
      _
    $region35: #{tpu_custom_call.1} parent=1 // pred_check_branch
      %95 = sbr.rel (0) target = $region37
    $region36: #{tpu_custom_call.1} parent=1 // pred_region
      %96 = dma.done [#allocation6], 32
    $region37: #{tpu_custom_call.1} parent=1 // pred_fallthru
      _
    // Predicated region
    $region38: #{tpu_custom_call.1} parent=1 // pred_check
      _
    $region39: #{tpu_custom_call.1} parent=1 // pred_check_branch
      %98 = sbr.rel (0) target = $region41
    $region40: #{tpu_custom_call.1} parent=1 // pred_region
      %99 = dma.done [#allocation6], 4096
    $region41: #{tpu_custom_call.1} parent=1 // pred_fallthru
      _
    // Predicated region
    $region42: #{tpu_custom_call.1} parent=1 // pred_check
      _
    $region43: #{tpu_custom_call.1} parent=1 // pred_check_branch
      %101 = sbr.rel (0) target = $region45
    $region44: #{tpu_custom_call.1} parent=1 // pred_region
      %102 = dma.done [#allocation9], 32
    $region45: #{tpu_custom_call.1} parent=1 // pred_fallthru
      _
    // Predicated region
    $region46: #{tpu_custom_call.1} parent=1 // pred_check
      _
    $region47: #{tpu_custom_call.1} parent=1 // pred_check_branch
      %104 = sbr.rel (0) target = $region49
    $region48: #{tpu_custom_call.1} parent=1 // pred_region
      %105 = dma.done [#allocation9], 4096
    $region49: #{tpu_custom_call.1} parent=1 // pred_fallthru
      _
    // Predicated region
    $region50: #{tpu_custom_call.1} parent=1 // pred_check
      _
    $region51: #{tpu_custom_call.1} parent=1 // pred_check_branch
      %107 = sbr.rel (0) target = $region53
    $region52: #{tpu_custom_call.1} parent=1 // pred_region
      %108 = dma.done [#allocation12], 128
    $region53: #{tpu_custom_call.1} parent=1 // pred_fallthru
      _
    // Predicated region
    $region54: #{tpu_custom_call.1} parent=1 // pred_check
      _
    $region55: #{tpu_custom_call.1} parent=1 // pred_check_branch
      %110 = sbr.rel (0) target = $region57
    $region56: #{tpu_custom_call.1} parent=1 // pred_region
      %111 = dma.done [#allocation12], 16
    $region57: #{tpu_custom_call.1} parent=1 // pred_fallthru
      _
    %v112 = vld [vmem:[#allocation5] sm:$0x3]
    %v113 = vld [vmem:[#allocation7] sm:$0xff]
    %v114 = vld [vmem:[#allocation7 + $0x8] sm:$0xff]
    %v115 = vld [vmem:[#allocation7 + $0x10] sm:$0xff]
    %v116 = vld [vmem:[#allocation7 + $0x18] sm:$0xff]
    %v117 = vld [vmem:[#allocation7 + $0x20] sm:$0xff]
    %v118 = vld [vmem:[#allocation7 + $0x28] sm:$0xff]
    %v119 = vld [vmem:[#allocation7 + $0x30] sm:$0xff]
    %v120 = vld [vmem:[#allocation7 + $0x38] sm:$0xff]
    %v121 = vld [vmem:[#allocation7 + $0x40] sm:$0xff]
    %v122 = vld [vmem:[#allocation7 + $0x48] sm:$0xff]
    %v123 = vld [vmem:[#allocation7 + $0x50] sm:$0xff]
    %v124 = vld [vmem:[#allocation7 + $0x58] sm:$0xff]
    %v125 = vld [vmem:[#allocation7 + $0x60] sm:$0xff]
    %v126 = vld [vmem:[#allocation7 + $0x68] sm:$0xff]
    %v127 = vld [vmem:[#allocation7 + $0x70] sm:$0xff]
    %v128 = vld [vmem:[#allocation7 + $0x78] sm:$0xff]
    %v129 = vld [vmem:[#allocation7 + $0x80] sm:$0xff]
    %v130 = vld [vmem:[#allocation7 + $0x88] sm:$0xff]
    %v131 = vld [vmem:[#allocation7 + $0x90] sm:$0xff]
    %v132 = vld [vmem:[#allocation7 + $0x98] sm:$0xff]
    %v133 = vld [vmem:[#allocation7 + $0xa0] sm:$0xff]
    %v134 = vld [vmem:[#allocation7 + $0xa8] sm:$0xff]
    %v135 = vld [vmem:[#allocation7 + $0xb0] sm:$0xff]
    %v136 = vld [vmem:[#allocation7 + $0xb8] sm:$0xff]
    %v137 = vld [vmem:[#allocation7 + $0xc0] sm:$0xff]
    %v138 = vld [vmem:[#allocation7 + $0xc8] sm:$0xff]
    %v139 = vld [vmem:[#allocation7 + $0xd0] sm:$0xff]
    %v140 = vld [vmem:[#allocation7 + $0xd8] sm:$0xff]
    %v141 = vld [vmem:[#allocation7 + $0xe0] sm:$0xff]
    %v142 = vld [vmem:[#allocation7 + $0xe8] sm:$0xff]
    %v143 = vld [vmem:[#allocation7 + $0xf0] sm:$0xff]
    %v144 = vld [vmem:[#allocation7 + $0xf8] sm:$0xff]
    %v145 = vld [vmem:[#allocation8] sm:$0x3]
    %v147 = vlaneseq
    %v148 = vshrl.u32 %v147, 7
    %v149 = vsub.s32 0, %v148
    %v150 = vrot.slane %v145, %v149
    %v151 = vlaneseq
    %v152 = vshrl.u32 %v151, 7
    %v153 = vsub.s32 1, %v152
    %v154 = vrot.slane %v145, %v153
    %157 = vmatprep.subr.mxu0 %v114
    %158 = vmatpush1.msra.mxu0 %v113
    %159 = vmatprep.subr.mxu0 %v116
    %160 = vmatpush1.msra.mxu0 %v115
    %161 = vmatprep.subr.mxu0 %v118
    %162 = vmatpush1.msra.mxu0 %v117
    %163 = vmatprep.subr.mxu0 %v120
    %164 = vmatpush1.msra.mxu0 %v119
    %165 = vmatprep.subr.mxu0 %v122
    %166 = vmatpush1.msra.mxu0 %v121
    %167 = vmatprep.subr.mxu0 %v124
    %168 = vmatpush1.msra.mxu0 %v123
    %169 = vmatprep.subr.mxu0 %v126
    %170 = vmatpush1.msra.mxu0 %v125
    %171 = vmatprep.subr.mxu0 %v128
    %172 = vmatpush1.msra.mxu0 %v127
    %173 = vmatprep.subr.mxu0 %v130
    %174 = vmatpush1.msra.mxu0 %v129
    %175 = vmatprep.subr.mxu0 %v132
    %176 = vmatpush1.msra.mxu0 %v131
    %177 = vmatprep.subr.mxu0 %v134
    %178 = vmatpush1.msra.mxu0 %v133
    %179 = vmatprep.subr.mxu0 %v136
    %180 = vmatpush1.msra.mxu0 %v135
    %181 = vmatprep.subr.mxu0 %v138
    %182 = vmatpush1.msra.mxu0 %v137
    %183 = vmatprep.subr.mxu0 %v140
    %184 = vmatpush1.msra.mxu0 %v139
    %185 = vmatprep.subr.mxu0 %v142
    %186 = vmatpush1.msra.mxu0 %v141
    %187 = vmatprep.subr.mxu0 %v144
    %188 = vmatpush1.msra.mxu0 %v143
    %189 = vmatprep.subr.mxu0 0.0
    %190 = vmatpush1.msra.mxu0 0.0
    %191 = vmatprep.subr.mxu0 0.0
    %192 = vmatpush1.msra.mxu0 0.0
    %193 = vmatprep.subr.mxu0 0.0
    %194 = vmatpush1.msra.mxu0 0.0
    %195 = vmatprep.subr.mxu0 0.0
    %196 = vmatpush1.msra.mxu0 0.0
    %197 = vmatprep.subr.mxu0 0.0
    %198 = vmatpush1.msra.mxu0 0.0
    %199 = vmatprep.subr.mxu0 0.0
    %200 = vmatpush1.msra.mxu0 0.0
    %201 = vmatprep.subr.mxu0 0.0
    %202 = vmatpush1.msra.mxu0 0.0
    %203 = vmatprep.subr.mxu0 0.0
    %204 = vmatpush1.msra.mxu0 0.0
    %205 = vmatprep.subr.mxu0 0.0
    %206 = vmatpush1.msra.mxu0 0.0
    %207 = vmatprep.subr.mxu0 0.0
    %208 = vmatpush1.msra.mxu0 0.0
    %209 = vmatprep.subr.mxu0 0.0
    %210 = vmatpush1.msra.mxu0 0.0
    %211 = vmatprep.subr.mxu0 0.0
    %212 = vmatpush1.msra.mxu0 0.0
    %213 = vmatprep.subr.mxu0 0.0
    %214 = vmatpush1.msra.mxu0 0.0
    %215 = vmatprep.subr.mxu0 0.0
    %216 = vmatpush1.msra.mxu0 0.0
    %217 = vmatprep.subr.mxu0 0.0
    %218 = vmatpush1.msra.mxu0 0.0
    %219 = vmatprep.subr.mxu0 0.0
    %220 = vmatpush1.msra.mxu0 0.0
    %221 = vmatprep.mubr.f32.mxu0 0.0
    %222 = vmatmul.mubr.f32.gmra.mrb[0].mxu0 %v112
    %v223 = vpop.f32.mrb[0].mxu0
    %v224 = vadd.f32 %v150, %v223
    %v225 = vpop.f32.mrb[0].mxu0
    %v226 = vadd.f32 %v154, %v225
    %227 = vdwg.mxu0
    %v228 = vtanh.pop %v224
    %v229 = vtanh.pop %v226
    %v230 = vld [vmem:[#allocation10] sm:$0xff]
    %v231 = vld [vmem:[#allocation10 + $0x8] sm:$0xff]
    %v232 = vld [vmem:[#allocation10 + $0x10] sm:$0xff]
    %v233 = vld [vmem:[#allocation10 + $0x18] sm:$0xff]
    %v234 = vld [vmem:[#allocation10 + $0x20] sm:$0xff]
    %v235 = vld [vmem:[#allocation10 + $0x28] sm:$0xff]
    %v236 = vld [vmem:[#allocation10 + $0x30] sm:$0xff]
    %v237 = vld [vmem:[#allocation10 + $0x38] sm:$0xff]
    %v238 = vld [vmem:[#allocation10 + $0x40] sm:$0xff]
    %v239 = vld [vmem:[#allocation10 + $0x48] sm:$0xff]
    %v240 = vld [vmem:[#allocation10 + $0x50] sm:$0xff]
    %v241 = vld [vmem:[#allocation10 + $0x58] sm:$0xff]
    %v242 = vld [vmem:[#allocation10 + $0x60] sm:$0xff]
    %v243 = vld [vmem:[#allocation10 + $0x68] sm:$0xff]
    %v244 = vld [vmem:[#allocation10 + $0x70] sm:$0xff]
    %v245 = vld [vmem:[#allocation10 + $0x78] sm:$0xff]
    %v246 = vld [vmem:[#allocation10 + $0x80] sm:$0xff]
    %v247 = vld [vmem:[#allocation10 + $0x88] sm:$0xff]
    %v248 = vld [vmem:[#allocation10 + $0x90] sm:$0xff]
    %v249 = vld [vmem:[#allocation10 + $0x98] sm:$0xff]
    %v250 = vld [vmem:[#allocation10 + $0xa0] sm:$0xff]
    %v251 = vld [vmem:[#allocation10 + $0xa8] sm:$0xff]
    %v252 = vld [vmem:[#allocation10 + $0xb0] sm:$0xff]
    %v253 = vld [vmem:[#allocation10 + $0xb8] sm:$0xff]
    %v254 = vld [vmem:[#allocation10 + $0xc0] sm:$0xff]
    %v255 = vld [vmem:[#allocation10 + $0xc8] sm:$0xff]
    %v256 = vld [vmem:[#allocation10 + $0xd0] sm:$0xff]
    %v257 = vld [vmem:[#allocation10 + $0xd8] sm:$0xff]
    %v258 = vld [vmem:[#allocation10 + $0xe0] sm:$0xff]
    %v259 = vld [vmem:[#allocation10 + $0xe8] sm:$0xff]
    %v260 = vld [vmem:[#allocation10 + $0xf0] sm:$0xff]
    %v261 = vld [vmem:[#allocation10 + $0xf8] sm:$0xff]
    %262 = vmatprep.subr.mxu0 0.0
    %263 = vmatpush1.msra.mxu0 %v230
    %264 = vmatprep.subr.mxu0 0.0
    %265 = vmatpush1.msra.mxu0 %v231
    %266 = vmatprep.subr.mxu0 0.0
    %267 = vmatpush1.msra.mxu0 %v232
    %268 = vmatprep.subr.mxu0 0.0
    %269 = vmatpush1.msra.mxu0 %v233
    %270 = vmatprep.subr.mxu0 0.0
    %271 = vmatpush1.msra.mxu0 %v234
    %272 = vmatprep.subr.mxu0 0.0
    %273 = vmatpush1.msra.mxu0 %v235
    %274 = vmatprep.subr.mxu0 0.0
    %275 = vmatpush1.msra.mxu0 %v236
    %276 = vmatprep.subr.mxu0 0.0
    %277 = vmatpush1.msra.mxu0 %v237
    %278 = vmatprep.subr.mxu0 0.0
    %279 = vmatpush1.msra.mxu0 %v238
    %280 = vmatprep.subr.mxu0 0.0
    %281 = vmatpush1.msra.mxu0 %v239
    %282 = vmatprep.subr.mxu0 0.0
    %283 = vmatpush1.msra.mxu0 %v240
    %284 = vmatprep.subr.mxu0 0.0
    %285 = vmatpush1.msra.mxu0 %v241
    %286 = vmatprep.subr.mxu0 0.0
    %287 = vmatpush1.msra.mxu0 %v242
    %288 = vmatprep.subr.mxu0 0.0
    %289 = vmatpush1.msra.mxu0 %v243
    %290 = vmatprep.subr.mxu0 0.0
    %291 = vmatpush1.msra.mxu0 %v244
    %292 = vmatprep.subr.mxu0 0.0
    %293 = vmatpush1.msra.mxu0 %v245
    %294 = vmatprep.subr.mxu0 0.0
    %295 = vmatpush1.msra.mxu0 %v246
    %296 = vmatprep.subr.mxu0 0.0
    %297 = vmatpush1.msra.mxu0 %v247
    %298 = vmatprep.subr.mxu0 0.0
    %299 = vmatpush1.msra.mxu0 %v248
    %300 = vmatprep.subr.mxu0 0.0
    %301 = vmatpush1.msra.mxu0 %v249
    %302 = vmatprep.subr.mxu0 0.0
    %303 = vmatpush1.msra.mxu0 %v250
    %304 = vmatprep.subr.mxu0 0.0
    %305 = vmatpush1.msra.mxu0 %v251
    %306 = vmatprep.subr.mxu0 0.0
    %307 = vmatpush1.msra.mxu0 %v252
    %308 = vmatprep.subr.mxu0 0.0
    %309 = vmatpush1.msra.mxu0 %v253
    %310 = vmatprep.subr.mxu0 0.0
    %311 = vmatpush1.msra.mxu0 %v254
    %312 = vmatprep.subr.mxu0 0.0
    %313 = vmatpush1.msra.mxu0 %v255
    %314 = vmatprep.subr.mxu0 0.0
    %315 = vmatpush1.msra.mxu0 %v256
    %316 = vmatprep.subr.mxu0 0.0
    %317 = vmatpush1.msra.mxu0 %v257
    %318 = vmatprep.subr.mxu0 0.0
    %319 = vmatpush1.msra.mxu0 %v258
    %320 = vmatprep.subr.mxu0 0.0
    %321 = vmatpush1.msra.mxu0 %v259
    %322 = vmatprep.subr.mxu0 0.0
    %323 = vmatpush1.msra.mxu0 %v260
    %324 = vmatprep.subr.mxu0 0.0
    %325 = vmatpush1.msra.mxu0 %v261
    %326 = vmatprep.mubr.f32.mxu0 %v229
    %327 = vmatmul.mubr.f32.gmra.mrb[0].mxu0 %v228
    %v328 = vpop.f32.mrb[0].mxu0
    %v329 = vadd.f32 0.0, %v328
    %v330 = vpop.f32.mrb[0].mxu0
    %331 = vdwg.mxu0
    %v332 = vld [vmem:[#allocation2] sm:$0x3]
    %v333 = vlaneseq
    %v334 = vand.u32 %v333, 127
    %335 = vset.pattern.permute.xlu0 0
    %336 = vperm.xlu0 %335, %v332
    %v337 = vpop.permute.xlu0 %336
    %vm338 = vcmp.lt.s32.totalorder %v334, %v337
    %v339 = vsel %vm338, %v329, -1e+30
    %vm340 = vcmask 58368
    %v341 = vsel %vm340, %v339, -inf
    %342 = vmax.xlane.f32.xlu0 %v341
    %v343 = vpop.xlane.xlu0 %342
    %v344 = vsub.f32 %v339, %v343
    %v345 = vmul.f32 %v344, 1.442695
    %v346 = vpow.pop %v345
    %v347 = vsel %vm340, %v346, 0.0
    %348 = vadd.xlane.f32.xlu0 %v347
    %v349 = vpop.xlane.xlu0 %348
    %v350 = vrcp.pop %v349
    %v351 = vmul.f32 %v346, %v350
    %v352 = vld [vmem:[#allocation11] sm:$0xff]
    %vm353 = vcmask 64512
    %v355 = vsel %vm353, %v351, 0
    %357 = vmatprep.subr.mxu0 0.0
    %358 = vmatpush1.msra.mxu0 %v352
    %359 = vmatprep.subr.mxu0 0.0
    %360 = vmatpush1.msra.mxu0 0.0
    %361 = vmatprep.subr.mxu0 0.0
    %362 = vmatpush1.msra.mxu0 0.0
    %363 = vmatprep.subr.mxu0 0.0
    %364 = vmatpush1.msra.mxu0 0.0
    %365 = vmatprep.subr.mxu0 0.0
    %366 = vmatpush1.msra.mxu0 0.0
    %367 = vmatprep.subr.mxu0 0.0
    %368 = vmatpush1.msra.mxu0 0.0
    %369 = vmatprep.subr.mxu0 0.0
    %370 = vmatpush1.msra.mxu0 0.0
    %371 = vmatprep.subr.mxu0 0.0
    %372 = vmatpush1.msra.mxu0 0.0
    %373 = vmatprep.subr.mxu0 0.0
    %374 = vmatpush1.msra.mxu0 0.0
    %375 = vmatprep.subr.mxu0 0.0
    %376 = vmatpush1.msra.mxu0 0.0
    %377 = vmatprep.subr.mxu0 0.0
    %378 = vmatpush1.msra.mxu0 0.0
    %379 = vmatprep.subr.mxu0 0.0
    %380 = vmatpush1.msra.mxu0 0.0
    %381 = vmatprep.subr.mxu0 0.0
    %382 = vmatpush1.msra.mxu0 0.0
    %383 = vmatprep.subr.mxu0 0.0
    %384 = vmatpush1.msra.mxu0 0.0
    %385 = vmatprep.subr.mxu0 0.0
    %386 = vmatpush1.msra.mxu0 0.0
    %387 = vmatprep.subr.mxu0 0.0
    %388 = vmatpush1.msra.mxu0 0.0
    %389 = vmatprep.subr.mxu0 0.0
    %390 = vmatpush1.msra.mxu0 0.0
    %391 = vmatprep.subr.mxu0 0.0
    %392 = vmatpush1.msra.mxu0 0.0
    %393 = vmatprep.subr.mxu0 0.0
    %394 = vmatpush1.msra.mxu0 0.0
    %395 = vmatprep.subr.mxu0 0.0
    %396 = vmatpush1.msra.mxu0 0.0
    %397 = vmatprep.subr.mxu0 0.0
    %398 = vmatpush1.msra.mxu0 0.0
    %399 = vmatprep.subr.mxu0 0.0
    %400 = vmatpush1.msra.mxu0 0.0
    %401 = vmatprep.subr.mxu0 0.0
    %402 = vmatpush1.msra.mxu0 0.0
    %403 = vmatprep.subr.mxu0 0.0
    %404 = vmatpush1.msra.mxu0 0.0
    %405 = vmatprep.subr.mxu0 0.0
    %406 = vmatpush1.msra.mxu0 0.0
    %407 = vmatprep.subr.mxu0 0.0
    %408 = vmatpush1.msra.mxu0 0.0
    %409 = vmatprep.subr.mxu0 0.0
    %410 = vmatpush1.msra.mxu0 0.0
    %411 = vmatprep.subr.mxu0 0.0
    %412 = vmatpush1.msra.mxu0 0.0
    %413 = vmatprep.subr.mxu0 0.0
    %414 = vmatpush1.msra.mxu0 0.0
    %415 = vmatprep.subr.mxu0 0.0
    %416 = vmatpush1.msra.mxu0 0.0
    %417 = vmatprep.subr.mxu0 0.0
    %418 = vmatpush1.msra.mxu0 0.0
    %419 = vmatprep.subr.mxu0 0.0
    %420 = vmatpush1.msra.mxu0 0.0
    %421 = vmatprep.mubr.f32.mxu0 0.0
    %422 = vmatmul.mubr.f32.gmra.mrb[0].mxu0 %v355
    %v423 = vpop.f32.mrb[0].mxu0
    %v424 = vadd.f32 0.0, %v423
    %v425 = vpop.f32.mrb[0].mxu0
    %426 = vdwg.mxu0
    %v427 = vld [vmem:[#allocation13] sm:$0x1]
    %v428 = vlaneseq
    %v429 = vshrl.u32 %v428, 7
    %v430 = vsub.s32 0, %v429
    %v431 = vrot.slane %v427, %v430
    %432 = vset.pattern.permute.xlu0 1
    %433 = vperm.xlu0 %432, %v332
    %v434 = vpop.permute.xlu0 %433
    %vm435 = vcmp.eq.s32.totalorder %v431, %v434
    %v436 = vsel %vm435, 1, 0
    %v437 = vcvt.s32.f32 %v436
    %v438 = vmul.f32 %v424, %v437
    %v439 = vadd.f32 %v112, %v438
    %v440 = vmin.f32 %v439, 1.0
    %441 = vst [vmem:[#allocation14] sm:$0x3] %v440
    // Predicated region
    $region58: #{tpu_custom_call.1} parent=1 // pred_check
      _
    $region59: #{tpu_custom_call.1} parent=1 // pred_check_branch
      %443 = sbr.rel (0) target = $region61
    $region60: #{tpu_custom_call.1} parent=1 // pred_region
      %s445 = ssub.s32 32, 32
      %446 = vsyncadd [#allocation4], %s445
      %s448 = sshll.u32 [#allocation14], 4
      %s449 = int_to_ptr.vmem [resolvable:$true] %s448
      %451 = dma.vmem_to_hbm [thread:$0]  %s449, 32, %s7, [#allocation4]
    $region61: #{tpu_custom_call.1} parent=1 // pred_fallthru
      _
    // Predicated region
    $region62: #{tpu_custom_call.1} parent=1 // pred_check
      _
    $region63: #{tpu_custom_call.1} parent=1 // pred_check_branch
      %453 = sbr.rel (0) target = $region65
    $region64: #{tpu_custom_call.1} parent=1 // pred_region
      %454 = dma.done [#allocation4], 32
    $region65: #{tpu_custom_call.1} parent=1 // pred_fallthru
      _
    %455 = vsyncpa [#allocation3], 1
    %456 = vsyncpa [#allocation6], 1
    %457 = vsyncpa [#allocation9], 1
    %458 = vsyncpa [#allocation12], 1
    %459 = vsyncpa [#allocation4], 1

// kernel: tpu_custom_call.1
$region0: #{tpu_custom_call.1}
  #allocation0 [shape = 'u32[]', space=smem, size = 0x4, offset = 0x4, fixed_abs, tag = 'smem constant byte address 0x4 - core index']
  #allocation1 [shape = 'u32[144,128]{1,0:T(1,128)}', space=vmem, size = 0x12000, scoped, tag = 'internal scratch']
  %s0 = inlined_call_operand.hbm [shape: s32[2,2], index: 0, kind: input, shape index: {}]
  %s1 = inlined_call_operand.hbm [shape: f32[2,128], index: 1, kind: input, shape index: {}]
  %s2 = inlined_call_operand.hbm [shape: f32[128,256], index: 2, kind: input, shape index: {}]
  %s3 = inlined_call_operand.hbm [shape: f32[1,256], index: 3, kind: input, shape index: {}]
  %s4 = inlined_call_operand.hbm [shape: f32[256,8], index: 4, kind: input, shape index: {}]
  %s5 = inlined_call_operand.hbm [shape: f32[8,128], index: 5, kind: input, shape index: {}]
  %s6 = inlined_call_operand.hbm [shape: s32[1,128], index: 6, kind: input, shape index: {}]
  %s7 = inlined_call_operand.hbm [shape: f32[2,128], index: 7, kind: output, shape index: {}]
  %s8 = sld [smem:[#allocation0]]
  $region66: #{tpu_custom_call.1} parent=0
    _
  %s10 = ssub.s32 1, %s8
  %s11 = scalar_select 0, %s10, %s8
  $region1: #{tpu_custom_call.1} parent=0
    #allocation2 [shape = 'u8[1024]{0}', space=vmem, size = 0x400, scoped, tag = 'input window, operand 0, single buffered']
    #allocation3 [shape = 's32[1]{0}', space=sflag, size = 0x4, scoped, tag = 'scoped memory for tpu_custom_call.1']
    #allocation4 [shape = 's32[1]{0}', space=sflag, size = 0x4, scoped, tag = 'scoped memory for tpu_custom_call.1']
    #allocation5 [shape = 'u8[1024]{0}', space=vmem, size = 0x400, scoped, tag = 'input window, operand 1, single buffered']
    #allocation6 [shape = 's32[1]{0}', space=sflag, size = 0x4, scoped, tag = 'scoped memory for tpu_custom_call.1']
    #allocation7 [shape = 'u8[131072]{0}', space=vmem, size = 0x20000, scoped, tag = 'input window, operand 2, single buffered']
    #allocation8 [shape = 'u8[1024]{0}', space=vmem, size = 0x400, scoped, tag = 'input window, operand 3, single buffered']
    #allocation9 [shape = 's32[1]{0}', space=sflag, size = 0x4, scoped, tag = 'scoped memory for tpu_custom_call.1']
    #allocation10 [shape = 'u8[131072]{0}', space=vmem, size = 0x20000, scoped, tag = 'input window, operand 4, single buffered']
    #allocation11 [shape = 'u8[4096]{0}', space=vmem, size = 0x1000, scoped, tag = 'input window, operand 5, single buffered']
    #allocation12 [shape = 's32[1]{0}', space=sflag, size = 0x4, scoped, tag = 'scoped memory for tpu_custom_call.1']
    #allocation13 [shape = 'u8[512]{0}', space=vmem, size = 0x400, scoped, tag = 'input window, operand 6, single buffered']
    #allocation14 [shape = 'u8[1024]{0}', space=vmem, size = 0x400, scoped, tag = 'output window, operand 0, single buffered']
    %12 = vsyncpa [#allocation3], 0
    %13 = vsyncpa [#allocation6], 0
    %14 = vsyncpa [#allocation9], 0
    %15 = vsyncpa [#allocation12], 0
    %16 = vsyncpa [#allocation4], 0
    // Predicated region
    $region2: #{tpu_custom_call.1} parent=1 // pred_check
      _
    $region3: #{tpu_custom_call.1} parent=1 // pred_check_branch
      %18 = sbr.rel (0) target = $region5
    $region4: #{tpu_custom_call.1} parent=1 // pred_region
      %s20 = ssub.s32 32, 32
      %21 = vsyncadd [#allocation3], %s20
      %s23 = sshll.u32 [#allocation2], 4
      %s24 = int_to_ptr.vmem [resolvable:$true] %s23
      %26 = dma.hbm_to_vmem [thread:$0]  %s0, 32, %s24, [#allocation3]
    $region5: #{tpu_custom_call.1} parent=1 // pred_fallthru
      _
    // Predicated region
    $region6: #{tpu_custom_call.1} parent=1 // pred_check
      _
    $region7: #{tpu_custom_call.1} parent=1 // pred_check_branch
      %28 = sbr.rel (0) target = $region9
    $region8: #{tpu_custom_call.1} parent=1 // pred_region
      %s30 = ssub.s32 32, 32
      %31 = vsyncadd [#allocation6], %s30
      %s33 = sshll.u32 [#allocation5], 4
      %s34 = int_to_ptr.vmem [resolvable:$true] %s33
      %36 = dma.hbm_to_vmem [thread:$0]  %s1, 32, %s34, [#allocation6]
    $region9: #{tpu_custom_call.1} parent=1 // pred_fallthru
      _
    // Predicated region
    $region10: #{tpu_custom_call.1} parent=1 // pred_check
      _
    $region11: #{tpu_custom_call.1} parent=1 // pred_check_branch
      %38 = sbr.rel (0) target = $region13
    $region12: #{tpu_custom_call.1} parent=1 // pred_region
      %s40 = ssub.s32 4096, 4096
      %41 = vsyncadd [#allocation6], %s40
      %s42 = sshll.u32 [#allocation7], 4
      %s43 = int_to_ptr.vmem [resolvable:$true] %s42
      %48 = dma.hbm_to_vmem [thread:$0]  %s2, 4096, %s43, [#allocation6], 256, 256, 16
    $region13: #{tpu_custom_call.1} parent=1 // pred_fallthru
      _
    // Predicated region
    $region14: #{tpu_custom_call.1} parent=1 // pred_check
      _
    $region15: #{tpu_custom_call.1} parent=1 // pred_check_branch
      %50 = sbr.rel (0) target = $region17
    $region16: #{tpu_custom_call.1} parent=1 // pred_region
      %s52 = ssub.s32 32, 32
      %53 = vsyncadd [#allocation9], %s52
      %s55 = sshll.u32 [#allocation8], 4
      %s56 = int_to_ptr.vmem [resolvable:$true] %s55
      %58 = dma.hbm_to_vmem [thread:$0]  %s3, 32, %s56, [#allocation9]
    $region17: #{tpu_custom_call.1} parent=1 // pred_fallthru
      _
    // Predicated region
    $region18: #{tpu_custom_call.1} parent=1 // pred_check
      _
    $region19: #{tpu_custom_call.1} parent=1 // pred_check_branch
      %60 = sbr.rel (0) target = $region21
    $region20: #{tpu_custom_call.1} parent=1 // pred_region
      %s62 = ssub.s32 4096, 4096
      %63 = vsyncadd [#allocation9], %s62
      %s64 = sshll.u32 [#allocation10], 4
      %s65 = int_to_ptr.vmem [resolvable:$true] %s64
      %70 = dma.hbm_to_vmem [thread:$0]  %s4, 4096, %s65, [#allocation9], 128, 128, 8
    $region21: #{tpu_custom_call.1} parent=1 // pred_fallthru
      _
    // Predicated region
    $region22: #{tpu_custom_call.1} parent=1 // pred_check
      _
    $region23: #{tpu_custom_call.1} parent=1 // pred_check_branch
      %72 = sbr.rel (0) target = $region25
    $region24: #{tpu_custom_call.1} parent=1 // pred_region
      %s74 = ssub.s32 128, 128
      %75 = vsyncadd [#allocation12], %s74
      %s77 = sshll.u32 [#allocation11], 4
      %s78 = int_to_ptr.vmem [resolvable:$true] %s77
      %80 = dma.hbm_to_vmem [thread:$0]  %s5, 128, %s78, [#allocation12]
    $region25: #{tpu_custom_call.1} parent=1 // pred_fallthru
      _
    // Predicated region
    $region26: #{tpu_custom_call.1} parent=1 // pred_check
      _
    $region27: #{tpu_custom_call.1} parent=1 // pred_check_branch
      %82 = sbr.rel (0) target = $region29
    $region28: #{tpu_custom_call.1} parent=1 // pred_region
      %s84 = ssub.s32 16, 16
      %85 = vsyncadd [#allocation12], %s84
      %s87 = sshll.u32 [#allocation13], 4
      %s88 = int_to_ptr.vmem [resolvable:$true] %s87
      %90 = dma.hbm_to_vmem [thread:$0]  %s6, 16, %s88, [#allocation12]
    $region29: #{tpu_custom_call.1} parent=1 // pred_fallthru
      _
    // Predicated region
    $region30: #{tpu_custom_call.1} parent=1 // pred_check
      _
    $region31: #{tpu_custom_call.1} parent=1 // pred_check_branch
      %92 = sbr.rel (0) target = $region33
    $region32: #{tpu_custom_call.1} parent=1 // pred_region
      %93 = dma.done [#allocation3], 32
    $region33: #{tpu_custom_call.1} parent=1 // pred_fallthru
      _
    // Predicated region
    $region34: #{tpu_custom_call.1} parent=1 // pred_check
      _
    $region35: #{tpu_custom_call.1} parent=1 // pred_check_branch
      %95 = sbr.rel (0) target = $region37
    $region36: #{tpu_custom_call.1} parent=1 // pred_region
      %96 = dma.done [#allocation6], 32
    $region37: #{tpu_custom_call.1} parent=1 // pred_fallthru
      _
    // Predicated region
    $region38: #{tpu_custom_call.1} parent=1 // pred_check
      _
    $region39: #{tpu_custom_call.1} parent=1 // pred_check_branch
      %98 = sbr.rel (0) target = $region41
    $region40: #{tpu_custom_call.1} parent=1 // pred_region
      %99 = dma.done [#allocation6], 4096
    $region41: #{tpu_custom_call.1} parent=1 // pred_fallthru
      _
    // Predicated region
    $region42: #{tpu_custom_call.1} parent=1 // pred_check
      _
    $region43: #{tpu_custom_call.1} parent=1 // pred_check_branch
      %101 = sbr.rel (0) target = $region45
    $region44: #{tpu_custom_call.1} parent=1 // pred_region
      %102 = dma.done [#allocation9], 32
    $region45: #{tpu_custom_call.1} parent=1 // pred_fallthru
      _
    // Predicated region
    $region46: #{tpu_custom_call.1} parent=1 // pred_check
      _
    $region47: #{tpu_custom_call.1} parent=1 // pred_check_branch
      %104 = sbr.rel (0) target = $region49
    $region48: #{tpu_custom_call.1} parent=1 // pred_region
      %105 = dma.done [#allocation9], 4096
    $region49: #{tpu_custom_call.1} parent=1 // pred_fallthru
      _
    // Predicated region
    $region50: #{tpu_custom_call.1} parent=1 // pred_check
      _
    $region51: #{tpu_custom_call.1} parent=1 // pred_check_branch
      %107 = sbr.rel (0) target = $region53
    $region52: #{tpu_custom_call.1} parent=1 // pred_region
      %108 = dma.done [#allocation12], 128
    $region53: #{tpu_custom_call.1} parent=1 // pred_fallthru
      _
    // Predicated region
    $region54: #{tpu_custom_call.1} parent=1 // pred_check
      _
    $region55: #{tpu_custom_call.1} parent=1 // pred_check_branch
      %110 = sbr.rel (0) target = $region57
    $region56: #{tpu_custom_call.1} parent=1 // pred_region
      %111 = dma.done [#allocation12], 16
    $region57: #{tpu_custom_call.1} parent=1 // pred_fallthru
      _
    %v112 = vld [vmem:[#allocation5] sm:$0x3]
    %v113 = vld [vmem:[#allocation7] sm:$0xff]
    %v114 = vld [vmem:[#allocation7 + $0x8] sm:$0xff]
    %v115 = vld [vmem:[#allocation7 + $0x10] sm:$0xff]
    %v116 = vld [vmem:[#allocation7 + $0x18] sm:$0xff]
    %v117 = vld [vmem:[#allocation7 + $0x20] sm:$0xff]
    %v118 = vld [vmem:[#allocation7 + $0x28] sm:$0xff]
    %v119 = vld [vmem:[#allocation7 + $0x30] sm:$0xff]
    %v120 = vld [vmem:[#allocation7 + $0x38] sm:$0xff]
    %v121 = vld [vmem:[#allocation7 + $0x40] sm:$0xff]
    %v122 = vld [vmem:[#allocation7 + $0x48] sm:$0xff]
    %v123 = vld [vmem:[#allocation7 + $0x50] sm:$0xff]
    %v124 = vld [vmem:[#allocation7 + $0x58] sm:$0xff]
    %v125 = vld [vmem:[#allocation7 + $0x60] sm:$0xff]
    %v126 = vld [vmem:[#allocation7 + $0x68] sm:$0xff]
    %v127 = vld [vmem:[#allocation7 + $0x70] sm:$0xff]
    %v128 = vld [vmem:[#allocation7 + $0x78] sm:$0xff]
    %v129 = vld [vmem:[#allocation7 + $0x80] sm:$0xff]
    %v130 = vld [vmem:[#allocation7 + $0x88] sm:$0xff]
    %v131 = vld [vmem:[#allocation7 + $0x90] sm:$0xff]
    %v132 = vld [vmem:[#allocation7 + $0x98] sm:$0xff]
    %v133 = vld [vmem:[#allocation7 + $0xa0] sm:$0xff]
    %v134 = vld [vmem:[#allocation7 + $0xa8] sm:$0xff]
    %v135 = vld [vmem:[#allocation7 + $0xb0] sm:$0xff]
    %v136 = vld [vmem:[#allocation7 + $0xb8] sm:$0xff]
    %v137 = vld [vmem:[#allocation7 + $0xc0] sm:$0xff]
    %v138 = vld [vmem:[#allocation7 + $0xc8] sm:$0xff]
    %v139 = vld [vmem:[#allocation7 + $0xd0] sm:$0xff]
    %v140 = vld [vmem:[#allocation7 + $0xd8] sm:$0xff]
    %v141 = vld [vmem:[#allocation7 + $0xe0] sm:$0xff]
    %v142 = vld [vmem:[#allocation7 + $0xe8] sm:$0xff]
    %v143 = vld [vmem:[#allocation7 + $0xf0] sm:$0xff]
    %v144 = vld [vmem:[#allocation7 + $0xf8] sm:$0xff]
    %v145 = vld [vmem:[#allocation8] sm:$0x3]
    %v147 = vlaneseq
    %v148 = vshrl.u32 %v147, 7
    %v149 = vsub.s32 0, %v148
    %v150 = vrot.slane %v145, %v149
    %v151 = vlaneseq
    %v152 = vshrl.u32 %v151, 7
    %v153 = vsub.s32 1, %v152
    %v154 = vrot.slane %v145, %v153
    %v157 = vand.u32 %v114, 4294901760
    %158 = vmatprep.subr.mxu0 %v157
    %v159 = vand.u32 %v113, 4294901760
    %160 = vmatpush1.msra.mxu0 %v159
    %v161 = vand.u32 %v116, 4294901760
    %162 = vmatprep.subr.mxu0 %v161
    %v163 = vand.u32 %v115, 4294901760
    %164 = vmatpush1.msra.mxu0 %v163
    %v165 = vand.u32 %v118, 4294901760
    %166 = vmatprep.subr.mxu0 %v165
    %v167 = vand.u32 %v117, 4294901760
    %168 = vmatpush1.msra.mxu0 %v167
    %v169 = vand.u32 %v120, 4294901760
    %170 = vmatprep.subr.mxu0 %v169
    %v171 = vand.u32 %v119, 4294901760
    %172 = vmatpush1.msra.mxu0 %v171
    %v173 = vand.u32 %v122, 4294901760
    %174 = vmatprep.subr.mxu0 %v173
    %v175 = vand.u32 %v121, 4294901760
    %176 = vmatpush1.msra.mxu0 %v175
    %v177 = vand.u32 %v124, 4294901760
    %178 = vmatprep.subr.mxu0 %v177
    %v179 = vand.u32 %v123, 4294901760
    %180 = vmatpush1.msra.mxu0 %v179
    %v181 = vand.u32 %v126, 4294901760
    %182 = vmatprep.subr.mxu0 %v181
    %v183 = vand.u32 %v125, 4294901760
    %184 = vmatpush1.msra.mxu0 %v183
    %v185 = vand.u32 %v128, 4294901760
    %186 = vmatprep.subr.mxu0 %v185
    %v187 = vand.u32 %v127, 4294901760
    %188 = vmatpush1.msra.mxu0 %v187
    %v189 = vand.u32 %v130, 4294901760
    %190 = vmatprep.subr.mxu0 %v189
    %v191 = vand.u32 %v129, 4294901760
    %192 = vmatpush1.msra.mxu0 %v191
    %v193 = vand.u32 %v132, 4294901760
    %194 = vmatprep.subr.mxu0 %v193
    %v195 = vand.u32 %v131, 4294901760
    %196 = vmatpush1.msra.mxu0 %v195
    %v197 = vand.u32 %v134, 4294901760
    %198 = vmatprep.subr.mxu0 %v197
    %v199 = vand.u32 %v133, 4294901760
    %200 = vmatpush1.msra.mxu0 %v199
    %v201 = vand.u32 %v136, 4294901760
    %202 = vmatprep.subr.mxu0 %v201
    %v203 = vand.u32 %v135, 4294901760
    %204 = vmatpush1.msra.mxu0 %v203
    %v205 = vand.u32 %v138, 4294901760
    %206 = vmatprep.subr.mxu0 %v205
    %v207 = vand.u32 %v137, 4294901760
    %208 = vmatpush1.msra.mxu0 %v207
    %v209 = vand.u32 %v140, 4294901760
    %210 = vmatprep.subr.mxu0 %v209
    %v211 = vand.u32 %v139, 4294901760
    %212 = vmatpush1.msra.mxu0 %v211
    %v213 = vand.u32 %v142, 4294901760
    %214 = vmatprep.subr.mxu0 %v213
    %v215 = vand.u32 %v141, 4294901760
    %216 = vmatpush1.msra.mxu0 %v215
    %v217 = vand.u32 %v144, 4294901760
    %218 = vmatprep.subr.mxu0 %v217
    %v219 = vand.u32 %v143, 4294901760
    %220 = vmatpush1.msra.mxu0 %v219
    %221 = vmatprep.subr.mxu0 0.0
    %222 = vmatpush1.msra.mxu0 0.0
    %223 = vmatprep.subr.mxu0 0.0
    %224 = vmatpush1.msra.mxu0 0.0
    %225 = vmatprep.subr.mxu0 0.0
    %226 = vmatpush1.msra.mxu0 0.0
    %227 = vmatprep.subr.mxu0 0.0
    %228 = vmatpush1.msra.mxu0 0.0
    %229 = vmatprep.subr.mxu0 0.0
    %230 = vmatpush1.msra.mxu0 0.0
    %231 = vmatprep.subr.mxu0 0.0
    %232 = vmatpush1.msra.mxu0 0.0
    %233 = vmatprep.subr.mxu0 0.0
    %234 = vmatpush1.msra.mxu0 0.0
    %235 = vmatprep.subr.mxu0 0.0
    %236 = vmatpush1.msra.mxu0 0.0
    %237 = vmatprep.subr.mxu0 0.0
    %238 = vmatpush1.msra.mxu0 0.0
    %239 = vmatprep.subr.mxu0 0.0
    %240 = vmatpush1.msra.mxu0 0.0
    %241 = vmatprep.subr.mxu0 0.0
    %242 = vmatpush1.msra.mxu0 0.0
    %243 = vmatprep.subr.mxu0 0.0
    %244 = vmatpush1.msra.mxu0 0.0
    %245 = vmatprep.subr.mxu0 0.0
    %246 = vmatpush1.msra.mxu0 0.0
    %247 = vmatprep.subr.mxu0 0.0
    %248 = vmatpush1.msra.mxu0 0.0
    %249 = vmatprep.subr.mxu0 0.0
    %250 = vmatpush1.msra.mxu0 0.0
    %251 = vmatprep.subr.mxu0 0.0
    %252 = vmatpush1.msra.mxu0 0.0
    %253 = vmatprep.mubr.f32.mxu0 0.0
    %v254 = vand.u32 %v112, 4294901760
    %v255 = vsub.f32 %v112, %v254
    %v256 = vand.u32 %v255, 4294901760
    %v257 = vsub.f32 %v255, %v256
    %v258 = vand.u32 %v257, 4294901760
    %259 = vmatmul.mubr.f32.gmra.mrb[0].mxu0 %v258
    %v260 = vpop.f32.mrb[0].mxu0
    %v261 = vadd.f32 %v150, %v260
    %v262 = vpop.f32.mrb[0].mxu0
    %v263 = vadd.f32 %v154, %v262
    %264 = vdwg.mxu0
    %v265 = vand.u32 %v114, 4294901760
    %v266 = vsub.f32 %v114, %v265
    %v267 = vand.u32 %v266, 4294901760
    %v268 = vsub.f32 %v266, %v267
    %v269 = vand.u32 %v268, 4294901760
    %270 = vmatprep.subr.mxu0 %v269
    %v271 = vand.u32 %v113, 4294901760
    %v272 = vsub.f32 %v113, %v271
    %v273 = vand.u32 %v272, 4294901760
    %v274 = vsub.f32 %v272, %v273
    %v275 = vand.u32 %v274, 4294901760
    %276 = vmatpush1.msra.mxu0 %v275
    %v277 = vand.u32 %v116, 4294901760
    %v278 = vsub.f32 %v116, %v277
    %v279 = vand.u32 %v278, 4294901760
    %v280 = vsub.f32 %v278, %v279
    %v281 = vand.u32 %v280, 4294901760
    %282 = vmatprep.subr.mxu0 %v281
    %v283 = vand.u32 %v115, 4294901760
    %v284 = vsub.f32 %v115, %v283
    %v285 = vand.u32 %v284, 4294901760
    %v286 = vsub.f32 %v284, %v285
    %v287 = vand.u32 %v286, 4294901760
    %288 = vmatpush1.msra.mxu0 %v287
    %v289 = vand.u32 %v118, 4294901760
    %v290 = vsub.f32 %v118, %v289
    %v291 = vand.u32 %v290, 4294901760
    %v292 = vsub.f32 %v290, %v291
    %v293 = vand.u32 %v292, 4294901760
    %294 = vmatprep.subr.mxu0 %v293
    %v295 = vand.u32 %v117, 4294901760
    %v296 = vsub.f32 %v117, %v295
    %v297 = vand.u32 %v296, 4294901760
    %v298 = vsub.f32 %v296, %v297
    %v299 = vand.u32 %v298, 4294901760
    %300 = vmatpush1.msra.mxu0 %v299
    %v301 = vand.u32 %v120, 4294901760
    %v302 = vsub.f32 %v120, %v301
    %v303 = vand.u32 %v302, 4294901760
    %v304 = vsub.f32 %v302, %v303
    %v305 = vand.u32 %v304, 4294901760
    %306 = vmatprep.subr.mxu0 %v305
    %v307 = vand.u32 %v119, 4294901760
    %v308 = vsub.f32 %v119, %v307
    %v309 = vand.u32 %v308, 4294901760
    %v310 = vsub.f32 %v308, %v309
    %v311 = vand.u32 %v310, 4294901760
    %312 = vmatpush1.msra.mxu0 %v311
    %v313 = vand.u32 %v122, 4294901760
    %v314 = vsub.f32 %v122, %v313
    %v315 = vand.u32 %v314, 4294901760
    %v316 = vsub.f32 %v314, %v315
    %v317 = vand.u32 %v316, 4294901760
    %318 = vmatprep.subr.mxu0 %v317
    %v319 = vand.u32 %v121, 4294901760
    %v320 = vsub.f32 %v121, %v319
    %v321 = vand.u32 %v320, 4294901760
    %v322 = vsub.f32 %v320, %v321
    %v323 = vand.u32 %v322, 4294901760
    %324 = vmatpush1.msra.mxu0 %v323
    %v325 = vand.u32 %v124, 4294901760
    %v326 = vsub.f32 %v124, %v325
    %v327 = vand.u32 %v326, 4294901760
    %v328 = vsub.f32 %v326, %v327
    %v329 = vand.u32 %v328, 4294901760
    %330 = vmatprep.subr.mxu0 %v329
    %v331 = vand.u32 %v123, 4294901760
    %v332 = vsub.f32 %v123, %v331
    %v333 = vand.u32 %v332, 4294901760
    %v334 = vsub.f32 %v332, %v333
    %v335 = vand.u32 %v334, 4294901760
    %336 = vmatpush1.msra.mxu0 %v335
    %v337 = vand.u32 %v126, 4294901760
    %v338 = vsub.f32 %v126, %v337
    %v339 = vand.u32 %v338, 4294901760
    %v340 = vsub.f32 %v338, %v339
    %v341 = vand.u32 %v340, 4294901760
    %342 = vmatprep.subr.mxu0 %v341
    %v343 = vand.u32 %v125, 4294901760
    %v344 = vsub.f32 %v125, %v343
    %v345 = vand.u32 %v344, 4294901760
    %v346 = vsub.f32 %v344, %v345
    %v347 = vand.u32 %v346, 4294901760
    %348 = vmatpush1.msra.mxu0 %v347
    %v349 = vand.u32 %v128, 4294901760
    %v350 = vsub.f32 %v128, %v349
    %v351 = vand.u32 %v350, 4294901760
    %v352 = vsub.f32 %v350, %v351
    %v353 = vand.u32 %v352, 4294901760
    %354 = vmatprep.subr.mxu0 %v353
    %v355 = vand.u32 %v127, 4294901760
    %v356 = vsub.f32 %v127, %v355
    %v357 = vand.u32 %v356, 4294901760
    %v358 = vsub.f32 %v356, %v357
    %v359 = vand.u32 %v358, 4294901760
    %360 = vmatpush1.msra.mxu0 %v359
    %v361 = vand.u32 %v130, 4294901760
    %v362 = vsub.f32 %v130, %v361
    %v363 = vand.u32 %v362, 4294901760
    %v364 = vsub.f32 %v362, %v363
    %v365 = vand.u32 %v364, 4294901760
    %366 = vmatprep.subr.mxu0 %v365
    %v367 = vand.u32 %v129, 4294901760
    %v368 = vsub.f32 %v129, %v367
    %v369 = vand.u32 %v368, 4294901760
    %v370 = vsub.f32 %v368, %v369
    %v371 = vand.u32 %v370, 4294901760
    %372 = vmatpush1.msra.mxu0 %v371
    %v373 = vand.u32 %v132, 4294901760
    %v374 = vsub.f32 %v132, %v373
    %v375 = vand.u32 %v374, 4294901760
    %v376 = vsub.f32 %v374, %v375
    %v377 = vand.u32 %v376, 4294901760
    %378 = vmatprep.subr.mxu0 %v377
    %v379 = vand.u32 %v131, 4294901760
    %v380 = vsub.f32 %v131, %v379
    %v381 = vand.u32 %v380, 4294901760
    %v382 = vsub.f32 %v380, %v381
    %v383 = vand.u32 %v382, 4294901760
    %384 = vmatpush1.msra.mxu0 %v383
    %v385 = vand.u32 %v134, 4294901760
    %v386 = vsub.f32 %v134, %v385
    %v387 = vand.u32 %v386, 4294901760
    %v388 = vsub.f32 %v386, %v387
    %v389 = vand.u32 %v388, 4294901760
    %390 = vmatprep.subr.mxu0 %v389
    %v391 = vand.u32 %v133, 4294901760
    %v392 = vsub.f32 %v133, %v391
    %v393 = vand.u32 %v392, 4294901760
    %v394 = vsub.f32 %v392, %v393
    %v395 = vand.u32 %v394, 4294901760
    %396 = vmatpush1.msra.mxu0 %v395
    %v397 = vand.u32 %v136, 4294901760
    %v398 = vsub.f32 %v136, %v397
    %v399 = vand.u32 %v398, 4294901760
    %v400 = vsub.f32 %v398, %v399
    %v401 = vand.u32 %v400, 4294901760
    %402 = vmatprep.subr.mxu0 %v401
    %v403 = vand.u32 %v135, 4294901760
    %v404 = vsub.f32 %v135, %v403
    %v405 = vand.u32 %v404, 4294901760
    %v406 = vsub.f32 %v404, %v405
    %v407 = vand.u32 %v406, 4294901760
    %408 = vmatpush1.msra.mxu0 %v407
    %v409 = vand.u32 %v138, 4294901760
    %v410 = vsub.f32 %v138, %v409
    %v411 = vand.u32 %v410, 4294901760
    %v412 = vsub.f32 %v410, %v411
    %v413 = vand.u32 %v412, 4294901760
    %414 = vmatprep.subr.mxu0 %v413
    %v415 = vand.u32 %v137, 4294901760
    %v416 = vsub.f32 %v137, %v415
    %v417 = vand.u32 %v416, 4294901760
    %v418 = vsub.f32 %v416, %v417
    %v419 = vand.u32 %v418, 4294901760
    %420 = vmatpush1.msra.mxu0 %v419
    %v421 = vand.u32 %v140, 4294901760
    %v422 = vsub.f32 %v140, %v421
    %v423 = vand.u32 %v422, 4294901760
    %v424 = vsub.f32 %v422, %v423
    %v425 = vand.u32 %v424, 4294901760
    %426 = vmatprep.subr.mxu0 %v425
    %v427 = vand.u32 %v139, 4294901760
    %v428 = vsub.f32 %v139, %v427
    %v429 = vand.u32 %v428, 4294901760
    %v430 = vsub.f32 %v428, %v429
    %v431 = vand.u32 %v430, 4294901760
    %432 = vmatpush1.msra.mxu0 %v431
    %v433 = vand.u32 %v142, 4294901760
    %v434 = vsub.f32 %v142, %v433
    %v435 = vand.u32 %v434, 4294901760
    %v436 = vsub.f32 %v434, %v435
    %v437 = vand.u32 %v436, 4294901760
    %438 = vmatprep.subr.mxu0 %v437
    %v439 = vand.u32 %v141, 4294901760
    %v440 = vsub.f32 %v141, %v439
    %v441 = vand.u32 %v440, 4294901760
    %v442 = vsub.f32 %v440, %v441
    %v443 = vand.u32 %v442, 4294901760
    %444 = vmatpush1.msra.mxu0 %v443
    %v445 = vand.u32 %v144, 4294901760
    %v446 = vsub.f32 %v144, %v445
    %v447 = vand.u32 %v446, 4294901760
    %v448 = vsub.f32 %v446, %v447
    %v449 = vand.u32 %v448, 4294901760
    %450 = vmatprep.subr.mxu0 %v449
    %v451 = vand.u32 %v143, 4294901760
    %v452 = vsub.f32 %v143, %v451
    %v453 = vand.u32 %v452, 4294901760
    %v454 = vsub.f32 %v452, %v453
    %v455 = vand.u32 %v454, 4294901760
    %456 = vmatpush1.msra.mxu0 %v455
    %457 = vmatprep.subr.mxu0 0.0
    %458 = vmatpush1.msra.mxu0 0.0
    %459 = vmatprep.subr.mxu0 0.0
    %460 = vmatpush1.msra.mxu0 0.0
    %461 = vmatprep.subr.mxu0 0.0
    %462 = vmatpush1.msra.mxu0 0.0
    %463 = vmatprep.subr.mxu0 0.0
    %464 = vmatpush1.msra.mxu0 0.0
    %465 = vmatprep.subr.mxu0 0.0
    %466 = vmatpush1.msra.mxu0 0.0
    %467 = vmatprep.subr.mxu0 0.0
    %468 = vmatpush1.msra.mxu0 0.0
    %469 = vmatprep.subr.mxu0 0.0
    %470 = vmatpush1.msra.mxu0 0.0
    %471 = vmatprep.subr.mxu0 0.0
    %472 = vmatpush1.msra.mxu0 0.0
    %473 = vmatprep.subr.mxu0 0.0
    %474 = vmatpush1.msra.mxu0 0.0
    %475 = vmatprep.subr.mxu0 0.0
    %476 = vmatpush1.msra.mxu0 0.0
    %477 = vmatprep.subr.mxu0 0.0
    %478 = vmatpush1.msra.mxu0 0.0
    %479 = vmatprep.subr.mxu0 0.0
    %480 = vmatpush1.msra.mxu0 0.0
    %481 = vmatprep.subr.mxu0 0.0
    %482 = vmatpush1.msra.mxu0 0.0
    %483 = vmatprep.subr.mxu0 0.0
    %484 = vmatpush1.msra.mxu0 0.0
    %485 = vmatprep.subr.mxu0 0.0
    %486 = vmatpush1.msra.mxu0 0.0
    %487 = vmatprep.subr.mxu0 0.0
    %488 = vmatpush1.msra.mxu0 0.0
    %489 = vmatprep.mubr.f32.mxu0 0.0
    %v490 = vand.u32 %v112, 4294901760
    %491 = vmatmul.mubr.f32.gmra.mrb[0].mxu0 %v490
    %v492 = vpop.f32.mrb[0].mxu0
    %v493 = vadd.f32 %v261, %v492
    %v494 = vpop.f32.mrb[0].mxu0
    %v495 = vadd.f32 %v263, %v494
    %496 = vdwg.mxu0
    %v497 = vand.u32 %v114, 4294901760
    %v498 = vsub.f32 %v114, %v497
    %499 = vmatprep.subr.mxu0 %v498
    %v500 = vand.u32 %v113, 4294901760
    %v501 = vsub.f32 %v113, %v500
    %502 = vmatpush1.msra.mxu0 %v501
    %v503 = vand.u32 %v116, 4294901760
    %v504 = vsub.f32 %v116, %v503
    %505 = vmatprep.subr.mxu0 %v504
    %v506 = vand.u32 %v115, 4294901760
    %v507 = vsub.f32 %v115, %v506
    %508 = vmatpush1.msra.mxu0 %v507
    %v509 = vand.u32 %v118, 4294901760
    %v510 = vsub.f32 %v118, %v509
    %511 = vmatprep.subr.mxu0 %v510
    %v512 = vand.u32 %v117, 4294901760
    %v513 = vsub.f32 %v117, %v512
    %514 = vmatpush1.msra.mxu0 %v513
    %v515 = vand.u32 %v120, 4294901760
    %v516 = vsub.f32 %v120, %v515
    %517 = vmatprep.subr.mxu0 %v516
    %v518 = vand.u32 %v119, 4294901760
    %v519 = vsub.f32 %v119, %v518
    %520 = vmatpush1.msra.mxu0 %v519
    %v521 = vand.u32 %v122, 4294901760
    %v522 = vsub.f32 %v122, %v521
    %523 = vmatprep.subr.mxu0 %v522
    %v524 = vand.u32 %v121, 4294901760
    %v525 = vsub.f32 %v121, %v524
    %526 = vmatpush1.msra.mxu0 %v525
    %v527 = vand.u32 %v124, 4294901760
    %v528 = vsub.f32 %v124, %v527
    %529 = vmatprep.subr.mxu0 %v528
    %v530 = vand.u32 %v123, 4294901760
    %v531 = vsub.f32 %v123, %v530
    %532 = vmatpush1.msra.mxu0 %v531
    %v533 = vand.u32 %v126, 4294901760
    %v534 = vsub.f32 %v126, %v533
    %535 = vmatprep.subr.mxu0 %v534
    %v536 = vand.u32 %v125, 4294901760
    %v537 = vsub.f32 %v125, %v536
    %538 = vmatpush1.msra.mxu0 %v537
    %v539 = vand.u32 %v128, 4294901760
    %v540 = vsub.f32 %v128, %v539
    %541 = vmatprep.subr.mxu0 %v540
    %v542 = vand.u32 %v127, 4294901760
    %v543 = vsub.f32 %v127, %v542
    %544 = vmatpush1.msra.mxu0 %v543
    %v545 = vand.u32 %v130, 4294901760
    %v546 = vsub.f32 %v130, %v545
    %547 = vmatprep.subr.mxu0 %v546
    %v548 = vand.u32 %v129, 4294901760
    %v549 = vsub.f32 %v129, %v548
    %550 = vmatpush1.msra.mxu0 %v549
    %v551 = vand.u32 %v132, 4294901760
    %v552 = vsub.f32 %v132, %v551
    %553 = vmatprep.subr.mxu0 %v552
    %v554 = vand.u32 %v131, 4294901760
    %v555 = vsub.f32 %v131, %v554
    %556 = vmatpush1.msra.mxu0 %v555
    %v557 = vand.u32 %v134, 4294901760
    %v558 = vsub.f32 %v134, %v557
    %559 = vmatprep.subr.mxu0 %v558
    %v560 = vand.u32 %v133, 4294901760
    %v561 = vsub.f32 %v133, %v560
    %562 = vmatpush1.msra.mxu0 %v561
    %v563 = vand.u32 %v136, 4294901760
    %v564 = vsub.f32 %v136, %v563
    %565 = vmatprep.subr.mxu0 %v564
    %v566 = vand.u32 %v135, 4294901760
    %v567 = vsub.f32 %v135, %v566
    %568 = vmatpush1.msra.mxu0 %v567
    %v569 = vand.u32 %v138, 4294901760
    %v570 = vsub.f32 %v138, %v569
    %571 = vmatprep.subr.mxu0 %v570
    %v572 = vand.u32 %v137, 4294901760
    %v573 = vsub.f32 %v137, %v572
    %574 = vmatpush1.msra.mxu0 %v573
    %v575 = vand.u32 %v140, 4294901760
    %v576 = vsub.f32 %v140, %v575
    %577 = vmatprep.subr.mxu0 %v576
    %v578 = vand.u32 %v139, 4294901760
    %v579 = vsub.f32 %v139, %v578
    %580 = vmatpush1.msra.mxu0 %v579
    %v581 = vand.u32 %v142, 4294901760
    %v582 = vsub.f32 %v142, %v581
    %583 = vmatprep.subr.mxu0 %v582
    %v584 = vand.u32 %v141, 4294901760
    %v585 = vsub.f32 %v141, %v584
    %586 = vmatpush1.msra.mxu0 %v585
    %v587 = vand.u32 %v144, 4294901760
    %v588 = vsub.f32 %v144, %v587
    %589 = vmatprep.subr.mxu0 %v588
    %v590 = vand.u32 %v143, 4294901760
    %v591 = vsub.f32 %v143, %v590
    %592 = vmatpush1.msra.mxu0 %v591
    %593 = vmatprep.subr.mxu0 0.0
    %594 = vmatpush1.msra.mxu0 0.0
    %595 = vmatprep.subr.mxu0 0.0
    %596 = vmatpush1.msra.mxu0 0.0
    %597 = vmatprep.subr.mxu0 0.0
    %598 = vmatpush1.msra.mxu0 0.0
    %599 = vmatprep.subr.mxu0 0.0
    %600 = vmatpush1.msra.mxu0 0.0
    %601 = vmatprep.subr.mxu0 0.0
    %602 = vmatpush1.msra.mxu0 0.0
    %603 = vmatprep.subr.mxu0 0.0
    %604 = vmatpush1.msra.mxu0 0.0
    %605 = vmatprep.subr.mxu0 0.0
    %606 = vmatpush1.msra.mxu0 0.0
    %607 = vmatprep.subr.mxu0 0.0
    %608 = vmatpush1.msra.mxu0 0.0
    %609 = vmatprep.subr.mxu0 0.0
    %610 = vmatpush1.msra.mxu0 0.0
    %611 = vmatprep.subr.mxu0 0.0
    %612 = vmatpush1.msra.mxu0 0.0
    %613 = vmatprep.subr.mxu0 0.0
    %614 = vmatpush1.msra.mxu0 0.0
    %615 = vmatprep.subr.mxu0 0.0
    %616 = vmatpush1.msra.mxu0 0.0
    %617 = vmatprep.subr.mxu0 0.0
    %618 = vmatpush1.msra.mxu0 0.0
    %619 = vmatprep.subr.mxu0 0.0
    %620 = vmatpush1.msra.mxu0 0.0
    %621 = vmatprep.subr.mxu0 0.0
    %622 = vmatpush1.msra.mxu0 0.0
    %623 = vmatprep.subr.mxu0 0.0
    %624 = vmatpush1.msra.mxu0 0.0
    %625 = vmatprep.mubr.f32.mxu0 0.0
    %v626 = vand.u32 %v112, 4294901760
    %v627 = vsub.f32 %v112, %v626
    %628 = vmatmul.mubr.f32.gmra.mrb[0].mxu0 %v627
    %v629 = vpop.f32.mrb[0].mxu0
    %v630 = vadd.f32 %v493, %v629
    %v631 = vpop.f32.mrb[0].mxu0
    %v632 = vadd.f32 %v495, %v631
    %633 = vdwg.mxu0
    %v634 = vand.u32 %v114, 4294901760
    %635 = vmatprep.subr.mxu0 %v634
    %v636 = vand.u32 %v113, 4294901760
    %637 = vmatpush1.msra.mxu0 %v636
    %v638 = vand.u32 %v116, 4294901760
    %639 = vmatprep.subr.mxu0 %v638
    %v640 = vand.u32 %v115, 4294901760
    %641 = vmatpush1.msra.mxu0 %v640
    %v642 = vand.u32 %v118, 4294901760
    %643 = vmatprep.subr.mxu0 %v642
    %v644 = vand.u32 %v117, 4294901760
    %645 = vmatpush1.msra.mxu0 %v644
    %v646 = vand.u32 %v120, 4294901760
    %647 = vmatprep.subr.mxu0 %v646
    %v648 = vand.u32 %v119, 4294901760
    %649 = vmatpush1.msra.mxu0 %v648
    %v650 = vand.u32 %v122, 4294901760
    %651 = vmatprep.subr.mxu0 %v650
    %v652 = vand.u32 %v121, 4294901760
    %653 = vmatpush1.msra.mxu0 %v652
    %v654 = vand.u32 %v124, 4294901760
    %655 = vmatprep.subr.mxu0 %v654
    %v656 = vand.u32 %v123, 4294901760
    %657 = vmatpush1.msra.mxu0 %v656
    %v658 = vand.u32 %v126, 4294901760
    %659 = vmatprep.subr.mxu0 %v658
    %v660 = vand.u32 %v125, 4294901760
    %661 = vmatpush1.msra.mxu0 %v660
    %v662 = vand.u32 %v128, 4294901760
    %663 = vmatprep.subr.mxu0 %v662
    %v664 = vand.u32 %v127, 4294901760
    %665 = vmatpush1.msra.mxu0 %v664
    %v666 = vand.u32 %v130, 4294901760
    %667 = vmatprep.subr.mxu0 %v666
    %v668 = vand.u32 %v129, 4294901760
    %669 = vmatpush1.msra.mxu0 %v668
    %v670 = vand.u32 %v132, 4294901760
    %671 = vmatprep.subr.mxu0 %v670
    %v672 = vand.u32 %v131, 4294901760
    %673 = vmatpush1.msra.mxu0 %v672
    %v674 = vand.u32 %v134, 4294901760
    %675 = vmatprep.subr.mxu0 %v674
    %v676 = vand.u32 %v133, 4294901760
    %677 = vmatpush1.msra.mxu0 %v676
    %v678 = vand.u32 %v136, 4294901760
    %679 = vmatprep.subr.mxu0 %v678
    %v680 = vand.u32 %v135, 4294901760
    %681 = vmatpush1.msra.mxu0 %v680
    %v682 = vand.u32 %v138, 4294901760
    %683 = vmatprep.subr.mxu0 %v682
    %v684 = vand.u32 %v137, 4294901760
    %685 = vmatpush1.msra.mxu0 %v684
    %v686 = vand.u32 %v140, 4294901760
    %687 = vmatprep.subr.mxu0 %v686
    %v688 = vand.u32 %v139, 4294901760
    %689 = vmatpush1.msra.mxu0 %v688
    %v690 = vand.u32 %v142, 4294901760
    %691 = vmatprep.subr.mxu0 %v690
    %v692 = vand.u32 %v141, 4294901760
    %693 = vmatpush1.msra.mxu0 %v692
    %v694 = vand.u32 %v144, 4294901760
    %695 = vmatprep.subr.mxu0 %v694
    %v696 = vand.u32 %v143, 4294901760
    %697 = vmatpush1.msra.mxu0 %v696
    %698 = vmatprep.subr.mxu0 0.0
    %699 = vmatpush1.msra.mxu0 0.0
    %700 = vmatprep.subr.mxu0 0.0
    %701 = vmatpush1.msra.mxu0 0.0
    %702 = vmatprep.subr.mxu0 0.0
    %703 = vmatpush1.msra.mxu0 0.0
    %704 = vmatprep.subr.mxu0 0.0
    %705 = vmatpush1.msra.mxu0 0.0
    %706 = vmatprep.subr.mxu0 0.0
    %707 = vmatpush1.msra.mxu0 0.0
    %708 = vmatprep.subr.mxu0 0.0
    %709 = vmatpush1.msra.mxu0 0.0
    %710 = vmatprep.subr.mxu0 0.0
    %711 = vmatpush1.msra.mxu0 0.0
    %712 = vmatprep.subr.mxu0 0.0
    %713 = vmatpush1.msra.mxu0 0.0
    %714 = vmatprep.subr.mxu0 0.0
    %715 = vmatpush1.msra.mxu0 0.0
    %716 = vmatprep.subr.mxu0 0.0
    %717 = vmatpush1.msra.mxu0 0.0
    %718 = vmatprep.subr.mxu0 0.0
    %719 = vmatpush1.msra.mxu0 0.0
    %720 = vmatprep.subr.mxu0 0.0
    %721 = vmatpush1.msra.mxu0 0.0
    %722 = vmatprep.subr.mxu0 0.0
    %723 = vmatpush1.msra.mxu0 0.0
    %724 = vmatprep.subr.mxu0 0.0
    %725 = vmatpush1.msra.mxu0 0.0
    %726 = vmatprep.subr.mxu0 0.0
    %727 = vmatpush1.msra.mxu0 0.0
    %728 = vmatprep.subr.mxu0 0.0
    %729 = vmatpush1.msra.mxu0 0.0
    %730 = vmatprep.mubr.f32.mxu0 0.0
    %v731 = vand.u32 %v112, 4294901760
    %v732 = vsub.f32 %v112, %v731
    %v733 = vand.u32 %v732, 4294901760
    %734 = vmatmul.mubr.f32.gmra.mrb[0].mxu0 %v733
    %v735 = vpop.f32.mrb[0].mxu0
    %v736 = vadd.f32 %v630, %v735
    %v737 = vpop.f32.mrb[0].mxu0
    %v738 = vadd.f32 %v632, %v737
    %739 = vdwg.mxu0
    %v740 = vand.u32 %v114, 4294901760
    %v741 = vsub.f32 %v114, %v740
    %v742 = vand.u32 %v741, 4294901760
    %743 = vmatprep.subr.mxu0 %v742
    %v744 = vand.u32 %v113, 4294901760
    %v745 = vsub.f32 %v113, %v744
    %v746 = vand.u32 %v745, 4294901760
    %747 = vmatpush1.msra.mxu0 %v746
    %v748 = vand.u32 %v116, 4294901760
    %v749 = vsub.f32 %v116, %v748
    %v750 = vand.u32 %v749, 4294901760
    %751 = vmatprep.subr.mxu0 %v750
    %v752 = vand.u32 %v115, 4294901760
    %v753 = vsub.f32 %v115, %v752
    %v754 = vand.u32 %v753, 4294901760
    %755 = vmatpush1.msra.mxu0 %v754
    %v756 = vand.u32 %v118, 4294901760
    %v757 = vsub.f32 %v118, %v756
    %v758 = vand.u32 %v757, 4294901760
    %759 = vmatprep.subr.mxu0 %v758
    %v760 = vand.u32 %v117, 4294901760
    %v761 = vsub.f32 %v117, %v760
    %v762 = vand.u32 %v761, 4294901760
    %763 = vmatpush1.msra.mxu0 %v762
    %v764 = vand.u32 %v120, 4294901760
    %v765 = vsub.f32 %v120, %v764
    %v766 = vand.u32 %v765, 4294901760
    %767 = vmatprep.subr.mxu0 %v766
    %v768 = vand.u32 %v119, 4294901760
    %v769 = vsub.f32 %v119, %v768
    %v770 = vand.u32 %v769, 4294901760
    %771 = vmatpush1.msra.mxu0 %v770
    %v772 = vand.u32 %v122, 4294901760
    %v773 = vsub.f32 %v122, %v772
    %v774 = vand.u32 %v773, 4294901760
    %775 = vmatprep.subr.mxu0 %v774
    %v776 = vand.u32 %v121, 4294901760
    %v777 = vsub.f32 %v121, %v776
    %v778 = vand.u32 %v777, 4294901760
    %779 = vmatpush1.msra.mxu0 %v778
    %v780 = vand.u32 %v124, 4294901760
    %v781 = vsub.f32 %v124, %v780
    %v782 = vand.u32 %v781, 4294901760
    %783 = vmatprep.subr.mxu0 %v782
    %v784 = vand.u32 %v123, 4294901760
    %v785 = vsub.f32 %v123, %v784
    %v786 = vand.u32 %v785, 4294901760
    %787 = vmatpush1.msra.mxu0 %v786
    %v788 = vand.u32 %v126, 4294901760
    %v789 = vsub.f32 %v126, %v788
    %v790 = vand.u32 %v789, 4294901760
    %791 = vmatprep.subr.mxu0 %v790
    %v792 = vand.u32 %v125, 4294901760
    %v793 = vsub.f32 %v125, %v792
    %v794 = vand.u32 %v793, 4294901760
    %795 = vmatpush1.msra.mxu0 %v794
    %v796 = vand.u32 %v128, 4294901760
    %v797 = vsub.f32 %v128, %v796
    %v798 = vand.u32 %v797, 4294901760
    %799 = vmatprep.subr.mxu0 %v798
    %v800 = vand.u32 %v127, 4294901760
    %v801 = vsub.f32 %v127, %v800
    %v802 = vand.u32 %v801, 4294901760
    %803 = vmatpush1.msra.mxu0 %v802
    %v804 = vand.u32 %v130, 4294901760
    %v805 = vsub.f32 %v130, %v804
    %v806 = vand.u32 %v805, 4294901760
    %807 = vmatprep.subr.mxu0 %v806
    %v808 = vand.u32 %v129, 4294901760
    %v809 = vsub.f32 %v129, %v808
    %v810 = vand.u32 %v809, 4294901760
    %811 = vmatpush1.msra.mxu0 %v810
    %v812 = vand.u32 %v132, 4294901760
    %v813 = vsub.f32 %v132, %v812
    %v814 = vand.u32 %v813, 4294901760
    %815 = vmatprep.subr.mxu0 %v814
    %v816 = vand.u32 %v131, 4294901760
    %v817 = vsub.f32 %v131, %v816
    %v818 = vand.u32 %v817, 4294901760
    %819 = vmatpush1.msra.mxu0 %v818
    %v820 = vand.u32 %v134, 4294901760
    %v821 = vsub.f32 %v134, %v820
    %v822 = vand.u32 %v821, 4294901760
    %823 = vmatprep.subr.mxu0 %v822
    %v824 = vand.u32 %v133, 4294901760
    %v825 = vsub.f32 %v133, %v824
    %v826 = vand.u32 %v825, 4294901760
    %827 = vmatpush1.msra.mxu0 %v826
    %v828 = vand.u32 %v136, 4294901760
    %v829 = vsub.f32 %v136, %v828
    %v830 = vand.u32 %v829, 4294901760
    %831 = vmatprep.subr.mxu0 %v830
    %v832 = vand.u32 %v135, 4294901760
    %v833 = vsub.f32 %v135, %v832
    %v834 = vand.u32 %v833, 4294901760
    %835 = vmatpush1.msra.mxu0 %v834
    %v836 = vand.u32 %v138, 4294901760
    %v837 = vsub.f32 %v138, %v836
    %v838 = vand.u32 %v837, 4294901760
    %839 = vmatprep.subr.mxu0 %v838
    %v840 = vand.u32 %v137, 4294901760
    %v841 = vsub.f32 %v137, %v840
    %v842 = vand.u32 %v841, 4294901760
    %843 = vmatpush1.msra.mxu0 %v842
    %v844 = vand.u32 %v140, 4294901760
    %v845 = vsub.f32 %v140, %v844
    %v846 = vand.u32 %v845, 4294901760
    %847 = vmatprep.subr.mxu0 %v846
    %v848 = vand.u32 %v139, 4294901760
    %v849 = vsub.f32 %v139, %v848
    %v850 = vand.u32 %v849, 4294901760
    %851 = vmatpush1.msra.mxu0 %v850
    %v852 = vand.u32 %v142, 4294901760
    %v853 = vsub.f32 %v142, %v852
    %v854 = vand.u32 %v853, 4294901760
    %855 = vmatprep.subr.mxu0 %v854
    %v856 = vand.u32 %v141, 4294901760
    %v857 = vsub.f32 %v141, %v856
    %v858 = vand.u32 %v857, 4294901760
    %859 = vmatpush1.msra.mxu0 %v858
    %v860 = vand.u32 %v144, 4294901760
    %v861 = vsub.f32 %v144, %v860
    %v862 = vand.u32 %v861, 4294901760
    %863 = vmatprep.subr.mxu0 %v862
    %v864 = vand.u32 %v143, 4294901760
    %v865 = vsub.f32 %v143, %v864
    %v866 = vand.u32 %v865, 4294901760
    %867 = vmatpush1.msra.mxu0 %v866
    %868 = vmatprep.subr.mxu0 0.0
    %869 = vmatpush1.msra.mxu0 0.0
    %870 = vmatprep.subr.mxu0 0.0
    %871 = vmatpush1.msra.mxu0 0.0
    %872 = vmatprep.subr.mxu0 0.0
    %873 = vmatpush1.msra.mxu0 0.0
    %874 = vmatprep.subr.mxu0 0.0
    %875 = vmatpush1.msra.mxu0 0.0
    %876 = vmatprep.subr.mxu0 0.0
    %877 = vmatpush1.msra.mxu0 0.0
    %878 = vmatprep.subr.mxu0 0.0
    %879 = vmatpush1.msra.mxu0 0.0
    %880 = vmatprep.subr.mxu0 0.0
    %881 = vmatpush1.msra.mxu0 0.0
    %882 = vmatprep.subr.mxu0 0.0
    %883 = vmatpush1.msra.mxu0 0.0
    %884 = vmatprep.subr.mxu0 0.0
    %885 = vmatpush1.msra.mxu0 0.0
    %886 = vmatprep.subr.mxu0 0.0
    %887 = vmatpush1.msra.mxu0 0.0
    %888 = vmatprep.subr.mxu0 0.0
    %889 = vmatpush1.msra.mxu0 0.0
    %890 = vmatprep.subr.mxu0 0.0
    %891 = vmatpush1.msra.mxu0 0.0
    %892 = vmatprep.subr.mxu0 0.0
    %893 = vmatpush1.msra.mxu0 0.0
    %894 = vmatprep.subr.mxu0 0.0
    %895 = vmatpush1.msra.mxu0 0.0
    %896 = vmatprep.subr.mxu0 0.0
    %897 = vmatpush1.msra.mxu0 0.0
    %898 = vmatprep.subr.mxu0 0.0
    %899 = vmatpush1.msra.mxu0 0.0
    %900 = vmatprep.mubr.f32.mxu0 0.0
    %v901 = vand.u32 %v112, 4294901760
    %902 = vmatmul.mubr.f32.gmra.mrb[0].mxu0 %v901
    %v903 = vpop.f32.mrb[0].mxu0
    %v904 = vadd.f32 %v736, %v903
    %v905 = vpop.f32.mrb[0].mxu0
    %v906 = vadd.f32 %v738, %v905
    %907 = vdwg.mxu0
    %v908 = vand.u32 %v114, 4294901760
    %909 = vmatprep.subr.mxu0 %v908
    %v910 = vand.u32 %v113, 4294901760
    %911 = vmatpush1.msra.mxu0 %v910
    %v912 = vand.u32 %v116, 4294901760
    %913 = vmatprep.subr.mxu0 %v912
    %v914 = vand.u32 %v115, 4294901760
    %915 = vmatpush1.msra.mxu0 %v914
    %v916 = vand.u32 %v118, 4294901760
    %917 = vmatprep.subr.mxu0 %v916
    %v918 = vand.u32 %v117, 4294901760
    %919 = vmatpush1.msra.mxu0 %v918
    %v920 = vand.u32 %v120, 4294901760
    %921 = vmatprep.subr.mxu0 %v920
    %v922 = vand.u32 %v119, 4294901760
    %923 = vmatpush1.msra.mxu0 %v922
    %v924 = vand.u32 %v122, 4294901760
    %925 = vmatprep.subr.mxu0 %v924
    %v926 = vand.u32 %v121, 4294901760
    %927 = vmatpush1.msra.mxu0 %v926
    %v928 = vand.u32 %v124, 4294901760
    %929 = vmatprep.subr.mxu0 %v928
    %v930 = vand.u32 %v123, 4294901760
    %931 = vmatpush1.msra.mxu0 %v930
    %v932 = vand.u32 %v126, 4294901760
    %933 = vmatprep.subr.mxu0 %v932
    %v934 = vand.u32 %v125, 4294901760
    %935 = vmatpush1.msra.mxu0 %v934
    %v936 = vand.u32 %v128, 4294901760
    %937 = vmatprep.subr.mxu0 %v936
    %v938 = vand.u32 %v127, 4294901760
    %939 = vmatpush1.msra.mxu0 %v938
    %v940 = vand.u32 %v130, 4294901760
    %941 = vmatprep.subr.mxu0 %v940
    %v942 = vand.u32 %v129, 4294901760
    %943 = vmatpush1.msra.mxu0 %v942
    %v944 = vand.u32 %v132, 4294901760
    %945 = vmatprep.subr.mxu0 %v944
    %v946 = vand.u32 %v131, 4294901760
    %947 = vmatpush1.msra.mxu0 %v946
    %v948 = vand.u32 %v134, 4294901760
    %949 = vmatprep.subr.mxu0 %v948
    %v950 = vand.u32 %v133, 4294901760
    %951 = vmatpush1.msra.mxu0 %v950
    %v952 = vand.u32 %v136, 4294901760
    %953 = vmatprep.subr.mxu0 %v952
    %v954 = vand.u32 %v135, 4294901760
    %955 = vmatpush1.msra.mxu0 %v954
    %v956 = vand.u32 %v138, 4294901760
    %957 = vmatprep.subr.mxu0 %v956
    %v958 = vand.u32 %v137, 4294901760
    %959 = vmatpush1.msra.mxu0 %v958
    %v960 = vand.u32 %v140, 4294901760
    %961 = vmatprep.subr.mxu0 %v960
    %v962 = vand.u32 %v139, 4294901760
    %963 = vmatpush1.msra.mxu0 %v962
    %v964 = vand.u32 %v142, 4294901760
    %965 = vmatprep.subr.mxu0 %v964
    %v966 = vand.u32 %v141, 4294901760
    %967 = vmatpush1.msra.mxu0 %v966
    %v968 = vand.u32 %v144, 4294901760
    %969 = vmatprep.subr.mxu0 %v968
    %v970 = vand.u32 %v143, 4294901760
    %971 = vmatpush1.msra.mxu0 %v970
    %972 = vmatprep.subr.mxu0 0.0
    %973 = vmatpush1.msra.mxu0 0.0
    %974 = vmatprep.subr.mxu0 0.0
    %975 = vmatpush1.msra.mxu0 0.0
    %976 = vmatprep.subr.mxu0 0.0
    %977 = vmatpush1.msra.mxu0 0.0
    %978 = vmatprep.subr.mxu0 0.0
    %979 = vmatpush1.msra.mxu0 0.0
    %980 = vmatprep.subr.mxu0 0.0
    %981 = vmatpush1.msra.mxu0 0.0
    %982 = vmatprep.subr.mxu0 0.0
    %983 = vmatpush1.msra.mxu0 0.0
    %984 = vmatprep.subr.mxu0 0.0
    %985 = vmatpush1.msra.mxu0 0.0
    %986 = vmatprep.subr.mxu0 0.0
    %987 = vmatpush1.msra.mxu0 0.0
    %988 = vmatprep.subr.mxu0 0.0
    %989 = vmatpush1.msra.mxu0 0.0
    %990 = vmatprep.subr.mxu0 0.0
    %991 = vmatpush1.msra.mxu0 0.0
    %992 = vmatprep.subr.mxu0 0.0
    %993 = vmatpush1.msra.mxu0 0.0
    %994 = vmatprep.subr.mxu0 0.0
    %995 = vmatpush1.msra.mxu0 0.0
    %996 = vmatprep.subr.mxu0 0.0
    %997 = vmatpush1.msra.mxu0 0.0
    %998 = vmatprep.subr.mxu0 0.0
    %999 = vmatpush1.msra.mxu0 0.0
    %1000 = vmatprep.subr.mxu0 0.0
    %1001 = vmatpush1.msra.mxu0 0.0
    %1002 = vmatprep.subr.mxu0 0.0
    %1003 = vmatpush1.msra.mxu0 0.0
    %1004 = vmatprep.mubr.f32.mxu0 0.0
    %v1005 = vand.u32 %v112, 4294901760
    %1006 = vmatmul.mubr.f32.gmra.mrb[0].mxu0 %v1005
    %v1007 = vpop.f32.mrb[0].mxu0
    %v1008 = vadd.f32 %v904, %v1007
    %v1009 = vpop.f32.mrb[0].mxu0
    %v1010 = vadd.f32 %v906, %v1009
    %1011 = vdwg.mxu0
    %v1012 = vtanh.pop %v1008
    %v1013 = vtanh.pop %v1010
    %v1014 = vld [vmem:[#allocation10] sm:$0xff]
    %v1015 = vld [vmem:[#allocation10 + $0x8] sm:$0xff]
    %v1016 = vld [vmem:[#allocation10 + $0x10] sm:$0xff]
    %v1017 = vld [vmem:[#allocation10 + $0x18] sm:$0xff]
    %v1018 = vld [vmem:[#allocation10 + $0x20] sm:$0xff]
    %v1019 = vld [vmem:[#allocation10 + $0x28] sm:$0xff]
    %v1020 = vld [vmem:[#allocation10 + $0x30] sm:$0xff]
    %v1021 = vld [vmem:[#allocation10 + $0x38] sm:$0xff]
    %v1022 = vld [vmem:[#allocation10 + $0x40] sm:$0xff]
    %v1023 = vld [vmem:[#allocation10 + $0x48] sm:$0xff]
    %v1024 = vld [vmem:[#allocation10 + $0x50] sm:$0xff]
    %v1025 = vld [vmem:[#allocation10 + $0x58] sm:$0xff]
    %v1026 = vld [vmem:[#allocation10 + $0x60] sm:$0xff]
    %v1027 = vld [vmem:[#allocation10 + $0x68] sm:$0xff]
    %v1028 = vld [vmem:[#allocation10 + $0x70] sm:$0xff]
    %v1029 = vld [vmem:[#allocation10 + $0x78] sm:$0xff]
    %v1030 = vld [vmem:[#allocation10 + $0x80] sm:$0xff]
    %v1031 = vld [vmem:[#allocation10 + $0x88] sm:$0xff]
    %v1032 = vld [vmem:[#allocation10 + $0x90] sm:$0xff]
    %v1033 = vld [vmem:[#allocation10 + $0x98] sm:$0xff]
    %v1034 = vld [vmem:[#allocation10 + $0xa0] sm:$0xff]
    %v1035 = vld [vmem:[#allocation10 + $0xa8] sm:$0xff]
    %v1036 = vld [vmem:[#allocation10 + $0xb0] sm:$0xff]
    %v1037 = vld [vmem:[#allocation10 + $0xb8] sm:$0xff]
    %v1038 = vld [vmem:[#allocation10 + $0xc0] sm:$0xff]
    %v1039 = vld [vmem:[#allocation10 + $0xc8] sm:$0xff]
    %v1040 = vld [vmem:[#allocation10 + $0xd0] sm:$0xff]
    %v1041 = vld [vmem:[#allocation10 + $0xd8] sm:$0xff]
    %v1042 = vld [vmem:[#allocation10 + $0xe0] sm:$0xff]
    %v1043 = vld [vmem:[#allocation10 + $0xe8] sm:$0xff]
    %v1044 = vld [vmem:[#allocation10 + $0xf0] sm:$0xff]
    %v1045 = vld [vmem:[#allocation10 + $0xf8] sm:$0xff]
    %1046 = vmatprep.subr.mxu0 0.0
    %v1047 = vand.u32 %v1014, 4294901760
    %1048 = vmatpush1.msra.mxu0 %v1047
    %1049 = vmatprep.subr.mxu0 0.0
    %v1050 = vand.u32 %v1015, 4294901760
    %1051 = vmatpush1.msra.mxu0 %v1050
    %1052 = vmatprep.subr.mxu0 0.0
    %v1053 = vand.u32 %v1016, 4294901760
    %1054 = vmatpush1.msra.mxu0 %v1053
    %1055 = vmatprep.subr.mxu0 0.0
    %v1056 = vand.u32 %v1017, 4294901760
    %1057 = vmatpush1.msra.mxu0 %v1056
    %1058 = vmatprep.subr.mxu0 0.0
    %v1059 = vand.u32 %v1018, 4294901760
    %1060 = vmatpush1.msra.mxu0 %v1059
    %1061 = vmatprep.subr.mxu0 0.0
    %v1062 = vand.u32 %v1019, 4294901760
    %1063 = vmatpush1.msra.mxu0 %v1062
    %1064 = vmatprep.subr.mxu0 0.0
    %v1065 = vand.u32 %v1020, 4294901760
    %1066 = vmatpush1.msra.mxu0 %v1065
    %1067 = vmatprep.subr.mxu0 0.0
    %v1068 = vand.u32 %v1021, 4294901760
    %1069 = vmatpush1.msra.mxu0 %v1068
    %1070 = vmatprep.subr.mxu0 0.0
    %v1071 = vand.u32 %v1022, 4294901760
    %1072 = vmatpush1.msra.mxu0 %v1071
    %1073 = vmatprep.subr.mxu0 0.0
    %v1074 = vand.u32 %v1023, 4294901760
    %1075 = vmatpush1.msra.mxu0 %v1074
    %1076 = vmatprep.subr.mxu0 0.0
    %v1077 = vand.u32 %v1024, 4294901760
    %1078 = vmatpush1.msra.mxu0 %v1077
    %1079 = vmatprep.subr.mxu0 0.0
    %v1080 = vand.u32 %v1025, 4294901760
    %1081 = vmatpush1.msra.mxu0 %v1080
    %1082 = vmatprep.subr.mxu0 0.0
    %v1083 = vand.u32 %v1026, 4294901760
    %1084 = vmatpush1.msra.mxu0 %v1083
    %1085 = vmatprep.subr.mxu0 0.0
    %v1086 = vand.u32 %v1027, 4294901760
    %1087 = vmatpush1.msra.mxu0 %v1086
    %1088 = vmatprep.subr.mxu0 0.0
    %v1089 = vand.u32 %v1028, 4294901760
    %1090 = vmatpush1.msra.mxu0 %v1089
    %1091 = vmatprep.subr.mxu0 0.0
    %v1092 = vand.u32 %v1029, 4294901760
    %1093 = vmatpush1.msra.mxu0 %v1092
    %1094 = vmatprep.subr.mxu0 0.0
    %v1095 = vand.u32 %v1030, 4294901760
    %1096 = vmatpush1.msra.mxu0 %v1095
    %1097 = vmatprep.subr.mxu0 0.0
    %v1098 = vand.u32 %v1031, 4294901760
    %1099 = vmatpush1.msra.mxu0 %v1098
    %1100 = vmatprep.subr.mxu0 0.0
    %v1101 = vand.u32 %v1032, 4294901760
    %1102 = vmatpush1.msra.mxu0 %v1101
    %1103 = vmatprep.subr.mxu0 0.0
    %v1104 = vand.u32 %v1033, 4294901760
    %1105 = vmatpush1.msra.mxu0 %v1104
    %1106 = vmatprep.subr.mxu0 0.0
    %v1107 = vand.u32 %v1034, 4294901760
    %1108 = vmatpush1.msra.mxu0 %v1107
    %1109 = vmatprep.subr.mxu0 0.0
    %v1110 = vand.u32 %v1035, 4294901760
    %1111 = vmatpush1.msra.mxu0 %v1110
    %1112 = vmatprep.subr.mxu0 0.0
    %v1113 = vand.u32 %v1036, 4294901760
    %1114 = vmatpush1.msra.mxu0 %v1113
    %1115 = vmatprep.subr.mxu0 0.0
    %v1116 = vand.u32 %v1037, 4294901760
    %1117 = vmatpush1.msra.mxu0 %v1116
    %1118 = vmatprep.subr.mxu0 0.0
    %v1119 = vand.u32 %v1038, 4294901760
    %1120 = vmatpush1.msra.mxu0 %v1119
    %1121 = vmatprep.subr.mxu0 0.0
    %v1122 = vand.u32 %v1039, 4294901760
    %1123 = vmatpush1.msra.mxu0 %v1122
    %1124 = vmatprep.subr.mxu0 0.0
    %v1125 = vand.u32 %v1040, 4294901760
    %1126 = vmatpush1.msra.mxu0 %v1125
    %1127 = vmatprep.subr.mxu0 0.0
    %v1128 = vand.u32 %v1041, 4294901760
    %1129 = vmatpush1.msra.mxu0 %v1128
    %1130 = vmatprep.subr.mxu0 0.0
    %v1131 = vand.u32 %v1042, 4294901760
    %1132 = vmatpush1.msra.mxu0 %v1131
    %1133 = vmatprep.subr.mxu0 0.0
    %v1134 = vand.u32 %v1043, 4294901760
    %1135 = vmatpush1.msra.mxu0 %v1134
    %1136 = vmatprep.subr.mxu0 0.0
    %v1137 = vand.u32 %v1044, 4294901760
    %1138 = vmatpush1.msra.mxu0 %v1137
    %1139 = vmatprep.subr.mxu0 0.0
    %v1140 = vand.u32 %v1045, 4294901760
    %1141 = vmatpush1.msra.mxu0 %v1140
    %v1142 = vand.u32 %v1013, 4294901760
    %v1143 = vsub.f32 %v1013, %v1142
    %v1144 = vand.u32 %v1143, 4294901760
    %v1145 = vsub.f32 %v1143, %v1144
    %v1146 = vand.u32 %v1145, 4294901760
    %1147 = vmatprep.mubr.f32.mxu0 %v1146
    %v1148 = vand.u32 %v1012, 4294901760
    %v1149 = vsub.f32 %v1012, %v1148
    %v1150 = vand.u32 %v1149, 4294901760
    %v1151 = vsub.f32 %v1149, %v1150
    %v1152 = vand.u32 %v1151, 4294901760
    %1153 = vmatmul.mubr.f32.gmra.mrb[0].mxu0 %v1152
    %v1154 = vpop.f32.mrb[0].mxu0
    %v1155 = vadd.f32 0.0, %v1154
    %v1156 = vpop.f32.mrb[0].mxu0
    %1157 = vdwg.mxu0
    %1158 = vmatprep.subr.mxu0 0.0
    %v1159 = vand.u32 %v1014, 4294901760
    %v1160 = vsub.f32 %v1014, %v1159
    %v1161 = vand.u32 %v1160, 4294901760
    %v1162 = vsub.f32 %v1160, %v1161
    %v1163 = vand.u32 %v1162, 4294901760
    %1164 = vmatpush1.msra.mxu0 %v1163
    %1165 = vmatprep.subr.mxu0 0.0
    %v1166 = vand.u32 %v1015, 4294901760
    %v1167 = vsub.f32 %v1015, %v1166
    %v1168 = vand.u32 %v1167, 4294901760
    %v1169 = vsub.f32 %v1167, %v1168
    %v1170 = vand.u32 %v1169, 4294901760
    %1171 = vmatpush1.msra.mxu0 %v1170
    %1172 = vmatprep.subr.mxu0 0.0
    %v1173 = vand.u32 %v1016, 4294901760
    %v1174 = vsub.f32 %v1016, %v1173
    %v1175 = vand.u32 %v1174, 4294901760
    %v1176 = vsub.f32 %v1174, %v1175
    %v1177 = vand.u32 %v1176, 4294901760
    %1178 = vmatpush1.msra.mxu0 %v1177
    %1179 = vmatprep.subr.mxu0 0.0
    %v1180 = vand.u32 %v1017, 4294901760
    %v1181 = vsub.f32 %v1017, %v1180
    %v1182 = vand.u32 %v1181, 4294901760
    %v1183 = vsub.f32 %v1181, %v1182
    %v1184 = vand.u32 %v1183, 4294901760
    %1185 = vmatpush1.msra.mxu0 %v1184
    %1186 = vmatprep.subr.mxu0 0.0
    %v1187 = vand.u32 %v1018, 4294901760
    %v1188 = vsub.f32 %v1018, %v1187
    %v1189 = vand.u32 %v1188, 4294901760
    %v1190 = vsub.f32 %v1188, %v1189
    %v1191 = vand.u32 %v1190, 4294901760
    %1192 = vmatpush1.msra.mxu0 %v1191
    %1193 = vmatprep.subr.mxu0 0.0
    %v1194 = vand.u32 %v1019, 4294901760
    %v1195 = vsub.f32 %v1019, %v1194
    %v1196 = vand.u32 %v1195, 4294901760
    %v1197 = vsub.f32 %v1195, %v1196
    %v1198 = vand.u32 %v1197, 4294901760
    %1199 = vmatpush1.msra.mxu0 %v1198
    %1200 = vmatprep.subr.mxu0 0.0
    %v1201 = vand.u32 %v1020, 4294901760
    %v1202 = vsub.f32 %v1020, %v1201
    %v1203 = vand.u32 %v1202, 4294901760
    %v1204 = vsub.f32 %v1202, %v1203
    %v1205 = vand.u32 %v1204, 4294901760
    %1206 = vmatpush1.msra.mxu0 %v1205
    %1207 = vmatprep.subr.mxu0 0.0
    %v1208 = vand.u32 %v1021, 4294901760
    %v1209 = vsub.f32 %v1021, %v1208
    %v1210 = vand.u32 %v1209, 4294901760
    %v1211 = vsub.f32 %v1209, %v1210
    %v1212 = vand.u32 %v1211, 4294901760
    %1213 = vmatpush1.msra.mxu0 %v1212
    %1214 = vmatprep.subr.mxu0 0.0
    %v1215 = vand.u32 %v1022, 4294901760
    %v1216 = vsub.f32 %v1022, %v1215
    %v1217 = vand.u32 %v1216, 4294901760
    %v1218 = vsub.f32 %v1216, %v1217
    %v1219 = vand.u32 %v1218, 4294901760
    %1220 = vmatpush1.msra.mxu0 %v1219
    %1221 = vmatprep.subr.mxu0 0.0
    %v1222 = vand.u32 %v1023, 4294901760
    %v1223 = vsub.f32 %v1023, %v1222
    %v1224 = vand.u32 %v1223, 4294901760
    %v1225 = vsub.f32 %v1223, %v1224
    %v1226 = vand.u32 %v1225, 4294901760
    %1227 = vmatpush1.msra.mxu0 %v1226
    %1228 = vmatprep.subr.mxu0 0.0
    %v1229 = vand.u32 %v1024, 4294901760
    %v1230 = vsub.f32 %v1024, %v1229
    %v1231 = vand.u32 %v1230, 4294901760
    %v1232 = vsub.f32 %v1230, %v1231
    %v1233 = vand.u32 %v1232, 4294901760
    %1234 = vmatpush1.msra.mxu0 %v1233
    %1235 = vmatprep.subr.mxu0 0.0
    %v1236 = vand.u32 %v1025, 4294901760
    %v1237 = vsub.f32 %v1025, %v1236
    %v1238 = vand.u32 %v1237, 4294901760
    %v1239 = vsub.f32 %v1237, %v1238
    %v1240 = vand.u32 %v1239, 4294901760
    %1241 = vmatpush1.msra.mxu0 %v1240
    %1242 = vmatprep.subr.mxu0 0.0
    %v1243 = vand.u32 %v1026, 4294901760
    %v1244 = vsub.f32 %v1026, %v1243
    %v1245 = vand.u32 %v1244, 4294901760
    %v1246 = vsub.f32 %v1244, %v1245
    %v1247 = vand.u32 %v1246, 4294901760
    %1248 = vmatpush1.msra.mxu0 %v1247
    %1249 = vmatprep.subr.mxu0 0.0
    %v1250 = vand.u32 %v1027, 4294901760
    %v1251 = vsub.f32 %v1027, %v1250
    %v1252 = vand.u32 %v1251, 4294901760
    %v1253 = vsub.f32 %v1251, %v1252
    %v1254 = vand.u32 %v1253, 4294901760
    %1255 = vmatpush1.msra.mxu0 %v1254
    %1256 = vmatprep.subr.mxu0 0.0
    %v1257 = vand.u32 %v1028, 4294901760
    %v1258 = vsub.f32 %v1028, %v1257
    %v1259 = vand.u32 %v1258, 4294901760
    %v1260 = vsub.f32 %v1258, %v1259
    %v1261 = vand.u32 %v1260, 4294901760
    %1262 = vmatpush1.msra.mxu0 %v1261
    %1263 = vmatprep.subr.mxu0 0.0
    %v1264 = vand.u32 %v1029, 4294901760
    %v1265 = vsub.f32 %v1029, %v1264
    %v1266 = vand.u32 %v1265, 4294901760
    %v1267 = vsub.f32 %v1265, %v1266
    %v1268 = vand.u32 %v1267, 4294901760
    %1269 = vmatpush1.msra.mxu0 %v1268
    %1270 = vmatprep.subr.mxu0 0.0
    %v1271 = vand.u32 %v1030, 4294901760
    %v1272 = vsub.f32 %v1030, %v1271
    %v1273 = vand.u32 %v1272, 4294901760
    %v1274 = vsub.f32 %v1272, %v1273
    %v1275 = vand.u32 %v1274, 4294901760
    %1276 = vmatpush1.msra.mxu0 %v1275
    %1277 = vmatprep.subr.mxu0 0.0
    %v1278 = vand.u32 %v1031, 4294901760
    %v1279 = vsub.f32 %v1031, %v1278
    %v1280 = vand.u32 %v1279, 4294901760
    %v1281 = vsub.f32 %v1279, %v1280
    %v1282 = vand.u32 %v1281, 4294901760
    %1283 = vmatpush1.msra.mxu0 %v1282
    %1284 = vmatprep.subr.mxu0 0.0
    %v1285 = vand.u32 %v1032, 4294901760
    %v1286 = vsub.f32 %v1032, %v1285
    %v1287 = vand.u32 %v1286, 4294901760
    %v1288 = vsub.f32 %v1286, %v1287
    %v1289 = vand.u32 %v1288, 4294901760
    %1290 = vmatpush1.msra.mxu0 %v1289
    %1291 = vmatprep.subr.mxu0 0.0
    %v1292 = vand.u32 %v1033, 4294901760
    %v1293 = vsub.f32 %v1033, %v1292
    %v1294 = vand.u32 %v1293, 4294901760
    %v1295 = vsub.f32 %v1293, %v1294
    %v1296 = vand.u32 %v1295, 4294901760
    %1297 = vmatpush1.msra.mxu0 %v1296
    %1298 = vmatprep.subr.mxu0 0.0
    %v1299 = vand.u32 %v1034, 4294901760
    %v1300 = vsub.f32 %v1034, %v1299
    %v1301 = vand.u32 %v1300, 4294901760
    %v1302 = vsub.f32 %v1300, %v1301
    %v1303 = vand.u32 %v1302, 4294901760
    %1304 = vmatpush1.msra.mxu0 %v1303
    %1305 = vmatprep.subr.mxu0 0.0
    %v1306 = vand.u32 %v1035, 4294901760
    %v1307 = vsub.f32 %v1035, %v1306
    %v1308 = vand.u32 %v1307, 4294901760
    %v1309 = vsub.f32 %v1307, %v1308
    %v1310 = vand.u32 %v1309, 4294901760
    %1311 = vmatpush1.msra.mxu0 %v1310
    %1312 = vmatprep.subr.mxu0 0.0
    %v1313 = vand.u32 %v1036, 4294901760
    %v1314 = vsub.f32 %v1036, %v1313
    %v1315 = vand.u32 %v1314, 4294901760
    %v1316 = vsub.f32 %v1314, %v1315
    %v1317 = vand.u32 %v1316, 4294901760
    %1318 = vmatpush1.msra.mxu0 %v1317
    %1319 = vmatprep.subr.mxu0 0.0
    %v1320 = vand.u32 %v1037, 4294901760
    %v1321 = vsub.f32 %v1037, %v1320
    %v1322 = vand.u32 %v1321, 4294901760
    %v1323 = vsub.f32 %v1321, %v1322
    %v1324 = vand.u32 %v1323, 4294901760
    %1325 = vmatpush1.msra.mxu0 %v1324
    %1326 = vmatprep.subr.mxu0 0.0
    %v1327 = vand.u32 %v1038, 4294901760
    %v1328 = vsub.f32 %v1038, %v1327
    %v1329 = vand.u32 %v1328, 4294901760
    %v1330 = vsub.f32 %v1328, %v1329
    %v1331 = vand.u32 %v1330, 4294901760
    %1332 = vmatpush1.msra.mxu0 %v1331
    %1333 = vmatprep.subr.mxu0 0.0
    %v1334 = vand.u32 %v1039, 4294901760
    %v1335 = vsub.f32 %v1039, %v1334
    %v1336 = vand.u32 %v1335, 4294901760
    %v1337 = vsub.f32 %v1335, %v1336
    %v1338 = vand.u32 %v1337, 4294901760
    %1339 = vmatpush1.msra.mxu0 %v1338
    %1340 = vmatprep.subr.mxu0 0.0
    %v1341 = vand.u32 %v1040, 4294901760
    %v1342 = vsub.f32 %v1040, %v1341
    %v1343 = vand.u32 %v1342, 4294901760
    %v1344 = vsub.f32 %v1342, %v1343
    %v1345 = vand.u32 %v1344, 4294901760
    %1346 = vmatpush1.msra.mxu0 %v1345
    %1347 = vmatprep.subr.mxu0 0.0
    %v1348 = vand.u32 %v1041, 4294901760
    %v1349 = vsub.f32 %v1041, %v1348
    %v1350 = vand.u32 %v1349, 4294901760
    %v1351 = vsub.f32 %v1349, %v1350
    %v1352 = vand.u32 %v1351, 4294901760
    %1353 = vmatpush1.msra.mxu0 %v1352
    %1354 = vmatprep.subr.mxu0 0.0
    %v1355 = vand.u32 %v1042, 4294901760
    %v1356 = vsub.f32 %v1042, %v1355
    %v1357 = vand.u32 %v1356, 4294901760
    %v1358 = vsub.f32 %v1356, %v1357
    %v1359 = vand.u32 %v1358, 4294901760
    %1360 = vmatpush1.msra.mxu0 %v1359
    %1361 = vmatprep.subr.mxu0 0.0
    %v1362 = vand.u32 %v1043, 4294901760
    %v1363 = vsub.f32 %v1043, %v1362
    %v1364 = vand.u32 %v1363, 4294901760
    %v1365 = vsub.f32 %v1363, %v1364
    %v1366 = vand.u32 %v1365, 4294901760
    %1367 = vmatpush1.msra.mxu0 %v1366
    %1368 = vmatprep.subr.mxu0 0.0
    %v1369 = vand.u32 %v1044, 4294901760
    %v1370 = vsub.f32 %v1044, %v1369
    %v1371 = vand.u32 %v1370, 4294901760
    %v1372 = vsub.f32 %v1370, %v1371
    %v1373 = vand.u32 %v1372, 4294901760
    %1374 = vmatpush1.msra.mxu0 %v1373
    %1375 = vmatprep.subr.mxu0 0.0
    %v1376 = vand.u32 %v1045, 4294901760
    %v1377 = vsub.f32 %v1045, %v1376
    %v1378 = vand.u32 %v1377, 4294901760
    %v1379 = vsub.f32 %v1377, %v1378
    %v1380 = vand.u32 %v1379, 4294901760
    %1381 = vmatpush1.msra.mxu0 %v1380
    %v1382 = vand.u32 %v1013, 4294901760
    %1383 = vmatprep.mubr.f32.mxu0 %v1382
    %v1384 = vand.u32 %v1012, 4294901760
    %1385 = vmatmul.mubr.f32.gmra.mrb[0].mxu0 %v1384
    %v1386 = vpop.f32.mrb[0].mxu0
    %v1387 = vadd.f32 %v1155, %v1386
    %v1388 = vpop.f32.mrb[0].mxu0
    %1389 = vdwg.mxu0
    %1390 = vmatprep.subr.mxu0 0.0
    %v1391 = vand.u32 %v1014, 4294901760
    %v1392 = vsub.f32 %v1014, %v1391
    %1393 = vmatpush1.msra.mxu0 %v1392
    %1394 = vmatprep.subr.mxu0 0.0
    %v1395 = vand.u32 %v1015, 4294901760
    %v1396 = vsub.f32 %v1015, %v1395
    %1397 = vmatpush1.msra.mxu0 %v1396
    %1398 = vmatprep.subr.mxu0 0.0
    %v1399 = vand.u32 %v1016, 4294901760
    %v1400 = vsub.f32 %v1016, %v1399
    %1401 = vmatpush1.msra.mxu0 %v1400
    %1402 = vmatprep.subr.mxu0 0.0
    %v1403 = vand.u32 %v1017, 4294901760
    %v1404 = vsub.f32 %v1017, %v1403
    %1405 = vmatpush1.msra.mxu0 %v1404
    %1406 = vmatprep.subr.mxu0 0.0
    %v1407 = vand.u32 %v1018, 4294901760
    %v1408 = vsub.f32 %v1018, %v1407
    %1409 = vmatpush1.msra.mxu0 %v1408
    %1410 = vmatprep.subr.mxu0 0.0
    %v1411 = vand.u32 %v1019, 4294901760
    %v1412 = vsub.f32 %v1019, %v1411
    %1413 = vmatpush1.msra.mxu0 %v1412
    %1414 = vmatprep.subr.mxu0 0.0
    %v1415 = vand.u32 %v1020, 4294901760
    %v1416 = vsub.f32 %v1020, %v1415
    %1417 = vmatpush1.msra.mxu0 %v1416
    %1418 = vmatprep.subr.mxu0 0.0
    %v1419 = vand.u32 %v1021, 4294901760
    %v1420 = vsub.f32 %v1021, %v1419
    %1421 = vmatpush1.msra.mxu0 %v1420
    %1422 = vmatprep.subr.mxu0 0.0
    %v1423 = vand.u32 %v1022, 4294901760
    %v1424 = vsub.f32 %v1022, %v1423
    %1425 = vmatpush1.msra.mxu0 %v1424
    %1426 = vmatprep.subr.mxu0 0.0
    %v1427 = vand.u32 %v1023, 4294901760
    %v1428 = vsub.f32 %v1023, %v1427
    %1429 = vmatpush1.msra.mxu0 %v1428
    %1430 = vmatprep.subr.mxu0 0.0
    %v1431 = vand.u32 %v1024, 4294901760
    %v1432 = vsub.f32 %v1024, %v1431
    %1433 = vmatpush1.msra.mxu0 %v1432
    %1434 = vmatprep.subr.mxu0 0.0
    %v1435 = vand.u32 %v1025, 4294901760
    %v1436 = vsub.f32 %v1025, %v1435
    %1437 = vmatpush1.msra.mxu0 %v1436
    %1438 = vmatprep.subr.mxu0 0.0
    %v1439 = vand.u32 %v1026, 4294901760
    %v1440 = vsub.f32 %v1026, %v1439
    %1441 = vmatpush1.msra.mxu0 %v1440
    %1442 = vmatprep.subr.mxu0 0.0
    %v1443 = vand.u32 %v1027, 4294901760
    %v1444 = vsub.f32 %v1027, %v1443
    %1445 = vmatpush1.msra.mxu0 %v1444
    %1446 = vmatprep.subr.mxu0 0.0
    %v1447 = vand.u32 %v1028, 4294901760
    %v1448 = vsub.f32 %v1028, %v1447
    %1449 = vmatpush1.msra.mxu0 %v1448
    %1450 = vmatprep.subr.mxu0 0.0
    %v1451 = vand.u32 %v1029, 4294901760
    %v1452 = vsub.f32 %v1029, %v1451
    %1453 = vmatpush1.msra.mxu0 %v1452
    %1454 = vmatprep.subr.mxu0 0.0
    %v1455 = vand.u32 %v1030, 4294901760
    %v1456 = vsub.f32 %v1030, %v1455
    %1457 = vmatpush1.msra.mxu0 %v1456
    %1458 = vmatprep.subr.mxu0 0.0
    %v1459 = vand.u32 %v1031, 4294901760
    %v1460 = vsub.f32 %v1031, %v1459
    %1461 = vmatpush1.msra.mxu0 %v1460
    %1462 = vmatprep.subr.mxu0 0.0
    %v1463 = vand.u32 %v1032, 4294901760
    %v1464 = vsub.f32 %v1032, %v1463
    %1465 = vmatpush1.msra.mxu0 %v1464
    %1466 = vmatprep.subr.mxu0 0.0
    %v1467 = vand.u32 %v1033, 4294901760
    %v1468 = vsub.f32 %v1033, %v1467
    %1469 = vmatpush1.msra.mxu0 %v1468
    %1470 = vmatprep.subr.mxu0 0.0
    %v1471 = vand.u32 %v1034, 4294901760
    %v1472 = vsub.f32 %v1034, %v1471
    %1473 = vmatpush1.msra.mxu0 %v1472
    %1474 = vmatprep.subr.mxu0 0.0
    %v1475 = vand.u32 %v1035, 4294901760
    %v1476 = vsub.f32 %v1035, %v1475
    %1477 = vmatpush1.msra.mxu0 %v1476
    %1478 = vmatprep.subr.mxu0 0.0
    %v1479 = vand.u32 %v1036, 4294901760
    %v1480 = vsub.f32 %v1036, %v1479
    %1481 = vmatpush1.msra.mxu0 %v1480
    %1482 = vmatprep.subr.mxu0 0.0
    %v1483 = vand.u32 %v1037, 4294901760
    %v1484 = vsub.f32 %v1037, %v1483
    %1485 = vmatpush1.msra.mxu0 %v1484
    %1486 = vmatprep.subr.mxu0 0.0
    %v1487 = vand.u32 %v1038, 4294901760
    %v1488 = vsub.f32 %v1038, %v1487
    %1489 = vmatpush1.msra.mxu0 %v1488
    %1490 = vmatprep.subr.mxu0 0.0
    %v1491 = vand.u32 %v1039, 4294901760
    %v1492 = vsub.f32 %v1039, %v1491
    %1493 = vmatpush1.msra.mxu0 %v1492
    %1494 = vmatprep.subr.mxu0 0.0
    %v1495 = vand.u32 %v1040, 4294901760
    %v1496 = vsub.f32 %v1040, %v1495
    %1497 = vmatpush1.msra.mxu0 %v1496
    %1498 = vmatprep.subr.mxu0 0.0
    %v1499 = vand.u32 %v1041, 4294901760
    %v1500 = vsub.f32 %v1041, %v1499
    %1501 = vmatpush1.msra.mxu0 %v1500
    %1502 = vmatprep.subr.mxu0 0.0
    %v1503 = vand.u32 %v1042, 4294901760
    %v1504 = vsub.f32 %v1042, %v1503
    %1505 = vmatpush1.msra.mxu0 %v1504
    %1506 = vmatprep.subr.mxu0 0.0
    %v1507 = vand.u32 %v1043, 4294901760
    %v1508 = vsub.f32 %v1043, %v1507
    %1509 = vmatpush1.msra.mxu0 %v1508
    %1510 = vmatprep.subr.mxu0 0.0
    %v1511 = vand.u32 %v1044, 4294901760
    %v1512 = vsub.f32 %v1044, %v1511
    %1513 = vmatpush1.msra.mxu0 %v1512
    %1514 = vmatprep.subr.mxu0 0.0
    %v1515 = vand.u32 %v1045, 4294901760
    %v1516 = vsub.f32 %v1045, %v1515
    %1517 = vmatpush1.msra.mxu0 %v1516
    %v1518 = vand.u32 %v1013, 4294901760
    %v1519 = vsub.f32 %v1013, %v1518
    %1520 = vmatprep.mubr.f32.mxu0 %v1519
    %v1521 = vand.u32 %v1012, 4294901760
    %v1522 = vsub.f32 %v1012, %v1521
    %1523 = vmatmul.mubr.f32.gmra.mrb[0].mxu0 %v1522
    %v1524 = vpop.f32.mrb[0].mxu0
    %v1525 = vadd.f32 %v1387, %v1524
    %v1526 = vpop.f32.mrb[0].mxu0
    %1527 = vdwg.mxu0
    %1528 = vmatprep.subr.mxu0 0.0
    %v1529 = vand.u32 %v1014, 4294901760
    %1530 = vmatpush1.msra.mxu0 %v1529
    %1531 = vmatprep.subr.mxu0 0.0
    %v1532 = vand.u32 %v1015, 4294901760
    %1533 = vmatpush1.msra.mxu0 %v1532
    %1534 = vmatprep.subr.mxu0 0.0
    %v1535 = vand.u32 %v1016, 4294901760
    %1536 = vmatpush1.msra.mxu0 %v1535
    %1537 = vmatprep.subr.mxu0 0.0
    %v1538 = vand.u32 %v1017, 4294901760
    %1539 = vmatpush1.msra.mxu0 %v1538
    %1540 = vmatprep.subr.mxu0 0.0
    %v1541 = vand.u32 %v1018, 4294901760
    %1542 = vmatpush1.msra.mxu0 %v1541
    %1543 = vmatprep.subr.mxu0 0.0
    %v1544 = vand.u32 %v1019, 4294901760
    %1545 = vmatpush1.msra.mxu0 %v1544
    %1546 = vmatprep.subr.mxu0 0.0
    %v1547 = vand.u32 %v1020, 4294901760
    %1548 = vmatpush1.msra.mxu0 %v1547
    %1549 = vmatprep.subr.mxu0 0.0
    %v1550 = vand.u32 %v1021, 4294901760
    %1551 = vmatpush1.msra.mxu0 %v1550
    %1552 = vmatprep.subr.mxu0 0.0
    %v1553 = vand.u32 %v1022, 4294901760
    %1554 = vmatpush1.msra.mxu0 %v1553
    %1555 = vmatprep.subr.mxu0 0.0
    %v1556 = vand.u32 %v1023, 4294901760
    %1557 = vmatpush1.msra.mxu0 %v1556
    %1558 = vmatprep.subr.mxu0 0.0
    %v1559 = vand.u32 %v1024, 4294901760
    %1560 = vmatpush1.msra.mxu0 %v1559
    %1561 = vmatprep.subr.mxu0 0.0
    %v1562 = vand.u32 %v1025, 4294901760
    %1563 = vmatpush1.msra.mxu0 %v1562
    %1564 = vmatprep.subr.mxu0 0.0
    %v1565 = vand.u32 %v1026, 4294901760
    %1566 = vmatpush1.msra.mxu0 %v1565
    %1567 = vmatprep.subr.mxu0 0.0
    %v1568 = vand.u32 %v1027, 4294901760
    %1569 = vmatpush1.msra.mxu0 %v1568
    %1570 = vmatprep.subr.mxu0 0.0
    %v1571 = vand.u32 %v1028, 4294901760
    %1572 = vmatpush1.msra.mxu0 %v1571
    %1573 = vmatprep.subr.mxu0 0.0
    %v1574 = vand.u32 %v1029, 4294901760
    %1575 = vmatpush1.msra.mxu0 %v1574
    %1576 = vmatprep.subr.mxu0 0.0
    %v1577 = vand.u32 %v1030, 4294901760
    %1578 = vmatpush1.msra.mxu0 %v1577
    %1579 = vmatprep.subr.mxu0 0.0
    %v1580 = vand.u32 %v1031, 4294901760
    %1581 = vmatpush1.msra.mxu0 %v1580
    %1582 = vmatprep.subr.mxu0 0.0
    %v1583 = vand.u32 %v1032, 4294901760
    %1584 = vmatpush1.msra.mxu0 %v1583
    %1585 = vmatprep.subr.mxu0 0.0
    %v1586 = vand.u32 %v1033, 4294901760
    %1587 = vmatpush1.msra.mxu0 %v1586
    %1588 = vmatprep.subr.mxu0 0.0
    %v1589 = vand.u32 %v1034, 4294901760
    %1590 = vmatpush1.msra.mxu0 %v1589
    %1591 = vmatprep.subr.mxu0 0.0
    %v1592 = vand.u32 %v1035, 4294901760
    %1593 = vmatpush1.msra.mxu0 %v1592
    %1594 = vmatprep.subr.mxu0 0.0
    %v1595 = vand.u32 %v1036, 4294901760
    %1596 = vmatpush1.msra.mxu0 %v1595
    %1597 = vmatprep.subr.mxu0 0.0
    %v1598 = vand.u32 %v1037, 4294901760
    %1599 = vmatpush1.msra.mxu0 %v1598
    %1600 = vmatprep.subr.mxu0 0.0
    %v1601 = vand.u32 %v1038, 4294901760
    %1602 = vmatpush1.msra.mxu0 %v1601
    %1603 = vmatprep.subr.mxu0 0.0
    %v1604 = vand.u32 %v1039, 4294901760
    %1605 = vmatpush1.msra.mxu0 %v1604
    %1606 = vmatprep.subr.mxu0 0.0
    %v1607 = vand.u32 %v1040, 4294901760
    %1608 = vmatpush1.msra.mxu0 %v1607
    %1609 = vmatprep.subr.mxu0 0.0
    %v1610 = vand.u32 %v1041, 4294901760
    %1611 = vmatpush1.msra.mxu0 %v1610
    %1612 = vmatprep.subr.mxu0 0.0
    %v1613 = vand.u32 %v1042, 4294901760
    %1614 = vmatpush1.msra.mxu0 %v1613
    %1615 = vmatprep.subr.mxu0 0.0
    %v1616 = vand.u32 %v1043, 4294901760
    %1617 = vmatpush1.msra.mxu0 %v1616
    %1618 = vmatprep.subr.mxu0 0.0
    %v1619 = vand.u32 %v1044, 4294901760
    %1620 = vmatpush1.msra.mxu0 %v1619
    %1621 = vmatprep.subr.mxu0 0.0
    %v1622 = vand.u32 %v1045, 4294901760
    %1623 = vmatpush1.msra.mxu0 %v1622
    %v1624 = vand.u32 %v1013, 4294901760
    %v1625 = vsub.f32 %v1013, %v1624
    %v1626 = vand.u32 %v1625, 4294901760
    %1627 = vmatprep.mubr.f32.mxu0 %v1626
    %v1628 = vand.u32 %v1012, 4294901760
    %v1629 = vsub.f32 %v1012, %v1628
    %v1630 = vand.u32 %v1629, 4294901760
    %1631 = vmatmul.mubr.f32.gmra.mrb[0].mxu0 %v1630
    %v1632 = vpop.f32.mrb[0].mxu0
    %v1633 = vadd.f32 %v1525, %v1632
    %v1634 = vpop.f32.mrb[0].mxu0
    %1635 = vdwg.mxu0
    %1636 = vmatprep.subr.mxu0 0.0
    %v1637 = vand.u32 %v1014, 4294901760
    %v1638 = vsub.f32 %v1014, %v1637
    %v1639 = vand.u32 %v1638, 4294901760
    %1640 = vmatpush1.msra.mxu0 %v1639
    %1641 = vmatprep.subr.mxu0 0.0
    %v1642 = vand.u32 %v1015, 4294901760
    %v1643 = vsub.f32 %v1015, %v1642
    %v1644 = vand.u32 %v1643, 4294901760
    %1645 = vmatpush1.msra.mxu0 %v1644
    %1646 = vmatprep.subr.mxu0 0.0
    %v1647 = vand.u32 %v1016, 4294901760
    %v1648 = vsub.f32 %v1016, %v1647
    %v1649 = vand.u32 %v1648, 4294901760
    %1650 = vmatpush1.msra.mxu0 %v1649
    %1651 = vmatprep.subr.mxu0 0.0
    %v1652 = vand.u32 %v1017, 4294901760
    %v1653 = vsub.f32 %v1017, %v1652
    %v1654 = vand.u32 %v1653, 4294901760
    %1655 = vmatpush1.msra.mxu0 %v1654
    %1656 = vmatprep.subr.mxu0 0.0
    %v1657 = vand.u32 %v1018, 4294901760
    %v1658 = vsub.f32 %v1018, %v1657
    %v1659 = vand.u32 %v1658, 4294901760
    %1660 = vmatpush1.msra.mxu0 %v1659
    %1661 = vmatprep.subr.mxu0 0.0
    %v1662 = vand.u32 %v1019, 4294901760
    %v1663 = vsub.f32 %v1019, %v1662
    %v1664 = vand.u32 %v1663, 4294901760
    %1665 = vmatpush1.msra.mxu0 %v1664
    %1666 = vmatprep.subr.mxu0 0.0
    %v1667 = vand.u32 %v1020, 4294901760
    %v1668 = vsub.f32 %v1020, %v1667
    %v1669 = vand.u32 %v1668, 4294901760
    %1670 = vmatpush1.msra.mxu0 %v1669
    %1671 = vmatprep.subr.mxu0 0.0
    %v1672 = vand.u32 %v1021, 4294901760
    %v1673 = vsub.f32 %v1021, %v1672
    %v1674 = vand.u32 %v1673, 4294901760
    %1675 = vmatpush1.msra.mxu0 %v1674
    %1676 = vmatprep.subr.mxu0 0.0
    %v1677 = vand.u32 %v1022, 4294901760
    %v1678 = vsub.f32 %v1022, %v1677
    %v1679 = vand.u32 %v1678, 4294901760
    %1680 = vmatpush1.msra.mxu0 %v1679
    %1681 = vmatprep.subr.mxu0 0.0
    %v1682 = vand.u32 %v1023, 4294901760
    %v1683 = vsub.f32 %v1023, %v1682
    %v1684 = vand.u32 %v1683, 4294901760
    %1685 = vmatpush1.msra.mxu0 %v1684
    %1686 = vmatprep.subr.mxu0 0.0
    %v1687 = vand.u32 %v1024, 4294901760
    %v1688 = vsub.f32 %v1024, %v1687
    %v1689 = vand.u32 %v1688, 4294901760
    %1690 = vmatpush1.msra.mxu0 %v1689
    %1691 = vmatprep.subr.mxu0 0.0
    %v1692 = vand.u32 %v1025, 4294901760
    %v1693 = vsub.f32 %v1025, %v1692
    %v1694 = vand.u32 %v1693, 4294901760
    %1695 = vmatpush1.msra.mxu0 %v1694
    %1696 = vmatprep.subr.mxu0 0.0
    %v1697 = vand.u32 %v1026, 4294901760
    %v1698 = vsub.f32 %v1026, %v1697
    %v1699 = vand.u32 %v1698, 4294901760
    %1700 = vmatpush1.msra.mxu0 %v1699
    %1701 = vmatprep.subr.mxu0 0.0
    %v1702 = vand.u32 %v1027, 4294901760
    %v1703 = vsub.f32 %v1027, %v1702
    %v1704 = vand.u32 %v1703, 4294901760
    %1705 = vmatpush1.msra.mxu0 %v1704
    %1706 = vmatprep.subr.mxu0 0.0
    %v1707 = vand.u32 %v1028, 4294901760
    %v1708 = vsub.f32 %v1028, %v1707
    %v1709 = vand.u32 %v1708, 4294901760
    %1710 = vmatpush1.msra.mxu0 %v1709
    %1711 = vmatprep.subr.mxu0 0.0
    %v1712 = vand.u32 %v1029, 4294901760
    %v1713 = vsub.f32 %v1029, %v1712
    %v1714 = vand.u32 %v1713, 4294901760
    %1715 = vmatpush1.msra.mxu0 %v1714
    %1716 = vmatprep.subr.mxu0 0.0
    %v1717 = vand.u32 %v1030, 4294901760
    %v1718 = vsub.f32 %v1030, %v1717
    %v1719 = vand.u32 %v1718, 4294901760
    %1720 = vmatpush1.msra.mxu0 %v1719
    %1721 = vmatprep.subr.mxu0 0.0
    %v1722 = vand.u32 %v1031, 4294901760
    %v1723 = vsub.f32 %v1031, %v1722
    %v1724 = vand.u32 %v1723, 4294901760
    %1725 = vmatpush1.msra.mxu0 %v1724
    %1726 = vmatprep.subr.mxu0 0.0
    %v1727 = vand.u32 %v1032, 4294901760
    %v1728 = vsub.f32 %v1032, %v1727
    %v1729 = vand.u32 %v1728, 4294901760
    %1730 = vmatpush1.msra.mxu0 %v1729
    %1731 = vmatprep.subr.mxu0 0.0
    %v1732 = vand.u32 %v1033, 4294901760
    %v1733 = vsub.f32 %v1033, %v1732
    %v1734 = vand.u32 %v1733, 4294901760
    %1735 = vmatpush1.msra.mxu0 %v1734
    %1736 = vmatprep.subr.mxu0 0.0
    %v1737 = vand.u32 %v1034, 4294901760
    %v1738 = vsub.f32 %v1034, %v1737
    %v1739 = vand.u32 %v1738, 4294901760
    %1740 = vmatpush1.msra.mxu0 %v1739
    %1741 = vmatprep.subr.mxu0 0.0
    %v1742 = vand.u32 %v1035, 4294901760
    %v1743 = vsub.f32 %v1035, %v1742
    %v1744 = vand.u32 %v1743, 4294901760
    %1745 = vmatpush1.msra.mxu0 %v1744
    %1746 = vmatprep.subr.mxu0 0.0
    %v1747 = vand.u32 %v1036, 4294901760
    %v1748 = vsub.f32 %v1036, %v1747
    %v1749 = vand.u32 %v1748, 4294901760
    %1750 = vmatpush1.msra.mxu0 %v1749
    %1751 = vmatprep.subr.mxu0 0.0
    %v1752 = vand.u32 %v1037, 4294901760
    %v1753 = vsub.f32 %v1037, %v1752
    %v1754 = vand.u32 %v1753, 4294901760
    %1755 = vmatpush1.msra.mxu0 %v1754
    %1756 = vmatprep.subr.mxu0 0.0
    %v1757 = vand.u32 %v1038, 4294901760
    %v1758 = vsub.f32 %v1038, %v1757
    %v1759 = vand.u32 %v1758, 4294901760
    %1760 = vmatpush1.msra.mxu0 %v1759
    %1761 = vmatprep.subr.mxu0 0.0
    %v1762 = vand.u32 %v1039, 4294901760
    %v1763 = vsub.f32 %v1039, %v1762
    %v1764 = vand.u32 %v1763, 4294901760
    %1765 = vmatpush1.msra.mxu0 %v1764
    %1766 = vmatprep.subr.mxu0 0.0
    %v1767 = vand.u32 %v1040, 4294901760
    %v1768 = vsub.f32 %v1040, %v1767
    %v1769 = vand.u32 %v1768, 4294901760
    %1770 = vmatpush1.msra.mxu0 %v1769
    %1771 = vmatprep.subr.mxu0 0.0
    %v1772 = vand.u32 %v1041, 4294901760
    %v1773 = vsub.f32 %v1041, %v1772
    %v1774 = vand.u32 %v1773, 4294901760
    %1775 = vmatpush1.msra.mxu0 %v1774
    %1776 = vmatprep.subr.mxu0 0.0
    %v1777 = vand.u32 %v1042, 4294901760
    %v1778 = vsub.f32 %v1042, %v1777
    %v1779 = vand.u32 %v1778, 4294901760
    %1780 = vmatpush1.msra.mxu0 %v1779
    %1781 = vmatprep.subr.mxu0 0.0
    %v1782 = vand.u32 %v1043, 4294901760
    %v1783 = vsub.f32 %v1043, %v1782
    %v1784 = vand.u32 %v1783, 4294901760
    %1785 = vmatpush1.msra.mxu0 %v1784
    %1786 = vmatprep.subr.mxu0 0.0
    %v1787 = vand.u32 %v1044, 4294901760
    %v1788 = vsub.f32 %v1044, %v1787
    %v1789 = vand.u32 %v1788, 4294901760
    %1790 = vmatpush1.msra.mxu0 %v1789
    %1791 = vmatprep.subr.mxu0 0.0
    %v1792 = vand.u32 %v1045, 4294901760
    %v1793 = vsub.f32 %v1045, %v1792
    %v1794 = vand.u32 %v1793, 4294901760
    %1795 = vmatpush1.msra.mxu0 %v1794
    %v1796 = vand.u32 %v1013, 4294901760
    %1797 = vmatprep.mubr.f32.mxu0 %v1796
    %v1798 = vand.u32 %v1012, 4294901760
    %1799 = vmatmul.mubr.f32.gmra.mrb[0].mxu0 %v1798
    %v1800 = vpop.f32.mrb[0].mxu0
    %v1801 = vadd.f32 %v1633, %v1800
    %v1802 = vpop.f32.mrb[0].mxu0
    %1803 = vdwg.mxu0
    %1804 = vmatprep.subr.mxu0 0.0
    %v1805 = vand.u32 %v1014, 4294901760
    %1806 = vmatpush1.msra.mxu0 %v1805
    %1807 = vmatprep.subr.mxu0 0.0
    %v1808 = vand.u32 %v1015, 4294901760
    %1809 = vmatpush1.msra.mxu0 %v1808
    %1810 = vmatprep.subr.mxu0 0.0
    %v1811 = vand.u32 %v1016, 4294901760
    %1812 = vmatpush1.msra.mxu0 %v1811
    %1813 = vmatprep.subr.mxu0 0.0
    %v1814 = vand.u32 %v1017, 4294901760
    %1815 = vmatpush1.msra.mxu0 %v1814
    %1816 = vmatprep.subr.mxu0 0.0
    %v1817 = vand.u32 %v1018, 4294901760
    %1818 = vmatpush1.msra.mxu0 %v1817
    %1819 = vmatprep.subr.mxu0 0.0
    %v1820 = vand.u32 %v1019, 4294901760
    %1821 = vmatpush1.msra.mxu0 %v1820
    %1822 = vmatprep.subr.mxu0 0.0
    %v1823 = vand.u32 %v1020, 4294901760
    %1824 = vmatpush1.msra.mxu0 %v1823
    %1825 = vmatprep.subr.mxu0 0.0
    %v1826 = vand.u32 %v1021, 4294901760
    %1827 = vmatpush1.msra.mxu0 %v1826
    %1828 = vmatprep.subr.mxu0 0.0
    %v1829 = vand.u32 %v1022, 4294901760
    %1830 = vmatpush1.msra.mxu0 %v1829
    %1831 = vmatprep.subr.mxu0 0.0
    %v1832 = vand.u32 %v1023, 4294901760
    %1833 = vmatpush1.msra.mxu0 %v1832
    %1834 = vmatprep.subr.mxu0 0.0
    %v1835 = vand.u32 %v1024, 4294901760
    %1836 = vmatpush1.msra.mxu0 %v1835
    %1837 = vmatprep.subr.mxu0 0.0
    %v1838 = vand.u32 %v1025, 4294901760
    %1839 = vmatpush1.msra.mxu0 %v1838
    %1840 = vmatprep.subr.mxu0 0.0
    %v1841 = vand.u32 %v1026, 4294901760
    %1842 = vmatpush1.msra.mxu0 %v1841
    %1843 = vmatprep.subr.mxu0 0.0
    %v1844 = vand.u32 %v1027, 4294901760
    %1845 = vmatpush1.msra.mxu0 %v1844
    %1846 = vmatprep.subr.mxu0 0.0
    %v1847 = vand.u32 %v1028, 4294901760
    %1848 = vmatpush1.msra.mxu0 %v1847
    %1849 = vmatprep.subr.mxu0 0.0
    %v1850 = vand.u32 %v1029, 4294901760
    %1851 = vmatpush1.msra.mxu0 %v1850
    %1852 = vmatprep.subr.mxu0 0.0
    %v1853 = vand.u32 %v1030, 4294901760
    %1854 = vmatpush1.msra.mxu0 %v1853
    %1855 = vmatprep.subr.mxu0 0.0
    %v1856 = vand.u32 %v1031, 4294901760
    %1857 = vmatpush1.msra.mxu0 %v1856
    %1858 = vmatprep.subr.mxu0 0.0
    %v1859 = vand.u32 %v1032, 4294901760
    %1860 = vmatpush1.msra.mxu0 %v1859
    %1861 = vmatprep.subr.mxu0 0.0
    %v1862 = vand.u32 %v1033, 4294901760
    %1863 = vmatpush1.msra.mxu0 %v1862
    %1864 = vmatprep.subr.mxu0 0.0
    %v1865 = vand.u32 %v1034, 4294901760
    %1866 = vmatpush1.msra.mxu0 %v1865
    %1867 = vmatprep.subr.mxu0 0.0
    %v1868 = vand.u32 %v1035, 4294901760
    %1869 = vmatpush1.msra.mxu0 %v1868
    %1870 = vmatprep.subr.mxu0 0.0
    %v1871 = vand.u32 %v1036, 4294901760
    %1872 = vmatpush1.msra.mxu0 %v1871
    %1873 = vmatprep.subr.mxu0 0.0
    %v1874 = vand.u32 %v1037, 4294901760
    %1875 = vmatpush1.msra.mxu0 %v1874
    %1876 = vmatprep.subr.mxu0 0.0
    %v1877 = vand.u32 %v1038, 4294901760
    %1878 = vmatpush1.msra.mxu0 %v1877
    %1879 = vmatprep.subr.mxu0 0.0
    %v1880 = vand.u32 %v1039, 4294901760
    %1881 = vmatpush1.msra.mxu0 %v1880
    %1882 = vmatprep.subr.mxu0 0.0
    %v1883 = vand.u32 %v1040, 4294901760
    %1884 = vmatpush1.msra.mxu0 %v1883
    %1885 = vmatprep.subr.mxu0 0.0
    %v1886 = vand.u32 %v1041, 4294901760
    %1887 = vmatpush1.msra.mxu0 %v1886
    %1888 = vmatprep.subr.mxu0 0.0
    %v1889 = vand.u32 %v1042, 4294901760
    %1890 = vmatpush1.msra.mxu0 %v1889
    %1891 = vmatprep.subr.mxu0 0.0
    %v1892 = vand.u32 %v1043, 4294901760
    %1893 = vmatpush1.msra.mxu0 %v1892
    %1894 = vmatprep.subr.mxu0 0.0
    %v1895 = vand.u32 %v1044, 4294901760
    %1896 = vmatpush1.msra.mxu0 %v1895
    %1897 = vmatprep.subr.mxu0 0.0
    %v1898 = vand.u32 %v1045, 4294901760
    %1899 = vmatpush1.msra.mxu0 %v1898
    %v1900 = vand.u32 %v1013, 4294901760
    %1901 = vmatprep.mubr.f32.mxu0 %v1900
    %v1902 = vand.u32 %v1012, 4294901760
    %1903 = vmatmul.mubr.f32.gmra.mrb[0].mxu0 %v1902
    %v1904 = vpop.f32.mrb[0].mxu0
    %v1905 = vadd.f32 %v1801, %v1904
    %v1906 = vpop.f32.mrb[0].mxu0
    %1907 = vdwg.mxu0
    %v1908 = vld [vmem:[#allocation2] sm:$0x3]
    %v1909 = vlaneseq
    %v1910 = vand.u32 %v1909, 127
    %1911 = vset.pattern.permute.xlu0 0
    %1912 = vperm.xlu0 %1911, %v1908
    %v1913 = vpop.permute.xlu0 %1912
    %vm1914 = vcmp.lt.s32.totalorder %v1910, %v1913
    %v1915 = vsel %vm1914, %v1905, -1e+30
    %vm1916 = vcmask 58368
    %v1917 = vsel %vm1916, %v1915, -inf
    %1918 = vmax.xlane.f32.xlu0 %v1917
    %v1919 = vpop.xlane.xlu0 %1918
    %v1920 = vsub.f32 %v1915, %v1919
    %v1921 = vmul.f32 %v1920, 1.442695
    %v1922 = vpow.pop %v1921
    %v1923 = vsel %vm1916, %v1922, 0.0
    %1924 = vadd.xlane.f32.xlu0 %v1923
    %v1925 = vpop.xlane.xlu0 %1924
    %v1926 = vrcp.pop %v1925
    %v1927 = vmul.f32 %v1922, %v1926
    %v1928 = vld [vmem:[#allocation11] sm:$0xff]
    %vm1929 = vcmask 64512
    %v1931 = vsel %vm1929, %v1927, 0
    %1933 = vmatprep.subr.mxu0 0.0
    %v1934 = vand.u32 %v1928, 4294901760
    %1935 = vmatpush1.msra.mxu0 %v1934
    %1936 = vmatprep.subr.mxu0 0.0
    %1937 = vmatpush1.msra.mxu0 0.0
    %1938 = vmatprep.subr.mxu0 0.0
    %1939 = vmatpush1.msra.mxu0 0.0
    %1940 = vmatprep.subr.mxu0 0.0
    %1941 = vmatpush1.msra.mxu0 0.0
    %1942 = vmatprep.subr.mxu0 0.0
    %1943 = vmatpush1.msra.mxu0 0.0
    %1944 = vmatprep.subr.mxu0 0.0
    %1945 = vmatpush1.msra.mxu0 0.0
    %1946 = vmatprep.subr.mxu0 0.0
    %1947 = vmatpush1.msra.mxu0 0.0
    %1948 = vmatprep.subr.mxu0 0.0
    %1949 = vmatpush1.msra.mxu0 0.0
    %1950 = vmatprep.subr.mxu0 0.0
    %1951 = vmatpush1.msra.mxu0 0.0
    %1952 = vmatprep.subr.mxu0 0.0
    %1953 = vmatpush1.msra.mxu0 0.0
    %1954 = vmatprep.subr.mxu0 0.0
    %1955 = vmatpush1.msra.mxu0 0.0
    %1956 = vmatprep.subr.mxu0 0.0
    %1957 = vmatpush1.msra.mxu0 0.0
    %1958 = vmatprep.subr.mxu0 0.0
    %1959 = vmatpush1.msra.mxu0 0.0
    %1960 = vmatprep.subr.mxu0 0.0
    %1961 = vmatpush1.msra.mxu0 0.0
    %1962 = vmatprep.subr.mxu0 0.0
    %1963 = vmatpush1.msra.mxu0 0.0
    %1964 = vmatprep.subr.mxu0 0.0
    %1965 = vmatpush1.msra.mxu0 0.0
    %1966 = vmatprep.subr.mxu0 0.0
    %1967 = vmatpush1.msra.mxu0 0.0
    %1968 = vmatprep.subr.mxu0 0.0
    %1969 = vmatpush1.msra.mxu0 0.0
    %1970 = vmatprep.subr.mxu0 0.0
    %1971 = vmatpush1.msra.mxu0 0.0
    %1972 = vmatprep.subr.mxu0 0.0
    %1973 = vmatpush1.msra.mxu0 0.0
    %1974 = vmatprep.subr.mxu0 0.0
    %1975 = vmatpush1.msra.mxu0 0.0
    %1976 = vmatprep.subr.mxu0 0.0
    %1977 = vmatpush1.msra.mxu0 0.0
    %1978 = vmatprep.subr.mxu0 0.0
    %1979 = vmatpush1.msra.mxu0 0.0
    %1980 = vmatprep.subr.mxu0 0.0
    %1981 = vmatpush1.msra.mxu0 0.0
    %1982 = vmatprep.subr.mxu0 0.0
    %1983 = vmatpush1.msra.mxu0 0.0
    %1984 = vmatprep.subr.mxu0 0.0
    %1985 = vmatpush1.msra.mxu0 0.0
    %1986 = vmatprep.subr.mxu0 0.0
    %1987 = vmatpush1.msra.mxu0 0.0
    %1988 = vmatprep.subr.mxu0 0.0
    %1989 = vmatpush1.msra.mxu0 0.0
    %1990 = vmatprep.subr.mxu0 0.0
    %1991 = vmatpush1.msra.mxu0 0.0
    %1992 = vmatprep.subr.mxu0 0.0
    %1993 = vmatpush1.msra.mxu0 0.0
    %1994 = vmatprep.subr.mxu0 0.0
    %1995 = vmatpush1.msra.mxu0 0.0
    %1996 = vmatprep.subr.mxu0 0.0
    %1997 = vmatpush1.msra.mxu0 0.0
    %1998 = vmatprep.mubr.f32.mxu0 0.0
    %v1999 = vand.u32 %v1931, 4294901760
    %v2000 = vsub.f32 %v1931, %v1999
    %v2001 = vand.u32 %v2000, 4294901760
    %v2002 = vsub.f32 %v2000, %v2001
    %v2003 = vand.u32 %v2002, 4294901760
    %2004 = vmatmul.mubr.f32.gmra.mrb[0].mxu0 %v2003
    %v2005 = vpop.f32.mrb[0].mxu0
    %v2006 = vadd.f32 0.0, %v2005
    %v2007 = vpop.f32.mrb[0].mxu0
    %2008 = vdwg.mxu0
    %2009 = vmatprep.subr.mxu0 0.0
    %v2010 = vand.u32 %v1928, 4294901760
    %v2011 = vsub.f32 %v1928, %v2010
    %v2012 = vand.u32 %v2011, 4294901760
    %v2013 = vsub.f32 %v2011, %v2012
    %v2014 = vand.u32 %v2013, 4294901760
    %2015 = vmatpush1.msra.mxu0 %v2014
    %2016 = vmatprep.subr.mxu0 0.0
    %2017 = vmatpush1.msra.mxu0 0.0
    %2018 = vmatprep.subr.mxu0 0.0
    %2019 = vmatpush1.msra.mxu0 0.0
    %2020 = vmatprep.subr.mxu0 0.0
    %2021 = vmatpush1.msra.mxu0 0.0
    %2022 = vmatprep.subr.mxu0 0.0
    %2023 = vmatpush1.msra.mxu0 0.0
    %2024 = vmatprep.subr.mxu0 0.0
    %2025 = vmatpush1.msra.mxu0 0.0
    %2026 = vmatprep.subr.mxu0 0.0
    %2027 = vmatpush1.msra.mxu0 0.0
    %2028 = vmatprep.subr.mxu0 0.0
    %2029 = vmatpush1.msra.mxu0 0.0
    %2030 = vmatprep.subr.mxu0 0.0
    %2031 = vmatpush1.msra.mxu0 0.0
    %2032 = vmatprep.subr.mxu0 0.0
    %2033 = vmatpush1.msra.mxu0 0.0
    %2034 = vmatprep.subr.mxu0 0.0
    %2035 = vmatpush1.msra.mxu0 0.0
    %2036 = vmatprep.subr.mxu0 0.0
    %2037 = vmatpush1.msra.mxu0 0.0
    %2038 = vmatprep.subr.mxu0 0.0
    %2039 = vmatpush1.msra.mxu0 0.0
    %2040 = vmatprep.subr.mxu0 0.0
    %2041 = vmatpush1.msra.mxu0 0.0
    %2042 = vmatprep.subr.mxu0 0.0
    %2043 = vmatpush1.msra.mxu0 0.0
    %2044 = vmatprep.subr.mxu0 0.0
    %2045 = vmatpush1.msra.mxu0 0.0
    %2046 = vmatprep.subr.mxu0 0.0
    %2047 = vmatpush1.msra.mxu0 0.0
    %2048 = vmatprep.subr.mxu0 0.0
    %2049 = vmatpush1.msra.mxu0 0.0
    %2050 = vmatprep.subr.mxu0 0.0
    %2051 = vmatpush1.msra.mxu0 0.0
    %2052 = vmatprep.subr.mxu0 0.0
    %2053 = vmatpush1.msra.mxu0 0.0
    %2054 = vmatprep.subr.mxu0 0.0
    %2055 = vmatpush1.msra.mxu0 0.0
    %2056 = vmatprep.subr.mxu0 0.0
    %2057 = vmatpush1.msra.mxu0 0.0
    %2058 = vmatprep.subr.mxu0 0.0
    %2059 = vmatpush1.msra.mxu0 0.0
    %2060 = vmatprep.subr.mxu0 0.0
    %2061 = vmatpush1.msra.mxu0 0.0
    %2062 = vmatprep.subr.mxu0 0.0
    %2063 = vmatpush1.msra.mxu0 0.0
    %2064 = vmatprep.subr.mxu0 0.0
    %2065 = vmatpush1.msra.mxu0 0.0
    %2066 = vmatprep.subr.mxu0 0.0
    %2067 = vmatpush1.msra.mxu0 0.0
    %2068 = vmatprep.subr.mxu0 0.0
    %2069 = vmatpush1.msra.mxu0 0.0
    %2070 = vmatprep.subr.mxu0 0.0
    %2071 = vmatpush1.msra.mxu0 0.0
    %2072 = vmatprep.subr.mxu0 0.0
    %2073 = vmatpush1.msra.mxu0 0.0
    %2074 = vmatprep.subr.mxu0 0.0
    %2075 = vmatpush1.msra.mxu0 0.0
    %2076 = vmatprep.subr.mxu0 0.0
    %2077 = vmatpush1.msra.mxu0 0.0
    %2078 = vmatprep.mubr.f32.mxu0 0.0
    %v2079 = vand.u32 %v1931, 4294901760
    %2080 = vmatmul.mubr.f32.gmra.mrb[0].mxu0 %v2079
    %v2081 = vpop.f32.mrb[0].mxu0
    %v2082 = vadd.f32 %v2006, %v2081
    %v2083 = vpop.f32.mrb[0].mxu0
    %2084 = vdwg.mxu0
    %2085 = vmatprep.subr.mxu0 0.0
    %v2086 = vand.u32 %v1928, 4294901760
    %v2087 = vsub.f32 %v1928, %v2086
    %2088 = vmatpush1.msra.mxu0 %v2087
    %2089 = vmatprep.subr.mxu0 0.0
    %2090 = vmatpush1.msra.mxu0 0.0
    %2091 = vmatprep.subr.mxu0 0.0
    %2092 = vmatpush1.msra.mxu0 0.0
    %2093 = vmatprep.subr.mxu0 0.0
    %2094 = vmatpush1.msra.mxu0 0.0
    %2095 = vmatprep.subr.mxu0 0.0
    %2096 = vmatpush1.msra.mxu0 0.0
    %2097 = vmatprep.subr.mxu0 0.0
    %2098 = vmatpush1.msra.mxu0 0.0
    %2099 = vmatprep.subr.mxu0 0.0
    %2100 = vmatpush1.msra.mxu0 0.0
    %2101 = vmatprep.subr.mxu0 0.0
    %2102 = vmatpush1.msra.mxu0 0.0
    %2103 = vmatprep.subr.mxu0 0.0
    %2104 = vmatpush1.msra.mxu0 0.0
    %2105 = vmatprep.subr.mxu0 0.0
    %2106 = vmatpush1.msra.mxu0 0.0
    %2107 = vmatprep.subr.mxu0 0.0
    %2108 = vmatpush1.msra.mxu0 0.0
    %2109 = vmatprep.subr.mxu0 0.0
    %2110 = vmatpush1.msra.mxu0 0.0
    %2111 = vmatprep.subr.mxu0 0.0
    %2112 = vmatpush1.msra.mxu0 0.0
    %2113 = vmatprep.subr.mxu0 0.0
    %2114 = vmatpush1.msra.mxu0 0.0
    %2115 = vmatprep.subr.mxu0 0.0
    %2116 = vmatpush1.msra.mxu0 0.0
    %2117 = vmatprep.subr.mxu0 0.0
    %2118 = vmatpush1.msra.mxu0 0.0
    %2119 = vmatprep.subr.mxu0 0.0
    %2120 = vmatpush1.msra.mxu0 0.0
    %2121 = vmatprep.subr.mxu0 0.0
    %2122 = vmatpush1.msra.mxu0 0.0
    %2123 = vmatprep.subr.mxu0 0.0
    %2124 = vmatpush1.msra.mxu0 0.0
    %2125 = vmatprep.subr.mxu0 0.0
    %2126 = vmatpush1.msra.mxu0 0.0
    %2127 = vmatprep.subr.mxu0 0.0
    %2128 = vmatpush1.msra.mxu0 0.0
    %2129 = vmatprep.subr.mxu0 0.0
    %2130 = vmatpush1.msra.mxu0 0.0
    %2131 = vmatprep.subr.mxu0 0.0
    %2132 = vmatpush1.msra.mxu0 0.0
    %2133 = vmatprep.subr.mxu0 0.0
    %2134 = vmatpush1.msra.mxu0 0.0
    %2135 = vmatprep.subr.mxu0 0.0
    %2136 = vmatpush1.msra.mxu0 0.0
    %2137 = vmatprep.subr.mxu0 0.0
    %2138 = vmatpush1.msra.mxu0 0.0
    %2139 = vmatprep.subr.mxu0 0.0
    %2140 = vmatpush1.msra.mxu0 0.0
    %2141 = vmatprep.subr.mxu0 0.0
    %2142 = vmatpush1.msra.mxu0 0.0
    %2143 = vmatprep.subr.mxu0 0.0
    %2144 = vmatpush1.msra.mxu0 0.0
    %2145 = vmatprep.subr.mxu0 0.0
    %2146 = vmatpush1.msra.mxu0 0.0
    %2147 = vmatprep.subr.mxu0 0.0
    %2148 = vmatpush1.msra.mxu0 0.0
    %2149 = vmatprep.subr.mxu0 0.0
    %2150 = vmatpush1.msra.mxu0 0.0
    %2151 = vmatprep.mubr.f32.mxu0 0.0
    %v2152 = vand.u32 %v1931, 4294901760
    %v2153 = vsub.f32 %v1931, %v2152
    %2154 = vmatmul.mubr.f32.gmra.mrb[0].mxu0 %v2153
    %v2155 = vpop.f32.mrb[0].mxu0
    %v2156 = vadd.f32 %v2082, %v2155
    %v2157 = vpop.f32.mrb[0].mxu0
    %2158 = vdwg.mxu0
    %2159 = vmatprep.subr.mxu0 0.0
    %v2160 = vand.u32 %v1928, 4294901760
    %2161 = vmatpush1.msra.mxu0 %v2160
    %2162 = vmatprep.subr.mxu0 0.0
    %2163 = vmatpush1.msra.mxu0 0.0
    %2164 = vmatprep.subr.mxu0 0.0
    %2165 = vmatpush1.msra.mxu0 0.0
    %2166 = vmatprep.subr.mxu0 0.0
    %2167 = vmatpush1.msra.mxu0 0.0
    %2168 = vmatprep.subr.mxu0 0.0
    %2169 = vmatpush1.msra.mxu0 0.0
    %2170 = vmatprep.subr.mxu0 0.0
    %2171 = vmatpush1.msra.mxu0 0.0
    %2172 = vmatprep.subr.mxu0 0.0
    %2173 = vmatpush1.msra.mxu0 0.0
    %2174 = vmatprep.subr.mxu0 0.0
    %2175 = vmatpush1.msra.mxu0 0.0
    %2176 = vmatprep.subr.mxu0 0.0
    %2177 = vmatpush1.msra.mxu0 0.0
    %2178 = vmatprep.subr.mxu0 0.0
    %2179 = vmatpush1.msra.mxu0 0.0
    %2180 = vmatprep.subr.mxu0 0.0
    %2181 = vmatpush1.msra.mxu0 0.0
    %2182 = vmatprep.subr.mxu0 0.0
    %2183 = vmatpush1.msra.mxu0 0.0
    %2184 = vmatprep.subr.mxu0 0.0
    %2185 = vmatpush1.msra.mxu0 0.0
    %2186 = vmatprep.subr.mxu0 0.0
    %2187 = vmatpush1.msra.mxu0 0.0
    %2188 = vmatprep.subr.mxu0 0.0
    %2189 = vmatpush1.msra.mxu0 0.0
    %2190 = vmatprep.subr.mxu0 0.0
    %2191 = vmatpush1.msra.mxu0 0.0
    %2192 = vmatprep.subr.mxu0 0.0
    %2193 = vmatpush1.msra.mxu0 0.0
    %2194 = vmatprep.subr.mxu0 0.0
    %2195 = vmatpush1.msra.mxu0 0.0
    %2196 = vmatprep.subr.mxu0 0.0
    %2197 = vmatpush1.msra.mxu0 0.0
    %2198 = vmatprep.subr.mxu0 0.0
    %2199 = vmatpush1.msra.mxu0 0.0
    %2200 = vmatprep.subr.mxu0 0.0
    %2201 = vmatpush1.msra.mxu0 0.0
    %2202 = vmatprep.subr.mxu0 0.0
    %2203 = vmatpush1.msra.mxu0 0.0
    %2204 = vmatprep.subr.mxu0 0.0
    %2205 = vmatpush1.msra.mxu0 0.0
    %2206 = vmatprep.subr.mxu0 0.0
    %2207 = vmatpush1.msra.mxu0 0.0
    %2208 = vmatprep.subr.mxu0 0.0
    %2209 = vmatpush1.msra.mxu0 0.0
    %2210 = vmatprep.subr.mxu0 0.0
    %2211 = vmatpush1.msra.mxu0 0.0
    %2212 = vmatprep.subr.mxu0 0.0
    %2213 = vmatpush1.msra.mxu0 0.0
    %2214 = vmatprep.subr.mxu0 0.0
    %2215 = vmatpush1.msra.mxu0 0.0
    %2216 = vmatprep.subr.mxu0 0.0
    %2217 = vmatpush1.msra.mxu0 0.0
    %2218 = vmatprep.subr.mxu0 0.0
    %2219 = vmatpush1.msra.mxu0 0.0
    %2220 = vmatprep.subr.mxu0 0.0
    %2221 = vmatpush1.msra.mxu0 0.0
    %2222 = vmatprep.subr.mxu0 0.0
    %2223 = vmatpush1.msra.mxu0 0.0
    %2224 = vmatprep.mubr.f32.mxu0 0.0
    %v2225 = vand.u32 %v1931, 4294901760
    %v2226 = vsub.f32 %v1931, %v2225
    %v2227 = vand.u32 %v2226, 4294901760
    %2228 = vmatmul.mubr.f32.gmra.mrb[0].mxu0 %v2227
    %v2229 = vpop.f32.mrb[0].mxu0
    %v2230 = vadd.f32 %v2156, %v2229
    %v2231 = vpop.f32.mrb[0].mxu0
    %2232 = vdwg.mxu0
    %2233 = vmatprep.subr.mxu0 0.0
    %v2234 = vand.u32 %v1928, 4294901760
    %v2235 = vsub.f32 %v1928, %v2234
    %v2236 = vand.u32 %v2235, 4294901760
    %2237 = vmatpush1.msra.mxu0 %v2236
    %2238 = vmatprep.subr.mxu0 0.0
    %2239 = vmatpush1.msra.mxu0 0.0
    %2240 = vmatprep.subr.mxu0 0.0
    %2241 = vmatpush1.msra.mxu0 0.0
    %2242 = vmatprep.subr.mxu0 0.0
    %2243 = vmatpush1.msra.mxu0 0.0
    %2244 = vmatprep.subr.mxu0 0.0
    %2245 = vmatpush1.msra.mxu0 0.0
    %2246 = vmatprep.subr.mxu0 0.0
    %2247 = vmatpush1.msra.mxu0 0.0
    %2248 = vmatprep.subr.mxu0 0.0
    %2249 = vmatpush1.msra.mxu0 0.0
    %2250 = vmatprep.subr.mxu0 0.0
    %2251 = vmatpush1.msra.mxu0 0.0
    %2252 = vmatprep.subr.mxu0 0.0
    %2253 = vmatpush1.msra.mxu0 0.0
    %2254 = vmatprep.subr.mxu0 0.0
    %2255 = vmatpush1.msra.mxu0 0.0
    %2256 = vmatprep.subr.mxu0 0.0
    %2257 = vmatpush1.msra.mxu0 0.0
    %2258 = vmatprep.subr.mxu0 0.0
    %2259 = vmatpush1.msra.mxu0 0.0
    %2260 = vmatprep.subr.mxu0 0.0
    %2261 = vmatpush1.msra.mxu0 0.0
    %2262 = vmatprep.subr.mxu0 0.0
    %2263 = vmatpush1.msra.mxu0 0.0
    %2264 = vmatprep.subr.mxu0 0.0
    %2265 = vmatpush1.msra.mxu0 0.0
    %2266 = vmatprep.subr.mxu0 0.0
    %2267 = vmatpush1.msra.mxu0 0.0
    %2268 = vmatprep.subr.mxu0 0.0
    %2269 = vmatpush1.msra.mxu0 0.0
    %2270 = vmatprep.subr.mxu0 0.0
    %2271 = vmatpush1.msra.mxu0 0.0
    %2272 = vmatprep.subr.mxu0 0.0
    %2273 = vmatpush1.msra.mxu0 0.0
    %2274 = vmatprep.subr.mxu0 0.0
    %2275 = vmatpush1.msra.mxu0 0.0
    %2276 = vmatprep.subr.mxu0 0.0
    %2277 = vmatpush1.msra.mxu0 0.0
    %2278 = vmatprep.subr.mxu0 0.0
    %2279 = vmatpush1.msra.mxu0 0.0
    %2280 = vmatprep.subr.mxu0 0.0
    %2281 = vmatpush1.msra.mxu0 0.0
    %2282 = vmatprep.subr.mxu0 0.0
    %2283 = vmatpush1.msra.mxu0 0.0
    %2284 = vmatprep.subr.mxu0 0.0
    %2285 = vmatpush1.msra.mxu0 0.0
    %2286 = vmatprep.subr.mxu0 0.0
    %2287 = vmatpush1.msra.mxu0 0.0
    %2288 = vmatprep.subr.mxu0 0.0
    %2289 = vmatpush1.msra.mxu0 0.0
    %2290 = vmatprep.subr.mxu0 0.0
    %2291 = vmatpush1.msra.mxu0 0.0
    %2292 = vmatprep.subr.mxu0 0.0
    %2293 = vmatpush1.msra.mxu0 0.0
    %2294 = vmatprep.subr.mxu0 0.0
    %2295 = vmatpush1.msra.mxu0 0.0
    %2296 = vmatprep.subr.mxu0 0.0
    %2297 = vmatpush1.msra.mxu0 0.0
    %2298 = vmatprep.subr.mxu0 0.0
    %2299 = vmatpush1.msra.mxu0 0.0
    %2300 = vmatprep.mubr.f32.mxu0 0.0
    %v2301 = vand.u32 %v1931, 4294901760
    %2302 = vmatmul.mubr.f32.gmra.mrb[0].mxu0 %v2301
    %v2303 = vpop.f32.mrb[0].mxu0
    %v2304 = vadd.f32 %v2230, %v2303
    %v2305 = vpop.f32.mrb[0].mxu0
    %2306 = vdwg.mxu0
    %2307 = vmatprep.subr.mxu0 0.0
    %v2308 = vand.u32 %v1928, 4294901760
    %2309 = vmatpush1.msra.mxu0 %v2308
    %2310 = vmatprep.subr.mxu0 0.0
    %2311 = vmatpush1.msra.mxu0 0.0
    %2312 = vmatprep.subr.mxu0 0.0
    %2313 = vmatpush1.msra.mxu0 0.0
    %2314 = vmatprep.subr.mxu0 0.0
    %2315 = vmatpush1.msra.mxu0 0.0
    %2316 = vmatprep.subr.mxu0 0.0
    %2317 = vmatpush1.msra.mxu0 0.0
    %2318 = vmatprep.subr.mxu0 0.0
    %2319 = vmatpush1.msra.mxu0 0.0
    %2320 = vmatprep.subr.mxu0 0.0
    %2321 = vmatpush1.msra.mxu0 0.0
    %2322 = vmatprep.subr.mxu0 0.0
    %2323 = vmatpush1.msra.mxu0 0.0
    %2324 = vmatprep.subr.mxu0 0.0
    %2325 = vmatpush1.msra.mxu0 0.0
    %2326 = vmatprep.subr.mxu0 0.0
    %2327 = vmatpush1.msra.mxu0 0.0
    %2328 = vmatprep.subr.mxu0 0.0
    %2329 = vmatpush1.msra.mxu0 0.0
    %2330 = vmatprep.subr.mxu0 0.0
    %2331 = vmatpush1.msra.mxu0 0.0
    %2332 = vmatprep.subr.mxu0 0.0
    %2333 = vmatpush1.msra.mxu0 0.0
    %2334 = vmatprep.subr.mxu0 0.0
    %2335 = vmatpush1.msra.mxu0 0.0
    %2336 = vmatprep.subr.mxu0 0.0
    %2337 = vmatpush1.msra.mxu0 0.0
    %2338 = vmatprep.subr.mxu0 0.0
    %2339 = vmatpush1.msra.mxu0 0.0
    %2340 = vmatprep.subr.mxu0 0.0
    %2341 = vmatpush1.msra.mxu0 0.0
    %2342 = vmatprep.subr.mxu0 0.0
    %2343 = vmatpush1.msra.mxu0 0.0
    %2344 = vmatprep.subr.mxu0 0.0
    %2345 = vmatpush1.msra.mxu0 0.0
    %2346 = vmatprep.subr.mxu0 0.0
    %2347 = vmatpush1.msra.mxu0 0.0
    %2348 = vmatprep.subr.mxu0 0.0
    %2349 = vmatpush1.msra.mxu0 0.0
    %2350 = vmatprep.subr.mxu0 0.0
    %2351 = vmatpush1.msra.mxu0 0.0
    %2352 = vmatprep.subr.mxu0 0.0
    %2353 = vmatpush1.msra.mxu0 0.0
    %2354 = vmatprep.subr.mxu0 0.0
    %2355 = vmatpush1.msra.mxu0 0.0
    %2356 = vmatprep.subr.mxu0 0.0
    %2357 = vmatpush1.msra.mxu0 0.0
    %2358 = vmatprep.subr.mxu0 0.0
    %2359 = vmatpush1.msra.mxu0 0.0
    %2360 = vmatprep.subr.mxu0 0.0
    %2361 = vmatpush1.msra.mxu0 0.0
    %2362 = vmatprep.subr.mxu0 0.0
    %2363 = vmatpush1.msra.mxu0 0.0
    %2364 = vmatprep.subr.mxu0 0.0
    %2365 = vmatpush1.msra.mxu0 0.0
    %2366 = vmatprep.subr.mxu0 0.0
    %2367 = vmatpush1.msra.mxu0 0.0
    %2368 = vmatprep.subr.mxu0 0.0
    %2369 = vmatpush1.msra.mxu0 0.0
    %2370 = vmatprep.subr.mxu0 0.0
    %2371 = vmatpush1.msra.mxu0 0.0
    %2372 = vmatprep.mubr.f32.mxu0 0.0
    %v2373 = vand.u32 %v1931, 4294901760
    %2374 = vmatmul.mubr.f32.gmra.mrb[0].mxu0 %v2373
    %v2375 = vpop.f32.mrb[0].mxu0
    %v2376 = vadd.f32 %v2304, %v2375
    %v2377 = vpop.f32.mrb[0].mxu0
    %2378 = vdwg.mxu0
    %v2379 = vld [vmem:[#allocation13] sm:$0x1]
    %v2380 = vlaneseq
    %v2381 = vshrl.u32 %v2380, 7
    %v2382 = vsub.s32 0, %v2381
    %v2383 = vrot.slane %v2379, %v2382
    %2384 = vset.pattern.permute.xlu0 1
    %2385 = vperm.xlu0 %2384, %v1908
    %v2386 = vpop.permute.xlu0 %2385
    %vm2387 = vcmp.eq.s32.totalorder %v2383, %v2386
    %v2388 = vsel %vm2387, 1, 0
    %v2389 = vcvt.s32.f32 %v2388
    %v2390 = vmul.f32 %v2376, %v2389
    %v2391 = vadd.f32 %v112, %v2390
    %v2392 = vmin.f32 %v2391, 1.0
    %2393 = vst [vmem:[#allocation14] sm:$0x3] %v2392
    // Predicated region
    $region58: #{tpu_custom_call.1} parent=1 // pred_check
      _
    $region59: #{tpu_custom_call.1} parent=1 // pred_check_branch
      %2395 = sbr.rel (0) target = $region61
    $region60: #{tpu_custom_call.1} parent=1 // pred_region
      %s2397 = ssub.s32 32, 32
      %2398 = vsyncadd [#allocation4], %s2397
      %s2400 = sshll.u32 [#allocation14], 4
      %s2401 = int_to_ptr.vmem [resolvable:$true] %s2400
      %2403 = dma.vmem_to_hbm [thread:$0]  %s2401, 32, %s7, [#allocation4]
    $region61: #{tpu_custom_call.1} parent=1 // pred_fallthru
      _
    // Predicated region
    $region62: #{tpu_custom_call.1} parent=1 // pred_check
      _
    $region63: #{tpu_custom_call.1} parent=1 // pred_check_branch
      %2405 = sbr.rel (0) target = $region65
    $region64: #{tpu_custom_call.1} parent=1 // pred_region
      %2406 = dma.done [#allocation4], 32
    $region65: #{tpu_custom_call.1} parent=1 // pred_fallthru
      _
    %2407 = vsyncpa [#allocation3], 1
    %2408 = vsyncpa [#allocation6], 1
    %2409 = vsyncpa [#allocation9], 1
    %2410 = vsyncpa [#allocation12], 1
    %2411 = vsyncpa [#allocation4], 1

// kernel: tpu_custom_call.1
$region0: #{tpu_custom_call.1}
  #allocation0 [shape = 'u32[]', space=smem, size = 0x4, offset = 0x4, fixed_abs, tag = 'smem constant byte address 0x4 - core index']
  #allocation1 [shape = 'u32[144,128]{1,0:T(1,128)}', space=vmem, size = 0x12000, scoped, tag = 'internal scratch']
  %s0 = inlined_call_operand.hbm [shape: s32[2,2], index: 0, kind: input, shape index: {}]
  %s1 = inlined_call_operand.hbm [shape: f32[2,128], index: 1, kind: input, shape index: {}]
  %s2 = inlined_call_operand.hbm [shape: f32[128,256], index: 2, kind: input, shape index: {}]
  %s3 = inlined_call_operand.hbm [shape: f32[1,256], index: 3, kind: input, shape index: {}]
  %s4 = inlined_call_operand.hbm [shape: f32[256,8], index: 4, kind: input, shape index: {}]
  %s5 = inlined_call_operand.hbm [shape: f32[8,128], index: 5, kind: input, shape index: {}]
  %s6 = inlined_call_operand.hbm [shape: s32[1,128], index: 6, kind: input, shape index: {}]
  %s7 = inlined_call_operand.hbm [shape: f32[2,128], index: 7, kind: output, shape index: {}]
  %s8 = sld [smem:[#allocation0]]
  $region66: #{tpu_custom_call.1} parent=0
    _
  %s10 = ssub.s32 1, %s8
  %s11 = scalar_select 0, %s10, %s8
  $region1: #{tpu_custom_call.1} parent=0
    #allocation2 [shape = 'u8[1024]{0}', space=vmem, size = 0x400, scoped, tag = 'input window, operand 0, single buffered']
    #allocation3 [shape = 's32[1]{0}', space=sflag, size = 0x4, scoped, tag = 'scoped memory for tpu_custom_call.1']
    #allocation4 [shape = 's32[1]{0}', space=sflag, size = 0x4, scoped, tag = 'scoped memory for tpu_custom_call.1']
    #allocation5 [shape = 'u8[1024]{0}', space=vmem, size = 0x400, scoped, tag = 'input window, operand 1, single buffered']
    #allocation6 [shape = 's32[1]{0}', space=sflag, size = 0x4, scoped, tag = 'scoped memory for tpu_custom_call.1']
    #allocation7 [shape = 'u8[131072]{0}', space=vmem, size = 0x20000, scoped, tag = 'input window, operand 2, single buffered']
    #allocation8 [shape = 'u8[1024]{0}', space=vmem, size = 0x400, scoped, tag = 'input window, operand 3, single buffered']
    #allocation9 [shape = 's32[1]{0}', space=sflag, size = 0x4, scoped, tag = 'scoped memory for tpu_custom_call.1']
    #allocation10 [shape = 'u8[131072]{0}', space=vmem, size = 0x20000, scoped, tag = 'input window, operand 4, single buffered']
    #allocation11 [shape = 'u8[4096]{0}', space=vmem, size = 0x1000, scoped, tag = 'input window, operand 5, single buffered']
    #allocation12 [shape = 's32[1]{0}', space=sflag, size = 0x4, scoped, tag = 'scoped memory for tpu_custom_call.1']
    #allocation13 [shape = 'u8[512]{0}', space=vmem, size = 0x400, scoped, tag = 'input window, operand 6, single buffered']
    #allocation14 [shape = 'u8[1024]{0}', space=vmem, size = 0x400, scoped, tag = 'output window, operand 0, single buffered']
    %12 = vsyncpa [#allocation3], 0
    %13 = vsyncpa [#allocation6], 0
    %14 = vsyncpa [#allocation9], 0
    %15 = vsyncpa [#allocation12], 0
    %16 = vsyncpa [#allocation4], 0
    // Predicated region
    $region2: #{tpu_custom_call.1} parent=1 // pred_check
      _
    $region3: #{tpu_custom_call.1} parent=1 // pred_check_branch
      %18 = sbr.rel (0) target = $region5
    $region4: #{tpu_custom_call.1} parent=1 // pred_region
      %s20 = ssub.s32 32, 32
      %21 = vsyncadd [#allocation3], %s20
      %s23 = sshll.u32 [#allocation2], 4
      %s24 = int_to_ptr.vmem [resolvable:$true] %s23
      %26 = dma.hbm_to_vmem [thread:$0]  %s0, 32, %s24, [#allocation3]
    $region5: #{tpu_custom_call.1} parent=1 // pred_fallthru
      _
    // Predicated region
    $region6: #{tpu_custom_call.1} parent=1 // pred_check
      _
    $region7: #{tpu_custom_call.1} parent=1 // pred_check_branch
      %28 = sbr.rel (0) target = $region9
    $region8: #{tpu_custom_call.1} parent=1 // pred_region
      %s30 = ssub.s32 32, 32
      %31 = vsyncadd [#allocation6], %s30
      %s33 = sshll.u32 [#allocation5], 4
      %s34 = int_to_ptr.vmem [resolvable:$true] %s33
      %36 = dma.hbm_to_vmem [thread:$0]  %s1, 32, %s34, [#allocation6]
    $region9: #{tpu_custom_call.1} parent=1 // pred_fallthru
      _
    // Predicated region
    $region10: #{tpu_custom_call.1} parent=1 // pred_check
      _
    $region11: #{tpu_custom_call.1} parent=1 // pred_check_branch
      %38 = sbr.rel (0) target = $region13
    $region12: #{tpu_custom_call.1} parent=1 // pred_region
      %s40 = ssub.s32 4096, 4096
      %41 = vsyncadd [#allocation6], %s40
      %s42 = sshll.u32 [#allocation7], 4
      %s43 = int_to_ptr.vmem [resolvable:$true] %s42
      %48 = dma.hbm_to_vmem [thread:$0]  %s2, 4096, %s43, [#allocation6], 256, 256, 16
    $region13: #{tpu_custom_call.1} parent=1 // pred_fallthru
      _
    // Predicated region
    $region14: #{tpu_custom_call.1} parent=1 // pred_check
      _
    $region15: #{tpu_custom_call.1} parent=1 // pred_check_branch
      %50 = sbr.rel (0) target = $region17
    $region16: #{tpu_custom_call.1} parent=1 // pred_region
      %s52 = ssub.s32 32, 32
      %53 = vsyncadd [#allocation9], %s52
      %s55 = sshll.u32 [#allocation8], 4
      %s56 = int_to_ptr.vmem [resolvable:$true] %s55
      %58 = dma.hbm_to_vmem [thread:$0]  %s3, 32, %s56, [#allocation9]
    $region17: #{tpu_custom_call.1} parent=1 // pred_fallthru
      _
    // Predicated region
    $region18: #{tpu_custom_call.1} parent=1 // pred_check
      _
    $region19: #{tpu_custom_call.1} parent=1 // pred_check_branch
      %60 = sbr.rel (0) target = $region21
    $region20: #{tpu_custom_call.1} parent=1 // pred_region
      %s62 = ssub.s32 4096, 4096
      %63 = vsyncadd [#allocation9], %s62
      %s64 = sshll.u32 [#allocation10], 4
      %s65 = int_to_ptr.vmem [resolvable:$true] %s64
      %70 = dma.hbm_to_vmem [thread:$0]  %s4, 4096, %s65, [#allocation9], 128, 128, 8
    $region21: #{tpu_custom_call.1} parent=1 // pred_fallthru
      _
    // Predicated region
    $region22: #{tpu_custom_call.1} parent=1 // pred_check
      _
    $region23: #{tpu_custom_call.1} parent=1 // pred_check_branch
      %72 = sbr.rel (0) target = $region25
    $region24: #{tpu_custom_call.1} parent=1 // pred_region
      %s74 = ssub.s32 128, 128
      %75 = vsyncadd [#allocation12], %s74
      %s77 = sshll.u32 [#allocation11], 4
      %s78 = int_to_ptr.vmem [resolvable:$true] %s77
      %80 = dma.hbm_to_vmem [thread:$0]  %s5, 128, %s78, [#allocation12]
    $region25: #{tpu_custom_call.1} parent=1 // pred_fallthru
      _
    // Predicated region
    $region26: #{tpu_custom_call.1} parent=1 // pred_check
      _
    $region27: #{tpu_custom_call.1} parent=1 // pred_check_branch
      %82 = sbr.rel (0) target = $region29
    $region28: #{tpu_custom_call.1} parent=1 // pred_region
      %s84 = ssub.s32 16, 16
      %85 = vsyncadd [#allocation12], %s84
      %s87 = sshll.u32 [#allocation13], 4
      %s88 = int_to_ptr.vmem [resolvable:$true] %s87
      %90 = dma.hbm_to_vmem [thread:$0]  %s6, 16, %s88, [#allocation12]
    $region29: #{tpu_custom_call.1} parent=1 // pred_fallthru
      _
    // Predicated region
    $region30: #{tpu_custom_call.1} parent=1 // pred_check
      _
    $region31: #{tpu_custom_call.1} parent=1 // pred_check_branch
      %92 = sbr.rel (0) target = $region33
    $region32: #{tpu_custom_call.1} parent=1 // pred_region
      %93 = dma.done [#allocation3], 32
    $region33: #{tpu_custom_call.1} parent=1 // pred_fallthru
      _
    // Predicated region
    $region34: #{tpu_custom_call.1} parent=1 // pred_check
      _
    $region35: #{tpu_custom_call.1} parent=1 // pred_check_branch
      %95 = sbr.rel (0) target = $region37
    $region36: #{tpu_custom_call.1} parent=1 // pred_region
      %96 = dma.done [#allocation6], 32
    $region37: #{tpu_custom_call.1} parent=1 // pred_fallthru
      _
    // Predicated region
    $region38: #{tpu_custom_call.1} parent=1 // pred_check
      _
    $region39: #{tpu_custom_call.1} parent=1 // pred_check_branch
      %98 = sbr.rel (0) target = $region41
    $region40: #{tpu_custom_call.1} parent=1 // pred_region
      %99 = dma.done [#allocation6], 4096
    $region41: #{tpu_custom_call.1} parent=1 // pred_fallthru
      _
    // Predicated region
    $region42: #{tpu_custom_call.1} parent=1 // pred_check
      _
    $region43: #{tpu_custom_call.1} parent=1 // pred_check_branch
      %101 = sbr.rel (0) target = $region45
    $region44: #{tpu_custom_call.1} parent=1 // pred_region
      %102 = dma.done [#allocation9], 32
    $region45: #{tpu_custom_call.1} parent=1 // pred_fallthru
      _
    // Predicated region
    $region46: #{tpu_custom_call.1} parent=1 // pred_check
      _
    $region47: #{tpu_custom_call.1} parent=1 // pred_check_branch
      %104 = sbr.rel (0) target = $region49
    $region48: #{tpu_custom_call.1} parent=1 // pred_region
      %105 = dma.done [#allocation9], 4096
    $region49: #{tpu_custom_call.1} parent=1 // pred_fallthru
      _
    // Predicated region
    $region50: #{tpu_custom_call.1} parent=1 // pred_check
      _
    $region51: #{tpu_custom_call.1} parent=1 // pred_check_branch
      %107 = sbr.rel (0) target = $region53
    $region52: #{tpu_custom_call.1} parent=1 // pred_region
      %108 = dma.done [#allocation12], 128
    $region53: #{tpu_custom_call.1} parent=1 // pred_fallthru
      _
    // Predicated region
    $region54: #{tpu_custom_call.1} parent=1 // pred_check
      _
    $region55: #{tpu_custom_call.1} parent=1 // pred_check_branch
      %110 = sbr.rel (0) target = $region57
    $region56: #{tpu_custom_call.1} parent=1 // pred_region
      %111 = dma.done [#allocation12], 16
    $region57: #{tpu_custom_call.1} parent=1 // pred_fallthru
      _
    %v112 = vld [vmem:[#allocation5] sm:$0x3]
    %v113 = vld [vmem:[#allocation7] sm:$0xff]
    %v114 = vld [vmem:[#allocation7 + $0x8] sm:$0xff]
    %v115 = vld [vmem:[#allocation7 + $0x10] sm:$0xff]
    %v116 = vld [vmem:[#allocation7 + $0x18] sm:$0xff]
    %v117 = vld [vmem:[#allocation7 + $0x20] sm:$0xff]
    %v118 = vld [vmem:[#allocation7 + $0x28] sm:$0xff]
    %v119 = vld [vmem:[#allocation7 + $0x30] sm:$0xff]
    %v120 = vld [vmem:[#allocation7 + $0x38] sm:$0xff]
    %v121 = vld [vmem:[#allocation7 + $0x40] sm:$0xff]
    %v122 = vld [vmem:[#allocation7 + $0x48] sm:$0xff]
    %v123 = vld [vmem:[#allocation7 + $0x50] sm:$0xff]
    %v124 = vld [vmem:[#allocation7 + $0x58] sm:$0xff]
    %v125 = vld [vmem:[#allocation7 + $0x60] sm:$0xff]
    %v126 = vld [vmem:[#allocation7 + $0x68] sm:$0xff]
    %v127 = vld [vmem:[#allocation7 + $0x70] sm:$0xff]
    %v128 = vld [vmem:[#allocation7 + $0x78] sm:$0xff]
    %v129 = vld [vmem:[#allocation7 + $0x80] sm:$0xff]
    %v130 = vld [vmem:[#allocation7 + $0x88] sm:$0xff]
    %v131 = vld [vmem:[#allocation7 + $0x90] sm:$0xff]
    %v132 = vld [vmem:[#allocation7 + $0x98] sm:$0xff]
    %v133 = vld [vmem:[#allocation7 + $0xa0] sm:$0xff]
    %v134 = vld [vmem:[#allocation7 + $0xa8] sm:$0xff]
    %v135 = vld [vmem:[#allocation7 + $0xb0] sm:$0xff]
    %v136 = vld [vmem:[#allocation7 + $0xb8] sm:$0xff]
    %v137 = vld [vmem:[#allocation7 + $0xc0] sm:$0xff]
    %v138 = vld [vmem:[#allocation7 + $0xc8] sm:$0xff]
    %v139 = vld [vmem:[#allocation7 + $0xd0] sm:$0xff]
    %v140 = vld [vmem:[#allocation7 + $0xd8] sm:$0xff]
    %v141 = vld [vmem:[#allocation7 + $0xe0] sm:$0xff]
    %v142 = vld [vmem:[#allocation7 + $0xe8] sm:$0xff]
    %v143 = vld [vmem:[#allocation7 + $0xf0] sm:$0xff]
    %v144 = vld [vmem:[#allocation7 + $0xf8] sm:$0xff]
    %v145 = vld [vmem:[#allocation8] sm:$0x3]
    %v147 = vlaneseq
    %v148 = vshrl.u32 %v147, 7
    %v149 = vsub.s32 0, %v148
    %v150 = vrot.slane %v145, %v149
    %v151 = vlaneseq
    %v152 = vshrl.u32 %v151, 7
    %v153 = vsub.s32 1, %v152
    %v154 = vrot.slane %v145, %v153
    %157 = vmatprep.subr.mxu0 %v114
    %158 = vmatpush1.msra.mxu0 %v113
    %159 = vmatprep.subr.mxu0 %v116
    %160 = vmatpush1.msra.mxu0 %v115
    %161 = vmatprep.subr.mxu0 %v118
    %162 = vmatpush1.msra.mxu0 %v117
    %163 = vmatprep.subr.mxu0 %v120
    %164 = vmatpush1.msra.mxu0 %v119
    %165 = vmatprep.subr.mxu0 %v122
    %166 = vmatpush1.msra.mxu0 %v121
    %167 = vmatprep.subr.mxu0 %v124
    %168 = vmatpush1.msra.mxu0 %v123
    %169 = vmatprep.subr.mxu0 %v126
    %170 = vmatpush1.msra.mxu0 %v125
    %171 = vmatprep.subr.mxu0 %v128
    %172 = vmatpush1.msra.mxu0 %v127
    %173 = vmatprep.subr.mxu0 %v130
    %174 = vmatpush1.msra.mxu0 %v129
    %175 = vmatprep.subr.mxu0 %v132
    %176 = vmatpush1.msra.mxu0 %v131
    %177 = vmatprep.subr.mxu0 %v134
    %178 = vmatpush1.msra.mxu0 %v133
    %179 = vmatprep.subr.mxu0 %v136
    %180 = vmatpush1.msra.mxu0 %v135
    %181 = vmatprep.subr.mxu0 %v138
    %182 = vmatpush1.msra.mxu0 %v137
    %183 = vmatprep.subr.mxu0 %v140
    %184 = vmatpush1.msra.mxu0 %v139
    %185 = vmatprep.subr.mxu0 %v142
    %186 = vmatpush1.msra.mxu0 %v141
    %187 = vmatprep.subr.mxu0 %v144
    %188 = vmatpush1.msra.mxu0 %v143
    %189 = vmatprep.subr.mxu0 0.0
    %190 = vmatpush1.msra.mxu0 0.0
    %191 = vmatprep.subr.mxu0 0.0
    %192 = vmatpush1.msra.mxu0 0.0
    %193 = vmatprep.subr.mxu0 0.0
    %194 = vmatpush1.msra.mxu0 0.0
    %195 = vmatprep.subr.mxu0 0.0
    %196 = vmatpush1.msra.mxu0 0.0
    %197 = vmatprep.subr.mxu0 0.0
    %198 = vmatpush1.msra.mxu0 0.0
    %199 = vmatprep.subr.mxu0 0.0
    %200 = vmatpush1.msra.mxu0 0.0
    %201 = vmatprep.subr.mxu0 0.0
    %202 = vmatpush1.msra.mxu0 0.0
    %203 = vmatprep.subr.mxu0 0.0
    %204 = vmatpush1.msra.mxu0 0.0
    %205 = vmatprep.subr.mxu0 0.0
    %206 = vmatpush1.msra.mxu0 0.0
    %207 = vmatprep.subr.mxu0 0.0
    %208 = vmatpush1.msra.mxu0 0.0
    %209 = vmatprep.subr.mxu0 0.0
    %210 = vmatpush1.msra.mxu0 0.0
    %211 = vmatprep.subr.mxu0 0.0
    %212 = vmatpush1.msra.mxu0 0.0
    %213 = vmatprep.subr.mxu0 0.0
    %214 = vmatpush1.msra.mxu0 0.0
    %215 = vmatprep.subr.mxu0 0.0
    %216 = vmatpush1.msra.mxu0 0.0
    %217 = vmatprep.subr.mxu0 0.0
    %218 = vmatpush1.msra.mxu0 0.0
    %219 = vmatprep.subr.mxu0 0.0
    %220 = vmatpush1.msra.mxu0 0.0
    %221 = vmatprep.mubr.f32.mxu0 0.0
    %222 = vmatmul.mubr.f32.gmra.mrb[0].mxu0 %v112
    %v223 = vpop.f32.mrb[0].mxu0
    %v224 = vadd.f32 %v150, %v223
    %v225 = vpop.f32.mrb[0].mxu0
    %v226 = vadd.f32 %v154, %v225
    %227 = vdwg.mxu0
    %v228 = vtanh.pop %v224
    %v229 = vtanh.pop %v226
    %v230 = vld [vmem:[#allocation10] sm:$0xff]
    %v231 = vld [vmem:[#allocation10 + $0x8] sm:$0xff]
    %v232 = vld [vmem:[#allocation10 + $0x10] sm:$0xff]
    %v233 = vld [vmem:[#allocation10 + $0x18] sm:$0xff]
    %v234 = vld [vmem:[#allocation10 + $0x20] sm:$0xff]
    %v235 = vld [vmem:[#allocation10 + $0x28] sm:$0xff]
    %v236 = vld [vmem:[#allocation10 + $0x30] sm:$0xff]
    %v237 = vld [vmem:[#allocation10 + $0x38] sm:$0xff]
    %v238 = vld [vmem:[#allocation10 + $0x40] sm:$0xff]
    %v239 = vld [vmem:[#allocation10 + $0x48] sm:$0xff]
    %v240 = vld [vmem:[#allocation10 + $0x50] sm:$0xff]
    %v241 = vld [vmem:[#allocation10 + $0x58] sm:$0xff]
    %v242 = vld [vmem:[#allocation10 + $0x60] sm:$0xff]
    %v243 = vld [vmem:[#allocation10 + $0x68] sm:$0xff]
    %v244 = vld [vmem:[#allocation10 + $0x70] sm:$0xff]
    %v245 = vld [vmem:[#allocation10 + $0x78] sm:$0xff]
    %v246 = vld [vmem:[#allocation10 + $0x80] sm:$0xff]
    %v247 = vld [vmem:[#allocation10 + $0x88] sm:$0xff]
    %v248 = vld [vmem:[#allocation10 + $0x90] sm:$0xff]
    %v249 = vld [vmem:[#allocation10 + $0x98] sm:$0xff]
    %v250 = vld [vmem:[#allocation10 + $0xa0] sm:$0xff]
    %v251 = vld [vmem:[#allocation10 + $0xa8] sm:$0xff]
    %v252 = vld [vmem:[#allocation10 + $0xb0] sm:$0xff]
    %v253 = vld [vmem:[#allocation10 + $0xb8] sm:$0xff]
    %v254 = vld [vmem:[#allocation10 + $0xc0] sm:$0xff]
    %v255 = vld [vmem:[#allocation10 + $0xc8] sm:$0xff]
    %v256 = vld [vmem:[#allocation10 + $0xd0] sm:$0xff]
    %v257 = vld [vmem:[#allocation10 + $0xd8] sm:$0xff]
    %v258 = vld [vmem:[#allocation10 + $0xe0] sm:$0xff]
    %v259 = vld [vmem:[#allocation10 + $0xe8] sm:$0xff]
    %v260 = vld [vmem:[#allocation10 + $0xf0] sm:$0xff]
    %v261 = vld [vmem:[#allocation10 + $0xf8] sm:$0xff]
    %262 = vmatprep.subr.mxu0 0.0
    %263 = vmatpush1.msra.mxu0 %v230
    %264 = vmatprep.subr.mxu0 0.0
    %265 = vmatpush1.msra.mxu0 %v231
    %266 = vmatprep.subr.mxu0 0.0
    %267 = vmatpush1.msra.mxu0 %v232
    %268 = vmatprep.subr.mxu0 0.0
    %269 = vmatpush1.msra.mxu0 %v233
    %270 = vmatprep.subr.mxu0 0.0
    %271 = vmatpush1.msra.mxu0 %v234
    %272 = vmatprep.subr.mxu0 0.0
    %273 = vmatpush1.msra.mxu0 %v235
    %274 = vmatprep.subr.mxu0 0.0
    %275 = vmatpush1.msra.mxu0 %v236
    %276 = vmatprep.subr.mxu0 0.0
    %277 = vmatpush1.msra.mxu0 %v237
    %278 = vmatprep.subr.mxu0 0.0
    %279 = vmatpush1.msra.mxu0 %v238
    %280 = vmatprep.subr.mxu0 0.0
    %281 = vmatpush1.msra.mxu0 %v239
    %282 = vmatprep.subr.mxu0 0.0
    %283 = vmatpush1.msra.mxu0 %v240
    %284 = vmatprep.subr.mxu0 0.0
    %285 = vmatpush1.msra.mxu0 %v241
    %286 = vmatprep.subr.mxu0 0.0
    %287 = vmatpush1.msra.mxu0 %v242
    %288 = vmatprep.subr.mxu0 0.0
    %289 = vmatpush1.msra.mxu0 %v243
    %290 = vmatprep.subr.mxu0 0.0
    %291 = vmatpush1.msra.mxu0 %v244
    %292 = vmatprep.subr.mxu0 0.0
    %293 = vmatpush1.msra.mxu0 %v245
    %294 = vmatprep.subr.mxu0 0.0
    %295 = vmatpush1.msra.mxu0 %v246
    %296 = vmatprep.subr.mxu0 0.0
    %297 = vmatpush1.msra.mxu0 %v247
    %298 = vmatprep.subr.mxu0 0.0
    %299 = vmatpush1.msra.mxu0 %v248
    %300 = vmatprep.subr.mxu0 0.0
    %301 = vmatpush1.msra.mxu0 %v249
    %302 = vmatprep.subr.mxu0 0.0
    %303 = vmatpush1.msra.mxu0 %v250
    %304 = vmatprep.subr.mxu0 0.0
    %305 = vmatpush1.msra.mxu0 %v251
    %306 = vmatprep.subr.mxu0 0.0
    %307 = vmatpush1.msra.mxu0 %v252
    %308 = vmatprep.subr.mxu0 0.0
    %309 = vmatpush1.msra.mxu0 %v253
    %310 = vmatprep.subr.mxu0 0.0
    %311 = vmatpush1.msra.mxu0 %v254
    %312 = vmatprep.subr.mxu0 0.0
    %313 = vmatpush1.msra.mxu0 %v255
    %314 = vmatprep.subr.mxu0 0.0
    %315 = vmatpush1.msra.mxu0 %v256
    %316 = vmatprep.subr.mxu0 0.0
    %317 = vmatpush1.msra.mxu0 %v257
    %318 = vmatprep.subr.mxu0 0.0
    %319 = vmatpush1.msra.mxu0 %v258
    %320 = vmatprep.subr.mxu0 0.0
    %321 = vmatpush1.msra.mxu0 %v259
    %322 = vmatprep.subr.mxu0 0.0
    %323 = vmatpush1.msra.mxu0 %v260
    %324 = vmatprep.subr.mxu0 0.0
    %325 = vmatpush1.msra.mxu0 %v261
    %326 = vmatprep.mubr.f32.mxu0 %v229
    %327 = vmatmul.mubr.f32.gmra.mrb[0].mxu0 %v228
    %v328 = vpop.f32.mrb[0].mxu0
    %v329 = vadd.f32 0.0, %v328
    %v330 = vpop.f32.mrb[0].mxu0
    %331 = vdwg.mxu0
    %v332 = vld [vmem:[#allocation2] sm:$0x3]
    %v333 = vlaneseq
    %v334 = vand.u32 %v333, 127
    %335 = vset.pattern.permute.xlu0 0
    %336 = vperm.xlu0 %335, %v332
    %v337 = vpop.permute.xlu0 %336
    %vm338 = vcmp.lt.s32.totalorder %v334, %v337
    %v339 = vsel %vm338, %v329, -1e+30
    %vm340 = vcmask 58368
    %v341 = vsel %vm340, %v339, -inf
    %342 = vmax.xlane.f32.xlu0 %v341
    %v343 = vpop.xlane.xlu0 %342
    %v344 = vsub.f32 %v339, %v343
    %v345 = vmul.f32 %v344, 1.442695
    %v346 = vpow.pop %v345
    %v347 = vsel %vm340, %v346, 0.0
    %348 = vadd.xlane.f32.xlu0 %v347
    %v349 = vpop.xlane.xlu0 %348
    %v350 = vrcp.pop %v349
    %v351 = vmul.f32 %v346, %v350
    %v352 = vld [vmem:[#allocation11] sm:$0xff]
    %vm353 = vcmask 64512
    %v355 = vsel %vm353, %v351, 0
    %357 = vmatprep.subr.mxu0 0.0
    %358 = vmatpush1.msra.mxu0 %v352
    %359 = vmatprep.subr.mxu0 0.0
    %360 = vmatpush1.msra.mxu0 0.0
    %361 = vmatprep.subr.mxu0 0.0
    %362 = vmatpush1.msra.mxu0 0.0
    %363 = vmatprep.subr.mxu0 0.0
    %364 = vmatpush1.msra.mxu0 0.0
    %365 = vmatprep.subr.mxu0 0.0
    %366 = vmatpush1.msra.mxu0 0.0
    %367 = vmatprep.subr.mxu0 0.0
    %368 = vmatpush1.msra.mxu0 0.0
    %369 = vmatprep.subr.mxu0 0.0
    %370 = vmatpush1.msra.mxu0 0.0
    %371 = vmatprep.subr.mxu0 0.0
    %372 = vmatpush1.msra.mxu0 0.0
    %373 = vmatprep.subr.mxu0 0.0
    %374 = vmatpush1.msra.mxu0 0.0
    %375 = vmatprep.subr.mxu0 0.0
    %376 = vmatpush1.msra.mxu0 0.0
    %377 = vmatprep.subr.mxu0 0.0
    %378 = vmatpush1.msra.mxu0 0.0
    %379 = vmatprep.subr.mxu0 0.0
    %380 = vmatpush1.msra.mxu0 0.0
    %381 = vmatprep.subr.mxu0 0.0
    %382 = vmatpush1.msra.mxu0 0.0
    %383 = vmatprep.subr.mxu0 0.0
    %384 = vmatpush1.msra.mxu0 0.0
    %385 = vmatprep.subr.mxu0 0.0
    %386 = vmatpush1.msra.mxu0 0.0
    %387 = vmatprep.subr.mxu0 0.0
    %388 = vmatpush1.msra.mxu0 0.0
    %389 = vmatprep.subr.mxu0 0.0
    %390 = vmatpush1.msra.mxu0 0.0
    %391 = vmatprep.subr.mxu0 0.0
    %392 = vmatpush1.msra.mxu0 0.0
    %393 = vmatprep.subr.mxu0 0.0
    %394 = vmatpush1.msra.mxu0 0.0
    %395 = vmatprep.subr.mxu0 0.0
    %396 = vmatpush1.msra.mxu0 0.0
    %397 = vmatprep.subr.mxu0 0.0
    %398 = vmatpush1.msra.mxu0 0.0
    %399 = vmatprep.subr.mxu0 0.0
    %400 = vmatpush1.msra.mxu0 0.0
    %401 = vmatprep.subr.mxu0 0.0
    %402 = vmatpush1.msra.mxu0 0.0
    %403 = vmatprep.subr.mxu0 0.0
    %404 = vmatpush1.msra.mxu0 0.0
    %405 = vmatprep.subr.mxu0 0.0
    %406 = vmatpush1.msra.mxu0 0.0
    %407 = vmatprep.subr.mxu0 0.0
    %408 = vmatpush1.msra.mxu0 0.0
    %409 = vmatprep.subr.mxu0 0.0
    %410 = vmatpush1.msra.mxu0 0.0
    %411 = vmatprep.subr.mxu0 0.0
    %412 = vmatpush1.msra.mxu0 0.0
    %413 = vmatprep.subr.mxu0 0.0
    %414 = vmatpush1.msra.mxu0 0.0
    %415 = vmatprep.subr.mxu0 0.0
    %416 = vmatpush1.msra.mxu0 0.0
    %417 = vmatprep.subr.mxu0 0.0
    %418 = vmatpush1.msra.mxu0 0.0
    %419 = vmatprep.subr.mxu0 0.0
    %420 = vmatpush1.msra.mxu0 0.0
    %421 = vmatprep.mubr.f32.mxu0 0.0
    %422 = vmatmul.mubr.f32.gmra.mrb[0].mxu0 %v355
    %v423 = vpop.f32.mrb[0].mxu0
    %v424 = vadd.f32 0.0, %v423
    %v425 = vpop.f32.mrb[0].mxu0
    %426 = vdwg.mxu0
    %v427 = vld [vmem:[#allocation13] sm:$0x1]
    %v428 = vlaneseq
    %v429 = vshrl.u32 %v428, 7
    %v430 = vsub.s32 0, %v429
    %v431 = vrot.slane %v427, %v430
    %432 = vset.pattern.permute.xlu0 1
    %433 = vperm.xlu0 %432, %v332
    %v434 = vpop.permute.xlu0 %433
    %vm435 = vcmp.eq.s32.totalorder %v431, %v434
    %v436 = vsel %vm435, 1, 0
    %v437 = vcvt.s32.f32 %v436
    %v438 = vmul.f32 %v424, %v437
    %v439 = vadd.f32 %v112, %v438
    %v440 = vmin.f32 %v439, 1.0
    %441 = vst [vmem:[#allocation14] sm:$0x3] %v440
    // Predicated region
    $region58: #{tpu_custom_call.1} parent=1 // pred_check
      _
    $region59: #{tpu_custom_call.1} parent=1 // pred_check_branch
      %443 = sbr.rel (0) target = $region61
    $region60: #{tpu_custom_call.1} parent=1 // pred_region
      %s445 = ssub.s32 32, 32
      %446 = vsyncadd [#allocation4], %s445
      %s448 = sshll.u32 [#allocation14], 4
      %s449 = int_to_ptr.vmem [resolvable:$true] %s448
      %451 = dma.vmem_to_hbm [thread:$0]  %s449, 32, %s7, [#allocation4]
    $region61: #{tpu_custom_call.1} parent=1 // pred_fallthru
      _
    // Predicated region
    $region62: #{tpu_custom_call.1} parent=1 // pred_check
      _
    $region63: #{tpu_custom_call.1} parent=1 // pred_check_branch
      %453 = sbr.rel (0) target = $region65
    $region64: #{tpu_custom_call.1} parent=1 // pred_region
      %454 = dma.done [#allocation4], 32
    $region65: #{tpu_custom_call.1} parent=1 // pred_fallthru
      _
    %455 = vsyncpa [#allocation3], 1
    %456 = vsyncpa [#allocation6], 1
    %457 = vsyncpa [#allocation9], 1
    %458 = vsyncpa [#allocation12], 1
    %459 = vsyncpa [#allocation4], 1

</llo_original>
